<compile_context>
chip_gen: v5e
topology: v5e:2x2
jax: 0.10.0
libtpu: 0.0.40
codegen_flags: <defaults>
</compile_context>

<pallas_src>
import numpy as np
import jax
import jax.numpy as jnp
from jax import lax
from jax.experimental import pallas as pl
from jax.experimental.pallas import tpu as pltpu

NEG_SLOPE = 0.01  # nn.LeakyReLU default


def _leaky(x):
    return jnp.where(x > 0, x, NEG_SLOPE * x)


def _round_up(x, m):
    return ((x + m - 1) // m) * m


# ------------------------------ fused kernel ------------------------------- #

def _make_fused_kernel(H, W, Cin_k, Cp, TR, has_skip, fuse_c1, compute_dtype):
    """Kernel for one (batch image, TR-output-row tile)."""
    Wp = W + 2          # columns of the zero-padded (pad=2) intermediate grid
    R1 = TR + 2         # rows of the padded intermediate needed per output tile
    RS = R1 + 2         # rows of the padded *input* slab needed per tile

    def kernel(*refs):
        if has_skip:
            (xp_ref, w1_ref, b1_ref, w2_ref, b2_ref,
             ws_ref, bs_ref, o_ref, t_ref) = refs
        else:
            xp_ref, w1_ref, b1_ref, w2_ref, b2_ref, o_ref, t_ref = refs

        # first output row of this tile
        r0 = pl.multiple_of(pl.program_id(1) * TR, TR)

        # One dynamic-start load of the input slab; all taps are static slices.
        xslab = xp_ref[0, pl.ds(r0, RS), :, :]          # (RS, W+4, Cin_k) f32

        # ---- conv1 (3x3 VALID) + bias + LeakyReLU on an (R1, Wp) slab of the
        #      pad-2 intermediate grid.  2-D MXU matmuls, f32 accumulation.
        if fuse_c1:
            # K-fused: one (R1*Wp, 9*Cin_k) x (9*Cin_k, Cp) matmul.
            patches = jnp.concatenate(
                [xslab[di:di + R1, dj:dj + Wp, :]
                 for di in range(3) for dj in range(3)], axis=-1)
            patches = patches.reshape(R1 * Wp, 9 * Cin_k).astype(compute_dtype)
            acc = jnp.dot(patches, w1_ref[...],
                          preferred_element_type=jnp.float32)
        else:
            acc = jnp.zeros((R1 * Wp, Cp), jnp.float32)
            for di in range(3):
                for dj in range(3):
                    xs = xslab[di:di + R1, dj:dj + Wp, :]
                    xs = xs.reshape(R1 * Wp, Cin_k).astype(compute_dtype)
                    acc = acc + jnp.dot(xs, w1_ref[di * 3 + dj],
                                        preferred_element_type=jnp.float32)
        t = _leaky(acc + b1_ref[...]).reshape(R1, Wp, Cp)

        # zero the ring that is the transposed conv's implicit zero padding
        # (channel-independent 2-D mask, broadcast over lanes).
        rows = r0 + lax.broadcasted_iota(jnp.int32, (R1, Wp, 1), 0)
        cols = lax.broadcasted_iota(jnp.int32, (R1, Wp, 1), 1)
        inside = (rows >= 2) & (rows <= H - 1) & (cols >= 2) & (cols <= W - 1)
        t_ref[...] = jnp.where(inside, t, 0.0).astype(t_ref.dtype)  # VMEM only

        # ---- conv2: ConvTranspose2d(3x3, s=1, p=0) == VALID conv of the padded
        #      intermediate with the flipped kernel.  9 taps fused into ONE
        #      (TR*W, 9*Cp) x (9*Cp, Cp) MXU matmul (channel concat is 128-aligned).
        slab = jnp.concatenate(
            [t_ref[di:di + TR, dj:dj + W, :]
             for di in range(3) for dj in range(3)], axis=-1)
        out = jnp.dot(slab.reshape(TR * W, 9 * Cp), w2_ref[...],
                      preferred_element_type=jnp.float32)
        out = _leaky(out + b2_ref[...]).reshape(TR, W, Cp)

        # ---- skip path + residual add (1x1 conv if Cin != Cout, else VPU add)
        xc = xslab[2:2 + TR, 2:2 + W, :]
        if has_skip:
            idn = jnp.dot(xc.reshape(TR * W, Cin_k).astype(compute_dtype),
                          ws_ref[...], preferred_element_type=jnp.float32)
            idn = (idn + bs_ref[...]).reshape(TR, W, Cp)
        else:
            idn = xc.astype(jnp.float32)        # Cin_k == Cp (lane-padded) here

        o_ref[0] = (out + idn).astype(o_ref.dtype)

    return kernel


# --------------------------------- wrapper --------------------------------- #

def _pick_tile_rows(H, W, Cp, tile_h):
    """Largest divisor of H whose conv2 patch slab stays under ~6 MiB."""
    if tile_h is not None and H % tile_h == 0:
        return tile_h
    budget = 6 * 1024 * 1024
    best = 1
    for tr in range(1, min(H, 128) + 1):
        if H % tr == 0 and tr * W * 9 * Cp * 4 <= budget:
            best = tr
    return best


def residual_block_forward(x_nchw, params, *, tile_h=None,
                           compute_dtype=jnp.bfloat16):
    """ResidualBlock forward.  x: (N, Cin, H, W) float32 -> (N, Cout, H, W)."""
    N, Cin, H, W = x_nchw.shape
    w1, b1 = params["w1"], params["b1"]
    w2, b2 = params["w2"], params["b2"]
    Cout = w1.shape[0]
    has_skip = "ws" in params

    # lane-padded channel counts (lane-dense stores / full MXU N-dim).
    Cp = _round_up(Cout, 128)
    Cin_k = Cin if has_skip else Cp      # identity add needs Cin_k == Cp
    fuse_c1 = (Cin_k % 128 == 0)         # K-fuse conv1 only when lane-aligned

    TR = _pick_tile_rows(H, W, Cp, tile_h)

    # NHWC, zero-padded by 2 (and lane-padded channels in the identity case).
    # TODO(synk): the jnp.pad / final slice+transpose are extra HBM passes
    # outside the kernel; fold into neighbours when used inside a larger net.
    x_nhwc = jnp.transpose(x_nchw, (0, 2, 3, 1)).astype(jnp.float32)
    xp = jnp.pad(x_nhwc, ((0, 0), (2, 2), (2, 2), (0, Cin_k - Cin)))

    # weights as per-tap (ci, co) matrices, zero-padded to lane-aligned shapes
    w1t = jnp.transpose(w1, (2, 3, 1, 0)).reshape(9, Cin, Cout)
    w1t = jnp.pad(w1t, ((0, 0), (0, Cin_k - Cin), (0, Cp - Cout)))
    if fuse_c1:
        w1t = w1t.reshape(9 * Cin_k, Cp)

    w2t = jnp.transpose(jnp.flip(w2, (2, 3)), (2, 3, 0, 1)).reshape(9, Cout, Cout)
    w2t = jnp.pad(w2t, ((0, 0), (0, Cp - Cout), (0, Cp - Cout))).reshape(9 * Cp, Cp)

    pad_b = lambda b: jnp.pad(b.reshape(1, Cout),
                              ((0, 0), (0, Cp - Cout))).astype(jnp.float32)
    b1r, b2r = pad_b(b1), pad_b(b2)

    args = [xp, w1t.astype(compute_dtype), b1r, w2t.astype(compute_dtype), b2r]
    in_specs = [
        pl.BlockSpec((1, H + 4, W + 4, Cin_k), lambda b, r: (b, 0, 0, 0)),
        pl.BlockSpec(w1t.shape, (lambda b, r: (0, 0)) if fuse_c1
                     else (lambda b, r: (0, 0, 0))),
        pl.BlockSpec((1, Cp), lambda b, r: (0, 0)),
        pl.BlockSpec((9 * Cp, Cp), lambda b, r: (0, 0)),
        pl.BlockSpec((1, Cp), lambda b, r: (0, 0)),
    ]
    if has_skip:
        wst = jnp.pad(params["ws"][:, :, 0, 0].T, ((0, 0), (0, Cp - Cout)))
        bsr = pad_b(params["bs"])
        args += [wst.astype(compute_dtype), bsr]
        in_specs += [pl.BlockSpec((Cin, Cp), lambda b, r: (0, 0)),
                     pl.BlockSpec((1, Cp), lambda b, r: (0, 0))]

    # VMEM budget estimate -> explicit limit (clamped v7x-safe).
    isz = jnp.dtype(compute_dtype).itemsize
    est = (2 * (H + 4) * (W + 4) * Cin_k * 4            # resident padded image (x2 buf)
           + 2 * TR * W * Cp * 4                        # output block (x2 buf)
           + 2 * (9 * Cin_k * Cp + 9 * Cp * Cp + 3 * Cp) * isz
           + (TR + 2) * (W + 2) * Cp * isz              # intermediate scratch
           + (TR + 4) * (W + 4) * 9 * Cin_k * 4         # conv1 patch temps (upper bound)
           + TR * W * 9 * Cp * isz                      # conv2 patch slab
           + 4 * TR * W * Cp * 4)                       # accumulators / temps
    vmem_limit = int(min(max(2 * est, 32 << 20), 48 << 20))

    kernel = _make_fused_kernel(H, W, Cin_k, Cp, TR, has_skip, fuse_c1,
                                compute_dtype)

    y = pl.pallas_call(
        kernel,
        out_shape=jax.ShapeDtypeStruct((N, H, W, Cp), jnp.float32),
        grid=(N, H // TR),
        in_specs=in_specs,
        out_specs=pl.BlockSpec((1, TR, W, Cp), lambda b, r: (b, r, 0, 0)),
        scratch_shapes=[pltpu.VMEM((TR + 2, W + 2, Cp), compute_dtype)],
        compiler_params=pltpu.CompilerParams(
            dimension_semantics=("parallel", "parallel"),
            vmem_limit_bytes=vmem_limit),
    )(*args)

    y = y[..., :Cout]                                 # drop lane padding
    return jnp.transpose(y, (0, 3, 1, 2))             # back to NCHW


# --------------------------- params / reference ----------------------------- #

def init_params(key, in_ch, out_ch):
    """Deterministic synthetic init matching the PyTorch parameter shapes."""
    k1, k2, k3, k4, k5, k6 = jax.random.split(key, 6)

    def u(k, shape, fan_in):
        bound = 1.0 / np.sqrt(fan_in)
        return jax.random.uniform(k, shape, jnp.float32, -bound, bound)

    params = {
        "w1": u(k1, (out_ch, in_ch, 3, 3), in_ch * 9),    # Conv2d weight
        "b1": u(k2, (out_ch,), in_ch * 9),
        "w2": u(k3, (out_ch, out_ch, 3, 3), out_ch * 9),  # ConvTranspose2d (in,out,kH,kW)
        "b2": u(k4, (out_ch,), out_ch * 9),
    }
    if in_ch != out_ch:
        params["ws"] = u(k5, (out_ch, in_ch, 1, 1), in_ch)  # 1x1 skip conv
        params["bs"] = u(k6, (out_ch,), in_ch)
    return params


def reference_forward(x, params):
    """Pure-JAX reference (PyTorch semantics)."""
    w1, b1, w2, b2 = params["w1"], params["b1"], params["w2"], params["b2"]
    dn = ("NCHW", "OIHW", "NCHW")
    out = lax.conv_general_dilated(x, w1, (1, 1), "VALID", dimension_numbers=dn)
    out = _leaky(out + b1[None, :, None, None])
    out = lax.conv_general_dilated(out, jnp.flip(w2, (2, 3)), (1, 1),
                                   [(2, 2), (2, 2)],
                                   dimension_numbers=("NCHW", "IOHW", "NCHW"))
    out = _leaky(out + b2[None, :, None, None])
    if "ws" in params:
        identity = lax.conv_general_dilated(x, params["ws"], (1, 1), "VALID",
                                            dimension_numbers=dn)
        identity = identity + params["bs"][None, :, None, None]
    else:
        identity = x
    return out + identity


if __name__ == "__main__":
    key = jax.random.PRNGKey(0)
    kx, kp = jax.random.split(key)

    N, in_ch, out_ch, H, W = 2, 4, 8, 16, 16
    x = jax.random.normal(kx, (N, in_ch, H, W), jnp.float32)
    params = init_params(kp, in_ch, out_ch)
    y_ref = reference_forward(x, params)

    # f32 MXU operands: tight numerical check
    y32 = jax.block_until_ready(
        residual_block_forward(x, params, compute_dtype=jnp.float32))
    assert y32.shape == (N, out_ch, H, W), y32.shape
    np.testing.assert_allclose(np.asarray(y32), np.asarray(y_ref),
                               atol=5e-4, rtol=1e-3)

    # bf16 MXU operands, f32 accumulation: looser check
    ybf = jax.block_until_ready(
        residual_block_forward(x, params, compute_dtype=jnp.bfloat16))
    np.testing.assert_allclose(np.asarray(ybf), np.asarray(y_ref),
                               atol=5e-2, rtol=5e-2)

    # identity-skip branch (in_ch == out_ch): lane-padded residual add, K-fused conv1
    params_id = init_params(kp, out_ch, out_ch)
    x_id = jax.random.normal(kx, (N, out_ch, H, W), jnp.float32)
    y_id = jax.block_until_ready(
        residual_block_forward(x_id, params_id, compute_dtype=jnp.float32))
    np.testing.assert_allclose(np.asarray(y_id),
                               np.asarray(reference_forward(x_id, params_id)),
                               atol=5e-4, rtol=1e-3)

    print("KERNEL_OK")
</pallas_src>

<mosaic_0001>
module attributes {stable_mosaic.version = 11 : i64} {
  func.func @kernel(%arg0: i32, %arg1: i32, %arg2: memref<1x20x20x4xf32, #tpu.memory_space<vmem>>, %arg3: memref<9x4x128xf32, #tpu.memory_space<vmem>>, %arg4: memref<1x128xf32, #tpu.memory_space<vmem>>, %arg5: memref<1152x128xf32, #tpu.memory_space<vmem>>, %arg6: memref<1x128xf32, #tpu.memory_space<vmem>>, %arg7: memref<4x128xf32, #tpu.memory_space<vmem>>, %arg8: memref<1x128xf32, #tpu.memory_space<vmem>>, %arg9: memref<1x16x16x128xf32, #tpu.memory_space<vmem>>, %arg10: memref<18x18x128xf32, #tpu.memory_space<vmem>>) attributes {dimension_semantics = [#tpu.dimension_semantics<parallel>, #tpu.dimension_semantics<parallel>], iteration_bounds = array<i64: 2, 1>, scalar_prefetch = 0 : i64, scratch_operands = 1 : i64, tpu.core_type = #tpu.core_type<tc>, window_params = [{transform_indices = @transform_0, window_bounds = array<i64: 1, 20, 20, 4>}, {pipeline_mode = #tpu.pipeline_mode<synchronous>, transform_indices = @transform_1, window_bounds = array<i64: 9, 4, 128>}, {pipeline_mode = #tpu.pipeline_mode<synchronous>, transform_indices = @transform_2, window_bounds = array<i64: 1, 128>}, {pipeline_mode = #tpu.pipeline_mode<synchronous>, transform_indices = @transform_3, window_bounds = array<i64: 1152, 128>}, {pipeline_mode = #tpu.pipeline_mode<synchronous>, transform_indices = @transform_4, window_bounds = array<i64: 1, 128>}, {pipeline_mode = #tpu.pipeline_mode<synchronous>, transform_indices = @transform_5, window_bounds = array<i64: 4, 128>}, {pipeline_mode = #tpu.pipeline_mode<synchronous>, transform_indices = @transform_6, window_bounds = array<i64: 1, 128>}, {transform_indices = @transform_7, window_bounds = array<i64: 1, 16, 16, 128>}]} {
    %c16_i32 = arith.constant 16 : i32
    %0 = arith.muli %arg1, %c16_i32 : i32
    %1 = tpu.assume_multiple %0, 16 : i32
    %c0 = arith.constant 0 : index
    %2 = arith.index_cast %1 : i32 to index
    %c0_0 = arith.constant 0 : index
    %c0_1 = arith.constant 0 : index
    %3 = vector.load %arg2[%c0, %2, %c0_0, %c0_1] : memref<1x20x20x4xf32, #tpu.memory_space<vmem>>, vector<1x20x20x4xf32>
    %4 = vector.shape_cast %3 : vector<1x20x20x4xf32> to vector<20x20x4xf32>
    %cst = arith.constant 0.000000e+00 : f32
    %5 = vector.broadcast %cst : f32 to vector<324x128xf32>
    %6 = vector.extract_strided_slice %4 {offsets = [0, 0, 0], sizes = [18, 18, 4], strides = [1, 1, 1]} : vector<20x20x4xf32> to vector<18x18x4xf32>
    %7 = vector.shape_cast %6 : vector<18x18x4xf32> to vector<324x4xf32>
    %c0_2 = arith.constant 0 : index
    %c0_3 = arith.constant 0 : index
    %c0_4 = arith.constant 0 : index
    %8 = vector.load %arg3[%c0_2, %c0_3, %c0_4] : memref<9x4x128xf32, #tpu.memory_space<vmem>>, vector<1x4x128xf32>
    %9 = vector.shape_cast %8 : vector<1x4x128xf32> to vector<4x128xf32>
    %cst_5 = arith.constant dense<0.000000e+00> : vector<324x128xf32>
    %10 = tpu.matmul %7, %9, %cst_5 {dimension_numbers = #tpu.dot_dimension_numbers<[1], [0], [0], [1], [0, 0, 1, 1], [], []>} : vector<324x4xf32>, vector<4x128xf32>, vector<324x128xf32> -> vector<324x128xf32>
    %11 = arith.addf %5, %10 : vector<324x128xf32>
    %12 = vector.extract_strided_slice %4 {offsets = [0, 1, 0], sizes = [18, 18, 4], strides = [1, 1, 1]} : vector<20x20x4xf32> to vector<18x18x4xf32>
    %13 = vector.shape_cast %12 : vector<18x18x4xf32> to vector<324x4xf32>
    %c1 = arith.constant 1 : index
    %c0_6 = arith.constant 0 : index
    %c0_7 = arith.constant 0 : index
    %14 = vector.load %arg3[%c1, %c0_6, %c0_7] : memref<9x4x128xf32, #tpu.memory_space<vmem>>, vector<1x4x128xf32>
    %15 = vector.shape_cast %14 : vector<1x4x128xf32> to vector<4x128xf32>
    %cst_8 = arith.constant dense<0.000000e+00> : vector<324x128xf32>
    %16 = tpu.matmul %13, %15, %cst_8 {dimension_numbers = #tpu.dot_dimension_numbers<[1], [0], [0], [1], [0, 0, 1, 1], [], []>} : vector<324x4xf32>, vector<4x128xf32>, vector<324x128xf32> -> vector<324x128xf32>
    %17 = arith.addf %11, %16 : vector<324x128xf32>
    %18 = vector.extract_strided_slice %4 {offsets = [0, 2, 0], sizes = [18, 18, 4], strides = [1, 1, 1]} : vector<20x20x4xf32> to vector<18x18x4xf32>
    %19 = vector.shape_cast %18 : vector<18x18x4xf32> to vector<324x4xf32>
    %c2 = arith.constant 2 : index
    %c0_9 = arith.constant 0 : index
    %c0_10 = arith.constant 0 : index
    %20 = vector.load %arg3[%c2, %c0_9, %c0_10] : memref<9x4x128xf32, #tpu.memory_space<vmem>>, vector<1x4x128xf32>
    %21 = vector.shape_cast %20 : vector<1x4x128xf32> to vector<4x128xf32>
    %cst_11 = arith.constant dense<0.000000e+00> : vector<324x128xf32>
    %22 = tpu.matmul %19, %21, %cst_11 {dimension_numbers = #tpu.dot_dimension_numbers<[1], [0], [0], [1], [0, 0, 1, 1], [], []>} : vector<324x4xf32>, vector<4x128xf32>, vector<324x128xf32> -> vector<324x128xf32>
    %23 = arith.addf %17, %22 : vector<324x128xf32>
    %24 = vector.extract_strided_slice %4 {offsets = [1, 0, 0], sizes = [18, 18, 4], strides = [1, 1, 1]} : vector<20x20x4xf32> to vector<18x18x4xf32>
    %25 = vector.shape_cast %24 : vector<18x18x4xf32> to vector<324x4xf32>
    %c3 = arith.constant 3 : index
    %c0_12 = arith.constant 0 : index
    %c0_13 = arith.constant 0 : index
    %26 = vector.load %arg3[%c3, %c0_12, %c0_13] : memref<9x4x128xf32, #tpu.memory_space<vmem>>, vector<1x4x128xf32>
    %27 = vector.shape_cast %26 : vector<1x4x128xf32> to vector<4x128xf32>
    %cst_14 = arith.constant dense<0.000000e+00> : vector<324x128xf32>
    %28 = tpu.matmul %25, %27, %cst_14 {dimension_numbers = #tpu.dot_dimension_numbers<[1], [0], [0], [1], [0, 0, 1, 1], [], []>} : vector<324x4xf32>, vector<4x128xf32>, vector<324x128xf32> -> vector<324x128xf32>
    %29 = arith.addf %23, %28 : vector<324x128xf32>
    %30 = vector.extract_strided_slice %4 {offsets = [1, 1, 0], sizes = [18, 18, 4], strides = [1, 1, 1]} : vector<20x20x4xf32> to vector<18x18x4xf32>
    %31 = vector.shape_cast %30 : vector<18x18x4xf32> to vector<324x4xf32>
    %c4 = arith.constant 4 : index
    %c0_15 = arith.constant 0 : index
    %c0_16 = arith.constant 0 : index
    %32 = vector.load %arg3[%c4, %c0_15, %c0_16] : memref<9x4x128xf32, #tpu.memory_space<vmem>>, vector<1x4x128xf32>
    %33 = vector.shape_cast %32 : vector<1x4x128xf32> to vector<4x128xf32>
    %cst_17 = arith.constant dense<0.000000e+00> : vector<324x128xf32>
    %34 = tpu.matmul %31, %33, %cst_17 {dimension_numbers = #tpu.dot_dimension_numbers<[1], [0], [0], [1], [0, 0, 1, 1], [], []>} : vector<324x4xf32>, vector<4x128xf32>, vector<324x128xf32> -> vector<324x128xf32>
    %35 = arith.addf %29, %34 : vector<324x128xf32>
    %36 = vector.extract_strided_slice %4 {offsets = [1, 2, 0], sizes = [18, 18, 4], strides = [1, 1, 1]} : vector<20x20x4xf32> to vector<18x18x4xf32>
    %37 = vector.shape_cast %36 : vector<18x18x4xf32> to vector<324x4xf32>
    %c5 = arith.constant 5 : index
    %c0_18 = arith.constant 0 : index
    %c0_19 = arith.constant 0 : index
    %38 = vector.load %arg3[%c5, %c0_18, %c0_19] : memref<9x4x128xf32, #tpu.memory_space<vmem>>, vector<1x4x128xf32>
    %39 = vector.shape_cast %38 : vector<1x4x128xf32> to vector<4x128xf32>
    %cst_20 = arith.constant dense<0.000000e+00> : vector<324x128xf32>
    %40 = tpu.matmul %37, %39, %cst_20 {dimension_numbers = #tpu.dot_dimension_numbers<[1], [0], [0], [1], [0, 0, 1, 1], [], []>} : vector<324x4xf32>, vector<4x128xf32>, vector<324x128xf32> -> vector<324x128xf32>
    %41 = arith.addf %35, %40 : vector<324x128xf32>
    %42 = vector.extract_strided_slice %4 {offsets = [2, 0, 0], sizes = [18, 18, 4], strides = [1, 1, 1]} : vector<20x20x4xf32> to vector<18x18x4xf32>
    %43 = vector.shape_cast %42 : vector<18x18x4xf32> to vector<324x4xf32>
    %c6 = arith.constant 6 : index
    %c0_21 = arith.constant 0 : index
    %c0_22 = arith.constant 0 : index
    %44 = vector.load %arg3[%c6, %c0_21, %c0_22] : memref<9x4x128xf32, #tpu.memory_space<vmem>>, vector<1x4x128xf32>
    %45 = vector.shape_cast %44 : vector<1x4x128xf32> to vector<4x128xf32>
    %cst_23 = arith.constant dense<0.000000e+00> : vector<324x128xf32>
    %46 = tpu.matmul %43, %45, %cst_23 {dimension_numbers = #tpu.dot_dimension_numbers<[1], [0], [0], [1], [0, 0, 1, 1], [], []>} : vector<324x4xf32>, vector<4x128xf32>, vector<324x128xf32> -> vector<324x128xf32>
    %47 = arith.addf %41, %46 : vector<324x128xf32>
    %48 = vector.extract_strided_slice %4 {offsets = [2, 1, 0], sizes = [18, 18, 4], strides = [1, 1, 1]} : vector<20x20x4xf32> to vector<18x18x4xf32>
    %49 = vector.shape_cast %48 : vector<18x18x4xf32> to vector<324x4xf32>
    %c7 = arith.constant 7 : index
    %c0_24 = arith.constant 0 : index
    %c0_25 = arith.constant 0 : index
    %50 = vector.load %arg3[%c7, %c0_24, %c0_25] : memref<9x4x128xf32, #tpu.memory_space<vmem>>, vector<1x4x128xf32>
    %51 = vector.shape_cast %50 : vector<1x4x128xf32> to vector<4x128xf32>
    %cst_26 = arith.constant dense<0.000000e+00> : vector<324x128xf32>
    %52 = tpu.matmul %49, %51, %cst_26 {dimension_numbers = #tpu.dot_dimension_numbers<[1], [0], [0], [1], [0, 0, 1, 1], [], []>} : vector<324x4xf32>, vector<4x128xf32>, vector<324x128xf32> -> vector<324x128xf32>
    %53 = arith.addf %47, %52 : vector<324x128xf32>
    %54 = vector.extract_strided_slice %4 {offsets = [2, 2, 0], sizes = [18, 18, 4], strides = [1, 1, 1]} : vector<20x20x4xf32> to vector<18x18x4xf32>
    %55 = vector.shape_cast %54 : vector<18x18x4xf32> to vector<324x4xf32>
    %c8 = arith.constant 8 : index
    %c0_27 = arith.constant 0 : index
    %c0_28 = arith.constant 0 : index
    %56 = vector.load %arg3[%c8, %c0_27, %c0_28] : memref<9x4x128xf32, #tpu.memory_space<vmem>>, vector<1x4x128xf32>
    %57 = vector.shape_cast %56 : vector<1x4x128xf32> to vector<4x128xf32>
    %cst_29 = arith.constant dense<0.000000e+00> : vector<324x128xf32>
    %58 = tpu.matmul %55, %57, %cst_29 {dimension_numbers = #tpu.dot_dimension_numbers<[1], [0], [0], [1], [0, 0, 1, 1], [], []>} : vector<324x4xf32>, vector<4x128xf32>, vector<324x128xf32> -> vector<324x128xf32>
    %59 = arith.addf %53, %58 : vector<324x128xf32>
    %c0_30 = arith.constant 0 : index
    %c0_31 = arith.constant 0 : index
    %60 = vector.load %arg4[%c0_30, %c0_31] : memref<1x128xf32, #tpu.memory_space<vmem>>, vector<1x128xf32>
    %61 = vector.broadcast %60 : vector<1x128xf32> to vector<324x128xf32>
    %62 = arith.addf %59, %61 : vector<324x128xf32>
    %cst_32 = arith.constant 0.000000e+00 : f32
    %63 = vector.broadcast %cst_32 : f32 to vector<324x128xf32>
    %64 = arith.cmpf ogt, %62, %63 : vector<324x128xf32>
    %cst_33 = arith.constant 0.00999999977 : f32
    %65 = vector.broadcast %cst_33 : f32 to vector<324x128xf32>
    %66 = arith.mulf %65, %62 : vector<324x128xf32>
    %67 = arith.select %64, %62, %66 : vector<324x128xi1>, vector<324x128xf32>
    %68 = vector.shape_cast %67 : vector<324x128xf32> to vector<18x18x128xf32>
    %69 = tpu.iota {dimensions = array<i32: 0>} : vector<18x18x1xi32>
    %70 = vector.broadcast %1 : i32 to vector<18x18x1xi32>
    %71 = arith.addi %70, %69 : vector<18x18x1xi32>
    %72 = tpu.iota {dimensions = array<i32: 1>} : vector<18x18x1xi32>
    %c2_i32 = arith.constant 2 : i32
    %73 = vector.broadcast %c2_i32 : i32 to vector<18x18x1xi32>
    %74 = arith.cmpi sge, %71, %73 : vector<18x18x1xi32>
    %c15_i32 = arith.constant 15 : i32
    %75 = vector.broadcast %c15_i32 : i32 to vector<18x18x1xi32>
    %76 = arith.cmpi sle, %71, %75 : vector<18x18x1xi32>
    %77 = arith.andi %74, %76 : vector<18x18x1xi1>
    %c2_i32_34 = arith.constant 2 : i32
    %78 = vector.broadcast %c2_i32_34 : i32 to vector<18x18x1xi32>
    %79 = arith.cmpi sge, %72, %78 : vector<18x18x1xi32>
    %80 = arith.andi %77, %79 : vector<18x18x1xi1>
    %c15_i32_35 = arith.constant 15 : i32
    %81 = vector.broadcast %c15_i32_35 : i32 to vector<18x18x1xi32>
    %82 = arith.cmpi sle, %72, %81 : vector<18x18x1xi32>
    %83 = arith.andi %80, %82 : vector<18x18x1xi1>
    %cst_36 = arith.constant 0.000000e+00 : f32
    %84 = vector.shape_cast %83 : vector<18x18x1xi1> to vector<18x18x1xi1>
    %85 = vector.broadcast %84 : vector<18x18x1xi1> to vector<18x18x128xi1>
    %86 = vector.broadcast %cst_36 : f32 to vector<18x18x128xf32>
    %87 = arith.select %85, %68, %86 : vector<18x18x128xi1>, vector<18x18x128xf32>
    %c0_37 = arith.constant 0 : index
    %c0_38 = arith.constant 0 : index
    %c0_39 = arith.constant 0 : index
    %88 = vector.load %arg10[%c0_37, %c0_38, %c0_39] : memref<18x18x128xf32, #tpu.memory_space<vmem>>, vector<18x18x128xf32>
    tpu.vector_store %arg10[%c0_37, %c0_38, %c0_39], %87 {strides = array<i32>} : memref<18x18x128xf32, #tpu.memory_space<vmem>>, vector<18x18x128xf32>,
    %c0_40 = arith.constant 0 : index
    %c0_41 = arith.constant 0 : index
    %c0_42 = arith.constant 0 : index
    %89 = vector.load %arg10[%c0_40, %c0_41, %c0_42] : memref<18x18x128xf32, #tpu.memory_space<vmem>>, vector<16x16x128xf32>
    %c0_43 = arith.constant 0 : index
    %c1_44 = arith.constant 1 : index
    %c0_45 = arith.constant 0 : index
    %90 = vector.load %arg10[%c0_43, %c1_44, %c0_45] : memref<18x18x128xf32, #tpu.memory_space<vmem>>, vector<16x16x128xf32>
    %c0_46 = arith.constant 0 : index
    %c2_47 = arith.constant 2 : index
    %c0_48 = arith.constant 0 : index
    %91 = vector.load %arg10[%c0_46, %c2_47, %c0_48] : memref<18x18x128xf32, #tpu.memory_space<vmem>>, vector<16x16x128xf32>
    %c1_49 = arith.constant 1 : index
    %c0_50 = arith.constant 0 : index
    %c0_51 = arith.constant 0 : index
    %92 = vector.load %arg10[%c1_49, %c0_50, %c0_51] : memref<18x18x128xf32, #tpu.memory_space<vmem>>, vector<16x16x128xf32>
    %c1_52 = arith.constant 1 : index
    %c1_53 = arith.constant 1 : index
    %c0_54 = arith.constant 0 : index
    %93 = vector.load %arg10[%c1_52, %c1_53, %c0_54] : memref<18x18x128xf32, #tpu.memory_space<vmem>>, vector<16x16x128xf32>
    %c1_55 = arith.constant 1 : index
    %c2_56 = arith.constant 2 : index
    %c0_57 = arith.constant 0 : index
    %94 = vector.load %arg10[%c1_55, %c2_56, %c0_57] : memref<18x18x128xf32, #tpu.memory_space<vmem>>, vector<16x16x128xf32>
    %c2_58 = arith.constant 2 : index
    %c0_59 = arith.constant 0 : index
    %c0_60 = arith.constant 0 : index
    %95 = vector.load %arg10[%c2_58, %c0_59, %c0_60] : memref<18x18x128xf32, #tpu.memory_space<vmem>>, vector<16x16x128xf32>
    %c2_61 = arith.constant 2 : index
    %c1_62 = arith.constant 1 : index
    %c0_63 = arith.constant 0 : index
    %96 = vector.load %arg10[%c2_61, %c1_62, %c0_63] : memref<18x18x128xf32, #tpu.memory_space<vmem>>, vector<16x16x128xf32>
    %c2_64 = arith.constant 2 : index
    %c2_65 = arith.constant 2 : index
    %c0_66 = arith.constant 0 : index
    %97 = vector.load %arg10[%c2_64, %c2_65, %c0_66] : memref<18x18x128xf32, #tpu.memory_space<vmem>>, vector<16x16x128xf32>
    %98 = tpu.concatenate %89, %90, %91, %92, %93, %94, %95, %96, %97 in 2 : vector<16x16x128xf32>, vector<16x16x128xf32>, vector<16x16x128xf32>, vector<16x16x128xf32>, vector<16x16x128xf32>, vector<16x16x128xf32>, vector<16x16x128xf32>, vector<16x16x128xf32>, vector<16x16x128xf32> -> vector<16x16x1152xf32>
    %99 = vector.shape_cast %98 : vector<16x16x1152xf32> to vector<256x1152xf32>
    %c0_67 = arith.constant 0 : index
    %c0_68 = arith.constant 0 : index
    %100 = vector.load %arg5[%c0_67, %c0_68] : memref<1152x128xf32, #tpu.memory_space<vmem>>, vector<1152x128xf32>
    %cst_69 = arith.constant dense<0.000000e+00> : vector<256x128xf32>
    %101 = tpu.matmul %99, %100, %cst_69 {dimension_numbers = #tpu.dot_dimension_numbers<[1], [0], [0], [1], [0, 0, 1, 1], [], []>} : vector<256x1152xf32>, vector<1152x128xf32>, vector<256x128xf32> -> vector<256x128xf32>
    %c0_70 = arith.constant 0 : index
    %c0_71 = arith.constant 0 : index
    %102 = vector.load %arg6[%c0_70, %c0_71] : memref<1x128xf32, #tpu.memory_space<vmem>>, vector<1x128xf32>
    %103 = vector.broadcast %102 : vector<1x128xf32> to vector<256x128xf32>
    %104 = arith.addf %101, %103 : vector<256x128xf32>
    %cst_72 = arith.constant 0.000000e+00 : f32
    %105 = vector.broadcast %cst_72 : f32 to vector<256x128xf32>
    %106 = arith.cmpf ogt, %104, %105 : vector<256x128xf32>
    %cst_73 = arith.constant 0.00999999977 : f32
    %107 = vector.broadcast %cst_73 : f32 to vector<256x128xf32>
    %108 = arith.mulf %107, %104 : vector<256x128xf32>
    %109 = arith.select %106, %104, %108 : vector<256x128xi1>, vector<256x128xf32>
    %110 = vector.shape_cast %109 : vector<256x128xf32> to vector<16x16x128xf32>
    %111 = vector.extract_strided_slice %4 {offsets = [2, 2, 0], sizes = [16, 16, 4], strides = [1, 1, 1]} : vector<20x20x4xf32> to vector<16x16x4xf32>
    %112 = vector.shape_cast %111 : vector<16x16x4xf32> to vector<256x4xf32>
    %c0_74 = arith.constant 0 : index
    %c0_75 = arith.constant 0 : index
    %113 = vector.load %arg7[%c0_74, %c0_75] : memref<4x128xf32, #tpu.memory_space<vmem>>, vector<4x128xf32>
    %cst_76 = arith.constant dense<0.000000e+00> : vector<256x128xf32>
    %114 = tpu.matmul %112, %113, %cst_76 {dimension_numbers = #tpu.dot_dimension_numbers<[1], [0], [0], [1], [0, 0, 1, 1], [], []>} : vector<256x4xf32>, vector<4x128xf32>, vector<256x128xf32> -> vector<256x128xf32>
    %c0_77 = arith.constant 0 : index
    %c0_78 = arith.constant 0 : index
    %115 = vector.load %arg8[%c0_77, %c0_78] : memref<1x128xf32, #tpu.memory_space<vmem>>, vector<1x128xf32>
    %116 = vector.broadcast %115 : vector<1x128xf32> to vector<256x128xf32>
    %117 = arith.addf %114, %116 : vector<256x128xf32>
    %118 = vector.shape_cast %117 : vector<256x128xf32> to vector<16x16x128xf32>
    %119 = arith.addf %110, %118 : vector<16x16x128xf32>
    %c0_79 = arith.constant 0 : index
    %c0_80 = arith.constant 0 : index
    %c0_81 = arith.constant 0 : index
    %c0_82 = arith.constant 0 : index
    %120 = vector.load %arg9[%c0_79, %c0_80, %c0_81, %c0_82] : memref<1x16x16x128xf32, #tpu.memory_space<vmem>>, vector<1x16x16x128xf32>
    %121 = vector.shape_cast %120 : vector<1x16x16x128xf32> to vector<16x16x128xf32>
    %122 = vector.shape_cast %119 : vector<16x16x128xf32> to vector<1x16x16x128xf32>
    tpu.vector_store %arg9[%c0_79, %c0_80, %c0_81, %c0_82], %122 {strides = array<i32>} : memref<1x16x16x128xf32, #tpu.memory_space<vmem>>, vector<1x16x16x128xf32>,
    return
  }
  func.func @transform_0(%arg0: i32, %arg1: i32) -> (i32, i32, i32, i32) {
    %c0_i32 = arith.constant 0 : i32
    %c0_i32_0 = arith.constant 0 : i32
    %c0_i32_1 = arith.constant 0 : i32
    %c0_i32_2 = arith.constant 0 : i32
    return %arg0, %c0_i32, %c0_i32_0, %c0_i32_1 : i32, i32, i32, i32
  }
  func.func @transform_1(%arg0: i32, %arg1: i32) -> (i32, i32, i32) {
    %c0_i32 = arith.constant 0 : i32
    %c0_i32_0 = arith.constant 0 : i32
    %c0_i32_1 = arith.constant 0 : i32
    %c0_i32_2 = arith.constant 0 : i32
    return %c0_i32, %c0_i32_0, %c0_i32_1 : i32, i32, i32
  }
  func.func @transform_2(%arg0: i32, %arg1: i32) -> (i32, i32) {
    %c0_i32 = arith.constant 0 : i32
    %c0_i32_0 = arith.constant 0 : i32
    %c0_i32_1 = arith.constant 0 : i32
    return %c0_i32, %c0_i32_0 : i32, i32
  }
  func.func @transform_3(%arg0: i32, %arg1: i32) -> (i32, i32) {
    %c0_i32 = arith.constant 0 : i32
    %c0_i32_0 = arith.constant 0 : i32
    %c0_i32_1 = arith.constant 0 : i32
    return %c0_i32, %c0_i32_0 : i32, i32
  }
  func.func @transform_4(%arg0: i32, %arg1: i32) -> (i32, i32) {
    %c0_i32 = arith.constant 0 : i32
    %c0_i32_0 = arith.constant 0 : i32
    %c0_i32_1 = arith.constant 0 : i32
    return %c0_i32, %c0_i32_0 : i32, i32
  }
  func.func @transform_5(%arg0: i32, %arg1: i32) -> (i32, i32) {
    %c0_i32 = arith.constant 0 : i32
    %c0_i32_0 = arith.constant 0 : i32
    %c0_i32_1 = arith.constant 0 : i32
    return %c0_i32, %c0_i32_0 : i32, i32
  }
  func.func @transform_6(%arg0: i32, %arg1: i32) -> (i32, i32) {
    %c0_i32 = arith.constant 0 : i32
    %c0_i32_0 = arith.constant 0 : i32
    %c0_i32_1 = arith.constant 0 : i32
    return %c0_i32, %c0_i32_0 : i32, i32
  }
  func.func @transform_7(%arg0: i32, %arg1: i32) -> (i32, i32, i32, i32) {
    %c0_i32 = arith.constant 0 : i32
    %c0_i32_0 = arith.constant 0 : i32
    %c0_i32_1 = arith.constant 0 : i32
    return %arg0, %arg1, %c0_i32, %c0_i32_0 : i32, i32, i32, i32
  }
}

</mosaic_0001>

<llo_original>
// kernel: tpu_custom_call.1
$region0: #{tpu_custom_call.1}
  #allocation0 [shape = 'u32[]', space=smem, size = 0x4, offset = 0x4, fixed_abs, tag = 'smem constant byte address 0x4 - core index']
  #allocation1 [shape = 'u32[72,128]{1,0:T(1,128)}', space=vmem, size = 0x9000, scoped, tag = 'internal scratch']
  #allocation2 [shape = 'f32[18,18,128]{2,1,0:T(8,128)}', space=vmem, size = 0x36000, scoped, tag = 'scratch operand']
  %s0 = inlined_call_operand.vmem [shape: f32[2,20,20,4], index: 0, kind: input, shape index: {}]
  %s1 = inlined_call_operand.vmem [shape: f32[9,4,128], index: 1, kind: input, shape index: {}]
  %s2 = inlined_call_operand.vmem [shape: f32[1,128], index: 2, kind: input, shape index: {}]
  %s3 = inlined_call_operand.hbm [shape: f32[1152,128], index: 3, kind: input, shape index: {}]
  %s4 = inlined_call_operand.vmem [shape: f32[1,128], index: 4, kind: input, shape index: {}]
  %s5 = inlined_call_operand.vmem [shape: f32[4,128], index: 5, kind: input, shape index: {}]
  %s6 = inlined_call_operand.vmem [shape: f32[1,128], index: 6, kind: input, shape index: {}]
  %s7 = inlined_call_operand.hbm [shape: f32[2,16,16,128], index: 7, kind: output, shape index: {}]
  %s8 = sld [smem:[#allocation0]]
  $region65: #{tpu_custom_call.1} parent=0
    _
  %s10 = ssub.s32 1, %s8
  %s11 = scalar_select 0, %s10, %s8
  $region1: #{tpu_custom_call.1} parent=0
    #allocation3 [shape = 'u8[589824]{0}', space=vmem, size = 0x90000, scoped, tag = 'input window, operand 3, single buffered']
    #allocation4 [shape = 's32[2]{0}', space=sflag, size = 0x8, scoped, tag = 'scoped memory for tpu_custom_call.1']
    #allocation5 [shape = 's32[2]{0}', space=sflag, size = 0x8, scoped, tag = 'scoped memory for tpu_custom_call.1']
    #allocation6 [shape = 'u8[262144]{0}', space=vmem, size = 0x40000, scoped, tag = 'output window, operand 0']
    %12 = vsyncpa [#allocation4], 0
    %13 = vsyncpa [#allocation5], 0
    %s14 = scalar_lea.sflag [#allocation5], 1
    %15 = vsyncpa %s14, 0
    loop: start=0, step=1, limit=4
    $region2: #{tpu_custom_call.1} parent=1 // loop_pre_header
      _
    $region3: #{tpu_custom_call.1} parent=1 // loop_header
      %s17 = sphi 0, %s21
      %p18 = scmp.ge.s32.totalorder %s17, 4
      %s24 = sphi 0, %s36
      %s25 = sphi 0, %s32
      %s26 = sphi 0, %s24
      %s27 = sphi 0, %s25
      %s28 = sphi 0, %s26
      %s29 = sphi 0, %s27
      %s39 = sphi 0, %s41
      %s42 = sphi 0, %s39
      %s43 = sphi 0, %s42
      %s59 = sphi 0, %s43
      %s63 = sphi 0, %s63
      %s65 = sphi 0, %s63
      %s66 = sphi 0, %s65
      %s80 = sphi 0, %s66
      %s84 = sphi 0, %s84
      %s86 = sphi 0, %s84
      %s87 = sphi 0, %s86
      %s101 = sphi 0, %s87
      %s105 = sphi 0, %s105
      %s107 = sphi 0, %s105
      %s108 = sphi 0, %s107
      %s122 = sphi 0, %s108
      %s126 = sphi 0, %s126
      %s128 = sphi 0, %s126
      %s129 = sphi 0, %s128
      %s143 = sphi 0, %s129
      %s147 = sphi 0, %s147
      %s149 = sphi 0, %s147
      %s150 = sphi 0, %s149
      %s164 = sphi 0, %s150
      %s168 = sphi 0, %s168
      %s170 = sphi 0, %s168
      %s171 = sphi 0, %s170
      %s185 = sphi 0, %s171
      %s193 = sphi 0, %s195
      %s196 = sphi 0, %s193
      %s197 = sphi 0, %s196
      %s213 = sphi 0, %s197
    $region4: #{tpu_custom_call.1} parent=1 // loop_header_branch
      %20 = sbr.rel (%p18) target = $region8
    $region5: #{tpu_custom_call.1} parent=1 // loop_body
      %s22 = ssub.s32 %s17, 1
      %s23 = ssub.s32 %s17, 2
      %s30 = sadd.s32 1, %s25
      %p31 = scmp.ge.s32.totalorder %s30, 1
      %s32 = scalar_select %p31, 0, %s30
      %s33 = sadd.s32 1, %s24
      %s34 = scalar_select %p31, %s33, %s24
      %p35 = scmp.ge.s32.totalorder %s34, 2
      %s36 = scalar_select %p35, 0, %s34
      %s37 = ssub.s32 %s24, %s36
      %p38 = scmp.eq.s32.totalorder %s37, 0
      %s40 = sadd.s32 %s39, 1
      %s41 = scalar_select %p38, %s39, %s40
      %p44 = pneg %p38
      %p45 = scmp.eq.s32.totalorder %s17, 1
      %p46 = por %p44, %p45
      %p47 = scmp.ne.s32.totalorder %s39, %s42
      %p48 = scmp.eq.s32.totalorder %s17, 0
      %p49 = por %p47, %p48
      %p50 = scmp.ne.s32.totalorder %s39, %s42
      %p51 = scmp.eq.s32.totalorder %s22, 1
      %p52 = por %p50, %p51
      %p53 = scmp.ne.s32.totalorder %s42, %s43
      %p54 = scmp.eq.s32.totalorder %s22, 0
      %p55 = por %p53, %p54
      %p56 = scmp.ne.s32.totalorder %s42, %s43
      %p57 = scmp.eq.s32.totalorder %s23, 1
      %p58 = por %p56, %p57
      %p60 = scmp.ne.s32.totalorder %s43, %s59
      %p61 = scmp.eq.s32.totalorder %s23, 0
      %p62 = por %p60, %p61
      %s64 = sadd.s32 %s63, 1
      %p67 = scmp.eq.s32.totalorder %s17, 1
      %p68 = scmp.ne.s32.totalorder %s63, %s65
      %p69 = scmp.eq.s32.totalorder %s17, 0
      %p70 = por %p68, %p69
      %p71 = scmp.ne.s32.totalorder %s63, %s65
      %p72 = scmp.eq.s32.totalorder %s22, 1
      %p73 = por %p71, %p72
      %p74 = scmp.ne.s32.totalorder %s65, %s66
      %p75 = scmp.eq.s32.totalorder %s22, 0
      %p76 = por %p74, %p75
      %p77 = scmp.ne.s32.totalorder %s65, %s66
      %p78 = scmp.eq.s32.totalorder %s23, 1
      %p79 = por %p77, %p78
      %p81 = scmp.ne.s32.totalorder %s66, %s80
      %p82 = scmp.eq.s32.totalorder %s23, 0
      %p83 = por %p81, %p82
      %s85 = sadd.s32 %s84, 1
      %p88 = scmp.eq.s32.totalorder %s17, 1
      %p89 = scmp.ne.s32.totalorder %s84, %s86
      %p90 = scmp.eq.s32.totalorder %s17, 0
      %p91 = por %p89, %p90
      %p92 = scmp.ne.s32.totalorder %s84, %s86
      %p93 = scmp.eq.s32.totalorder %s22, 1
      %p94 = por %p92, %p93
      %p95 = scmp.ne.s32.totalorder %s86, %s87
      %p96 = scmp.eq.s32.totalorder %s22, 0
      %p97 = por %p95, %p96
      %p98 = scmp.ne.s32.totalorder %s86, %s87
      %p99 = scmp.eq.s32.totalorder %s23, 1
      %p100 = por %p98, %p99
      %p102 = scmp.ne.s32.totalorder %s87, %s101
      %p103 = scmp.eq.s32.totalorder %s23, 0
      %p104 = por %p102, %p103
      %s106 = sadd.s32 %s105, 1
      %p109 = scmp.eq.s32.totalorder %s17, 1
      %p110 = scmp.ne.s32.totalorder %s105, %s107
      %p111 = scmp.eq.s32.totalorder %s17, 0
      %p112 = por %p110, %p111
      %p113 = scmp.ne.s32.totalorder %s105, %s107
      %p114 = scmp.eq.s32.totalorder %s22, 1
      %p115 = por %p113, %p114
      %p116 = scmp.ne.s32.totalorder %s107, %s108
      %p117 = scmp.eq.s32.totalorder %s22, 0
      %p118 = por %p116, %p117
      %p119 = scmp.ne.s32.totalorder %s107, %s108
      %p120 = scmp.eq.s32.totalorder %s23, 1
      %p121 = por %p119, %p120
      %p123 = scmp.ne.s32.totalorder %s108, %s122
      %p124 = scmp.eq.s32.totalorder %s23, 0
      %p125 = por %p123, %p124
      %s127 = sadd.s32 %s126, 1
      %p130 = scmp.eq.s32.totalorder %s17, 1
      %p131 = scmp.ne.s32.totalorder %s126, %s128
      %p132 = scmp.eq.s32.totalorder %s17, 0
      %p133 = por %p131, %p132
      %p134 = scmp.ne.s32.totalorder %s126, %s128
      %p135 = scmp.eq.s32.totalorder %s22, 1
      %p136 = por %p134, %p135
      %p137 = scmp.ne.s32.totalorder %s128, %s129
      %p138 = scmp.eq.s32.totalorder %s22, 0
      %p139 = por %p137, %p138
      %p140 = scmp.ne.s32.totalorder %s128, %s129
      %p141 = scmp.eq.s32.totalorder %s23, 1
      %p142 = por %p140, %p141
      %p144 = scmp.ne.s32.totalorder %s129, %s143
      %p145 = scmp.eq.s32.totalorder %s23, 0
      %p146 = por %p144, %p145
      %s148 = sadd.s32 %s147, 1
      %p151 = scmp.eq.s32.totalorder %s17, 1
      %p152 = scmp.ne.s32.totalorder %s147, %s149
      %p153 = scmp.eq.s32.totalorder %s17, 0
      %p154 = por %p152, %p153
      %p155 = scmp.ne.s32.totalorder %s147, %s149
      %p156 = scmp.eq.s32.totalorder %s22, 1
      %p157 = por %p155, %p156
      %p158 = scmp.ne.s32.totalorder %s149, %s150
      %p159 = scmp.eq.s32.totalorder %s22, 0
      %p160 = por %p158, %p159
      %p161 = scmp.ne.s32.totalorder %s149, %s150
      %p162 = scmp.eq.s32.totalorder %s23, 1
      %p163 = por %p161, %p162
      %p165 = scmp.ne.s32.totalorder %s150, %s164
      %p166 = scmp.eq.s32.totalorder %s23, 0
      %p167 = por %p165, %p166
      %s169 = sadd.s32 %s168, 1
      %p172 = scmp.eq.s32.totalorder %s17, 1
      %p173 = scmp.ne.s32.totalorder %s168, %s170
      %p174 = scmp.eq.s32.totalorder %s17, 0
      %p175 = por %p173, %p174
      %p176 = scmp.ne.s32.totalorder %s168, %s170
      %p177 = scmp.eq.s32.totalorder %s22, 1
      %p178 = por %p176, %p177
      %p179 = scmp.ne.s32.totalorder %s170, %s171
      %p180 = scmp.eq.s32.totalorder %s22, 0
      %p181 = por %p179, %p180
      %p182 = scmp.ne.s32.totalorder %s170, %s171
      %p183 = scmp.eq.s32.totalorder %s23, 1
      %p184 = por %p182, %p183
      %p186 = scmp.ne.s32.totalorder %s171, %s185
      %p187 = scmp.eq.s32.totalorder %s23, 0
      %p188 = por %p186, %p187
      %s189 = ssub.s32 %s24, %s36
      %s190 = ssub.s32 %s25, %s32
      %s191 = sor.u32 %s189, %s190
      %p192 = scmp.eq.s32.totalorder %s191, 0
      %s194 = sadd.s32 %s193, 1
      %s195 = scalar_select %p192, %s193, %s194
      %p198 = pneg %p192
      %p199 = scmp.eq.s32.totalorder %s17, 1
      %p200 = por %p198, %p199
      %p201 = scmp.ne.s32.totalorder %s193, %s196
      %p202 = scmp.eq.s32.totalorder %s17, 0
      %p203 = por %p201, %p202
      %p204 = scmp.ne.s32.totalorder %s193, %s196
      %p205 = scmp.eq.s32.totalorder %s22, 1
      %p206 = por %p204, %p205
      %p207 = scmp.ne.s32.totalorder %s196, %s197
      %p208 = scmp.eq.s32.totalorder %s22, 0
      %p209 = por %p207, %p208
      %p210 = scmp.ne.s32.totalorder %s196, %s197
      %p211 = scmp.eq.s32.totalorder %s23, 1
      %p212 = por %p210, %p211
      %p214 = scmp.ne.s32.totalorder %s197, %s213
      %p215 = scmp.eq.s32.totalorder %s23, 0
      %p216 = por %p214, %p215
      %p217 = scmp.le.s32.totalorder 1, %s17
      %p218 = scmp.lt.s32.totalorder %s17, 3
      %p219 = pnand %p217, %p218
      %p220 = pneg %p219
      // Predicated region
      $region9: #{tpu_custom_call.1} parent=5 // pred_check
        _
      $region10: #{tpu_custom_call.1} parent=5 // pred_check_branch
        %222 = sbr.rel (%p219) target = $region12
      $region11: #{tpu_custom_call.1} parent=5 // pred_region
        %s223 = ssub.s32 %s17, 1
        // Predicated region
        $region13: #{tpu_custom_call.1} parent=11 // pred_check
          %p224 = pneg %p76
        $region14: #{tpu_custom_call.1} parent=11 // pred_check_branch
          %226 = sbr.rel (%p224) target = $region16
        $region15: #{tpu_custom_call.1} parent=11 // pred_region
          _
        $region16: #{tpu_custom_call.1} parent=11 // pred_fallthru
          _
        // Predicated region
        $region17: #{tpu_custom_call.1} parent=11 // pred_check
          %p227 = pneg %p97
        $region18: #{tpu_custom_call.1} parent=11 // pred_check_branch
          %229 = sbr.rel (%p227) target = $region20
        $region19: #{tpu_custom_call.1} parent=11 // pred_region
          _
        $region20: #{tpu_custom_call.1} parent=11 // pred_fallthru
          _
        // Predicated region
        $region21: #{tpu_custom_call.1} parent=11 // pred_check
          %p230 = pneg %p118
        $region22: #{tpu_custom_call.1} parent=11 // pred_check_branch
          %232 = sbr.rel (%p230) target = $region24
        $region23: #{tpu_custom_call.1} parent=11 // pred_region
          %234 = vsyncadd [#allocation4], 0
          %s235 = sshll.u32 %s3, 4
          %s236 = int_to_ptr.hbm [resolvable:$true] %s235
          %s237 = sshll.u32 [#allocation3], 4
          %s238 = int_to_ptr.vmem [resolvable:$true] %s237
          %243 = dma.hbm_to_vmem [thread:$0]  %s236, 18432, %s238, [#allocation4], 128, 128, 8
        $region24: #{tpu_custom_call.1} parent=11 // pred_fallthru
          _
        // Predicated region
        $region25: #{tpu_custom_call.1} parent=11 // pred_check
          %p244 = pneg %p139
        $region26: #{tpu_custom_call.1} parent=11 // pred_check_branch
          %246 = sbr.rel (%p244) target = $region28
        $region27: #{tpu_custom_call.1} parent=11 // pred_region
          _
        $region28: #{tpu_custom_call.1} parent=11 // pred_fallthru
          _
        // Predicated region
        $region29: #{tpu_custom_call.1} parent=11 // pred_check
          %p247 = pneg %p160
        $region30: #{tpu_custom_call.1} parent=11 // pred_check_branch
          %249 = sbr.rel (%p247) target = $region32
        $region31: #{tpu_custom_call.1} parent=11 // pred_region
          _
        $region32: #{tpu_custom_call.1} parent=11 // pred_fallthru
          _
        // Predicated region
        $region33: #{tpu_custom_call.1} parent=11 // pred_check
          %p250 = pneg %p181
        $region34: #{tpu_custom_call.1} parent=11 // pred_check_branch
          %252 = sbr.rel (%p250) target = $region36
        $region35: #{tpu_custom_call.1} parent=11 // pred_region
          _
        $region36: #{tpu_custom_call.1} parent=11 // pred_fallthru
          _
      $region12: #{tpu_custom_call.1} parent=5 // pred_fallthru
        _
      %p253 = scmp.lt.s32.totalorder %s17, 2
      // Predicated region
      $region37: #{tpu_custom_call.1} parent=5 // pred_check
        %p254 = pneg %p253
      $region38: #{tpu_custom_call.1} parent=5 // pred_check_branch
        %256 = sbr.rel (%p254) target = $region40
      $region39: #{tpu_custom_call.1} parent=5 // pred_region
        // Predicated region
        $region41: #{tpu_custom_call.1} parent=39 // pred_check
          %p257 = pneg %p49
        $region42: #{tpu_custom_call.1} parent=39 // pred_check_branch
          %259 = sbr.rel (%p257) target = $region44
        $region43: #{tpu_custom_call.1} parent=39 // pred_region
          %p260 = scmp.lt.s32.totalorder %s24, 1
          %s261 = scalar_select %p260, %s24, 1
          %s262 = smul.addr %s261, 60
          %s263 = smul.addr %s262, 8
          %s264 = scalar_lea.vmem %s0, %s263
        $region44: #{tpu_custom_call.1} parent=39 // pred_fallthru
          _
      $region40: #{tpu_custom_call.1} parent=5 // pred_fallthru
        _
      %p265 = scmp.le.s32.totalorder 1, %s17
      %p266 = scmp.lt.s32.totalorder %s17, 3
      %p267 = pnand %p265, %p266
      %p268 = pneg %p267
      // Predicated region
      $region45: #{tpu_custom_call.1} parent=5 // pred_check
        _
      $region46: #{tpu_custom_call.1} parent=5 // pred_check_branch
        %270 = sbr.rel (%p267) target = $region48
      $region47: #{tpu_custom_call.1} parent=5 // pred_region
        %s271 = ssub.s32 %s17, 1
        // Predicated region
        $region49: #{tpu_custom_call.1} parent=47 // pred_check
          %p272 = pneg %p118
        $region50: #{tpu_custom_call.1} parent=47 // pred_check_branch
          %274 = sbr.rel (%p272) target = $region52
        $region51: #{tpu_custom_call.1} parent=47 // pred_region
          %276 = dma.done [#allocation4], 18432
        $region52: #{tpu_custom_call.1} parent=47 // pred_fallthru
          _
        %p277 = scmp.lt.s32.totalorder %s26, 1
        %s278 = scalar_select %p277, %s26, 1
        %s279 = smul.addr %s278, 60
        %s280 = smul.addr %s279, 8
        %s281 = scalar_lea.vmem %s0, %s280
        %p282 = pneg %p55
        %p283 = pneg %p52
        %p284 = pneg %p76
        %p285 = pneg %p73
        %p286 = pneg %p97
        %p287 = pneg %p94
        %p288 = pneg %p118
        %p289 = pneg %p115
        %p290 = pneg %p139
        %p291 = pneg %p136
        %p292 = pneg %p160
        %p293 = pneg %p157
        %p294 = pneg %p181
        %p295 = pneg %p178
        %p296 = pneg %p209
        %p297 = pneg %p206
        %s298 = sand.u32 %s196, 1
        %s299 = scalar_lea.sflag [#allocation5], %s298
        %s300 = sand.u32 %s196, 1
        %s301 = smul.addr %s300, 256
        %s302 = scalar_lea.vmem [#allocation6], %s301
        %p303 = scmp.lt.s32.totalorder %s26, 1
        %s304 = scalar_select %p303, %s26, 1
        %s305 = smul.addr %s304, 60
        %s306 = smul.addr %s305, 8
        %s307 = scalar_lea.vmem %s0, %s306
        %s308 = smul.u32 16, %s27
        %s309 = smul.u32 %s27, 16
        %s310 = smul.u32 %s309, 24
        %s311 = scalar_lea.vmem %s307, %s310
        %v312 = vld [vmem:[%s311] sm:$0xff]
        %v313 = vld [vmem:[%s311 + $0x8] sm:$0xff]
        %v314 = vld [vmem:[%s311 + $0x10] sm:$0xf]
        %v315 = vld [vmem:[%s311 + $0x18] sm:$0xff]
        %v316 = vld [vmem:[%s311 + $0x20] sm:$0xff]
        %v317 = vld [vmem:[%s311 + $0x28] sm:$0xf]
        %v318 = vld [vmem:[%s311 + $0x30] sm:$0xff]
        %v319 = vld [vmem:[%s311 + $0x38] sm:$0xff]
        %v320 = vld [vmem:[%s311 + $0x40] sm:$0xf]
        %v321 = vld [vmem:[%s311 + $0x48] sm:$0xff]
        %v322 = vld [vmem:[%s311 + $0x50] sm:$0xff]
        %v323 = vld [vmem:[%s311 + $0x58] sm:$0xf]
        %v324 = vld [vmem:[%s311 + $0x60] sm:$0xff]
        %v325 = vld [vmem:[%s311 + $0x68] sm:$0xff]
        %v326 = vld [vmem:[%s311 + $0x70] sm:$0xf]
        %v327 = vld [vmem:[%s311 + $0x78] sm:$0xff]
        %v328 = vld [vmem:[%s311 + $0x80] sm:$0xff]
        %v329 = vld [vmem:[%s311 + $0x88] sm:$0xf]
        %v330 = vld [vmem:[%s311 + $0x90] sm:$0xff]
        %v331 = vld [vmem:[%s311 + $0x98] sm:$0xff]
        %v332 = vld [vmem:[%s311 + $0xa0] sm:$0xf]
        %v333 = vld [vmem:[%s311 + $0xa8] sm:$0xff]
        %v334 = vld [vmem:[%s311 + $0xb0] sm:$0xff]
        %v335 = vld [vmem:[%s311 + $0xb8] sm:$0xf]
        %v336 = vld [vmem:[%s311 + $0xc0] sm:$0xff]
        %v337 = vld [vmem:[%s311 + $0xc8] sm:$0xff]
        %v338 = vld [vmem:[%s311 + $0xd0] sm:$0xf]
        %v339 = vld [vmem:[%s311 + $0xd8] sm:$0xff]
        %v340 = vld [vmem:[%s311 + $0xe0] sm:$0xff]
        %v341 = vld [vmem:[%s311 + $0xe8] sm:$0xf]
        %v342 = vld [vmem:[%s311 + $0xf0] sm:$0xff]
        %v343 = vld [vmem:[%s311 + $0xf8] sm:$0xff]
        %v344 = vld [vmem:[%s311 + $0x100] sm:$0xf]
        %v345 = vld [vmem:[%s311 + $0x108] sm:$0xff]
        %v346 = vld [vmem:[%s311 + $0x110] sm:$0xff]
        %v347 = vld [vmem:[%s311 + $0x118] sm:$0xf]
        %v348 = vld [vmem:[%s311 + $0x120] sm:$0xff]
        %v349 = vld [vmem:[%s311 + $0x128] sm:$0xff]
        %v350 = vld [vmem:[%s311 + $0x130] sm:$0xf]
        %v351 = vld [vmem:[%s311 + $0x138] sm:$0xff]
        %v352 = vld [vmem:[%s311 + $0x140] sm:$0xff]
        %v353 = vld [vmem:[%s311 + $0x148] sm:$0xf]
        %v354 = vld [vmem:[%s311 + $0x150] sm:$0xff]
        %v355 = vld [vmem:[%s311 + $0x158] sm:$0xff]
        %v356 = vld [vmem:[%s311 + $0x160] sm:$0xf]
        %v357 = vld [vmem:[%s311 + $0x168] sm:$0xff]
        %v358 = vld [vmem:[%s311 + $0x170] sm:$0xff]
        %v359 = vld [vmem:[%s311 + $0x178] sm:$0xf]
        %v360 = vld [vmem:[%s311 + $0x180] sm:$0xff]
        %v361 = vld [vmem:[%s311 + $0x188] sm:$0xff]
        %v362 = vld [vmem:[%s311 + $0x190] sm:$0xf]
        %v363 = vld [vmem:[%s311 + $0x198] sm:$0xff]
        %v364 = vld [vmem:[%s311 + $0x1a0] sm:$0xff]
        %v365 = vld [vmem:[%s311 + $0x1a8] sm:$0xf]
        %v366 = vld [vmem:[%s311 + $0x1b0] sm:$0xff]
        %v367 = vld [vmem:[%s311 + $0x1b8] sm:$0xff]
        %v368 = vld [vmem:[%s311 + $0x1c0] sm:$0xf]
        %v369 = vld [vmem:[%s311 + $0x1c8] sm:$0xff]
        %v370 = vld [vmem:[%s311 + $0x1d0] sm:$0xff]
        %v371 = vld [vmem:[%s311 + $0x1d8] sm:$0xf]
        %v426 = vrot.slane %v312, 2
        %v427 = vrot.slane %v312, 4
        %v428 = vrot.slane %v312, 6
        %v429 = vrot.slane %v313, 2
        %v430 = vrot.slane %v313, 4
        %v431 = vrot.slane %v313, 6
        %v432 = vrot.slane %v315, 2
        %v433 = vrot.slane %v315, 4
        %v434 = vrot.slane %v315, 6
        %v435 = vrot.slane %v316, 2
        %v436 = vrot.slane %v316, 4
        %v437 = vrot.slane %v316, 6
        %v438 = vrot.slane %v318, 2
        %v439 = vrot.slane %v318, 4
        %v440 = vrot.slane %v318, 6
        %v441 = vrot.slane %v319, 2
        %v442 = vrot.slane %v319, 4
        %v443 = vrot.slane %v319, 6
        %v444 = vrot.slane %v321, 2
        %v445 = vrot.slane %v321, 4
        %v446 = vrot.slane %v321, 6
        %v447 = vrot.slane %v322, 2
        %v448 = vrot.slane %v322, 4
        %v449 = vrot.slane %v322, 6
        %v450 = vrot.slane %v324, 2
        %v451 = vrot.slane %v324, 4
        %v452 = vrot.slane %v324, 6
        %v453 = vrot.slane %v325, 2
        %v454 = vrot.slane %v325, 4
        %v455 = vrot.slane %v325, 6
        %v456 = vrot.slane %v327, 2
        %v457 = vrot.slane %v327, 4
        %v458 = vrot.slane %v327, 6
        %v459 = vrot.slane %v328, 2
        %v460 = vrot.slane %v328, 4
        %v461 = vrot.slane %v328, 6
        %v462 = vrot.slane %v330, 2
        %v463 = vrot.slane %v330, 4
        %v464 = vrot.slane %v330, 6
        %v465 = vrot.slane %v331, 2
        %v466 = vrot.slane %v331, 4
        %v467 = vrot.slane %v331, 6
        %v468 = vrot.slane %v333, 2
        %v469 = vrot.slane %v333, 4
        %v470 = vrot.slane %v333, 6
        %v471 = vrot.slane %v334, 2
        %v472 = vrot.slane %v334, 4
        %v473 = vrot.slane %v334, 6
        %v474 = vrot.slane %v336, 2
        %v475 = vrot.slane %v336, 4
        %v476 = vrot.slane %v336, 6
        %v477 = vrot.slane %v337, 2
        %v478 = vrot.slane %v337, 4
        %v479 = vrot.slane %v337, 6
        %v480 = vrot.slane %v339, 2
        %v481 = vrot.slane %v339, 4
        %v482 = vrot.slane %v339, 6
        %v483 = vrot.slane %v340, 2
        %v484 = vrot.slane %v340, 4
        %v485 = vrot.slane %v340, 6
        %v486 = vrot.slane %v342, 2
        %v487 = vrot.slane %v342, 4
        %v488 = vrot.slane %v342, 6
        %v489 = vrot.slane %v343, 2
        %v490 = vrot.slane %v343, 4
        %v491 = vrot.slane %v343, 6
        %v492 = vrot.slane %v345, 2
        %v493 = vrot.slane %v345, 4
        %v494 = vrot.slane %v345, 6
        %v495 = vrot.slane %v346, 2
        %v496 = vrot.slane %v346, 4
        %v497 = vrot.slane %v346, 6
        %v498 = vrot.slane %v348, 2
        %v499 = vrot.slane %v348, 4
        %v500 = vrot.slane %v348, 6
        %v501 = vrot.slane %v349, 2
        %v502 = vrot.slane %v349, 4
        %v503 = vrot.slane %v349, 6
        %v504 = vrot.slane %v351, 2
        %v505 = vrot.slane %v351, 4
        %v506 = vrot.slane %v351, 6
        %v507 = vrot.slane %v352, 2
        %v508 = vrot.slane %v352, 4
        %v509 = vrot.slane %v352, 6
        %v510 = vrot.slane %v354, 2
        %v511 = vrot.slane %v354, 4
        %v512 = vrot.slane %v354, 6
        %v513 = vrot.slane %v355, 2
        %v514 = vrot.slane %v355, 4
        %v515 = vrot.slane %v355, 6
        %v516 = vrot.slane %v357, 2
        %v517 = vrot.slane %v357, 4
        %v518 = vrot.slane %v357, 6
        %v519 = vrot.slane %v358, 2
        %v520 = vrot.slane %v358, 4
        %v521 = vrot.slane %v358, 6
        %v522 = vrot.slane %v360, 2
        %v523 = vrot.slane %v360, 4
        %v524 = vrot.slane %v360, 6
        %v525 = vrot.slane %v361, 2
        %v526 = vrot.slane %v361, 4
        %v527 = vrot.slane %v361, 6
        %v528 = vrot.slane %v363, 2
        %v529 = vrot.slane %v363, 4
        %v530 = vrot.slane %v363, 6
        %v531 = vrot.slane %v364, 2
        %v532 = vrot.slane %v364, 4
        %v533 = vrot.slane %v364, 6
        %v534 = vld [vmem:[%s1] sm:$0xf]
        %v535 = vrot.slane %v314, 2
        %v536 = vrot.slane %v317, 2
        %v537 = vrot.slane %v320, 2
        %v538 = vrot.slane %v323, 2
        %v539 = vrot.slane %v326, 2
        %v540 = vrot.slane %v329, 2
        %v541 = vrot.slane %v332, 2
        %v542 = vrot.slane %v335, 2
        %v543 = vrot.slane %v338, 2
        %v544 = vrot.slane %v341, 2
        %v545 = vrot.slane %v344, 2
        %v546 = vrot.slane %v347, 2
        %v547 = vrot.slane %v350, 2
        %v548 = vrot.slane %v353, 2
        %v549 = vrot.slane %v356, 2
        %v550 = vrot.slane %v359, 2
        %v551 = vrot.slane %v362, 2
        %v552 = vrot.slane %v365, 2
        %vm553 = vcmask 1040384
        %vm554 = vcmask 1042434
        %vm555 = vmor %vm553, %vm554
        %vm556 = vcmask 1044484
        %vm557 = vmor %vm555, %vm556
        %vm558 = vcmask 1046534
        %vm559 = vmor %vm557, %vm558
        %v560 = vrot.slane %v312, 7
        %v561 = vrot.slane %v560, 2
        %v562 = vrot.slane %v426, 7
        %v563 = vsel %vm559, %v561, %v562
        %v564 = vrot.slane %v562, 2
        %v565 = vrot.slane %v427, 7
        %v566 = vsel %vm559, %v564, %v565
        %v567 = vrot.slane %v565, 2
        %v568 = vrot.slane %v428, 7
        %v569 = vsel %vm559, %v567, %v568
        %v570 = vrot.slane %v568, 2
        %v571 = vrot.slane %v313, 7
        %v572 = vsel %vm559, %v570, %v571
        %v573 = vrot.slane %v571, 2
        %v574 = vrot.slane %v429, 7
        %v575 = vsel %vm559, %v573, %v574
        %v576 = vrot.slane %v574, 2
        %v577 = vrot.slane %v430, 7
        %v578 = vsel %vm559, %v576, %v577
        %v579 = vrot.slane %v577, 2
        %v580 = vrot.slane %v431, 7
        %v581 = vsel %vm559, %v579, %v580
        %v582 = vrot.slane %v580, 2
        %v583 = vrot.slane %v314, 7
        %v584 = vsel %vm559, %v582, %v583
        %v585 = vrot.slane %v583, 2
        %v586 = vrot.slane %v535, 7
        %v587 = vsel %vm559, %v585, %v586
        %v588 = vrot.slane %v315, 7
        %v589 = vrot.slane %v588, 2
        %v590 = vrot.slane %v432, 7
        %v591 = vsel %vm559, %v589, %v590
        %v592 = vrot.slane %v590, 2
        %v593 = vrot.slane %v433, 7
        %v594 = vsel %vm559, %v592, %v593
        %v595 = vrot.slane %v593, 2
        %v596 = vrot.slane %v434, 7
        %v597 = vsel %vm559, %v595, %v596
        %v598 = vrot.slane %v596, 2
        %v599 = vrot.slane %v316, 7
        %v600 = vsel %vm559, %v598, %v599
        %v601 = vrot.slane %v599, 2
        %v602 = vrot.slane %v435, 7
        %v603 = vsel %vm559, %v601, %v602
        %v604 = vrot.slane %v602, 2
        %v605 = vrot.slane %v436, 7
        %v606 = vsel %vm559, %v604, %v605
        %v607 = vrot.slane %v605, 2
        %v608 = vrot.slane %v437, 7
        %v609 = vsel %vm559, %v607, %v608
        %v610 = vrot.slane %v608, 2
        %v611 = vrot.slane %v317, 7
        %v612 = vsel %vm559, %v610, %v611
        %v613 = vrot.slane %v611, 2
        %v614 = vrot.slane %v536, 7
        %v615 = vsel %vm559, %v613, %v614
        %v616 = vrot.slane %v318, 7
        %v617 = vrot.slane %v616, 2
        %v618 = vrot.slane %v438, 7
        %v619 = vsel %vm559, %v617, %v618
        %v620 = vrot.slane %v618, 2
        %v621 = vrot.slane %v439, 7
        %v622 = vsel %vm559, %v620, %v621
        %v623 = vrot.slane %v621, 2
        %v624 = vrot.slane %v440, 7
        %v625 = vsel %vm559, %v623, %v624
        %v626 = vrot.slane %v624, 2
        %v627 = vrot.slane %v319, 7
        %v628 = vsel %vm559, %v626, %v627
        %v629 = vrot.slane %v627, 2
        %v630 = vrot.slane %v441, 7
        %v631 = vsel %vm559, %v629, %v630
        %v632 = vrot.slane %v630, 2
        %v633 = vrot.slane %v442, 7
        %v634 = vsel %vm559, %v632, %v633
        %v635 = vrot.slane %v633, 2
        %v636 = vrot.slane %v443, 7
        %v637 = vsel %vm559, %v635, %v636
        %v638 = vrot.slane %v636, 2
        %v639 = vrot.slane %v320, 7
        %v640 = vsel %vm559, %v638, %v639
        %v641 = vrot.slane %v639, 2
        %v642 = vrot.slane %v537, 7
        %v643 = vsel %vm559, %v641, %v642
        %v644 = vrot.slane %v321, 7
        %v645 = vrot.slane %v644, 2
        %v646 = vrot.slane %v444, 7
        %v647 = vsel %vm559, %v645, %v646
        %v648 = vrot.slane %v646, 2
        %v649 = vrot.slane %v445, 7
        %v650 = vsel %vm559, %v648, %v649
        %v651 = vrot.slane %v649, 2
        %v652 = vrot.slane %v446, 7
        %v653 = vsel %vm559, %v651, %v652
        %v654 = vrot.slane %v652, 2
        %v655 = vrot.slane %v322, 7
        %v656 = vsel %vm559, %v654, %v655
        %v657 = vrot.slane %v655, 2
        %v658 = vrot.slane %v447, 7
        %v659 = vsel %vm559, %v657, %v658
        %v660 = vrot.slane %v658, 2
        %v661 = vrot.slane %v448, 7
        %v662 = vsel %vm559, %v660, %v661
        %v663 = vrot.slane %v661, 2
        %v664 = vrot.slane %v449, 7
        %v665 = vsel %vm559, %v663, %v664
        %v666 = vrot.slane %v664, 2
        %v667 = vrot.slane %v323, 7
        %v668 = vsel %vm559, %v666, %v667
        %v669 = vrot.slane %v667, 2
        %v670 = vrot.slane %v538, 7
        %v671 = vsel %vm559, %v669, %v670
        %v672 = vrot.slane %v324, 7
        %v673 = vrot.slane %v672, 2
        %v674 = vrot.slane %v450, 7
        %v675 = vsel %vm559, %v673, %v674
        %v676 = vrot.slane %v674, 2
        %v677 = vrot.slane %v451, 7
        %v678 = vsel %vm559, %v676, %v677
        %v679 = vrot.slane %v677, 2
        %v680 = vrot.slane %v452, 7
        %v681 = vsel %vm559, %v679, %v680
        %v682 = vrot.slane %v680, 2
        %v683 = vrot.slane %v325, 7
        %v684 = vsel %vm559, %v682, %v683
        %v685 = vrot.slane %v683, 2
        %v686 = vrot.slane %v453, 7
        %v687 = vsel %vm559, %v685, %v686
        %v688 = vrot.slane %v686, 2
        %v689 = vrot.slane %v454, 7
        %v690 = vsel %vm559, %v688, %v689
        %v691 = vrot.slane %v689, 2
        %v692 = vrot.slane %v455, 7
        %v693 = vsel %vm559, %v691, %v692
        %v694 = vrot.slane %v692, 2
        %v695 = vrot.slane %v326, 7
        %v696 = vsel %vm559, %v694, %v695
        %v697 = vrot.slane %v695, 2
        %v698 = vrot.slane %v539, 7
        %v699 = vsel %vm559, %v697, %v698
        %v700 = vrot.slane %v327, 7
        %v701 = vrot.slane %v700, 2
        %v702 = vrot.slane %v456, 7
        %v703 = vsel %vm559, %v701, %v702
        %v704 = vrot.slane %v702, 2
        %v705 = vrot.slane %v457, 7
        %v706 = vsel %vm559, %v704, %v705
        %v707 = vrot.slane %v705, 2
        %v708 = vrot.slane %v458, 7
        %v709 = vsel %vm559, %v707, %v708
        %v710 = vrot.slane %v708, 2
        %v711 = vrot.slane %v328, 7
        %v712 = vsel %vm559, %v710, %v711
        %v713 = vrot.slane %v711, 2
        %v714 = vrot.slane %v459, 7
        %v715 = vsel %vm559, %v713, %v714
        %v716 = vrot.slane %v714, 2
        %v717 = vrot.slane %v460, 7
        %v718 = vsel %vm559, %v716, %v717
        %v719 = vrot.slane %v717, 2
        %v720 = vrot.slane %v461, 7
        %v721 = vsel %vm559, %v719, %v720
        %v722 = vrot.slane %v720, 2
        %v723 = vrot.slane %v329, 7
        %v724 = vsel %vm559, %v722, %v723
        %v725 = vrot.slane %v723, 2
        %v726 = vrot.slane %v540, 7
        %v727 = vsel %vm559, %v725, %v726
        %v728 = vrot.slane %v330, 7
        %v729 = vrot.slane %v728, 2
        %v730 = vrot.slane %v462, 7
        %v731 = vsel %vm559, %v729, %v730
        %v732 = vrot.slane %v730, 2
        %v733 = vrot.slane %v463, 7
        %v734 = vsel %vm559, %v732, %v733
        %v735 = vrot.slane %v733, 2
        %v736 = vrot.slane %v464, 7
        %v737 = vsel %vm559, %v735, %v736
        %v738 = vrot.slane %v736, 2
        %v739 = vrot.slane %v331, 7
        %v740 = vsel %vm559, %v738, %v739
        %v741 = vrot.slane %v739, 2
        %v742 = vrot.slane %v465, 7
        %v743 = vsel %vm559, %v741, %v742
        %v744 = vrot.slane %v742, 2
        %v745 = vrot.slane %v466, 7
        %v746 = vsel %vm559, %v744, %v745
        %v747 = vrot.slane %v745, 2
        %v748 = vrot.slane %v467, 7
        %v749 = vsel %vm559, %v747, %v748
        %v750 = vrot.slane %v748, 2
        %v751 = vrot.slane %v332, 7
        %v752 = vsel %vm559, %v750, %v751
        %v753 = vrot.slane %v751, 2
        %v754 = vrot.slane %v541, 7
        %v755 = vsel %vm559, %v753, %v754
        %v756 = vrot.slane %v333, 7
        %v757 = vrot.slane %v756, 2
        %v758 = vrot.slane %v468, 7
        %v759 = vsel %vm559, %v757, %v758
        %v760 = vrot.slane %v758, 2
        %v761 = vrot.slane %v469, 7
        %v762 = vsel %vm559, %v760, %v761
        %v763 = vrot.slane %v761, 2
        %v764 = vrot.slane %v470, 7
        %v765 = vsel %vm559, %v763, %v764
        %v766 = vrot.slane %v764, 2
        %v767 = vrot.slane %v334, 7
        %v768 = vsel %vm559, %v766, %v767
        %v769 = vrot.slane %v767, 2
        %v770 = vrot.slane %v471, 7
        %v771 = vsel %vm559, %v769, %v770
        %v772 = vrot.slane %v770, 2
        %v773 = vrot.slane %v472, 7
        %v774 = vsel %vm559, %v772, %v773
        %v775 = vrot.slane %v773, 2
        %v776 = vrot.slane %v473, 7
        %v777 = vsel %vm559, %v775, %v776
        %v778 = vrot.slane %v776, 2
        %v779 = vrot.slane %v335, 7
        %v780 = vsel %vm559, %v778, %v779
        %v781 = vrot.slane %v779, 2
        %v782 = vrot.slane %v542, 7
        %v783 = vsel %vm559, %v781, %v782
        %v784 = vrot.slane %v336, 7
        %v785 = vrot.slane %v784, 2
        %v786 = vrot.slane %v474, 7
        %v787 = vsel %vm559, %v785, %v786
        %v788 = vrot.slane %v786, 2
        %v789 = vrot.slane %v475, 7
        %v790 = vsel %vm559, %v788, %v789
        %v791 = vrot.slane %v789, 2
        %v792 = vrot.slane %v476, 7
        %v793 = vsel %vm559, %v791, %v792
        %v794 = vrot.slane %v792, 2
        %v795 = vrot.slane %v337, 7
        %v796 = vsel %vm559, %v794, %v795
        %v797 = vrot.slane %v795, 2
        %v798 = vrot.slane %v477, 7
        %v799 = vsel %vm559, %v797, %v798
        %v800 = vrot.slane %v798, 2
        %v801 = vrot.slane %v478, 7
        %v802 = vsel %vm559, %v800, %v801
        %v803 = vrot.slane %v801, 2
        %v804 = vrot.slane %v479, 7
        %v805 = vsel %vm559, %v803, %v804
        %v806 = vrot.slane %v804, 2
        %v807 = vrot.slane %v338, 7
        %v808 = vsel %vm559, %v806, %v807
        %v809 = vrot.slane %v807, 2
        %v810 = vrot.slane %v543, 7
        %v811 = vsel %vm559, %v809, %v810
        %v812 = vrot.slane %v339, 7
        %v813 = vrot.slane %v812, 2
        %v814 = vrot.slane %v480, 7
        %v815 = vsel %vm559, %v813, %v814
        %v816 = vrot.slane %v814, 2
        %v817 = vrot.slane %v481, 7
        %v818 = vsel %vm559, %v816, %v817
        %v819 = vrot.slane %v817, 2
        %v820 = vrot.slane %v482, 7
        %v821 = vsel %vm559, %v819, %v820
        %v822 = vrot.slane %v820, 2
        %v823 = vrot.slane %v340, 7
        %v824 = vsel %vm559, %v822, %v823
        %v825 = vrot.slane %v823, 2
        %v826 = vrot.slane %v483, 7
        %v827 = vsel %vm559, %v825, %v826
        %v828 = vrot.slane %v826, 2
        %v829 = vrot.slane %v484, 7
        %v830 = vsel %vm559, %v828, %v829
        %v831 = vrot.slane %v829, 2
        %v832 = vrot.slane %v485, 7
        %v833 = vsel %vm559, %v831, %v832
        %v834 = vrot.slane %v832, 2
        %v835 = vrot.slane %v341, 7
        %v836 = vsel %vm559, %v834, %v835
        %v837 = vrot.slane %v835, 2
        %v838 = vrot.slane %v544, 7
        %v839 = vsel %vm559, %v837, %v838
        %v840 = vrot.slane %v342, 7
        %v841 = vrot.slane %v840, 2
        %v842 = vrot.slane %v486, 7
        %v843 = vsel %vm559, %v841, %v842
        %v844 = vrot.slane %v842, 2
        %v845 = vrot.slane %v487, 7
        %v846 = vsel %vm559, %v844, %v845
        %v847 = vrot.slane %v845, 2
        %v848 = vrot.slane %v488, 7
        %v849 = vsel %vm559, %v847, %v848
        %v850 = vrot.slane %v848, 2
        %v851 = vrot.slane %v343, 7
        %v852 = vsel %vm559, %v850, %v851
        %v853 = vrot.slane %v851, 2
        %v854 = vrot.slane %v489, 7
        %v855 = vsel %vm559, %v853, %v854
        %v856 = vrot.slane %v854, 2
        %v857 = vrot.slane %v490, 7
        %v858 = vsel %vm559, %v856, %v857
        %v859 = vrot.slane %v857, 2
        %v860 = vrot.slane %v491, 7
        %v861 = vsel %vm559, %v859, %v860
        %v862 = vrot.slane %v860, 2
        %v863 = vrot.slane %v344, 7
        %v864 = vsel %vm559, %v862, %v863
        %v865 = vrot.slane %v863, 2
        %v866 = vrot.slane %v545, 7
        %v867 = vsel %vm559, %v865, %v866
        %v868 = vrot.slane %v345, 7
        %v869 = vrot.slane %v868, 2
        %v870 = vrot.slane %v492, 7
        %v871 = vsel %vm559, %v869, %v870
        %v872 = vrot.slane %v870, 2
        %v873 = vrot.slane %v493, 7
        %v874 = vsel %vm559, %v872, %v873
        %v875 = vrot.slane %v873, 2
        %v876 = vrot.slane %v494, 7
        %v877 = vsel %vm559, %v875, %v876
        %v878 = vrot.slane %v876, 2
        %v879 = vrot.slane %v346, 7
        %v880 = vsel %vm559, %v878, %v879
        %v881 = vrot.slane %v879, 2
        %v882 = vrot.slane %v495, 7
        %v883 = vsel %vm559, %v881, %v882
        %v884 = vrot.slane %v882, 2
        %v885 = vrot.slane %v496, 7
        %v886 = vsel %vm559, %v884, %v885
        %v887 = vrot.slane %v885, 2
        %v888 = vrot.slane %v497, 7
        %v889 = vsel %vm559, %v887, %v888
        %v890 = vrot.slane %v888, 2
        %v891 = vrot.slane %v347, 7
        %v892 = vsel %vm559, %v890, %v891
        %v893 = vrot.slane %v891, 2
        %v894 = vrot.slane %v546, 7
        %v895 = vsel %vm559, %v893, %v894
        %v896 = vrot.slane %v348, 7
        %v897 = vrot.slane %v896, 2
        %v898 = vrot.slane %v498, 7
        %v899 = vsel %vm559, %v897, %v898
        %v900 = vrot.slane %v898, 2
        %v901 = vrot.slane %v499, 7
        %v902 = vsel %vm559, %v900, %v901
        %v903 = vrot.slane %v901, 2
        %v904 = vrot.slane %v500, 7
        %v905 = vsel %vm559, %v903, %v904
        %v906 = vrot.slane %v904, 2
        %v907 = vrot.slane %v349, 7
        %v908 = vsel %vm559, %v906, %v907
        %v909 = vrot.slane %v907, 2
        %v910 = vrot.slane %v501, 7
        %v911 = vsel %vm559, %v909, %v910
        %v912 = vrot.slane %v910, 2
        %v913 = vrot.slane %v502, 7
        %v914 = vsel %vm559, %v912, %v913
        %v915 = vrot.slane %v913, 2
        %v916 = vrot.slane %v503, 7
        %v917 = vsel %vm559, %v915, %v916
        %v918 = vrot.slane %v916, 2
        %v919 = vrot.slane %v350, 7
        %v920 = vsel %vm559, %v918, %v919
        %v921 = vrot.slane %v919, 2
        %v922 = vrot.slane %v547, 7
        %v923 = vsel %vm559, %v921, %v922
        %v924 = vrot.slane %v351, 7
        %v925 = vrot.slane %v924, 2
        %v926 = vrot.slane %v504, 7
        %v927 = vsel %vm559, %v925, %v926
        %v928 = vrot.slane %v926, 2
        %v929 = vrot.slane %v505, 7
        %v930 = vsel %vm559, %v928, %v929
        %v931 = vrot.slane %v929, 2
        %v932 = vrot.slane %v506, 7
        %v933 = vsel %vm559, %v931, %v932
        %v934 = vrot.slane %v932, 2
        %v935 = vrot.slane %v352, 7
        %v936 = vsel %vm559, %v934, %v935
        %v937 = vrot.slane %v935, 2
        %v938 = vrot.slane %v507, 7
        %v939 = vsel %vm559, %v937, %v938
        %v940 = vrot.slane %v938, 2
        %v941 = vrot.slane %v508, 7
        %v942 = vsel %vm559, %v940, %v941
        %v943 = vrot.slane %v941, 2
        %v944 = vrot.slane %v509, 7
        %v945 = vsel %vm559, %v943, %v944
        %v946 = vrot.slane %v944, 2
        %v947 = vrot.slane %v353, 7
        %v948 = vsel %vm559, %v946, %v947
        %v949 = vrot.slane %v947, 2
        %v950 = vrot.slane %v548, 7
        %v951 = vsel %vm559, %v949, %v950
        %v952 = vrot.slane %v354, 7
        %v953 = vrot.slane %v952, 2
        %v954 = vrot.slane %v510, 7
        %v955 = vsel %vm559, %v953, %v954
        %v956 = vrot.slane %v954, 2
        %v957 = vrot.slane %v511, 7
        %v958 = vsel %vm559, %v956, %v957
        %v959 = vrot.slane %v957, 2
        %v960 = vrot.slane %v512, 7
        %v961 = vsel %vm559, %v959, %v960
        %v962 = vrot.slane %v960, 2
        %v963 = vrot.slane %v355, 7
        %v964 = vsel %vm559, %v962, %v963
        %v965 = vrot.slane %v963, 2
        %v966 = vrot.slane %v513, 7
        %v967 = vsel %vm559, %v965, %v966
        %v968 = vrot.slane %v966, 2
        %v969 = vrot.slane %v514, 7
        %v970 = vsel %vm559, %v968, %v969
        %v971 = vrot.slane %v969, 2
        %v972 = vrot.slane %v515, 7
        %v973 = vsel %vm559, %v971, %v972
        %v974 = vrot.slane %v972, 2
        %v975 = vrot.slane %v356, 7
        %v976 = vsel %vm559, %v974, %v975
        %v977 = vrot.slane %v975, 2
        %v978 = vrot.slane %v549, 7
        %v979 = vsel %vm559, %v977, %v978
        %v980 = vrot.slane %v357, 7
        %v981 = vrot.slane %v980, 2
        %v982 = vrot.slane %v516, 7
        %v983 = vsel %vm559, %v981, %v982
        %v984 = vrot.slane %v982, 2
        %v985 = vrot.slane %v517, 7
        %v986 = vsel %vm559, %v984, %v985
        %v987 = vrot.slane %v985, 2
        %v988 = vrot.slane %v518, 7
        %v989 = vsel %vm559, %v987, %v988
        %v990 = vrot.slane %v988, 2
        %v991 = vrot.slane %v358, 7
        %v992 = vsel %vm559, %v990, %v991
        %v993 = vrot.slane %v991, 2
        %v994 = vrot.slane %v519, 7
        %v995 = vsel %vm559, %v993, %v994
        %v996 = vrot.slane %v994, 2
        %v997 = vrot.slane %v520, 7
        %v998 = vsel %vm559, %v996, %v997
        %v999 = vrot.slane %v997, 2
        %v1000 = vrot.slane %v521, 7
        %v1001 = vsel %vm559, %v999, %v1000
        %v1002 = vrot.slane %v1000, 2
        %v1003 = vrot.slane %v359, 7
        %v1004 = vsel %vm559, %v1002, %v1003
        %v1005 = vrot.slane %v1003, 2
        %v1006 = vrot.slane %v550, 7
        %v1007 = vsel %vm559, %v1005, %v1006
        %v1008 = vrot.slane %v360, 7
        %v1009 = vrot.slane %v1008, 2
        %v1010 = vrot.slane %v522, 7
        %v1011 = vsel %vm559, %v1009, %v1010
        %v1012 = vrot.slane %v1010, 2
        %v1013 = vrot.slane %v523, 7
        %v1014 = vsel %vm559, %v1012, %v1013
        %v1015 = vrot.slane %v1013, 2
        %v1016 = vrot.slane %v524, 7
        %v1017 = vsel %vm559, %v1015, %v1016
        %v1018 = vrot.slane %v1016, 2
        %v1019 = vrot.slane %v361, 7
        %v1020 = vsel %vm559, %v1018, %v1019
        %v1021 = vrot.slane %v1019, 2
        %v1022 = vrot.slane %v525, 7
        %v1023 = vsel %vm559, %v1021, %v1022
        %v1024 = vrot.slane %v1022, 2
        %v1025 = vrot.slane %v526, 7
        %v1026 = vsel %vm559, %v1024, %v1025
        %v1027 = vrot.slane %v1025, 2
        %v1028 = vrot.slane %v527, 7
        %v1029 = vsel %vm559, %v1027, %v1028
        %v1030 = vrot.slane %v1028, 2
        %v1031 = vrot.slane %v362, 7
        %v1032 = vsel %vm559, %v1030, %v1031
        %v1033 = vrot.slane %v1031, 2
        %v1034 = vrot.slane %v551, 7
        %v1035 = vsel %vm559, %v1033, %v1034
        %v1036 = vrot.slane %v363, 7
        %v1037 = vrot.slane %v1036, 2
        %v1038 = vrot.slane %v528, 7
        %v1039 = vsel %vm559, %v1037, %v1038
        %v1040 = vrot.slane %v1038, 2
        %v1041 = vrot.slane %v529, 7
        %v1042 = vsel %vm559, %v1040, %v1041
        %v1043 = vrot.slane %v1041, 2
        %v1044 = vrot.slane %v530, 7
        %v1045 = vsel %vm559, %v1043, %v1044
        %v1046 = vrot.slane %v1044, 2
        %v1047 = vrot.slane %v364, 7
        %v1048 = vsel %vm559, %v1046, %v1047
        %v1049 = vrot.slane %v1047, 2
        %v1050 = vrot.slane %v531, 7
        %v1051 = vsel %vm559, %v1049, %v1050
        %v1052 = vrot.slane %v1050, 2
        %v1053 = vrot.slane %v532, 7
        %v1054 = vsel %vm559, %v1052, %v1053
        %v1055 = vrot.slane %v1053, 2
        %v1056 = vrot.slane %v533, 7
        %v1057 = vsel %vm559, %v1055, %v1056
        %v1058 = vrot.slane %v1056, 2
        %v1059 = vrot.slane %v365, 7
        %v1060 = vsel %vm559, %v1058, %v1059
        %v1061 = vrot.slane %v1059, 2
        %v1062 = vrot.slane %v552, 7
        %v1063 = vsel %vm559, %v1061, %v1062
        %s1064 = scalar_lea.vmem %s1, 4
        %v1065 = vld [vmem:[%s1064] sm:$0xf]
        %1066 = vst [vmem:[#allocation1] ss:$4 sm:$0xff] %v563
        %s1067 = scalar_lea.vmem [#allocation1], 1
        %1068 = vst [vmem:[%s1067] ss:$4 sm:$0xff] %v566
        %s1069 = scalar_lea.vmem [#allocation1], 2
        %1070 = vst [vmem:[%s1069] ss:$4 sm:$0xff] %v569
        %s1071 = scalar_lea.vmem [#allocation1], 3
        %1072 = vst [vmem:[%s1071] ss:$4 sm:$0xff] %v572
        %s1073 = scalar_lea.vmem [#allocation1], 32
        %1074 = vst [vmem:[%s1073] ss:$4 sm:$0xff] %v575
        %s1075 = scalar_lea.vmem [#allocation1], 33
        %1076 = vst [vmem:[%s1075] ss:$4 sm:$0xff] %v578
        %s1077 = scalar_lea.vmem [#allocation1], 34
        %1078 = vst [vmem:[%s1077] ss:$4 sm:$0xff] %v581
        %s1079 = scalar_lea.vmem [#allocation1], 35
        %1080 = vst [vmem:[%s1079] ss:$4 sm:$0xff] %v584
        %v1081 = vld.sshfl [vmem:[#allocation1] sm:$0xff pattern:$0x73625140]
        %v1082 = vld.sshfl [vmem:[#allocation1 + $0x20] sm:$0xff pattern:$0x73625140]
        %1083 = vst [vmem:[#allocation1] ss:$4 sm:$0xff] %v587
        %1084 = vst [vmem:[%s1067] ss:$4 sm:$0xff] %v591
        %1085 = vst [vmem:[%s1069] ss:$4 sm:$0xff] %v594
        %1086 = vst [vmem:[%s1071] ss:$4 sm:$0xff] %v597
        %1087 = vst [vmem:[%s1073] ss:$4 sm:$0xff] %v600
        %1088 = vst [vmem:[%s1075] ss:$4 sm:$0xff] %v603
        %1089 = vst [vmem:[%s1077] ss:$4 sm:$0xff] %v606
        %1090 = vst [vmem:[%s1079] ss:$4 sm:$0xff] %v609
        %v1091 = vld.sshfl [vmem:[#allocation1] sm:$0xff pattern:$0x73625140]
        %v1092 = vld.sshfl [vmem:[#allocation1 + $0x20] sm:$0xff pattern:$0x73625140]
        %1093 = vst [vmem:[#allocation1] ss:$4 sm:$0xff] %v612
        %1094 = vst [vmem:[%s1067] ss:$4 sm:$0xff] %v615
        %1095 = vst [vmem:[%s1069] ss:$4 sm:$0xff] %v619
        %1096 = vst [vmem:[%s1071] ss:$4 sm:$0xff] %v622
        %1097 = vst [vmem:[%s1073] ss:$4 sm:$0xff] %v625
        %1098 = vst [vmem:[%s1075] ss:$4 sm:$0xff] %v628
        %1099 = vst [vmem:[%s1077] ss:$4 sm:$0xff] %v631
        %1100 = vst [vmem:[%s1079] ss:$4 sm:$0xff] %v634
        %v1101 = vld.sshfl [vmem:[#allocation1] sm:$0xff pattern:$0x73625140]
        %v1102 = vld.sshfl [vmem:[#allocation1 + $0x20] sm:$0xff pattern:$0x73625140]
        %1103 = vst [vmem:[#allocation1] ss:$4 sm:$0xff] %v637
        %1104 = vst [vmem:[%s1067] ss:$4 sm:$0xff] %v640
        %1105 = vst [vmem:[%s1069] ss:$4 sm:$0xff] %v643
        %1106 = vst [vmem:[%s1071] ss:$4 sm:$0xff] %v647
        %1107 = vst [vmem:[%s1073] ss:$4 sm:$0xff] %v650
        %1108 = vst [vmem:[%s1075] ss:$4 sm:$0xff] %v653
        %1109 = vst [vmem:[%s1077] ss:$4 sm:$0xff] %v656
        %1110 = vst [vmem:[%s1079] ss:$4 sm:$0xff] %v659
        %v1111 = vld.sshfl [vmem:[#allocation1] sm:$0xff pattern:$0x73625140]
        %v1112 = vld.sshfl [vmem:[#allocation1 + $0x20] sm:$0xff pattern:$0x73625140]
        %1113 = vst [vmem:[#allocation1] ss:$4 sm:$0xff] %v662
        %1114 = vst [vmem:[%s1067] ss:$4 sm:$0xff] %v665
        %1115 = vst [vmem:[%s1069] ss:$4 sm:$0xff] %v668
        %1116 = vst [vmem:[%s1071] ss:$4 sm:$0xff] %v671
        %1117 = vst [vmem:[%s1073] ss:$4 sm:$0xff] %v675
        %1118 = vst [vmem:[%s1075] ss:$4 sm:$0xff] %v678
        %1119 = vst [vmem:[%s1077] ss:$4 sm:$0xff] %v681
        %1120 = vst [vmem:[%s1079] ss:$4 sm:$0xff] %v684
        %v1121 = vld.sshfl [vmem:[#allocation1] sm:$0xff pattern:$0x73625140]
        %v1122 = vld.sshfl [vmem:[#allocation1 + $0x20] sm:$0xff pattern:$0x73625140]
        %1123 = vst [vmem:[#allocation1] ss:$4 sm:$0xff] %v687
        %1124 = vst [vmem:[%s1067] ss:$4 sm:$0xff] %v690
        %1125 = vst [vmem:[%s1069] ss:$4 sm:$0xff] %v693
        %1126 = vst [vmem:[%s1071] ss:$4 sm:$0xff] %v696
        %1127 = vst [vmem:[%s1073] ss:$4 sm:$0xff] %v699
        %1128 = vst [vmem:[%s1075] ss:$4 sm:$0xff] %v703
        %1129 = vst [vmem:[%s1077] ss:$4 sm:$0xff] %v706
        %1130 = vst [vmem:[%s1079] ss:$4 sm:$0xff] %v709
        %v1131 = vld.sshfl [vmem:[#allocation1] sm:$0xff pattern:$0x73625140]
        %v1132 = vld.sshfl [vmem:[#allocation1 + $0x20] sm:$0xff pattern:$0x73625140]
        %1133 = vst [vmem:[#allocation1] ss:$4 sm:$0xff] %v712
        %1134 = vst [vmem:[%s1067] ss:$4 sm:$0xff] %v715
        %1135 = vst [vmem:[%s1069] ss:$4 sm:$0xff] %v718
        %1136 = vst [vmem:[%s1071] ss:$4 sm:$0xff] %v721
        %1137 = vst [vmem:[%s1073] ss:$4 sm:$0xff] %v724
        %1138 = vst [vmem:[%s1075] ss:$4 sm:$0xff] %v727
        %1139 = vst [vmem:[%s1077] ss:$4 sm:$0xff] %v731
        %1140 = vst [vmem:[%s1079] ss:$4 sm:$0xff] %v734
        %v1141 = vld.sshfl [vmem:[#allocation1] sm:$0xff pattern:$0x73625140]
        %v1142 = vld.sshfl [vmem:[#allocation1 + $0x20] sm:$0xff pattern:$0x73625140]
        %1143 = vst [vmem:[#allocation1] ss:$4 sm:$0xff] %v737
        %1144 = vst [vmem:[%s1067] ss:$4 sm:$0xff] %v740
        %1145 = vst [vmem:[%s1069] ss:$4 sm:$0xff] %v743
        %1146 = vst [vmem:[%s1071] ss:$4 sm:$0xff] %v746
        %1147 = vst [vmem:[%s1073] ss:$4 sm:$0xff] %v749
        %1148 = vst [vmem:[%s1075] ss:$4 sm:$0xff] %v752
        %1149 = vst [vmem:[%s1077] ss:$4 sm:$0xff] %v755
        %1150 = vst [vmem:[%s1079] ss:$4 sm:$0xff] %v759
        %v1151 = vld.sshfl [vmem:[#allocation1] sm:$0xff pattern:$0x73625140]
        %v1152 = vld.sshfl [vmem:[#allocation1 + $0x20] sm:$0xff pattern:$0x73625140]
        %1153 = vst [vmem:[#allocation1] ss:$4 sm:$0xff] %v762
        %1154 = vst [vmem:[%s1067] ss:$4 sm:$0xff] %v765
        %1155 = vst [vmem:[%s1069] ss:$4 sm:$0xff] %v768
        %1156 = vst [vmem:[%s1071] ss:$4 sm:$0xff] %v771
        %1157 = vst [vmem:[%s1073] ss:$4 sm:$0xff] %v774
        %1158 = vst [vmem:[%s1075] ss:$4 sm:$0xff] %v777
        %1159 = vst [vmem:[%s1077] ss:$4 sm:$0xff] %v780
        %1160 = vst [vmem:[%s1079] ss:$4 sm:$0xff] %v783
        %v1161 = vld.sshfl [vmem:[#allocation1] sm:$0xff pattern:$0x73625140]
        %v1162 = vld.sshfl [vmem:[#allocation1 + $0x20] sm:$0xff pattern:$0x73625140]
        %1163 = vst [vmem:[#allocation1] ss:$4 sm:$0xff] %v787
        %1164 = vst [vmem:[%s1067] ss:$4 sm:$0xff] %v790
        %1165 = vst [vmem:[%s1069] ss:$4 sm:$0xff] %v793
        %1166 = vst [vmem:[%s1071] ss:$4 sm:$0xff] %v796
        %1167 = vst [vmem:[%s1073] ss:$4 sm:$0xff] %v799
        %1168 = vst [vmem:[%s1075] ss:$4 sm:$0xff] %v802
        %1169 = vst [vmem:[%s1077] ss:$4 sm:$0xff] %v805
        %1170 = vst [vmem:[%s1079] ss:$4 sm:$0xff] %v808
        %v1171 = vld.sshfl [vmem:[#allocation1] sm:$0xff pattern:$0x73625140]
        %v1172 = vld.sshfl [vmem:[#allocation1 + $0x20] sm:$0xff pattern:$0x73625140]
        %1173 = vst [vmem:[#allocation1] ss:$4 sm:$0xff] %v811
        %1174 = vst [vmem:[%s1067] ss:$4 sm:$0xff] %v815
        %1175 = vst [vmem:[%s1069] ss:$4 sm:$0xff] %v818
        %1176 = vst [vmem:[%s1071] ss:$4 sm:$0xff] %v821
        %1177 = vst [vmem:[%s1073] ss:$4 sm:$0xff] %v824
        %1178 = vst [vmem:[%s1075] ss:$4 sm:$0xff] %v827
        %1179 = vst [vmem:[%s1077] ss:$4 sm:$0xff] %v830
        %1180 = vst [vmem:[%s1079] ss:$4 sm:$0xff] %v833
        %v1181 = vld.sshfl [vmem:[#allocation1] sm:$0xff pattern:$0x73625140]
        %v1182 = vld.sshfl [vmem:[#allocation1 + $0x20] sm:$0xff pattern:$0x73625140]
        %1183 = vst [vmem:[#allocation1] ss:$4 sm:$0xff] %v836
        %1184 = vst [vmem:[%s1067] ss:$4 sm:$0xff] %v839
        %1185 = vst [vmem:[%s1069] ss:$4 sm:$0xff] %v843
        %1186 = vst [vmem:[%s1071] ss:$4 sm:$0xff] %v846
        %1187 = vst [vmem:[%s1073] ss:$4 sm:$0xff] %v849
        %1188 = vst [vmem:[%s1075] ss:$4 sm:$0xff] %v852
        %1189 = vst [vmem:[%s1077] ss:$4 sm:$0xff] %v855
        %1190 = vst [vmem:[%s1079] ss:$4 sm:$0xff] %v858
        %v1191 = vld.sshfl [vmem:[#allocation1] sm:$0xff pattern:$0x73625140]
        %v1192 = vld.sshfl [vmem:[#allocation1 + $0x20] sm:$0xff pattern:$0x73625140]
        %1193 = vst [vmem:[#allocation1] ss:$4 sm:$0xff] %v861
        %1194 = vst [vmem:[%s1067] ss:$4 sm:$0xff] %v864
        %1195 = vst [vmem:[%s1069] ss:$4 sm:$0xff] %v867
        %1196 = vst [vmem:[%s1071] ss:$4 sm:$0xff] %v871
        %1197 = vst [vmem:[%s1073] ss:$4 sm:$0xff] %v874
        %1198 = vst [vmem:[%s1075] ss:$4 sm:$0xff] %v877
        %1199 = vst [vmem:[%s1077] ss:$4 sm:$0xff] %v880
        %1200 = vst [vmem:[%s1079] ss:$4 sm:$0xff] %v883
        %v1201 = vld.sshfl [vmem:[#allocation1] sm:$0xff pattern:$0x73625140]
        %v1202 = vld.sshfl [vmem:[#allocation1 + $0x20] sm:$0xff pattern:$0x73625140]
        %1203 = vst [vmem:[#allocation1] ss:$4 sm:$0xff] %v886
        %1204 = vst [vmem:[%s1067] ss:$4 sm:$0xff] %v889
        %1205 = vst [vmem:[%s1069] ss:$4 sm:$0xff] %v892
        %1206 = vst [vmem:[%s1071] ss:$4 sm:$0xff] %v895
        %1207 = vst [vmem:[%s1073] ss:$4 sm:$0xff] %v899
        %1208 = vst [vmem:[%s1075] ss:$4 sm:$0xff] %v902
        %1209 = vst [vmem:[%s1077] ss:$4 sm:$0xff] %v905
        %1210 = vst [vmem:[%s1079] ss:$4 sm:$0xff] %v908
        %v1211 = vld.sshfl [vmem:[#allocation1] sm:$0xff pattern:$0x73625140]
        %v1212 = vld.sshfl [vmem:[#allocation1 + $0x20] sm:$0xff pattern:$0x73625140]
        %1213 = vst [vmem:[#allocation1] ss:$4 sm:$0xff] %v911
        %1214 = vst [vmem:[%s1067] ss:$4 sm:$0xff] %v914
        %1215 = vst [vmem:[%s1069] ss:$4 sm:$0xff] %v917
        %1216 = vst [vmem:[%s1071] ss:$4 sm:$0xff] %v920
        %1217 = vst [vmem:[%s1073] ss:$4 sm:$0xff] %v923
        %1218 = vst [vmem:[%s1075] ss:$4 sm:$0xff] %v927
        %1219 = vst [vmem:[%s1077] ss:$4 sm:$0xff] %v930
        %1220 = vst [vmem:[%s1079] ss:$4 sm:$0xff] %v933
        %v1221 = vld.sshfl [vmem:[#allocation1] sm:$0xff pattern:$0x73625140]
        %v1222 = vld.sshfl [vmem:[#allocation1 + $0x20] sm:$0xff pattern:$0x73625140]
        %1223 = vst [vmem:[#allocation1] ss:$4 sm:$0xff] %v936
        %1224 = vst [vmem:[%s1067] ss:$4 sm:$0xff] %v939
        %1225 = vst [vmem:[%s1069] ss:$4 sm:$0xff] %v942
        %1226 = vst [vmem:[%s1071] ss:$4 sm:$0xff] %v945
        %1227 = vst [vmem:[%s1073] ss:$4 sm:$0xff] %v948
        %1228 = vst [vmem:[%s1075] ss:$4 sm:$0xff] %v951
        %1229 = vst [vmem:[%s1077] ss:$4 sm:$0xff] %v955
        %1230 = vst [vmem:[%s1079] ss:$4 sm:$0xff] %v958
        %v1231 = vld.sshfl [vmem:[#allocation1] sm:$0xff pattern:$0x73625140]
        %v1232 = vld.sshfl [vmem:[#allocation1 + $0x20] sm:$0xff pattern:$0x73625140]
        %1233 = vst [vmem:[#allocation1] ss:$4 sm:$0xff] %v961
        %1234 = vst [vmem:[%s1067] ss:$4 sm:$0xff] %v964
        %1235 = vst [vmem:[%s1069] ss:$4 sm:$0xff] %v967
        %1236 = vst [vmem:[%s1071] ss:$4 sm:$0xff] %v970
        %1237 = vst [vmem:[%s1073] ss:$4 sm:$0xff] %v973
        %1238 = vst [vmem:[%s1075] ss:$4 sm:$0xff] %v976
        %1239 = vst [vmem:[%s1077] ss:$4 sm:$0xff] %v979
        %1240 = vst [vmem:[%s1079] ss:$4 sm:$0xff] %v983
        %v1241 = vld.sshfl [vmem:[#allocation1] sm:$0xff pattern:$0x73625140]
        %v1242 = vld.sshfl [vmem:[#allocation1 + $0x20] sm:$0xff pattern:$0x73625140]
        %1243 = vst [vmem:[#allocation1] ss:$4 sm:$0xff] %v986
        %1244 = vst [vmem:[%s1067] ss:$4 sm:$0xff] %v989
        %1245 = vst [vmem:[%s1069] ss:$4 sm:$0xff] %v992
        %1246 = vst [vmem:[%s1071] ss:$4 sm:$0xff] %v995
        %1247 = vst [vmem:[%s1073] ss:$4 sm:$0xff] %v998
        %1248 = vst [vmem:[%s1075] ss:$4 sm:$0xff] %v1001
        %1249 = vst [vmem:[%s1077] ss:$4 sm:$0xff] %v1004
        %1250 = vst [vmem:[%s1079] ss:$4 sm:$0xff] %v1007
        %v1251 = vld.sshfl [vmem:[#allocation1] sm:$0xff pattern:$0x73625140]
        %v1252 = vld.sshfl [vmem:[#allocation1 + $0x20] sm:$0xff pattern:$0x73625140]
        %1253 = vst [vmem:[#allocation1] ss:$4 sm:$0xff] %v1011
        %1254 = vst [vmem:[%s1067] ss:$4 sm:$0xff] %v1014
        %1255 = vst [vmem:[%s1069] ss:$4 sm:$0xff] %v1017
        %1256 = vst [vmem:[%s1071] ss:$4 sm:$0xff] %v1020
        %1257 = vst [vmem:[%s1073] ss:$4 sm:$0xff] %v1023
        %1258 = vst [vmem:[%s1075] ss:$4 sm:$0xff] %v1026
        %1259 = vst [vmem:[%s1077] ss:$4 sm:$0xff] %v1029
        %1260 = vst [vmem:[%s1079] ss:$4 sm:$0xff] %v1032
        %v1261 = vld.sshfl [vmem:[#allocation1] sm:$0xff pattern:$0x73625140]
        %v1262 = vld.sshfl [vmem:[#allocation1 + $0x20] sm:$0xff pattern:$0x73625140]
        %1263 = vst [vmem:[#allocation1] ss:$4 sm:$0xff] %v1035
        %1264 = vst [vmem:[%s1067] ss:$4 sm:$0xff] %v1039
        %1265 = vst [vmem:[%s1069] ss:$4 sm:$0xff] %v1042
        %1266 = vst [vmem:[%s1071] ss:$4 sm:$0xff] %v1045
        %1267 = vst [vmem:[%s1073] ss:$4 sm:$0xff] %v1048
        %1268 = vst [vmem:[%s1075] ss:$4 sm:$0xff] %v1051
        %1269 = vst [vmem:[%s1077] ss:$4 sm:$0xff] %v1054
        %1270 = vst [vmem:[%s1079] ss:$4 sm:$0xff] %v1057
        %v1271 = vld.sshfl [vmem:[#allocation1] sm:$0xff pattern:$0x73625140]
        %v1272 = vld.sshfl [vmem:[#allocation1 + $0x20] sm:$0xff pattern:$0x73625140]
        %1273 = vst [vmem:[#allocation1] ss:$4 sm:$0xff] %v1060
        %1274 = vst [vmem:[%s1067] ss:$4 sm:$0xff] %v1063
        %v1275 = vld.sshfl [vmem:[#allocation1] sm:$0xff pattern:$0x73625140]
        %vm1276 = vcmask 31744
        %v1277 = vsel %vm1276, %v1081, 0
        %v1279 = vsel %vm1276, %v1082, 0
        %v1281 = vsel %vm1276, %v1091, 0
        %v1283 = vsel %vm1276, %v1092, 0
        %v1285 = vsel %vm1276, %v1101, 0
        %v1287 = vsel %vm1276, %v1102, 0
        %v1289 = vsel %vm1276, %v1111, 0
        %v1291 = vsel %vm1276, %v1112, 0
        %v1293 = vsel %vm1276, %v1121, 0
        %v1295 = vsel %vm1276, %v1122, 0
        %v1297 = vsel %vm1276, %v1131, 0
        %v1299 = vsel %vm1276, %v1132, 0
        %v1301 = vsel %vm1276, %v1141, 0
        %v1303 = vsel %vm1276, %v1142, 0
        %v1305 = vsel %vm1276, %v1151, 0
        %v1307 = vsel %vm1276, %v1152, 0
        %v1309 = vsel %vm1276, %v1161, 0
        %v1311 = vsel %vm1276, %v1162, 0
        %v1313 = vsel %vm1276, %v1171, 0
        %v1315 = vsel %vm1276, %v1172, 0
        %v1317 = vsel %vm1276, %v1181, 0
        %v1319 = vsel %vm1276, %v1182, 0
        %v1321 = vsel %vm1276, %v1191, 0
        %v1323 = vsel %vm1276, %v1192, 0
        %v1325 = vsel %vm1276, %v1201, 0
        %v1327 = vsel %vm1276, %v1202, 0
        %v1329 = vsel %vm1276, %v1211, 0
        %v1331 = vsel %vm1276, %v1212, 0
        %v1333 = vsel %vm1276, %v1221, 0
        %v1335 = vsel %vm1276, %v1222, 0
        %v1337 = vsel %vm1276, %v1231, 0
        %v1339 = vsel %vm1276, %v1232, 0
        %v1341 = vsel %vm1276, %v1241, 0
        %v1343 = vsel %vm1276, %v1242, 0
        %v1345 = vsel %vm1276, %v1251, 0
        %v1347 = vsel %vm1276, %v1252, 0
        %v1349 = vsel %vm1276, %v1261, 0
        %v1351 = vsel %vm1276, %v1262, 0
        %v1353 = vsel %vm1276, %v1271, 0
        %v1355 = vsel %vm1276, %v1272, 0
        %v1357 = vsel %vm1276, %v1275, 0
        %vm1359 = vcmask 1043456
        %v1361 = vsel %vm1359, %v1065, 0
        %1363 = vmatpush.msra.mxu0 0.0
        %1364 = vmatpush.msra.mxu0 0.0
        %1365 = vmatpush.msra.mxu0 0.0
        %1366 = vmatpush.msra.mxu0 0.0
        %1367 = vmatpush.msra.mxu0 0.0
        %1368 = vmatpush.msra.mxu0 0.0
        %1369 = vmatpush.msra.mxu0 0.0
        %1370 = vmatpush.msra.mxu0 0.0
        %1371 = vmatpush.msra.mxu0 0.0
        %1372 = vmatpush.msra.mxu0 0.0
        %1373 = vmatpush.msra.mxu0 0.0
        %1374 = vmatpush.msra.mxu0 0.0
        %1375 = vmatpush.msra.mxu0 0.0
        %1376 = vmatpush.msra.mxu0 0.0
        %1377 = vmatpush.msra.mxu0 0.0
        %1378 = vmatpush.msra.mxu0 %v1361
        %1379 = vmatmul.f32.gmra.mxu0 %v1277
        %v1380 = vpop.f32.mrf.mxu0
        %v1381 = vadd.f32 0.0, %v1380
        %1382 = vmatmul.f32.gmra.mxu0 %v1279
        %v1383 = vpop.f32.mrf.mxu0
        %v1384 = vadd.f32 0.0, %v1383
        %1385 = vmatmul.f32.gmra.mxu0 %v1281
        %v1386 = vpop.f32.mrf.mxu0
        %v1387 = vadd.f32 0.0, %v1386
        %1388 = vmatmul.f32.gmra.mxu0 %v1283
        %v1389 = vpop.f32.mrf.mxu0
        %v1390 = vadd.f32 0.0, %v1389
        %1391 = vmatmul.f32.gmra.mxu0 %v1285
        %v1392 = vpop.f32.mrf.mxu0
        %v1393 = vadd.f32 0.0, %v1392
        %1394 = vmatmul.f32.gmra.mxu0 %v1287
        %v1395 = vpop.f32.mrf.mxu0
        %v1396 = vadd.f32 0.0, %v1395
        %1397 = vmatmul.f32.gmra.mxu0 %v1289
        %v1398 = vpop.f32.mrf.mxu0
        %v1399 = vadd.f32 0.0, %v1398
        %1400 = vmatmul.f32.gmra.mxu0 %v1291
        %v1401 = vpop.f32.mrf.mxu0
        %v1402 = vadd.f32 0.0, %v1401
        %1403 = vmatmul.f32.gmra.mxu0 %v1293
        %v1404 = vpop.f32.mrf.mxu0
        %v1405 = vadd.f32 0.0, %v1404
        %1406 = vmatmul.f32.gmra.mxu0 %v1295
        %v1407 = vpop.f32.mrf.mxu0
        %v1408 = vadd.f32 0.0, %v1407
        %1409 = vmatmul.f32.gmra.mxu0 %v1297
        %v1410 = vpop.f32.mrf.mxu0
        %v1411 = vadd.f32 0.0, %v1410
        %1412 = vmatmul.f32.gmra.mxu0 %v1299
        %v1413 = vpop.f32.mrf.mxu0
        %v1414 = vadd.f32 0.0, %v1413
        %1415 = vmatmul.f32.gmra.mxu0 %v1301
        %v1416 = vpop.f32.mrf.mxu0
        %v1417 = vadd.f32 0.0, %v1416
        %1418 = vmatmul.f32.gmra.mxu0 %v1303
        %v1419 = vpop.f32.mrf.mxu0
        %v1420 = vadd.f32 0.0, %v1419
        %1421 = vmatmul.f32.gmra.mxu0 %v1305
        %v1422 = vpop.f32.mrf.mxu0
        %v1423 = vadd.f32 0.0, %v1422
        %1424 = vmatmul.f32.gmra.mxu0 %v1307
        %v1425 = vpop.f32.mrf.mxu0
        %v1426 = vadd.f32 0.0, %v1425
        %1427 = vmatmul.f32.gmra.mxu0 %v1309
        %v1428 = vpop.f32.mrf.mxu0
        %v1429 = vadd.f32 0.0, %v1428
        %1430 = vmatmul.f32.gmra.mxu0 %v1311
        %v1431 = vpop.f32.mrf.mxu0
        %v1432 = vadd.f32 0.0, %v1431
        %1433 = vmatmul.f32.gmra.mxu0 %v1313
        %v1434 = vpop.f32.mrf.mxu0
        %v1435 = vadd.f32 0.0, %v1434
        %1436 = vmatmul.f32.gmra.mxu0 %v1315
        %v1437 = vpop.f32.mrf.mxu0
        %v1438 = vadd.f32 0.0, %v1437
        %1439 = vmatmul.f32.gmra.mxu0 %v1317
        %v1440 = vpop.f32.mrf.mxu0
        %v1441 = vadd.f32 0.0, %v1440
        %1442 = vmatmul.f32.gmra.mxu0 %v1319
        %v1443 = vpop.f32.mrf.mxu0
        %v1444 = vadd.f32 0.0, %v1443
        %1445 = vmatmul.f32.gmra.mxu0 %v1321
        %v1446 = vpop.f32.mrf.mxu0
        %v1447 = vadd.f32 0.0, %v1446
        %1448 = vmatmul.f32.gmra.mxu0 %v1323
        %v1449 = vpop.f32.mrf.mxu0
        %v1450 = vadd.f32 0.0, %v1449
        %1451 = vmatmul.f32.gmra.mxu0 %v1325
        %v1452 = vpop.f32.mrf.mxu0
        %v1453 = vadd.f32 0.0, %v1452
        %1454 = vmatmul.f32.gmra.mxu0 %v1327
        %v1455 = vpop.f32.mrf.mxu0
        %v1456 = vadd.f32 0.0, %v1455
        %1457 = vmatmul.f32.gmra.mxu0 %v1329
        %v1458 = vpop.f32.mrf.mxu0
        %v1459 = vadd.f32 0.0, %v1458
        %1460 = vmatmul.f32.gmra.mxu0 %v1331
        %v1461 = vpop.f32.mrf.mxu0
        %v1462 = vadd.f32 0.0, %v1461
        %1463 = vmatmul.f32.gmra.mxu0 %v1333
        %v1464 = vpop.f32.mrf.mxu0
        %v1465 = vadd.f32 0.0, %v1464
        %1466 = vmatmul.f32.gmra.mxu0 %v1335
        %v1467 = vpop.f32.mrf.mxu0
        %v1468 = vadd.f32 0.0, %v1467
        %1469 = vmatmul.f32.gmra.mxu0 %v1337
        %v1470 = vpop.f32.mrf.mxu0
        %v1471 = vadd.f32 0.0, %v1470
        %1472 = vmatmul.f32.gmra.mxu0 %v1339
        %v1473 = vpop.f32.mrf.mxu0
        %v1474 = vadd.f32 0.0, %v1473
        %1475 = vmatmul.f32.gmra.mxu0 %v1341
        %v1476 = vpop.f32.mrf.mxu0
        %v1477 = vadd.f32 0.0, %v1476
        %1478 = vmatmul.f32.gmra.mxu0 %v1343
        %v1479 = vpop.f32.mrf.mxu0
        %v1480 = vadd.f32 0.0, %v1479
        %1481 = vmatmul.f32.gmra.mxu0 %v1345
        %v1482 = vpop.f32.mrf.mxu0
        %v1483 = vadd.f32 0.0, %v1482
        %1484 = vmatmul.f32.gmra.mxu0 %v1347
        %v1485 = vpop.f32.mrf.mxu0
        %v1486 = vadd.f32 0.0, %v1485
        %1487 = vmatmul.f32.gmra.mxu0 %v1349
        %v1488 = vpop.f32.mrf.mxu0
        %v1489 = vadd.f32 0.0, %v1488
        %1490 = vmatmul.f32.gmra.mxu0 %v1351
        %v1491 = vpop.f32.mrf.mxu0
        %v1492 = vadd.f32 0.0, %v1491
        %1493 = vmatmul.f32.gmra.mxu0 %v1353
        %v1494 = vpop.f32.mrf.mxu0
        %v1495 = vadd.f32 0.0, %v1494
        %1496 = vmatmul.f32.gmra.mxu0 %v1355
        %v1497 = vpop.f32.mrf.mxu0
        %v1498 = vadd.f32 0.0, %v1497
        %1499 = vmatmul.f32.gmra.mxu0 %v1357
        %v1500 = vpop.f32.mrf.mxu0
        %v1501 = vadd.f32 0.0, %v1500
        %1502 = vdwg.mxu0
        %1503 = vst [vmem:[#allocation1] ss:$4 sm:$0xff] %v312
        %s1504 = scalar_lea.vmem [#allocation1], 1
        %1505 = vst [vmem:[%s1504] ss:$4 sm:$0xff] %v426
        %s1506 = scalar_lea.vmem [#allocation1], 2
        %1507 = vst [vmem:[%s1506] ss:$4 sm:$0xff] %v427
        %s1508 = scalar_lea.vmem [#allocation1], 3
        %1509 = vst [vmem:[%s1508] ss:$4 sm:$0xff] %v428
        %s1510 = scalar_lea.vmem [#allocation1], 32
        %1511 = vst [vmem:[%s1510] ss:$4 sm:$0xff] %v313
        %s1512 = scalar_lea.vmem [#allocation1], 33
        %1513 = vst [vmem:[%s1512] ss:$4 sm:$0xff] %v429
        %s1514 = scalar_lea.vmem [#allocation1], 34
        %1515 = vst [vmem:[%s1514] ss:$4 sm:$0xff] %v430
        %s1516 = scalar_lea.vmem [#allocation1], 35
        %1517 = vst [vmem:[%s1516] ss:$4 sm:$0xff] %v431
        %v1518 = vld.sshfl [vmem:[#allocation1] sm:$0xff pattern:$0x73625140]
        %v1519 = vld.sshfl [vmem:[#allocation1 + $0x20] sm:$0xff pattern:$0x73625140]
        %1520 = vst [vmem:[#allocation1] ss:$4 sm:$0xff] %v314
        %1521 = vst [vmem:[%s1504] ss:$4 sm:$0xff] %v315
        %1522 = vst [vmem:[%s1506] ss:$4 sm:$0xff] %v432
        %1523 = vst [vmem:[%s1508] ss:$4 sm:$0xff] %v433
        %1524 = vst [vmem:[%s1510] ss:$4 sm:$0xff] %v434
        %1525 = vst [vmem:[%s1512] ss:$4 sm:$0xff] %v316
        %1526 = vst [vmem:[%s1514] ss:$4 sm:$0xff] %v435
        %1527 = vst [vmem:[%s1516] ss:$4 sm:$0xff] %v436
        %v1528 = vld.sshfl [vmem:[#allocation1] sm:$0xff pattern:$0x73625140]
        %v1529 = vld.sshfl [vmem:[#allocation1 + $0x20] sm:$0xff pattern:$0x73625140]
        %1530 = vst [vmem:[#allocation1] ss:$4 sm:$0xff] %v437
        %1531 = vst [vmem:[%s1504] ss:$4 sm:$0xff] %v317
        %1532 = vst [vmem:[%s1506] ss:$4 sm:$0xff] %v318
        %1533 = vst [vmem:[%s1508] ss:$4 sm:$0xff] %v438
        %1534 = vst [vmem:[%s1510] ss:$4 sm:$0xff] %v439
        %1535 = vst [vmem:[%s1512] ss:$4 sm:$0xff] %v440
        %1536 = vst [vmem:[%s1514] ss:$4 sm:$0xff] %v319
        %1537 = vst [vmem:[%s1516] ss:$4 sm:$0xff] %v441
        %v1538 = vld.sshfl [vmem:[#allocation1] sm:$0xff pattern:$0x73625140]
        %v1539 = vld.sshfl [vmem:[#allocation1 + $0x20] sm:$0xff pattern:$0x73625140]
        %1540 = vst [vmem:[#allocation1] ss:$4 sm:$0xff] %v442
        %1541 = vst [vmem:[%s1504] ss:$4 sm:$0xff] %v443
        %1542 = vst [vmem:[%s1506] ss:$4 sm:$0xff] %v320
        %1543 = vst [vmem:[%s1508] ss:$4 sm:$0xff] %v321
        %1544 = vst [vmem:[%s1510] ss:$4 sm:$0xff] %v444
        %1545 = vst [vmem:[%s1512] ss:$4 sm:$0xff] %v445
        %1546 = vst [vmem:[%s1514] ss:$4 sm:$0xff] %v446
        %1547 = vst [vmem:[%s1516] ss:$4 sm:$0xff] %v322
        %v1548 = vld.sshfl [vmem:[#allocation1] sm:$0xff pattern:$0x73625140]
        %v1549 = vld.sshfl [vmem:[#allocation1 + $0x20] sm:$0xff pattern:$0x73625140]
        %1550 = vst [vmem:[#allocation1] ss:$4 sm:$0xff] %v447
        %1551 = vst [vmem:[%s1504] ss:$4 sm:$0xff] %v448
        %1552 = vst [vmem:[%s1506] ss:$4 sm:$0xff] %v449
        %1553 = vst [vmem:[%s1508] ss:$4 sm:$0xff] %v323
        %1554 = vst [vmem:[%s1510] ss:$4 sm:$0xff] %v324
        %1555 = vst [vmem:[%s1512] ss:$4 sm:$0xff] %v450
        %1556 = vst [vmem:[%s1514] ss:$4 sm:$0xff] %v451
        %1557 = vst [vmem:[%s1516] ss:$4 sm:$0xff] %v452
        %v1558 = vld.sshfl [vmem:[#allocation1] sm:$0xff pattern:$0x73625140]
        %v1559 = vld.sshfl [vmem:[#allocation1 + $0x20] sm:$0xff pattern:$0x73625140]
        %1560 = vst [vmem:[#allocation1] ss:$4 sm:$0xff] %v325
        %1561 = vst [vmem:[%s1504] ss:$4 sm:$0xff] %v453
        %1562 = vst [vmem:[%s1506] ss:$4 sm:$0xff] %v454
        %1563 = vst [vmem:[%s1508] ss:$4 sm:$0xff] %v455
        %1564 = vst [vmem:[%s1510] ss:$4 sm:$0xff] %v326
        %1565 = vst [vmem:[%s1512] ss:$4 sm:$0xff] %v327
        %1566 = vst [vmem:[%s1514] ss:$4 sm:$0xff] %v456
        %1567 = vst [vmem:[%s1516] ss:$4 sm:$0xff] %v457
        %v1568 = vld.sshfl [vmem:[#allocation1] sm:$0xff pattern:$0x73625140]
        %v1569 = vld.sshfl [vmem:[#allocation1 + $0x20] sm:$0xff pattern:$0x73625140]
        %1570 = vst [vmem:[#allocation1] ss:$4 sm:$0xff] %v458
        %1571 = vst [vmem:[%s1504] ss:$4 sm:$0xff] %v328
        %1572 = vst [vmem:[%s1506] ss:$4 sm:$0xff] %v459
        %1573 = vst [vmem:[%s1508] ss:$4 sm:$0xff] %v460
        %1574 = vst [vmem:[%s1510] ss:$4 sm:$0xff] %v461
        %1575 = vst [vmem:[%s1512] ss:$4 sm:$0xff] %v329
        %1576 = vst [vmem:[%s1514] ss:$4 sm:$0xff] %v330
        %1577 = vst [vmem:[%s1516] ss:$4 sm:$0xff] %v462
        %v1578 = vld.sshfl [vmem:[#allocation1] sm:$0xff pattern:$0x73625140]
        %v1579 = vld.sshfl [vmem:[#allocation1 + $0x20] sm:$0xff pattern:$0x73625140]
        %1580 = vst [vmem:[#allocation1] ss:$4 sm:$0xff] %v463
        %1581 = vst [vmem:[%s1504] ss:$4 sm:$0xff] %v464
        %1582 = vst [vmem:[%s1506] ss:$4 sm:$0xff] %v331
        %1583 = vst [vmem:[%s1508] ss:$4 sm:$0xff] %v465
        %1584 = vst [vmem:[%s1510] ss:$4 sm:$0xff] %v466
        %1585 = vst [vmem:[%s1512] ss:$4 sm:$0xff] %v467
        %1586 = vst [vmem:[%s1514] ss:$4 sm:$0xff] %v332
        %1587 = vst [vmem:[%s1516] ss:$4 sm:$0xff] %v333
        %v1588 = vld.sshfl [vmem:[#allocation1] sm:$0xff pattern:$0x73625140]
        %v1589 = vld.sshfl [vmem:[#allocation1 + $0x20] sm:$0xff pattern:$0x73625140]
        %1590 = vst [vmem:[#allocation1] ss:$4 sm:$0xff] %v468
        %1591 = vst [vmem:[%s1504] ss:$4 sm:$0xff] %v469
        %1592 = vst [vmem:[%s1506] ss:$4 sm:$0xff] %v470
        %1593 = vst [vmem:[%s1508] ss:$4 sm:$0xff] %v334
        %1594 = vst [vmem:[%s1510] ss:$4 sm:$0xff] %v471
        %1595 = vst [vmem:[%s1512] ss:$4 sm:$0xff] %v472
        %1596 = vst [vmem:[%s1514] ss:$4 sm:$0xff] %v473
        %1597 = vst [vmem:[%s1516] ss:$4 sm:$0xff] %v335
        %v1598 = vld.sshfl [vmem:[#allocation1] sm:$0xff pattern:$0x73625140]
        %v1599 = vld.sshfl [vmem:[#allocation1 + $0x20] sm:$0xff pattern:$0x73625140]
        %1600 = vst [vmem:[#allocation1] ss:$4 sm:$0xff] %v336
        %1601 = vst [vmem:[%s1504] ss:$4 sm:$0xff] %v474
        %1602 = vst [vmem:[%s1506] ss:$4 sm:$0xff] %v475
        %1603 = vst [vmem:[%s1508] ss:$4 sm:$0xff] %v476
        %1604 = vst [vmem:[%s1510] ss:$4 sm:$0xff] %v337
        %1605 = vst [vmem:[%s1512] ss:$4 sm:$0xff] %v477
        %1606 = vst [vmem:[%s1514] ss:$4 sm:$0xff] %v478
        %1607 = vst [vmem:[%s1516] ss:$4 sm:$0xff] %v479
        %v1608 = vld.sshfl [vmem:[#allocation1] sm:$0xff pattern:$0x73625140]
        %v1609 = vld.sshfl [vmem:[#allocation1 + $0x20] sm:$0xff pattern:$0x73625140]
        %1610 = vst [vmem:[#allocation1] ss:$4 sm:$0xff] %v338
        %1611 = vst [vmem:[%s1504] ss:$4 sm:$0xff] %v339
        %1612 = vst [vmem:[%s1506] ss:$4 sm:$0xff] %v480
        %1613 = vst [vmem:[%s1508] ss:$4 sm:$0xff] %v481
        %1614 = vst [vmem:[%s1510] ss:$4 sm:$0xff] %v482
        %1615 = vst [vmem:[%s1512] ss:$4 sm:$0xff] %v340
        %1616 = vst [vmem:[%s1514] ss:$4 sm:$0xff] %v483
        %1617 = vst [vmem:[%s1516] ss:$4 sm:$0xff] %v484
        %v1618 = vld.sshfl [vmem:[#allocation1] sm:$0xff pattern:$0x73625140]
        %v1619 = vld.sshfl [vmem:[#allocation1 + $0x20] sm:$0xff pattern:$0x73625140]
        %1620 = vst [vmem:[#allocation1] ss:$4 sm:$0xff] %v485
        %1621 = vst [vmem:[%s1504] ss:$4 sm:$0xff] %v341
        %1622 = vst [vmem:[%s1506] ss:$4 sm:$0xff] %v342
        %1623 = vst [vmem:[%s1508] ss:$4 sm:$0xff] %v486
        %1624 = vst [vmem:[%s1510] ss:$4 sm:$0xff] %v487
        %1625 = vst [vmem:[%s1512] ss:$4 sm:$0xff] %v488
        %1626 = vst [vmem:[%s1514] ss:$4 sm:$0xff] %v343
        %1627 = vst [vmem:[%s1516] ss:$4 sm:$0xff] %v489
        %v1628 = vld.sshfl [vmem:[#allocation1] sm:$0xff pattern:$0x73625140]
        %v1629 = vld.sshfl [vmem:[#allocation1 + $0x20] sm:$0xff pattern:$0x73625140]
        %1630 = vst [vmem:[#allocation1] ss:$4 sm:$0xff] %v490
        %1631 = vst [vmem:[%s1504] ss:$4 sm:$0xff] %v491
        %1632 = vst [vmem:[%s1506] ss:$4 sm:$0xff] %v344
        %1633 = vst [vmem:[%s1508] ss:$4 sm:$0xff] %v345
        %1634 = vst [vmem:[%s1510] ss:$4 sm:$0xff] %v492
        %1635 = vst [vmem:[%s1512] ss:$4 sm:$0xff] %v493
        %1636 = vst [vmem:[%s1514] ss:$4 sm:$0xff] %v494
        %1637 = vst [vmem:[%s1516] ss:$4 sm:$0xff] %v346
        %v1638 = vld.sshfl [vmem:[#allocation1] sm:$0xff pattern:$0x73625140]
        %v1639 = vld.sshfl [vmem:[#allocation1 + $0x20] sm:$0xff pattern:$0x73625140]
        %1640 = vst [vmem:[#allocation1] ss:$4 sm:$0xff] %v495
        %1641 = vst [vmem:[%s1504] ss:$4 sm:$0xff] %v496
        %1642 = vst [vmem:[%s1506] ss:$4 sm:$0xff] %v497
        %1643 = vst [vmem:[%s1508] ss:$4 sm:$0xff] %v347
        %1644 = vst [vmem:[%s1510] ss:$4 sm:$0xff] %v348
        %1645 = vst [vmem:[%s1512] ss:$4 sm:$0xff] %v498
        %1646 = vst [vmem:[%s1514] ss:$4 sm:$0xff] %v499
        %1647 = vst [vmem:[%s1516] ss:$4 sm:$0xff] %v500
        %v1648 = vld.sshfl [vmem:[#allocation1] sm:$0xff pattern:$0x73625140]
        %v1649 = vld.sshfl [vmem:[#allocation1 + $0x20] sm:$0xff pattern:$0x73625140]
        %1650 = vst [vmem:[#allocation1] ss:$4 sm:$0xff] %v349
        %1651 = vst [vmem:[%s1504] ss:$4 sm:$0xff] %v501
        %1652 = vst [vmem:[%s1506] ss:$4 sm:$0xff] %v502
        %1653 = vst [vmem:[%s1508] ss:$4 sm:$0xff] %v503
        %1654 = vst [vmem:[%s1510] ss:$4 sm:$0xff] %v350
        %1655 = vst [vmem:[%s1512] ss:$4 sm:$0xff] %v351
        %1656 = vst [vmem:[%s1514] ss:$4 sm:$0xff] %v504
        %1657 = vst [vmem:[%s1516] ss:$4 sm:$0xff] %v505
        %v1658 = vld.sshfl [vmem:[#allocation1] sm:$0xff pattern:$0x73625140]
        %v1659 = vld.sshfl [vmem:[#allocation1 + $0x20] sm:$0xff pattern:$0x73625140]
        %1660 = vst [vmem:[#allocation1] ss:$4 sm:$0xff] %v506
        %1661 = vst [vmem:[%s1504] ss:$4 sm:$0xff] %v352
        %1662 = vst [vmem:[%s1506] ss:$4 sm:$0xff] %v507
        %1663 = vst [vmem:[%s1508] ss:$4 sm:$0xff] %v508
        %1664 = vst [vmem:[%s1510] ss:$4 sm:$0xff] %v509
        %1665 = vst [vmem:[%s1512] ss:$4 sm:$0xff] %v353
        %1666 = vst [vmem:[%s1514] ss:$4 sm:$0xff] %v354
        %1667 = vst [vmem:[%s1516] ss:$4 sm:$0xff] %v510
        %v1668 = vld.sshfl [vmem:[#allocation1] sm:$0xff pattern:$0x73625140]
        %v1669 = vld.sshfl [vmem:[#allocation1 + $0x20] sm:$0xff pattern:$0x73625140]
        %1670 = vst [vmem:[#allocation1] ss:$4 sm:$0xff] %v511
        %1671 = vst [vmem:[%s1504] ss:$4 sm:$0xff] %v512
        %1672 = vst [vmem:[%s1506] ss:$4 sm:$0xff] %v355
        %1673 = vst [vmem:[%s1508] ss:$4 sm:$0xff] %v513
        %1674 = vst [vmem:[%s1510] ss:$4 sm:$0xff] %v514
        %1675 = vst [vmem:[%s1512] ss:$4 sm:$0xff] %v515
        %1676 = vst [vmem:[%s1514] ss:$4 sm:$0xff] %v356
        %1677 = vst [vmem:[%s1516] ss:$4 sm:$0xff] %v357
        %v1678 = vld.sshfl [vmem:[#allocation1] sm:$0xff pattern:$0x73625140]
        %v1679 = vld.sshfl [vmem:[#allocation1 + $0x20] sm:$0xff pattern:$0x73625140]
        %1680 = vst [vmem:[#allocation1] ss:$4 sm:$0xff] %v516
        %1681 = vst [vmem:[%s1504] ss:$4 sm:$0xff] %v517
        %1682 = vst [vmem:[%s1506] ss:$4 sm:$0xff] %v518
        %1683 = vst [vmem:[%s1508] ss:$4 sm:$0xff] %v358
        %1684 = vst [vmem:[%s1510] ss:$4 sm:$0xff] %v519
        %1685 = vst [vmem:[%s1512] ss:$4 sm:$0xff] %v520
        %1686 = vst [vmem:[%s1514] ss:$4 sm:$0xff] %v521
        %1687 = vst [vmem:[%s1516] ss:$4 sm:$0xff] %v359
        %v1688 = vld.sshfl [vmem:[#allocation1] sm:$0xff pattern:$0x73625140]
        %v1689 = vld.sshfl [vmem:[#allocation1 + $0x20] sm:$0xff pattern:$0x73625140]
        %1690 = vst [vmem:[#allocation1] ss:$4 sm:$0xff] %v360
        %1691 = vst [vmem:[%s1504] ss:$4 sm:$0xff] %v522
        %1692 = vst [vmem:[%s1506] ss:$4 sm:$0xff] %v523
        %1693 = vst [vmem:[%s1508] ss:$4 sm:$0xff] %v524
        %1694 = vst [vmem:[%s1510] ss:$4 sm:$0xff] %v361
        %1695 = vst [vmem:[%s1512] ss:$4 sm:$0xff] %v525
        %1696 = vst [vmem:[%s1514] ss:$4 sm:$0xff] %v526
        %1697 = vst [vmem:[%s1516] ss:$4 sm:$0xff] %v527
        %v1698 = vld.sshfl [vmem:[#allocation1] sm:$0xff pattern:$0x73625140]
        %v1699 = vld.sshfl [vmem:[#allocation1 + $0x20] sm:$0xff pattern:$0x73625140]
        %1700 = vst [vmem:[#allocation1] ss:$4 sm:$0xff] %v362
        %1701 = vst [vmem:[%s1504] ss:$4 sm:$0xff] %v363
        %1702 = vst [vmem:[%s1506] ss:$4 sm:$0xff] %v528
        %1703 = vst [vmem:[%s1508] ss:$4 sm:$0xff] %v529
        %1704 = vst [vmem:[%s1510] ss:$4 sm:$0xff] %v530
        %1705 = vst [vmem:[%s1512] ss:$4 sm:$0xff] %v364
        %1706 = vst [vmem:[%s1514] ss:$4 sm:$0xff] %v531
        %1707 = vst [vmem:[%s1516] ss:$4 sm:$0xff] %v532
        %v1708 = vld.sshfl [vmem:[#allocation1] sm:$0xff pattern:$0x73625140]
        %v1709 = vld.sshfl [vmem:[#allocation1 + $0x20] sm:$0xff pattern:$0x73625140]
        %1710 = vst [vmem:[#allocation1] ss:$4 sm:$0xff] %v533
        %1711 = vst [vmem:[%s1504] ss:$4 sm:$0xff] %v365
        %v1712 = vld.sshfl [vmem:[#allocation1] sm:$0xff pattern:$0x73625140]
        %v1713 = vsel %vm1276, %v1518, 0
        %v1715 = vsel %vm1276, %v1519, 0
        %v1717 = vsel %vm1276, %v1528, 0
        %v1719 = vsel %vm1276, %v1529, 0
        %v1721 = vsel %vm1276, %v1538, 0
        %v1723 = vsel %vm1276, %v1539, 0
        %v1725 = vsel %vm1276, %v1548, 0
        %v1727 = vsel %vm1276, %v1549, 0
        %v1729 = vsel %vm1276, %v1558, 0
        %v1731 = vsel %vm1276, %v1559, 0
        %v1733 = vsel %vm1276, %v1568, 0
        %v1735 = vsel %vm1276, %v1569, 0
        %v1737 = vsel %vm1276, %v1578, 0
        %v1739 = vsel %vm1276, %v1579, 0
        %v1741 = vsel %vm1276, %v1588, 0
        %v1743 = vsel %vm1276, %v1589, 0
        %v1745 = vsel %vm1276, %v1598, 0
        %v1747 = vsel %vm1276, %v1599, 0
        %v1749 = vsel %vm1276, %v1608, 0
        %v1751 = vsel %vm1276, %v1609, 0
        %v1753 = vsel %vm1276, %v1618, 0
        %v1755 = vsel %vm1276, %v1619, 0
        %v1757 = vsel %vm1276, %v1628, 0
        %v1759 = vsel %vm1276, %v1629, 0
        %v1761 = vsel %vm1276, %v1638, 0
        %v1763 = vsel %vm1276, %v1639, 0
        %v1765 = vsel %vm1276, %v1648, 0
        %v1767 = vsel %vm1276, %v1649, 0
        %v1769 = vsel %vm1276, %v1658, 0
        %v1771 = vsel %vm1276, %v1659, 0
        %v1773 = vsel %vm1276, %v1668, 0
        %v1775 = vsel %vm1276, %v1669, 0
        %v1777 = vsel %vm1276, %v1678, 0
        %v1779 = vsel %vm1276, %v1679, 0
        %v1781 = vsel %vm1276, %v1688, 0
        %v1783 = vsel %vm1276, %v1689, 0
        %v1785 = vsel %vm1276, %v1698, 0
        %v1787 = vsel %vm1276, %v1699, 0
        %v1789 = vsel %vm1276, %v1708, 0
        %v1791 = vsel %vm1276, %v1709, 0
        %v1793 = vsel %vm1276, %v1712, 0
        %v1796 = vsel %vm1359, %v534, 0
        %1798 = vmatpush.msra.mxu0 0.0
        %1799 = vmatpush.msra.mxu0 0.0
        %1800 = vmatpush.msra.mxu0 0.0
        %1801 = vmatpush.msra.mxu0 0.0
        %1802 = vmatpush.msra.mxu0 0.0
        %1803 = vmatpush.msra.mxu0 0.0
        %1804 = vmatpush.msra.mxu0 0.0
        %1805 = vmatpush.msra.mxu0 0.0
        %1806 = vmatpush.msra.mxu0 0.0
        %1807 = vmatpush.msra.mxu0 0.0
        %1808 = vmatpush.msra.mxu0 0.0
        %1809 = vmatpush.msra.mxu0 0.0
        %1810 = vmatpush.msra.mxu0 0.0
        %1811 = vmatpush.msra.mxu0 0.0
        %1812 = vmatpush.msra.mxu0 0.0
        %1813 = vmatpush.msra.mxu0 %v1796
        %1814 = vmatmul.f32.gmra.mxu0 %v1713
        %v1815 = vpop.f32.mrf.mxu0
        %v1816 = vadd.f32 %v1381, %v1815
        %1817 = vmatmul.f32.gmra.mxu0 %v1715
        %v1818 = vpop.f32.mrf.mxu0
        %v1819 = vadd.f32 %v1384, %v1818
        %1820 = vmatmul.f32.gmra.mxu0 %v1717
        %v1821 = vpop.f32.mrf.mxu0
        %v1822 = vadd.f32 %v1387, %v1821
        %1823 = vmatmul.f32.gmra.mxu0 %v1719
        %v1824 = vpop.f32.mrf.mxu0
        %v1825 = vadd.f32 %v1390, %v1824
        %1826 = vmatmul.f32.gmra.mxu0 %v1721
        %v1827 = vpop.f32.mrf.mxu0
        %v1828 = vadd.f32 %v1393, %v1827
        %1829 = vmatmul.f32.gmra.mxu0 %v1723
        %v1830 = vpop.f32.mrf.mxu0
        %v1831 = vadd.f32 %v1396, %v1830
        %1832 = vmatmul.f32.gmra.mxu0 %v1725
        %v1833 = vpop.f32.mrf.mxu0
        %v1834 = vadd.f32 %v1399, %v1833
        %1835 = vmatmul.f32.gmra.mxu0 %v1727
        %v1836 = vpop.f32.mrf.mxu0
        %v1837 = vadd.f32 %v1402, %v1836
        %1838 = vmatmul.f32.gmra.mxu0 %v1729
        %v1839 = vpop.f32.mrf.mxu0
        %v1840 = vadd.f32 %v1405, %v1839
        %1841 = vmatmul.f32.gmra.mxu0 %v1731
        %v1842 = vpop.f32.mrf.mxu0
        %v1843 = vadd.f32 %v1408, %v1842
        %1844 = vmatmul.f32.gmra.mxu0 %v1733
        %v1845 = vpop.f32.mrf.mxu0
        %v1846 = vadd.f32 %v1411, %v1845
        %1847 = vmatmul.f32.gmra.mxu0 %v1735
        %v1848 = vpop.f32.mrf.mxu0
        %v1849 = vadd.f32 %v1414, %v1848
        %1850 = vmatmul.f32.gmra.mxu0 %v1737
        %v1851 = vpop.f32.mrf.mxu0
        %v1852 = vadd.f32 %v1417, %v1851
        %1853 = vmatmul.f32.gmra.mxu0 %v1739
        %v1854 = vpop.f32.mrf.mxu0
        %v1855 = vadd.f32 %v1420, %v1854
        %1856 = vmatmul.f32.gmra.mxu0 %v1741
        %v1857 = vpop.f32.mrf.mxu0
        %v1858 = vadd.f32 %v1423, %v1857
        %1859 = vmatmul.f32.gmra.mxu0 %v1743
        %v1860 = vpop.f32.mrf.mxu0
        %v1861 = vadd.f32 %v1426, %v1860
        %1862 = vmatmul.f32.gmra.mxu0 %v1745
        %v1863 = vpop.f32.mrf.mxu0
        %v1864 = vadd.f32 %v1429, %v1863
        %1865 = vmatmul.f32.gmra.mxu0 %v1747
        %v1866 = vpop.f32.mrf.mxu0
        %v1867 = vadd.f32 %v1432, %v1866
        %1868 = vmatmul.f32.gmra.mxu0 %v1749
        %v1869 = vpop.f32.mrf.mxu0
        %v1870 = vadd.f32 %v1435, %v1869
        %1871 = vmatmul.f32.gmra.mxu0 %v1751
        %v1872 = vpop.f32.mrf.mxu0
        %v1873 = vadd.f32 %v1438, %v1872
        %1874 = vmatmul.f32.gmra.mxu0 %v1753
        %v1875 = vpop.f32.mrf.mxu0
        %v1876 = vadd.f32 %v1441, %v1875
        %1877 = vmatmul.f32.gmra.mxu0 %v1755
        %v1878 = vpop.f32.mrf.mxu0
        %v1879 = vadd.f32 %v1444, %v1878
        %1880 = vmatmul.f32.gmra.mxu0 %v1757
        %v1881 = vpop.f32.mrf.mxu0
        %v1882 = vadd.f32 %v1447, %v1881
        %1883 = vmatmul.f32.gmra.mxu0 %v1759
        %v1884 = vpop.f32.mrf.mxu0
        %v1885 = vadd.f32 %v1450, %v1884
        %1886 = vmatmul.f32.gmra.mxu0 %v1761
        %v1887 = vpop.f32.mrf.mxu0
        %v1888 = vadd.f32 %v1453, %v1887
        %1889 = vmatmul.f32.gmra.mxu0 %v1763
        %v1890 = vpop.f32.mrf.mxu0
        %v1891 = vadd.f32 %v1456, %v1890
        %1892 = vmatmul.f32.gmra.mxu0 %v1765
        %v1893 = vpop.f32.mrf.mxu0
        %v1894 = vadd.f32 %v1459, %v1893
        %1895 = vmatmul.f32.gmra.mxu0 %v1767
        %v1896 = vpop.f32.mrf.mxu0
        %v1897 = vadd.f32 %v1462, %v1896
        %1898 = vmatmul.f32.gmra.mxu0 %v1769
        %v1899 = vpop.f32.mrf.mxu0
        %v1900 = vadd.f32 %v1465, %v1899
        %1901 = vmatmul.f32.gmra.mxu0 %v1771
        %v1902 = vpop.f32.mrf.mxu0
        %v1903 = vadd.f32 %v1468, %v1902
        %1904 = vmatmul.f32.gmra.mxu0 %v1773
        %v1905 = vpop.f32.mrf.mxu0
        %v1906 = vadd.f32 %v1471, %v1905
        %1907 = vmatmul.f32.gmra.mxu0 %v1775
        %v1908 = vpop.f32.mrf.mxu0
        %v1909 = vadd.f32 %v1474, %v1908
        %1910 = vmatmul.f32.gmra.mxu0 %v1777
        %v1911 = vpop.f32.mrf.mxu0
        %v1912 = vadd.f32 %v1477, %v1911
        %1913 = vmatmul.f32.gmra.mxu0 %v1779
        %v1914 = vpop.f32.mrf.mxu0
        %v1915 = vadd.f32 %v1480, %v1914
        %1916 = vmatmul.f32.gmra.mxu0 %v1781
        %v1917 = vpop.f32.mrf.mxu0
        %v1918 = vadd.f32 %v1483, %v1917
        %1919 = vmatmul.f32.gmra.mxu0 %v1783
        %v1920 = vpop.f32.mrf.mxu0
        %v1921 = vadd.f32 %v1486, %v1920
        %1922 = vmatmul.f32.gmra.mxu0 %v1785
        %v1923 = vpop.f32.mrf.mxu0
        %v1924 = vadd.f32 %v1489, %v1923
        %1925 = vmatmul.f32.gmra.mxu0 %v1787
        %v1926 = vpop.f32.mrf.mxu0
        %v1927 = vadd.f32 %v1492, %v1926
        %1928 = vmatmul.f32.gmra.mxu0 %v1789
        %v1929 = vpop.f32.mrf.mxu0
        %v1930 = vadd.f32 %v1495, %v1929
        %1931 = vmatmul.f32.gmra.mxu0 %v1791
        %v1932 = vpop.f32.mrf.mxu0
        %v1933 = vadd.f32 %v1498, %v1932
        %1934 = vmatmul.f32.gmra.mxu0 %v1793
        %v1935 = vpop.f32.mrf.mxu0
        %v1936 = vadd.f32 %v1501, %v1935
        %1937 = vdwg.mxu0
        %1938 = vst.sshfl [vmem:[#allocation1] sm:$0xff pattern:$0x73625140] %v312
        %1939 = vst.sshfl [vmem:[#allocation1 + $0x20] sm:$0xff pattern:$0x73625140] %v313
        %s1940 = scalar_lea.vmem [#allocation1], 1
        %v1941 = vld [vmem:[%s1940] ss:$4 sm:$0xff]
        %s1942 = scalar_lea.vmem [#allocation1], 2
        %v1943 = vld [vmem:[%s1942] ss:$4 sm:$0xff]
        %s1944 = scalar_lea.vmem [#allocation1], 3
        %v1945 = vld [vmem:[%s1944] ss:$4 sm:$0xff]
        %s1946 = scalar_lea.vmem [#allocation1], 32
        %v1947 = vld [vmem:[%s1946] ss:$4 sm:$0xff]
        %s1948 = scalar_lea.vmem [#allocation1], 33
        %v1949 = vld [vmem:[%s1948] ss:$4 sm:$0xff]
        %s1950 = scalar_lea.vmem [#allocation1], 34
        %v1951 = vld [vmem:[%s1950] ss:$4 sm:$0xff]
        %s1952 = scalar_lea.vmem [#allocation1], 35
        %v1953 = vld [vmem:[%s1952] ss:$4 sm:$0xff]
        %1954 = vst.sshfl [vmem:[#allocation1] sm:$0xff pattern:$0x73625140] %v314
        %v1955 = vld [vmem:[#allocation1] ss:$4 sm:$0xff]
        %v1956 = vld [vmem:[%s1940] ss:$4 sm:$0xff]
        %1957 = vst.sshfl [vmem:[#allocation1 + $0x20] sm:$0xff pattern:$0x73625140] %v315
        %v1958 = vld [vmem:[%s1948] ss:$4 sm:$0xff]
        %v1959 = vld [vmem:[%s1950] ss:$4 sm:$0xff]
        %v1960 = vld [vmem:[%s1952] ss:$4 sm:$0xff]
        %1961 = vst.sshfl [vmem:[#allocation1] sm:$0xff pattern:$0x73625140] %v316
        %1962 = vst.sshfl [vmem:[#allocation1 + $0x20] sm:$0xff pattern:$0x73625140] %v317
        %v1963 = vld [vmem:[#allocation1] ss:$4 sm:$0xff]
        %v1964 = vld [vmem:[%s1940] ss:$4 sm:$0xff]
        %v1965 = vld [vmem:[%s1942] ss:$4 sm:$0xff]
        %v1966 = vld [vmem:[%s1944] ss:$4 sm:$0xff]
        %v1967 = vld [vmem:[%s1946] ss:$4 sm:$0xff]
        %v1968 = vld [vmem:[%s1948] ss:$4 sm:$0xff]
        %1969 = vst.sshfl [vmem:[#allocation1] sm:$0xff pattern:$0x73625140] %v318
        %1970 = vst.sshfl [vmem:[#allocation1 + $0x20] sm:$0xff pattern:$0x73625140] %v319
        %v1971 = vld [vmem:[%s1940] ss:$4 sm:$0xff]
        %v1972 = vld [vmem:[%s1942] ss:$4 sm:$0xff]
        %v1973 = vld [vmem:[%s1944] ss:$4 sm:$0xff]
        %v1974 = vld [vmem:[%s1946] ss:$4 sm:$0xff]
        %v1975 = vld [vmem:[%s1948] ss:$4 sm:$0xff]
        %v1976 = vld [vmem:[%s1950] ss:$4 sm:$0xff]
        %v1977 = vld [vmem:[%s1952] ss:$4 sm:$0xff]
        %1978 = vst.sshfl [vmem:[#allocation1] sm:$0xff pattern:$0x73625140] %v320
        %v1979 = vld [vmem:[#allocation1] ss:$4 sm:$0xff]
        %v1980 = vld [vmem:[%s1940] ss:$4 sm:$0xff]
        %1981 = vst.sshfl [vmem:[#allocation1 + $0x20] sm:$0xff pattern:$0x73625140] %v321
        %v1982 = vld [vmem:[%s1948] ss:$4 sm:$0xff]
        %v1983 = vld [vmem:[%s1950] ss:$4 sm:$0xff]
        %v1984 = vld [vmem:[%s1952] ss:$4 sm:$0xff]
        %1985 = vst.sshfl [vmem:[#allocation1] sm:$0xff pattern:$0x73625140] %v322
        %1986 = vst.sshfl [vmem:[#allocation1 + $0x20] sm:$0xff pattern:$0x73625140] %v323
        %v1987 = vld [vmem:[#allocation1] ss:$4 sm:$0xff]
        %v1988 = vld [vmem:[%s1940] ss:$4 sm:$0xff]
        %v1989 = vld [vmem:[%s1942] ss:$4 sm:$0xff]
        %v1990 = vld [vmem:[%s1944] ss:$4 sm:$0xff]
        %v1991 = vld [vmem:[%s1946] ss:$4 sm:$0xff]
        %v1992 = vld [vmem:[%s1948] ss:$4 sm:$0xff]
        %1993 = vst.sshfl [vmem:[#allocation1] sm:$0xff pattern:$0x73625140] %v324
        %1994 = vst.sshfl [vmem:[#allocation1 + $0x20] sm:$0xff pattern:$0x73625140] %v325
        %v1995 = vld [vmem:[%s1940] ss:$4 sm:$0xff]
        %v1996 = vld [vmem:[%s1942] ss:$4 sm:$0xff]
        %v1997 = vld [vmem:[%s1944] ss:$4 sm:$0xff]
        %v1998 = vld [vmem:[%s1946] ss:$4 sm:$0xff]
        %v1999 = vld [vmem:[%s1948] ss:$4 sm:$0xff]
        %v2000 = vld [vmem:[%s1950] ss:$4 sm:$0xff]
        %v2001 = vld [vmem:[%s1952] ss:$4 sm:$0xff]
        %2002 = vst.sshfl [vmem:[#allocation1] sm:$0xff pattern:$0x73625140] %v326
        %v2003 = vld [vmem:[#allocation1] ss:$4 sm:$0xff]
        %v2004 = vld [vmem:[%s1940] ss:$4 sm:$0xff]
        %2005 = vst.sshfl [vmem:[#allocation1 + $0x20] sm:$0xff pattern:$0x73625140] %v327
        %v2006 = vld [vmem:[%s1948] ss:$4 sm:$0xff]
        %v2007 = vld [vmem:[%s1950] ss:$4 sm:$0xff]
        %v2008 = vld [vmem:[%s1952] ss:$4 sm:$0xff]
        %2009 = vst.sshfl [vmem:[#allocation1] sm:$0xff pattern:$0x73625140] %v328
        %2010 = vst.sshfl [vmem:[#allocation1 + $0x20] sm:$0xff pattern:$0x73625140] %v329
        %v2011 = vld [vmem:[#allocation1] ss:$4 sm:$0xff]
        %v2012 = vld [vmem:[%s1940] ss:$4 sm:$0xff]
        %v2013 = vld [vmem:[%s1942] ss:$4 sm:$0xff]
        %v2014 = vld [vmem:[%s1944] ss:$4 sm:$0xff]
        %v2015 = vld [vmem:[%s1946] ss:$4 sm:$0xff]
        %v2016 = vld [vmem:[%s1948] ss:$4 sm:$0xff]
        %2017 = vst.sshfl [vmem:[#allocation1] sm:$0xff pattern:$0x73625140] %v330
        %2018 = vst.sshfl [vmem:[#allocation1 + $0x20] sm:$0xff pattern:$0x73625140] %v331
        %v2019 = vld [vmem:[%s1940] ss:$4 sm:$0xff]
        %v2020 = vld [vmem:[%s1942] ss:$4 sm:$0xff]
        %v2021 = vld [vmem:[%s1944] ss:$4 sm:$0xff]
        %v2022 = vld [vmem:[%s1946] ss:$4 sm:$0xff]
        %v2023 = vld [vmem:[%s1948] ss:$4 sm:$0xff]
        %v2024 = vld [vmem:[%s1950] ss:$4 sm:$0xff]
        %v2025 = vld [vmem:[%s1952] ss:$4 sm:$0xff]
        %2026 = vst.sshfl [vmem:[#allocation1] sm:$0xff pattern:$0x73625140] %v332
        %v2027 = vld [vmem:[#allocation1] ss:$4 sm:$0xff]
        %v2028 = vld [vmem:[%s1940] ss:$4 sm:$0xff]
        %2029 = vst.sshfl [vmem:[#allocation1 + $0x20] sm:$0xff pattern:$0x73625140] %v333
        %v2030 = vld [vmem:[%s1948] ss:$4 sm:$0xff]
        %v2031 = vld [vmem:[%s1950] ss:$4 sm:$0xff]
        %v2032 = vld [vmem:[%s1952] ss:$4 sm:$0xff]
        %2033 = vst.sshfl [vmem:[#allocation1] sm:$0xff pattern:$0x73625140] %v334
        %2034 = vst.sshfl [vmem:[#allocation1 + $0x20] sm:$0xff pattern:$0x73625140] %v335
        %v2035 = vld [vmem:[#allocation1] ss:$4 sm:$0xff]
        %v2036 = vld [vmem:[%s1940] ss:$4 sm:$0xff]
        %v2037 = vld [vmem:[%s1942] ss:$4 sm:$0xff]
        %v2038 = vld [vmem:[%s1944] ss:$4 sm:$0xff]
        %v2039 = vld [vmem:[%s1946] ss:$4 sm:$0xff]
        %v2040 = vld [vmem:[%s1948] ss:$4 sm:$0xff]
        %2041 = vst.sshfl [vmem:[#allocation1] sm:$0xff pattern:$0x73625140] %v336
        %2042 = vst.sshfl [vmem:[#allocation1 + $0x20] sm:$0xff pattern:$0x73625140] %v337
        %v2043 = vld [vmem:[%s1940] ss:$4 sm:$0xff]
        %v2044 = vld [vmem:[%s1942] ss:$4 sm:$0xff]
        %v2045 = vld [vmem:[%s1944] ss:$4 sm:$0xff]
        %v2046 = vld [vmem:[%s1946] ss:$4 sm:$0xff]
        %v2047 = vld [vmem:[%s1948] ss:$4 sm:$0xff]
        %v2048 = vld [vmem:[%s1950] ss:$4 sm:$0xff]
        %v2049 = vld [vmem:[%s1952] ss:$4 sm:$0xff]
        %2050 = vst.sshfl [vmem:[#allocation1] sm:$0xff pattern:$0x73625140] %v338
        %v2051 = vld [vmem:[#allocation1] ss:$4 sm:$0xff]
        %v2052 = vld [vmem:[%s1940] ss:$4 sm:$0xff]
        %2053 = vst.sshfl [vmem:[#allocation1 + $0x20] sm:$0xff pattern:$0x73625140] %v339
        %v2054 = vld [vmem:[%s1948] ss:$4 sm:$0xff]
        %v2055 = vld [vmem:[%s1950] ss:$4 sm:$0xff]
        %v2056 = vld [vmem:[%s1952] ss:$4 sm:$0xff]
        %2057 = vst.sshfl [vmem:[#allocation1] sm:$0xff pattern:$0x73625140] %v340
        %2058 = vst.sshfl [vmem:[#allocation1 + $0x20] sm:$0xff pattern:$0x73625140] %v341
        %v2059 = vld [vmem:[#allocation1] ss:$4 sm:$0xff]
        %v2060 = vld [vmem:[%s1940] ss:$4 sm:$0xff]
        %v2061 = vld [vmem:[%s1942] ss:$4 sm:$0xff]
        %v2062 = vld [vmem:[%s1944] ss:$4 sm:$0xff]
        %v2063 = vld [vmem:[%s1946] ss:$4 sm:$0xff]
        %v2064 = vld [vmem:[%s1948] ss:$4 sm:$0xff]
        %2065 = vst.sshfl [vmem:[#allocation1] sm:$0xff pattern:$0x73625140] %v342
        %2066 = vst.sshfl [vmem:[#allocation1 + $0x20] sm:$0xff pattern:$0x73625140] %v343
        %v2067 = vld [vmem:[%s1940] ss:$4 sm:$0xff]
        %v2068 = vld [vmem:[%s1942] ss:$4 sm:$0xff]
        %v2069 = vld [vmem:[%s1944] ss:$4 sm:$0xff]
        %v2070 = vld [vmem:[%s1946] ss:$4 sm:$0xff]
        %v2071 = vld [vmem:[%s1948] ss:$4 sm:$0xff]
        %v2072 = vld [vmem:[%s1950] ss:$4 sm:$0xff]
        %v2073 = vld [vmem:[%s1952] ss:$4 sm:$0xff]
        %2074 = vst.sshfl [vmem:[#allocation1] sm:$0xff pattern:$0x73625140] %v344
        %v2075 = vld [vmem:[#allocation1] ss:$4 sm:$0xff]
        %v2076 = vld [vmem:[%s1940] ss:$4 sm:$0xff]
        %2077 = vst.sshfl [vmem:[#allocation1 + $0x20] sm:$0xff pattern:$0x73625140] %v345
        %v2078 = vld [vmem:[%s1948] ss:$4 sm:$0xff]
        %v2079 = vld [vmem:[%s1950] ss:$4 sm:$0xff]
        %v2080 = vld [vmem:[%s1952] ss:$4 sm:$0xff]
        %2081 = vst.sshfl [vmem:[#allocation1] sm:$0xff pattern:$0x73625140] %v346
        %2082 = vst.sshfl [vmem:[#allocation1 + $0x20] sm:$0xff pattern:$0x73625140] %v347
        %v2083 = vld [vmem:[#allocation1] ss:$4 sm:$0xff]
        %v2084 = vld [vmem:[%s1940] ss:$4 sm:$0xff]
        %v2085 = vld [vmem:[%s1942] ss:$4 sm:$0xff]
        %v2086 = vld [vmem:[%s1944] ss:$4 sm:$0xff]
        %v2087 = vld [vmem:[%s1946] ss:$4 sm:$0xff]
        %v2088 = vld [vmem:[%s1948] ss:$4 sm:$0xff]
        %2089 = vst.sshfl [vmem:[#allocation1] sm:$0xff pattern:$0x73625140] %v348
        %2090 = vst.sshfl [vmem:[#allocation1 + $0x20] sm:$0xff pattern:$0x73625140] %v349
        %v2091 = vld [vmem:[%s1940] ss:$4 sm:$0xff]
        %v2092 = vld [vmem:[%s1942] ss:$4 sm:$0xff]
        %v2093 = vld [vmem:[%s1944] ss:$4 sm:$0xff]
        %v2094 = vld [vmem:[%s1946] ss:$4 sm:$0xff]
        %v2095 = vld [vmem:[%s1948] ss:$4 sm:$0xff]
        %v2096 = vld [vmem:[%s1950] ss:$4 sm:$0xff]
        %v2097 = vld [vmem:[%s1952] ss:$4 sm:$0xff]
        %2098 = vst.sshfl [vmem:[#allocation1] sm:$0xff pattern:$0x73625140] %v350
        %v2099 = vld [vmem:[#allocation1] ss:$4 sm:$0xff]
        %v2100 = vld [vmem:[%s1940] ss:$4 sm:$0xff]
        %2101 = vst.sshfl [vmem:[#allocation1 + $0x20] sm:$0xff pattern:$0x73625140] %v351
        %v2102 = vld [vmem:[%s1948] ss:$4 sm:$0xff]
        %v2103 = vld [vmem:[%s1950] ss:$4 sm:$0xff]
        %v2104 = vld [vmem:[%s1952] ss:$4 sm:$0xff]
        %2105 = vst.sshfl [vmem:[#allocation1] sm:$0xff pattern:$0x73625140] %v352
        %2106 = vst.sshfl [vmem:[#allocation1 + $0x20] sm:$0xff pattern:$0x73625140] %v353
        %v2107 = vld [vmem:[#allocation1] ss:$4 sm:$0xff]
        %v2108 = vld [vmem:[%s1940] ss:$4 sm:$0xff]
        %v2109 = vld [vmem:[%s1942] ss:$4 sm:$0xff]
        %v2110 = vld [vmem:[%s1944] ss:$4 sm:$0xff]
        %v2111 = vld [vmem:[%s1946] ss:$4 sm:$0xff]
        %v2112 = vld [vmem:[%s1948] ss:$4 sm:$0xff]
        %2113 = vst.sshfl [vmem:[#allocation1] sm:$0xff pattern:$0x73625140] %v354
        %2114 = vst.sshfl [vmem:[#allocation1 + $0x20] sm:$0xff pattern:$0x73625140] %v355
        %v2115 = vld [vmem:[%s1940] ss:$4 sm:$0xff]
        %v2116 = vld [vmem:[%s1942] ss:$4 sm:$0xff]
        %v2117 = vld [vmem:[%s1944] ss:$4 sm:$0xff]
        %v2118 = vld [vmem:[%s1946] ss:$4 sm:$0xff]
        %v2119 = vld [vmem:[%s1948] ss:$4 sm:$0xff]
        %v2120 = vld [vmem:[%s1950] ss:$4 sm:$0xff]
        %v2121 = vld [vmem:[%s1952] ss:$4 sm:$0xff]
        %2122 = vst.sshfl [vmem:[#allocation1] sm:$0xff pattern:$0x73625140] %v356
        %v2123 = vld [vmem:[#allocation1] ss:$4 sm:$0xff]
        %v2124 = vld [vmem:[%s1940] ss:$4 sm:$0xff]
        %2125 = vst.sshfl [vmem:[#allocation1 + $0x20] sm:$0xff pattern:$0x73625140] %v357
        %v2126 = vld [vmem:[%s1948] ss:$4 sm:$0xff]
        %v2127 = vld [vmem:[%s1950] ss:$4 sm:$0xff]
        %v2128 = vld [vmem:[%s1952] ss:$4 sm:$0xff]
        %2129 = vst.sshfl [vmem:[#allocation1] sm:$0xff pattern:$0x73625140] %v358
        %2130 = vst.sshfl [vmem:[#allocation1 + $0x20] sm:$0xff pattern:$0x73625140] %v359
        %v2131 = vld [vmem:[#allocation1] ss:$4 sm:$0xff]
        %v2132 = vld [vmem:[%s1940] ss:$4 sm:$0xff]
        %v2133 = vld [vmem:[%s1942] ss:$4 sm:$0xff]
        %v2134 = vld [vmem:[%s1944] ss:$4 sm:$0xff]
        %v2135 = vld [vmem:[%s1946] ss:$4 sm:$0xff]
        %v2136 = vld [vmem:[%s1948] ss:$4 sm:$0xff]
        %2137 = vst.sshfl [vmem:[#allocation1] sm:$0xff pattern:$0x73625140] %v360
        %2138 = vst.sshfl [vmem:[#allocation1 + $0x20] sm:$0xff pattern:$0x73625140] %v361
        %v2139 = vld [vmem:[%s1940] ss:$4 sm:$0xff]
        %v2140 = vld [vmem:[%s1942] ss:$4 sm:$0xff]
        %v2141 = vld [vmem:[%s1944] ss:$4 sm:$0xff]
        %v2142 = vld [vmem:[%s1946] ss:$4 sm:$0xff]
        %v2143 = vld [vmem:[%s1948] ss:$4 sm:$0xff]
        %v2144 = vld [vmem:[%s1950] ss:$4 sm:$0xff]
        %v2145 = vld [vmem:[%s1952] ss:$4 sm:$0xff]
        %2146 = vst.sshfl [vmem:[#allocation1] sm:$0xff pattern:$0x73625140] %v362
        %v2147 = vld [vmem:[#allocation1] ss:$4 sm:$0xff]
        %v2148 = vld [vmem:[%s1940] ss:$4 sm:$0xff]
        %2149 = vst.sshfl [vmem:[#allocation1 + $0x20] sm:$0xff pattern:$0x73625140] %v363
        %v2150 = vld [vmem:[%s1948] ss:$4 sm:$0xff]
        %v2151 = vld [vmem:[%s1950] ss:$4 sm:$0xff]
        %v2152 = vld [vmem:[%s1952] ss:$4 sm:$0xff]
        %2153 = vst.sshfl [vmem:[#allocation1] sm:$0xff pattern:$0x73625140] %v364
        %2154 = vst.sshfl [vmem:[#allocation1 + $0x20] sm:$0xff pattern:$0x73625140] %v365
        %v2155 = vld [vmem:[#allocation1] ss:$4 sm:$0xff]
        %v2156 = vld [vmem:[%s1940] ss:$4 sm:$0xff]
        %v2157 = vld [vmem:[%s1942] ss:$4 sm:$0xff]
        %v2158 = vld [vmem:[%s1944] ss:$4 sm:$0xff]
        %v2159 = vld [vmem:[%s1946] ss:$4 sm:$0xff]
        %v2160 = vld [vmem:[%s1948] ss:$4 sm:$0xff]
        %s2161 = scalar_lea.vmem %s1, 8
        %v2162 = vld [vmem:[%s2161] sm:$0xf]
        %2163 = vst [vmem:[#allocation1] ss:$4 sm:$0xff] %v1941
        %s2164 = scalar_lea.vmem [#allocation1], 1
        %2165 = vst [vmem:[%s2164] ss:$4 sm:$0xff] %v1943
        %s2166 = scalar_lea.vmem [#allocation1], 2
        %2167 = vst [vmem:[%s2166] ss:$4 sm:$0xff] %v1945
        %s2168 = scalar_lea.vmem [#allocation1], 3
        %2169 = vst [vmem:[%s2168] ss:$4 sm:$0xff] %v1947
        %s2170 = scalar_lea.vmem [#allocation1], 32
        %2171 = vst [vmem:[%s2170] ss:$4 sm:$0xff] %v1949
        %s2172 = scalar_lea.vmem [#allocation1], 33
        %2173 = vst [vmem:[%s2172] ss:$4 sm:$0xff] %v1951
        %s2174 = scalar_lea.vmem [#allocation1], 34
        %2175 = vst [vmem:[%s2174] ss:$4 sm:$0xff] %v1953
        %s2176 = scalar_lea.vmem [#allocation1], 35
        %2177 = vst [vmem:[%s2176] ss:$4 sm:$0xff] %v1955
        %v2178 = vld.sshfl [vmem:[#allocation1] sm:$0xff pattern:$0x73625140]
        %v2179 = vld.sshfl [vmem:[#allocation1 + $0x20] sm:$0xff pattern:$0x73625140]
        %2180 = vst [vmem:[#allocation1] ss:$4 sm:$0xff] %v1956
        %2181 = vst [vmem:[%s2164] ss:$4 sm:$0xff] %v1958
        %2182 = vst [vmem:[%s2166] ss:$4 sm:$0xff] %v1959
        %2183 = vst [vmem:[%s2168] ss:$4 sm:$0xff] %v1960
        %2184 = vst [vmem:[%s2170] ss:$4 sm:$0xff] %v1963
        %2185 = vst [vmem:[%s2172] ss:$4 sm:$0xff] %v1964
        %2186 = vst [vmem:[%s2174] ss:$4 sm:$0xff] %v1965
        %2187 = vst [vmem:[%s2176] ss:$4 sm:$0xff] %v1966
        %v2188 = vld.sshfl [vmem:[#allocation1] sm:$0xff pattern:$0x73625140]
        %v2189 = vld.sshfl [vmem:[#allocation1 + $0x20] sm:$0xff pattern:$0x73625140]
        %2190 = vst [vmem:[#allocation1] ss:$4 sm:$0xff] %v1967
        %2191 = vst [vmem:[%s2164] ss:$4 sm:$0xff] %v1968
        %2192 = vst [vmem:[%s2166] ss:$4 sm:$0xff] %v1971
        %2193 = vst [vmem:[%s2168] ss:$4 sm:$0xff] %v1972
        %2194 = vst [vmem:[%s2170] ss:$4 sm:$0xff] %v1973
        %2195 = vst [vmem:[%s2172] ss:$4 sm:$0xff] %v1974
        %2196 = vst [vmem:[%s2174] ss:$4 sm:$0xff] %v1975
        %2197 = vst [vmem:[%s2176] ss:$4 sm:$0xff] %v1976
        %v2198 = vld.sshfl [vmem:[#allocation1] sm:$0xff pattern:$0x73625140]
        %v2199 = vld.sshfl [vmem:[#allocation1 + $0x20] sm:$0xff pattern:$0x73625140]
        %2200 = vst [vmem:[#allocation1] ss:$4 sm:$0xff] %v1977
        %2201 = vst [vmem:[%s2164] ss:$4 sm:$0xff] %v1979
        %2202 = vst [vmem:[%s2166] ss:$4 sm:$0xff] %v1980
        %2203 = vst [vmem:[%s2168] ss:$4 sm:$0xff] %v1982
        %2204 = vst [vmem:[%s2170] ss:$4 sm:$0xff] %v1983
        %2205 = vst [vmem:[%s2172] ss:$4 sm:$0xff] %v1984
        %2206 = vst [vmem:[%s2174] ss:$4 sm:$0xff] %v1987
        %2207 = vst [vmem:[%s2176] ss:$4 sm:$0xff] %v1988
        %v2208 = vld.sshfl [vmem:[#allocation1] sm:$0xff pattern:$0x73625140]
        %v2209 = vld.sshfl [vmem:[#allocation1 + $0x20] sm:$0xff pattern:$0x73625140]
        %2210 = vst [vmem:[#allocation1] ss:$4 sm:$0xff] %v1989
        %2211 = vst [vmem:[%s2164] ss:$4 sm:$0xff] %v1990
        %2212 = vst [vmem:[%s2166] ss:$4 sm:$0xff] %v1991
        %2213 = vst [vmem:[%s2168] ss:$4 sm:$0xff] %v1992
        %2214 = vst [vmem:[%s2170] ss:$4 sm:$0xff] %v1995
        %2215 = vst [vmem:[%s2172] ss:$4 sm:$0xff] %v1996
        %2216 = vst [vmem:[%s2174] ss:$4 sm:$0xff] %v1997
        %2217 = vst [vmem:[%s2176] ss:$4 sm:$0xff] %v1998
        %v2218 = vld.sshfl [vmem:[#allocation1] sm:$0xff pattern:$0x73625140]
        %v2219 = vld.sshfl [vmem:[#allocation1 + $0x20] sm:$0xff pattern:$0x73625140]
        %2220 = vst [vmem:[#allocation1] ss:$4 sm:$0xff] %v1999
        %2221 = vst [vmem:[%s2164] ss:$4 sm:$0xff] %v2000
        %2222 = vst [vmem:[%s2166] ss:$4 sm:$0xff] %v2001
        %2223 = vst [vmem:[%s2168] ss:$4 sm:$0xff] %v2003
        %2224 = vst [vmem:[%s2170] ss:$4 sm:$0xff] %v2004
        %2225 = vst [vmem:[%s2172] ss:$4 sm:$0xff] %v2006
        %2226 = vst [vmem:[%s2174] ss:$4 sm:$0xff] %v2007
        %2227 = vst [vmem:[%s2176] ss:$4 sm:$0xff] %v2008
        %v2228 = vld.sshfl [vmem:[#allocation1] sm:$0xff pattern:$0x73625140]
        %v2229 = vld.sshfl [vmem:[#allocation1 + $0x20] sm:$0xff pattern:$0x73625140]
        %2230 = vst [vmem:[#allocation1] ss:$4 sm:$0xff] %v2011
        %2231 = vst [vmem:[%s2164] ss:$4 sm:$0xff] %v2012
        %2232 = vst [vmem:[%s2166] ss:$4 sm:$0xff] %v2013
        %2233 = vst [vmem:[%s2168] ss:$4 sm:$0xff] %v2014
        %2234 = vst [vmem:[%s2170] ss:$4 sm:$0xff] %v2015
        %2235 = vst [vmem:[%s2172] ss:$4 sm:$0xff] %v2016
        %2236 = vst [vmem:[%s2174] ss:$4 sm:$0xff] %v2019
        %2237 = vst [vmem:[%s2176] ss:$4 sm:$0xff] %v2020
        %v2238 = vld.sshfl [vmem:[#allocation1] sm:$0xff pattern:$0x73625140]
        %v2239 = vld.sshfl [vmem:[#allocation1 + $0x20] sm:$0xff pattern:$0x73625140]
        %2240 = vst [vmem:[#allocation1] ss:$4 sm:$0xff] %v2021
        %2241 = vst [vmem:[%s2164] ss:$4 sm:$0xff] %v2022
        %2242 = vst [vmem:[%s2166] ss:$4 sm:$0xff] %v2023
        %2243 = vst [vmem:[%s2168] ss:$4 sm:$0xff] %v2024
        %2244 = vst [vmem:[%s2170] ss:$4 sm:$0xff] %v2025
        %2245 = vst [vmem:[%s2172] ss:$4 sm:$0xff] %v2027
        %2246 = vst [vmem:[%s2174] ss:$4 sm:$0xff] %v2028
        %2247 = vst [vmem:[%s2176] ss:$4 sm:$0xff] %v2030
        %v2248 = vld.sshfl [vmem:[#allocation1] sm:$0xff pattern:$0x73625140]
        %v2249 = vld.sshfl [vmem:[#allocation1 + $0x20] sm:$0xff pattern:$0x73625140]
        %2250 = vst [vmem:[#allocation1] ss:$4 sm:$0xff] %v2031
        %2251 = vst [vmem:[%s2164] ss:$4 sm:$0xff] %v2032
        %2252 = vst [vmem:[%s2166] ss:$4 sm:$0xff] %v2035
        %2253 = vst [vmem:[%s2168] ss:$4 sm:$0xff] %v2036
        %2254 = vst [vmem:[%s2170] ss:$4 sm:$0xff] %v2037
        %2255 = vst [vmem:[%s2172] ss:$4 sm:$0xff] %v2038
        %2256 = vst [vmem:[%s2174] ss:$4 sm:$0xff] %v2039
        %2257 = vst [vmem:[%s2176] ss:$4 sm:$0xff] %v2040
        %v2258 = vld.sshfl [vmem:[#allocation1] sm:$0xff pattern:$0x73625140]
        %v2259 = vld.sshfl [vmem:[#allocation1 + $0x20] sm:$0xff pattern:$0x73625140]
        %2260 = vst [vmem:[#allocation1] ss:$4 sm:$0xff] %v2043
        %2261 = vst [vmem:[%s2164] ss:$4 sm:$0xff] %v2044
        %2262 = vst [vmem:[%s2166] ss:$4 sm:$0xff] %v2045
        %2263 = vst [vmem:[%s2168] ss:$4 sm:$0xff] %v2046
        %2264 = vst [vmem:[%s2170] ss:$4 sm:$0xff] %v2047
        %2265 = vst [vmem:[%s2172] ss:$4 sm:$0xff] %v2048
        %2266 = vst [vmem:[%s2174] ss:$4 sm:$0xff] %v2049
        %2267 = vst [vmem:[%s2176] ss:$4 sm:$0xff] %v2051
        %v2268 = vld.sshfl [vmem:[#allocation1] sm:$0xff pattern:$0x73625140]
        %v2269 = vld.sshfl [vmem:[#allocation1 + $0x20] sm:$0xff pattern:$0x73625140]
        %2270 = vst [vmem:[#allocation1] ss:$4 sm:$0xff] %v2052
        %2271 = vst [vmem:[%s2164] ss:$4 sm:$0xff] %v2054
        %2272 = vst [vmem:[%s2166] ss:$4 sm:$0xff] %v2055
        %2273 = vst [vmem:[%s2168] ss:$4 sm:$0xff] %v2056
        %2274 = vst [vmem:[%s2170] ss:$4 sm:$0xff] %v2059
        %2275 = vst [vmem:[%s2172] ss:$4 sm:$0xff] %v2060
        %2276 = vst [vmem:[%s2174] ss:$4 sm:$0xff] %v2061
        %2277 = vst [vmem:[%s2176] ss:$4 sm:$0xff] %v2062
        %v2278 = vld.sshfl [vmem:[#allocation1] sm:$0xff pattern:$0x73625140]
        %v2279 = vld.sshfl [vmem:[#allocation1 + $0x20] sm:$0xff pattern:$0x73625140]
        %2280 = vst [vmem:[#allocation1] ss:$4 sm:$0xff] %v2063
        %2281 = vst [vmem:[%s2164] ss:$4 sm:$0xff] %v2064
        %2282 = vst [vmem:[%s2166] ss:$4 sm:$0xff] %v2067
        %2283 = vst [vmem:[%s2168] ss:$4 sm:$0xff] %v2068
        %2284 = vst [vmem:[%s2170] ss:$4 sm:$0xff] %v2069
        %2285 = vst [vmem:[%s2172] ss:$4 sm:$0xff] %v2070
        %2286 = vst [vmem:[%s2174] ss:$4 sm:$0xff] %v2071
        %2287 = vst [vmem:[%s2176] ss:$4 sm:$0xff] %v2072
        %v2288 = vld.sshfl [vmem:[#allocation1] sm:$0xff pattern:$0x73625140]
        %v2289 = vld.sshfl [vmem:[#allocation1 + $0x20] sm:$0xff pattern:$0x73625140]
        %2290 = vst [vmem:[#allocation1] ss:$4 sm:$0xff] %v2073
        %2291 = vst [vmem:[%s2164] ss:$4 sm:$0xff] %v2075
        %2292 = vst [vmem:[%s2166] ss:$4 sm:$0xff] %v2076
        %2293 = vst [vmem:[%s2168] ss:$4 sm:$0xff] %v2078
        %2294 = vst [vmem:[%s2170] ss:$4 sm:$0xff] %v2079
        %2295 = vst [vmem:[%s2172] ss:$4 sm:$0xff] %v2080
        %2296 = vst [vmem:[%s2174] ss:$4 sm:$0xff] %v2083
        %2297 = vst [vmem:[%s2176] ss:$4 sm:$0xff] %v2084
        %v2298 = vld.sshfl [vmem:[#allocation1] sm:$0xff pattern:$0x73625140]
        %v2299 = vld.sshfl [vmem:[#allocation1 + $0x20] sm:$0xff pattern:$0x73625140]
        %2300 = vst [vmem:[#allocation1] ss:$4 sm:$0xff] %v2085
        %2301 = vst [vmem:[%s2164] ss:$4 sm:$0xff] %v2086
        %2302 = vst [vmem:[%s2166] ss:$4 sm:$0xff] %v2087
        %2303 = vst [vmem:[%s2168] ss:$4 sm:$0xff] %v2088
        %2304 = vst [vmem:[%s2170] ss:$4 sm:$0xff] %v2091
        %2305 = vst [vmem:[%s2172] ss:$4 sm:$0xff] %v2092
        %2306 = vst [vmem:[%s2174] ss:$4 sm:$0xff] %v2093
        %2307 = vst [vmem:[%s2176] ss:$4 sm:$0xff] %v2094
        %v2308 = vld.sshfl [vmem:[#allocation1] sm:$0xff pattern:$0x73625140]
        %v2309 = vld.sshfl [vmem:[#allocation1 + $0x20] sm:$0xff pattern:$0x73625140]
        %2310 = vst [vmem:[#allocation1] ss:$4 sm:$0xff] %v2095
        %2311 = vst [vmem:[%s2164] ss:$4 sm:$0xff] %v2096
        %2312 = vst [vmem:[%s2166] ss:$4 sm:$0xff] %v2097
        %2313 = vst [vmem:[%s2168] ss:$4 sm:$0xff] %v2099
        %2314 = vst [vmem:[%s2170] ss:$4 sm:$0xff] %v2100
        %2315 = vst [vmem:[%s2172] ss:$4 sm:$0xff] %v2102
        %2316 = vst [vmem:[%s2174] ss:$4 sm:$0xff] %v2103
        %2317 = vst [vmem:[%s2176] ss:$4 sm:$0xff] %v2104
        %v2318 = vld.sshfl [vmem:[#allocation1] sm:$0xff pattern:$0x73625140]
        %v2319 = vld.sshfl [vmem:[#allocation1 + $0x20] sm:$0xff pattern:$0x73625140]
        %2320 = vst [vmem:[#allocation1] ss:$4 sm:$0xff] %v2107
        %2321 = vst [vmem:[%s2164] ss:$4 sm:$0xff] %v2108
        %2322 = vst [vmem:[%s2166] ss:$4 sm:$0xff] %v2109
        %2323 = vst [vmem:[%s2168] ss:$4 sm:$0xff] %v2110
        %2324 = vst [vmem:[%s2170] ss:$4 sm:$0xff] %v2111
        %2325 = vst [vmem:[%s2172] ss:$4 sm:$0xff] %v2112
        %2326 = vst [vmem:[%s2174] ss:$4 sm:$0xff] %v2115
        %2327 = vst [vmem:[%s2176] ss:$4 sm:$0xff] %v2116
        %v2328 = vld.sshfl [vmem:[#allocation1] sm:$0xff pattern:$0x73625140]
        %v2329 = vld.sshfl [vmem:[#allocation1 + $0x20] sm:$0xff pattern:$0x73625140]
        %2330 = vst [vmem:[#allocation1] ss:$4 sm:$0xff] %v2117
        %2331 = vst [vmem:[%s2164] ss:$4 sm:$0xff] %v2118
        %2332 = vst [vmem:[%s2166] ss:$4 sm:$0xff] %v2119
        %2333 = vst [vmem:[%s2168] ss:$4 sm:$0xff] %v2120
        %2334 = vst [vmem:[%s2170] ss:$4 sm:$0xff] %v2121
        %2335 = vst [vmem:[%s2172] ss:$4 sm:$0xff] %v2123
        %2336 = vst [vmem:[%s2174] ss:$4 sm:$0xff] %v2124
        %2337 = vst [vmem:[%s2176] ss:$4 sm:$0xff] %v2126
        %v2338 = vld.sshfl [vmem:[#allocation1] sm:$0xff pattern:$0x73625140]
        %v2339 = vld.sshfl [vmem:[#allocation1 + $0x20] sm:$0xff pattern:$0x73625140]
        %2340 = vst [vmem:[#allocation1] ss:$4 sm:$0xff] %v2127
        %2341 = vst [vmem:[%s2164] ss:$4 sm:$0xff] %v2128
        %2342 = vst [vmem:[%s2166] ss:$4 sm:$0xff] %v2131
        %2343 = vst [vmem:[%s2168] ss:$4 sm:$0xff] %v2132
        %2344 = vst [vmem:[%s2170] ss:$4 sm:$0xff] %v2133
        %2345 = vst [vmem:[%s2172] ss:$4 sm:$0xff] %v2134
        %2346 = vst [vmem:[%s2174] ss:$4 sm:$0xff] %v2135
        %2347 = vst [vmem:[%s2176] ss:$4 sm:$0xff] %v2136
        %v2348 = vld.sshfl [vmem:[#allocation1] sm:$0xff pattern:$0x73625140]
        %v2349 = vld.sshfl [vmem:[#allocation1 + $0x20] sm:$0xff pattern:$0x73625140]
        %2350 = vst [vmem:[#allocation1] ss:$4 sm:$0xff] %v2139
        %2351 = vst [vmem:[%s2164] ss:$4 sm:$0xff] %v2140
        %2352 = vst [vmem:[%s2166] ss:$4 sm:$0xff] %v2141
        %2353 = vst [vmem:[%s2168] ss:$4 sm:$0xff] %v2142
        %2354 = vst [vmem:[%s2170] ss:$4 sm:$0xff] %v2143
        %2355 = vst [vmem:[%s2172] ss:$4 sm:$0xff] %v2144
        %2356 = vst [vmem:[%s2174] ss:$4 sm:$0xff] %v2145
        %2357 = vst [vmem:[%s2176] ss:$4 sm:$0xff] %v2147
        %v2358 = vld.sshfl [vmem:[#allocation1] sm:$0xff pattern:$0x73625140]
        %v2359 = vld.sshfl [vmem:[#allocation1 + $0x20] sm:$0xff pattern:$0x73625140]
        %2360 = vst [vmem:[#allocation1] ss:$4 sm:$0xff] %v2148
        %2361 = vst [vmem:[%s2164] ss:$4 sm:$0xff] %v2150
        %2362 = vst [vmem:[%s2166] ss:$4 sm:$0xff] %v2151
        %2363 = vst [vmem:[%s2168] ss:$4 sm:$0xff] %v2152
        %2364 = vst [vmem:[%s2170] ss:$4 sm:$0xff] %v2155
        %2365 = vst [vmem:[%s2172] ss:$4 sm:$0xff] %v2156
        %2366 = vst [vmem:[%s2174] ss:$4 sm:$0xff] %v2157
        %2367 = vst [vmem:[%s2176] ss:$4 sm:$0xff] %v2158
        %v2368 = vld.sshfl [vmem:[#allocation1] sm:$0xff pattern:$0x73625140]
        %v2369 = vld.sshfl [vmem:[#allocation1 + $0x20] sm:$0xff pattern:$0x73625140]
        %2370 = vst [vmem:[#allocation1] ss:$4 sm:$0xff] %v2159
        %2371 = vst [vmem:[%s2164] ss:$4 sm:$0xff] %v2160
        %v2372 = vld.sshfl [vmem:[#allocation1] sm:$0xff pattern:$0x73625140]
        %v2373 = vsel %vm1276, %v2178, 0
        %v2375 = vsel %vm1276, %v2179, 0
        %v2377 = vsel %vm1276, %v2188, 0
        %v2379 = vsel %vm1276, %v2189, 0
        %v2381 = vsel %vm1276, %v2198, 0
        %v2383 = vsel %vm1276, %v2199, 0
        %v2385 = vsel %vm1276, %v2208, 0
        %v2387 = vsel %vm1276, %v2209, 0
        %v2389 = vsel %vm1276, %v2218, 0
        %v2391 = vsel %vm1276, %v2219, 0
        %v2393 = vsel %vm1276, %v2228, 0
        %v2395 = vsel %vm1276, %v2229, 0
        %v2397 = vsel %vm1276, %v2238, 0
        %v2399 = vsel %vm1276, %v2239, 0
        %v2401 = vsel %vm1276, %v2248, 0
        %v2403 = vsel %vm1276, %v2249, 0
        %v2405 = vsel %vm1276, %v2258, 0
        %v2407 = vsel %vm1276, %v2259, 0
        %v2409 = vsel %vm1276, %v2268, 0
        %v2411 = vsel %vm1276, %v2269, 0
        %v2413 = vsel %vm1276, %v2278, 0
        %v2415 = vsel %vm1276, %v2279, 0
        %v2417 = vsel %vm1276, %v2288, 0
        %v2419 = vsel %vm1276, %v2289, 0
        %v2421 = vsel %vm1276, %v2298, 0
        %v2423 = vsel %vm1276, %v2299, 0
        %v2425 = vsel %vm1276, %v2308, 0
        %v2427 = vsel %vm1276, %v2309, 0
        %v2429 = vsel %vm1276, %v2318, 0
        %v2431 = vsel %vm1276, %v2319, 0
        %v2433 = vsel %vm1276, %v2328, 0
        %v2435 = vsel %vm1276, %v2329, 0
        %v2437 = vsel %vm1276, %v2338, 0
        %v2439 = vsel %vm1276, %v2339, 0
        %v2441 = vsel %vm1276, %v2348, 0
        %v2443 = vsel %vm1276, %v2349, 0
        %v2445 = vsel %vm1276, %v2358, 0
        %v2447 = vsel %vm1276, %v2359, 0
        %v2449 = vsel %vm1276, %v2368, 0
        %v2451 = vsel %vm1276, %v2369, 0
        %v2453 = vsel %vm1276, %v2372, 0
        %v2456 = vsel %vm1359, %v2162, 0
        %2458 = vmatpush.msra.mxu0 0.0
        %2459 = vmatpush.msra.mxu0 0.0
        %2460 = vmatpush.msra.mxu0 0.0
        %2461 = vmatpush.msra.mxu0 0.0
        %2462 = vmatpush.msra.mxu0 0.0
        %2463 = vmatpush.msra.mxu0 0.0
        %2464 = vmatpush.msra.mxu0 0.0
        %2465 = vmatpush.msra.mxu0 0.0
        %2466 = vmatpush.msra.mxu0 0.0
        %2467 = vmatpush.msra.mxu0 0.0
        %2468 = vmatpush.msra.mxu0 0.0
        %2469 = vmatpush.msra.mxu0 0.0
        %2470 = vmatpush.msra.mxu0 0.0
        %2471 = vmatpush.msra.mxu0 0.0
        %2472 = vmatpush.msra.mxu0 0.0
        %2473 = vmatpush.msra.mxu0 %v2456
        %2474 = vmatmul.f32.gmra.mxu0 %v2373
        %v2475 = vpop.f32.mrf.mxu0
        %v2476 = vadd.f32 0.0, %v2475
        %2477 = vmatmul.f32.gmra.mxu0 %v2375
        %v2478 = vpop.f32.mrf.mxu0
        %v2479 = vadd.f32 0.0, %v2478
        %2480 = vmatmul.f32.gmra.mxu0 %v2377
        %v2481 = vpop.f32.mrf.mxu0
        %v2482 = vadd.f32 0.0, %v2481
        %2483 = vmatmul.f32.gmra.mxu0 %v2379
        %v2484 = vpop.f32.mrf.mxu0
        %v2485 = vadd.f32 0.0, %v2484
        %2486 = vmatmul.f32.gmra.mxu0 %v2381
        %v2487 = vpop.f32.mrf.mxu0
        %v2488 = vadd.f32 0.0, %v2487
        %2489 = vmatmul.f32.gmra.mxu0 %v2383
        %v2490 = vpop.f32.mrf.mxu0
        %v2491 = vadd.f32 0.0, %v2490
        %2492 = vmatmul.f32.gmra.mxu0 %v2385
        %v2493 = vpop.f32.mrf.mxu0
        %v2494 = vadd.f32 0.0, %v2493
        %2495 = vmatmul.f32.gmra.mxu0 %v2387
        %v2496 = vpop.f32.mrf.mxu0
        %v2497 = vadd.f32 0.0, %v2496
        %2498 = vmatmul.f32.gmra.mxu0 %v2389
        %v2499 = vpop.f32.mrf.mxu0
        %v2500 = vadd.f32 0.0, %v2499
        %2501 = vmatmul.f32.gmra.mxu0 %v2391
        %v2502 = vpop.f32.mrf.mxu0
        %v2503 = vadd.f32 0.0, %v2502
        %2504 = vmatmul.f32.gmra.mxu0 %v2393
        %v2505 = vpop.f32.mrf.mxu0
        %v2506 = vadd.f32 0.0, %v2505
        %2507 = vmatmul.f32.gmra.mxu0 %v2395
        %v2508 = vpop.f32.mrf.mxu0
        %v2509 = vadd.f32 0.0, %v2508
        %2510 = vmatmul.f32.gmra.mxu0 %v2397
        %v2511 = vpop.f32.mrf.mxu0
        %v2512 = vadd.f32 0.0, %v2511
        %2513 = vmatmul.f32.gmra.mxu0 %v2399
        %v2514 = vpop.f32.mrf.mxu0
        %v2515 = vadd.f32 0.0, %v2514
        %2516 = vmatmul.f32.gmra.mxu0 %v2401
        %v2517 = vpop.f32.mrf.mxu0
        %v2518 = vadd.f32 0.0, %v2517
        %2519 = vmatmul.f32.gmra.mxu0 %v2403
        %v2520 = vpop.f32.mrf.mxu0
        %v2521 = vadd.f32 0.0, %v2520
        %2522 = vmatmul.f32.gmra.mxu0 %v2405
        %v2523 = vpop.f32.mrf.mxu0
        %v2524 = vadd.f32 0.0, %v2523
        %2525 = vmatmul.f32.gmra.mxu0 %v2407
        %v2526 = vpop.f32.mrf.mxu0
        %v2527 = vadd.f32 0.0, %v2526
        %2528 = vmatmul.f32.gmra.mxu0 %v2409
        %v2529 = vpop.f32.mrf.mxu0
        %v2530 = vadd.f32 0.0, %v2529
        %2531 = vmatmul.f32.gmra.mxu0 %v2411
        %v2532 = vpop.f32.mrf.mxu0
        %v2533 = vadd.f32 0.0, %v2532
        %2534 = vmatmul.f32.gmra.mxu0 %v2413
        %v2535 = vpop.f32.mrf.mxu0
        %v2536 = vadd.f32 0.0, %v2535
        %2537 = vmatmul.f32.gmra.mxu0 %v2415
        %v2538 = vpop.f32.mrf.mxu0
        %v2539 = vadd.f32 0.0, %v2538
        %2540 = vmatmul.f32.gmra.mxu0 %v2417
        %v2541 = vpop.f32.mrf.mxu0
        %v2542 = vadd.f32 0.0, %v2541
        %2543 = vmatmul.f32.gmra.mxu0 %v2419
        %v2544 = vpop.f32.mrf.mxu0
        %v2545 = vadd.f32 0.0, %v2544
        %2546 = vmatmul.f32.gmra.mxu0 %v2421
        %v2547 = vpop.f32.mrf.mxu0
        %v2548 = vadd.f32 0.0, %v2547
        %2549 = vmatmul.f32.gmra.mxu0 %v2423
        %v2550 = vpop.f32.mrf.mxu0
        %v2551 = vadd.f32 0.0, %v2550
        %2552 = vmatmul.f32.gmra.mxu0 %v2425
        %v2553 = vpop.f32.mrf.mxu0
        %v2554 = vadd.f32 0.0, %v2553
        %2555 = vmatmul.f32.gmra.mxu0 %v2427
        %v2556 = vpop.f32.mrf.mxu0
        %v2557 = vadd.f32 0.0, %v2556
        %2558 = vmatmul.f32.gmra.mxu0 %v2429
        %v2559 = vpop.f32.mrf.mxu0
        %v2560 = vadd.f32 0.0, %v2559
        %2561 = vmatmul.f32.gmra.mxu0 %v2431
        %v2562 = vpop.f32.mrf.mxu0
        %v2563 = vadd.f32 0.0, %v2562
        %2564 = vmatmul.f32.gmra.mxu0 %v2433
        %v2565 = vpop.f32.mrf.mxu0
        %v2566 = vadd.f32 0.0, %v2565
        %2567 = vmatmul.f32.gmra.mxu0 %v2435
        %v2568 = vpop.f32.mrf.mxu0
        %v2569 = vadd.f32 0.0, %v2568
        %2570 = vmatmul.f32.gmra.mxu0 %v2437
        %v2571 = vpop.f32.mrf.mxu0
        %v2572 = vadd.f32 0.0, %v2571
        %2573 = vmatmul.f32.gmra.mxu0 %v2439
        %v2574 = vpop.f32.mrf.mxu0
        %v2575 = vadd.f32 0.0, %v2574
        %2576 = vmatmul.f32.gmra.mxu0 %v2441
        %v2577 = vpop.f32.mrf.mxu0
        %v2578 = vadd.f32 0.0, %v2577
        %2579 = vmatmul.f32.gmra.mxu0 %v2443
        %v2580 = vpop.f32.mrf.mxu0
        %v2581 = vadd.f32 0.0, %v2580
        %2582 = vmatmul.f32.gmra.mxu0 %v2445
        %v2583 = vpop.f32.mrf.mxu0
        %v2584 = vadd.f32 0.0, %v2583
        %2585 = vmatmul.f32.gmra.mxu0 %v2447
        %v2586 = vpop.f32.mrf.mxu0
        %v2587 = vadd.f32 0.0, %v2586
        %2588 = vmatmul.f32.gmra.mxu0 %v2449
        %v2589 = vpop.f32.mrf.mxu0
        %v2590 = vadd.f32 0.0, %v2589
        %2591 = vmatmul.f32.gmra.mxu0 %v2451
        %v2592 = vpop.f32.mrf.mxu0
        %v2593 = vadd.f32 0.0, %v2592
        %2594 = vmatmul.f32.gmra.mxu0 %v2453
        %v2595 = vpop.f32.mrf.mxu0
        %v2596 = vadd.f32 0.0, %v2595
        %2597 = vdwg.mxu0
        %v2598 = vadd.f32 %v1816, %v2476
        %v2599 = vadd.f32 %v1819, %v2479
        %v2600 = vadd.f32 %v1822, %v2482
        %v2601 = vadd.f32 %v1825, %v2485
        %v2602 = vadd.f32 %v1828, %v2488
        %v2603 = vadd.f32 %v1831, %v2491
        %v2604 = vadd.f32 %v1834, %v2494
        %v2605 = vadd.f32 %v1837, %v2497
        %v2606 = vadd.f32 %v1840, %v2500
        %v2607 = vadd.f32 %v1843, %v2503
        %v2608 = vadd.f32 %v1846, %v2506
        %v2609 = vadd.f32 %v1849, %v2509
        %v2610 = vadd.f32 %v1852, %v2512
        %v2611 = vadd.f32 %v1855, %v2515
        %v2612 = vadd.f32 %v1858, %v2518
        %v2613 = vadd.f32 %v1861, %v2521
        %v2614 = vadd.f32 %v1864, %v2524
        %v2615 = vadd.f32 %v1867, %v2527
        %v2616 = vadd.f32 %v1870, %v2530
        %v2617 = vadd.f32 %v1873, %v2533
        %v2618 = vadd.f32 %v1876, %v2536
        %v2619 = vadd.f32 %v1879, %v2539
        %v2620 = vadd.f32 %v1882, %v2542
        %v2621 = vadd.f32 %v1885, %v2545
        %v2622 = vadd.f32 %v1888, %v2548
        %v2623 = vadd.f32 %v1891, %v2551
        %v2624 = vadd.f32 %v1894, %v2554
        %v2625 = vadd.f32 %v1897, %v2557
        %v2626 = vadd.f32 %v1900, %v2560
        %v2627 = vadd.f32 %v1903, %v2563
        %v2628 = vadd.f32 %v1906, %v2566
        %v2629 = vadd.f32 %v1909, %v2569
        %v2630 = vadd.f32 %v1912, %v2572
        %v2631 = vadd.f32 %v1915, %v2575
        %v2632 = vadd.f32 %v1918, %v2578
        %v2633 = vadd.f32 %v1921, %v2581
        %v2634 = vadd.f32 %v1924, %v2584
        %v2635 = vadd.f32 %v1927, %v2587
        %v2636 = vadd.f32 %v1930, %v2590
        %v2637 = vadd.f32 %v1933, %v2593
        %v2638 = vadd.f32 %v1936, %v2596
        %v2642 = vrot.slane %v366, 2
        %v2643 = vrot.slane %v366, 4
        %v2644 = vrot.slane %v366, 6
        %v2645 = vrot.slane %v367, 2
        %v2646 = vrot.slane %v367, 4
        %v2647 = vrot.slane %v367, 6
        %s2648 = scalar_lea.vmem %s1, 12
        %v2649 = vld [vmem:[%s2648] sm:$0xf]
        %2650 = vst [vmem:[#allocation1] ss:$4 sm:$0xff] %v315
        %s2651 = scalar_lea.vmem [#allocation1], 1
        %2652 = vst [vmem:[%s2651] ss:$4 sm:$0xff] %v432
        %s2653 = scalar_lea.vmem [#allocation1], 2
        %2654 = vst [vmem:[%s2653] ss:$4 sm:$0xff] %v433
        %s2655 = scalar_lea.vmem [#allocation1], 3
        %2656 = vst [vmem:[%s2655] ss:$4 sm:$0xff] %v434
        %s2657 = scalar_lea.vmem [#allocation1], 32
        %2658 = vst [vmem:[%s2657] ss:$4 sm:$0xff] %v316
        %s2659 = scalar_lea.vmem [#allocation1], 33
        %2660 = vst [vmem:[%s2659] ss:$4 sm:$0xff] %v435
        %s2661 = scalar_lea.vmem [#allocation1], 34
        %2662 = vst [vmem:[%s2661] ss:$4 sm:$0xff] %v436
        %s2663 = scalar_lea.vmem [#allocation1], 35
        %2664 = vst [vmem:[%s2663] ss:$4 sm:$0xff] %v437
        %v2665 = vld.sshfl [vmem:[#allocation1] sm:$0xff pattern:$0x73625140]
        %v2666 = vld.sshfl [vmem:[#allocation1 + $0x20] sm:$0xff pattern:$0x73625140]
        %2667 = vst [vmem:[#allocation1] ss:$4 sm:$0xff] %v317
        %2668 = vst [vmem:[%s2651] ss:$4 sm:$0xff] %v318
        %2669 = vst [vmem:[%s2653] ss:$4 sm:$0xff] %v438
        %2670 = vst [vmem:[%s2655] ss:$4 sm:$0xff] %v439
        %2671 = vst [vmem:[%s2657] ss:$4 sm:$0xff] %v440
        %2672 = vst [vmem:[%s2659] ss:$4 sm:$0xff] %v319
        %2673 = vst [vmem:[%s2661] ss:$4 sm:$0xff] %v441
        %2674 = vst [vmem:[%s2663] ss:$4 sm:$0xff] %v442
        %v2675 = vld.sshfl [vmem:[#allocation1] sm:$0xff pattern:$0x73625140]
        %v2676 = vld.sshfl [vmem:[#allocation1 + $0x20] sm:$0xff pattern:$0x73625140]
        %2677 = vst [vmem:[#allocation1] ss:$4 sm:$0xff] %v443
        %2678 = vst [vmem:[%s2651] ss:$4 sm:$0xff] %v320
        %2679 = vst [vmem:[%s2653] ss:$4 sm:$0xff] %v321
        %2680 = vst [vmem:[%s2655] ss:$4 sm:$0xff] %v444
        %2681 = vst [vmem:[%s2657] ss:$4 sm:$0xff] %v445
        %2682 = vst [vmem:[%s2659] ss:$4 sm:$0xff] %v446
        %2683 = vst [vmem:[%s2661] ss:$4 sm:$0xff] %v322
        %2684 = vst [vmem:[%s2663] ss:$4 sm:$0xff] %v447
        %v2685 = vld.sshfl [vmem:[#allocation1] sm:$0xff pattern:$0x73625140]
        %v2686 = vld.sshfl [vmem:[#allocation1 + $0x20] sm:$0xff pattern:$0x73625140]
        %2687 = vst [vmem:[#allocation1] ss:$4 sm:$0xff] %v448
        %2688 = vst [vmem:[%s2651] ss:$4 sm:$0xff] %v449
        %2689 = vst [vmem:[%s2653] ss:$4 sm:$0xff] %v323
        %2690 = vst [vmem:[%s2655] ss:$4 sm:$0xff] %v324
        %2691 = vst [vmem:[%s2657] ss:$4 sm:$0xff] %v450
        %2692 = vst [vmem:[%s2659] ss:$4 sm:$0xff] %v451
        %2693 = vst [vmem:[%s2661] ss:$4 sm:$0xff] %v452
        %2694 = vst [vmem:[%s2663] ss:$4 sm:$0xff] %v325
        %v2695 = vld.sshfl [vmem:[#allocation1] sm:$0xff pattern:$0x73625140]
        %v2696 = vld.sshfl [vmem:[#allocation1 + $0x20] sm:$0xff pattern:$0x73625140]
        %2697 = vst [vmem:[#allocation1] ss:$4 sm:$0xff] %v453
        %2698 = vst [vmem:[%s2651] ss:$4 sm:$0xff] %v454
        %2699 = vst [vmem:[%s2653] ss:$4 sm:$0xff] %v455
        %2700 = vst [vmem:[%s2655] ss:$4 sm:$0xff] %v326
        %2701 = vst [vmem:[%s2657] ss:$4 sm:$0xff] %v327
        %2702 = vst [vmem:[%s2659] ss:$4 sm:$0xff] %v456
        %2703 = vst [vmem:[%s2661] ss:$4 sm:$0xff] %v457
        %2704 = vst [vmem:[%s2663] ss:$4 sm:$0xff] %v458
        %v2705 = vld.sshfl [vmem:[#allocation1] sm:$0xff pattern:$0x73625140]
        %v2706 = vld.sshfl [vmem:[#allocation1 + $0x20] sm:$0xff pattern:$0x73625140]
        %2707 = vst [vmem:[#allocation1] ss:$4 sm:$0xff] %v328
        %2708 = vst [vmem:[%s2651] ss:$4 sm:$0xff] %v459
        %2709 = vst [vmem:[%s2653] ss:$4 sm:$0xff] %v460
        %2710 = vst [vmem:[%s2655] ss:$4 sm:$0xff] %v461
        %2711 = vst [vmem:[%s2657] ss:$4 sm:$0xff] %v329
        %2712 = vst [vmem:[%s2659] ss:$4 sm:$0xff] %v330
        %2713 = vst [vmem:[%s2661] ss:$4 sm:$0xff] %v462
        %2714 = vst [vmem:[%s2663] ss:$4 sm:$0xff] %v463
        %v2715 = vld.sshfl [vmem:[#allocation1] sm:$0xff pattern:$0x73625140]
        %v2716 = vld.sshfl [vmem:[#allocation1 + $0x20] sm:$0xff pattern:$0x73625140]
        %2717 = vst [vmem:[#allocation1] ss:$4 sm:$0xff] %v464
        %2718 = vst [vmem:[%s2651] ss:$4 sm:$0xff] %v331
        %2719 = vst [vmem:[%s2653] ss:$4 sm:$0xff] %v465
        %2720 = vst [vmem:[%s2655] ss:$4 sm:$0xff] %v466
        %2721 = vst [vmem:[%s2657] ss:$4 sm:$0xff] %v467
        %2722 = vst [vmem:[%s2659] ss:$4 sm:$0xff] %v332
        %2723 = vst [vmem:[%s2661] ss:$4 sm:$0xff] %v333
        %2724 = vst [vmem:[%s2663] ss:$4 sm:$0xff] %v468
        %v2725 = vld.sshfl [vmem:[#allocation1] sm:$0xff pattern:$0x73625140]
        %v2726 = vld.sshfl [vmem:[#allocation1 + $0x20] sm:$0xff pattern:$0x73625140]
        %2727 = vst [vmem:[#allocation1] ss:$4 sm:$0xff] %v469
        %2728 = vst [vmem:[%s2651] ss:$4 sm:$0xff] %v470
        %2729 = vst [vmem:[%s2653] ss:$4 sm:$0xff] %v334
        %2730 = vst [vmem:[%s2655] ss:$4 sm:$0xff] %v471
        %2731 = vst [vmem:[%s2657] ss:$4 sm:$0xff] %v472
        %2732 = vst [vmem:[%s2659] ss:$4 sm:$0xff] %v473
        %2733 = vst [vmem:[%s2661] ss:$4 sm:$0xff] %v335
        %2734 = vst [vmem:[%s2663] ss:$4 sm:$0xff] %v336
        %v2735 = vld.sshfl [vmem:[#allocation1] sm:$0xff pattern:$0x73625140]
        %v2736 = vld.sshfl [vmem:[#allocation1 + $0x20] sm:$0xff pattern:$0x73625140]
        %2737 = vst [vmem:[#allocation1] ss:$4 sm:$0xff] %v474
        %2738 = vst [vmem:[%s2651] ss:$4 sm:$0xff] %v475
        %2739 = vst [vmem:[%s2653] ss:$4 sm:$0xff] %v476
        %2740 = vst [vmem:[%s2655] ss:$4 sm:$0xff] %v337
        %2741 = vst [vmem:[%s2657] ss:$4 sm:$0xff] %v477
        %2742 = vst [vmem:[%s2659] ss:$4 sm:$0xff] %v478
        %2743 = vst [vmem:[%s2661] ss:$4 sm:$0xff] %v479
        %2744 = vst [vmem:[%s2663] ss:$4 sm:$0xff] %v338
        %v2745 = vld.sshfl [vmem:[#allocation1] sm:$0xff pattern:$0x73625140]
        %v2746 = vld.sshfl [vmem:[#allocation1 + $0x20] sm:$0xff pattern:$0x73625140]
        %2747 = vst [vmem:[#allocation1] ss:$4 sm:$0xff] %v339
        %2748 = vst [vmem:[%s2651] ss:$4 sm:$0xff] %v480
        %2749 = vst [vmem:[%s2653] ss:$4 sm:$0xff] %v481
        %2750 = vst [vmem:[%s2655] ss:$4 sm:$0xff] %v482
        %2751 = vst [vmem:[%s2657] ss:$4 sm:$0xff] %v340
        %2752 = vst [vmem:[%s2659] ss:$4 sm:$0xff] %v483
        %2753 = vst [vmem:[%s2661] ss:$4 sm:$0xff] %v484
        %2754 = vst [vmem:[%s2663] ss:$4 sm:$0xff] %v485
        %v2755 = vld.sshfl [vmem:[#allocation1] sm:$0xff pattern:$0x73625140]
        %v2756 = vld.sshfl [vmem:[#allocation1 + $0x20] sm:$0xff pattern:$0x73625140]
        %2757 = vst [vmem:[#allocation1] ss:$4 sm:$0xff] %v341
        %2758 = vst [vmem:[%s2651] ss:$4 sm:$0xff] %v342
        %2759 = vst [vmem:[%s2653] ss:$4 sm:$0xff] %v486
        %2760 = vst [vmem:[%s2655] ss:$4 sm:$0xff] %v487
        %2761 = vst [vmem:[%s2657] ss:$4 sm:$0xff] %v488
        %2762 = vst [vmem:[%s2659] ss:$4 sm:$0xff] %v343
        %2763 = vst [vmem:[%s2661] ss:$4 sm:$0xff] %v489
        %2764 = vst [vmem:[%s2663] ss:$4 sm:$0xff] %v490
        %v2765 = vld.sshfl [vmem:[#allocation1] sm:$0xff pattern:$0x73625140]
        %v2766 = vld.sshfl [vmem:[#allocation1 + $0x20] sm:$0xff pattern:$0x73625140]
        %2767 = vst [vmem:[#allocation1] ss:$4 sm:$0xff] %v491
        %2768 = vst [vmem:[%s2651] ss:$4 sm:$0xff] %v344
        %2769 = vst [vmem:[%s2653] ss:$4 sm:$0xff] %v345
        %2770 = vst [vmem:[%s2655] ss:$4 sm:$0xff] %v492
        %2771 = vst [vmem:[%s2657] ss:$4 sm:$0xff] %v493
        %2772 = vst [vmem:[%s2659] ss:$4 sm:$0xff] %v494
        %2773 = vst [vmem:[%s2661] ss:$4 sm:$0xff] %v346
        %2774 = vst [vmem:[%s2663] ss:$4 sm:$0xff] %v495
        %v2775 = vld.sshfl [vmem:[#allocation1] sm:$0xff pattern:$0x73625140]
        %v2776 = vld.sshfl [vmem:[#allocation1 + $0x20] sm:$0xff pattern:$0x73625140]
        %2777 = vst [vmem:[#allocation1] ss:$4 sm:$0xff] %v496
        %2778 = vst [vmem:[%s2651] ss:$4 sm:$0xff] %v497
        %2779 = vst [vmem:[%s2653] ss:$4 sm:$0xff] %v347
        %2780 = vst [vmem:[%s2655] ss:$4 sm:$0xff] %v348
        %2781 = vst [vmem:[%s2657] ss:$4 sm:$0xff] %v498
        %2782 = vst [vmem:[%s2659] ss:$4 sm:$0xff] %v499
        %2783 = vst [vmem:[%s2661] ss:$4 sm:$0xff] %v500
        %2784 = vst [vmem:[%s2663] ss:$4 sm:$0xff] %v349
        %v2785 = vld.sshfl [vmem:[#allocation1] sm:$0xff pattern:$0x73625140]
        %v2786 = vld.sshfl [vmem:[#allocation1 + $0x20] sm:$0xff pattern:$0x73625140]
        %2787 = vst [vmem:[#allocation1] ss:$4 sm:$0xff] %v501
        %2788 = vst [vmem:[%s2651] ss:$4 sm:$0xff] %v502
        %2789 = vst [vmem:[%s2653] ss:$4 sm:$0xff] %v503
        %2790 = vst [vmem:[%s2655] ss:$4 sm:$0xff] %v350
        %2791 = vst [vmem:[%s2657] ss:$4 sm:$0xff] %v351
        %2792 = vst [vmem:[%s2659] ss:$4 sm:$0xff] %v504
        %2793 = vst [vmem:[%s2661] ss:$4 sm:$0xff] %v505
        %2794 = vst [vmem:[%s2663] ss:$4 sm:$0xff] %v506
        %v2795 = vld.sshfl [vmem:[#allocation1] sm:$0xff pattern:$0x73625140]
        %v2796 = vld.sshfl [vmem:[#allocation1 + $0x20] sm:$0xff pattern:$0x73625140]
        %2797 = vst [vmem:[#allocation1] ss:$4 sm:$0xff] %v352
        %2798 = vst [vmem:[%s2651] ss:$4 sm:$0xff] %v507
        %2799 = vst [vmem:[%s2653] ss:$4 sm:$0xff] %v508
        %2800 = vst [vmem:[%s2655] ss:$4 sm:$0xff] %v509
        %2801 = vst [vmem:[%s2657] ss:$4 sm:$0xff] %v353
        %2802 = vst [vmem:[%s2659] ss:$4 sm:$0xff] %v354
        %2803 = vst [vmem:[%s2661] ss:$4 sm:$0xff] %v510
        %2804 = vst [vmem:[%s2663] ss:$4 sm:$0xff] %v511
        %v2805 = vld.sshfl [vmem:[#allocation1] sm:$0xff pattern:$0x73625140]
        %v2806 = vld.sshfl [vmem:[#allocation1 + $0x20] sm:$0xff pattern:$0x73625140]
        %2807 = vst [vmem:[#allocation1] ss:$4 sm:$0xff] %v512
        %2808 = vst [vmem:[%s2651] ss:$4 sm:$0xff] %v355
        %2809 = vst [vmem:[%s2653] ss:$4 sm:$0xff] %v513
        %2810 = vst [vmem:[%s2655] ss:$4 sm:$0xff] %v514
        %2811 = vst [vmem:[%s2657] ss:$4 sm:$0xff] %v515
        %2812 = vst [vmem:[%s2659] ss:$4 sm:$0xff] %v356
        %2813 = vst [vmem:[%s2661] ss:$4 sm:$0xff] %v357
        %2814 = vst [vmem:[%s2663] ss:$4 sm:$0xff] %v516
        %v2815 = vld.sshfl [vmem:[#allocation1] sm:$0xff pattern:$0x73625140]
        %v2816 = vld.sshfl [vmem:[#allocation1 + $0x20] sm:$0xff pattern:$0x73625140]
        %2817 = vst [vmem:[#allocation1] ss:$4 sm:$0xff] %v517
        %2818 = vst [vmem:[%s2651] ss:$4 sm:$0xff] %v518
        %2819 = vst [vmem:[%s2653] ss:$4 sm:$0xff] %v358
        %2820 = vst [vmem:[%s2655] ss:$4 sm:$0xff] %v519
        %2821 = vst [vmem:[%s2657] ss:$4 sm:$0xff] %v520
        %2822 = vst [vmem:[%s2659] ss:$4 sm:$0xff] %v521
        %2823 = vst [vmem:[%s2661] ss:$4 sm:$0xff] %v359
        %2824 = vst [vmem:[%s2663] ss:$4 sm:$0xff] %v360
        %v2825 = vld.sshfl [vmem:[#allocation1] sm:$0xff pattern:$0x73625140]
        %v2826 = vld.sshfl [vmem:[#allocation1 + $0x20] sm:$0xff pattern:$0x73625140]
        %2827 = vst [vmem:[#allocation1] ss:$4 sm:$0xff] %v522
        %2828 = vst [vmem:[%s2651] ss:$4 sm:$0xff] %v523
        %2829 = vst [vmem:[%s2653] ss:$4 sm:$0xff] %v524
        %2830 = vst [vmem:[%s2655] ss:$4 sm:$0xff] %v361
        %2831 = vst [vmem:[%s2657] ss:$4 sm:$0xff] %v525
        %2832 = vst [vmem:[%s2659] ss:$4 sm:$0xff] %v526
        %2833 = vst [vmem:[%s2661] ss:$4 sm:$0xff] %v527
        %2834 = vst [vmem:[%s2663] ss:$4 sm:$0xff] %v362
        %v2835 = vld.sshfl [vmem:[#allocation1] sm:$0xff pattern:$0x73625140]
        %v2836 = vld.sshfl [vmem:[#allocation1 + $0x20] sm:$0xff pattern:$0x73625140]
        %2837 = vst [vmem:[#allocation1] ss:$4 sm:$0xff] %v363
        %2838 = vst [vmem:[%s2651] ss:$4 sm:$0xff] %v528
        %2839 = vst [vmem:[%s2653] ss:$4 sm:$0xff] %v529
        %2840 = vst [vmem:[%s2655] ss:$4 sm:$0xff] %v530
        %2841 = vst [vmem:[%s2657] ss:$4 sm:$0xff] %v364
        %2842 = vst [vmem:[%s2659] ss:$4 sm:$0xff] %v531
        %2843 = vst [vmem:[%s2661] ss:$4 sm:$0xff] %v532
        %2844 = vst [vmem:[%s2663] ss:$4 sm:$0xff] %v533
        %v2845 = vld.sshfl [vmem:[#allocation1] sm:$0xff pattern:$0x73625140]
        %v2846 = vld.sshfl [vmem:[#allocation1 + $0x20] sm:$0xff pattern:$0x73625140]
        %2847 = vst [vmem:[#allocation1] ss:$4 sm:$0xff] %v365
        %2848 = vst [vmem:[%s2651] ss:$4 sm:$0xff] %v366
        %2849 = vst [vmem:[%s2653] ss:$4 sm:$0xff] %v2642
        %2850 = vst [vmem:[%s2655] ss:$4 sm:$0xff] %v2643
        %2851 = vst [vmem:[%s2657] ss:$4 sm:$0xff] %v2644
        %2852 = vst [vmem:[%s2659] ss:$4 sm:$0xff] %v367
        %2853 = vst [vmem:[%s2661] ss:$4 sm:$0xff] %v2645
        %2854 = vst [vmem:[%s2663] ss:$4 sm:$0xff] %v2646
        %v2855 = vld.sshfl [vmem:[#allocation1] sm:$0xff pattern:$0x73625140]
        %v2856 = vld.sshfl [vmem:[#allocation1 + $0x20] sm:$0xff pattern:$0x73625140]
        %2857 = vst [vmem:[#allocation1] ss:$4 sm:$0xff] %v2647
        %2858 = vst [vmem:[%s2651] ss:$4 sm:$0xff] %v368
        %v2859 = vld.sshfl [vmem:[#allocation1] sm:$0xff pattern:$0x73625140]
        %v2860 = vsel %vm1276, %v2665, 0
        %v2862 = vsel %vm1276, %v2666, 0
        %v2864 = vsel %vm1276, %v2675, 0
        %v2866 = vsel %vm1276, %v2676, 0
        %v2868 = vsel %vm1276, %v2685, 0
        %v2870 = vsel %vm1276, %v2686, 0
        %v2872 = vsel %vm1276, %v2695, 0
        %v2874 = vsel %vm1276, %v2696, 0
        %v2876 = vsel %vm1276, %v2705, 0
        %v2878 = vsel %vm1276, %v2706, 0
        %v2880 = vsel %vm1276, %v2715, 0
        %v2882 = vsel %vm1276, %v2716, 0
        %v2884 = vsel %vm1276, %v2725, 0
        %v2886 = vsel %vm1276, %v2726, 0
        %v2888 = vsel %vm1276, %v2735, 0
        %v2890 = vsel %vm1276, %v2736, 0
        %v2892 = vsel %vm1276, %v2745, 0
        %v2894 = vsel %vm1276, %v2746, 0
        %v2896 = vsel %vm1276, %v2755, 0
        %v2898 = vsel %vm1276, %v2756, 0
        %v2900 = vsel %vm1276, %v2765, 0
        %v2902 = vsel %vm1276, %v2766, 0
        %v2904 = vsel %vm1276, %v2775, 0
        %v2906 = vsel %vm1276, %v2776, 0
        %v2908 = vsel %vm1276, %v2785, 0
        %v2910 = vsel %vm1276, %v2786, 0
        %v2912 = vsel %vm1276, %v2795, 0
        %v2914 = vsel %vm1276, %v2796, 0
        %v2916 = vsel %vm1276, %v2805, 0
        %v2918 = vsel %vm1276, %v2806, 0
        %v2920 = vsel %vm1276, %v2815, 0
        %v2922 = vsel %vm1276, %v2816, 0
        %v2924 = vsel %vm1276, %v2825, 0
        %v2926 = vsel %vm1276, %v2826, 0
        %v2928 = vsel %vm1276, %v2835, 0
        %v2930 = vsel %vm1276, %v2836, 0
        %v2932 = vsel %vm1276, %v2845, 0
        %v2934 = vsel %vm1276, %v2846, 0
        %v2936 = vsel %vm1276, %v2855, 0
        %v2938 = vsel %vm1276, %v2856, 0
        %v2940 = vsel %vm1276, %v2859, 0
        %v2943 = vsel %vm1359, %v2649, 0
        %2945 = vmatpush.msra.mxu0 0.0
        %2946 = vmatpush.msra.mxu0 0.0
        %2947 = vmatpush.msra.mxu0 0.0
        %2948 = vmatpush.msra.mxu0 0.0
        %2949 = vmatpush.msra.mxu0 0.0
        %2950 = vmatpush.msra.mxu0 0.0
        %2951 = vmatpush.msra.mxu0 0.0
        %2952 = vmatpush.msra.mxu0 0.0
        %2953 = vmatpush.msra.mxu0 0.0
        %2954 = vmatpush.msra.mxu0 0.0
        %2955 = vmatpush.msra.mxu0 0.0
        %2956 = vmatpush.msra.mxu0 0.0
        %2957 = vmatpush.msra.mxu0 0.0
        %2958 = vmatpush.msra.mxu0 0.0
        %2959 = vmatpush.msra.mxu0 0.0
        %2960 = vmatpush.msra.mxu0 %v2943
        %2961 = vmatmul.f32.gmra.mxu0 %v2860
        %v2962 = vpop.f32.mrf.mxu0
        %v2963 = vadd.f32 0.0, %v2962
        %2964 = vmatmul.f32.gmra.mxu0 %v2862
        %v2965 = vpop.f32.mrf.mxu0
        %v2966 = vadd.f32 0.0, %v2965
        %2967 = vmatmul.f32.gmra.mxu0 %v2864
        %v2968 = vpop.f32.mrf.mxu0
        %v2969 = vadd.f32 0.0, %v2968
        %2970 = vmatmul.f32.gmra.mxu0 %v2866
        %v2971 = vpop.f32.mrf.mxu0
        %v2972 = vadd.f32 0.0, %v2971
        %2973 = vmatmul.f32.gmra.mxu0 %v2868
        %v2974 = vpop.f32.mrf.mxu0
        %v2975 = vadd.f32 0.0, %v2974
        %2976 = vmatmul.f32.gmra.mxu0 %v2870
        %v2977 = vpop.f32.mrf.mxu0
        %v2978 = vadd.f32 0.0, %v2977
        %2979 = vmatmul.f32.gmra.mxu0 %v2872
        %v2980 = vpop.f32.mrf.mxu0
        %v2981 = vadd.f32 0.0, %v2980
        %2982 = vmatmul.f32.gmra.mxu0 %v2874
        %v2983 = vpop.f32.mrf.mxu0
        %v2984 = vadd.f32 0.0, %v2983
        %2985 = vmatmul.f32.gmra.mxu0 %v2876
        %v2986 = vpop.f32.mrf.mxu0
        %v2987 = vadd.f32 0.0, %v2986
        %2988 = vmatmul.f32.gmra.mxu0 %v2878
        %v2989 = vpop.f32.mrf.mxu0
        %v2990 = vadd.f32 0.0, %v2989
        %2991 = vmatmul.f32.gmra.mxu0 %v2880
        %v2992 = vpop.f32.mrf.mxu0
        %v2993 = vadd.f32 0.0, %v2992
        %2994 = vmatmul.f32.gmra.mxu0 %v2882
        %v2995 = vpop.f32.mrf.mxu0
        %v2996 = vadd.f32 0.0, %v2995
        %2997 = vmatmul.f32.gmra.mxu0 %v2884
        %v2998 = vpop.f32.mrf.mxu0
        %v2999 = vadd.f32 0.0, %v2998
        %3000 = vmatmul.f32.gmra.mxu0 %v2886
        %v3001 = vpop.f32.mrf.mxu0
        %v3002 = vadd.f32 0.0, %v3001
        %3003 = vmatmul.f32.gmra.mxu0 %v2888
        %v3004 = vpop.f32.mrf.mxu0
        %v3005 = vadd.f32 0.0, %v3004
        %3006 = vmatmul.f32.gmra.mxu0 %v2890
        %v3007 = vpop.f32.mrf.mxu0
        %v3008 = vadd.f32 0.0, %v3007
        %3009 = vmatmul.f32.gmra.mxu0 %v2892
        %v3010 = vpop.f32.mrf.mxu0
        %v3011 = vadd.f32 0.0, %v3010
        %3012 = vmatmul.f32.gmra.mxu0 %v2894
        %v3013 = vpop.f32.mrf.mxu0
        %v3014 = vadd.f32 0.0, %v3013
        %3015 = vmatmul.f32.gmra.mxu0 %v2896
        %v3016 = vpop.f32.mrf.mxu0
        %v3017 = vadd.f32 0.0, %v3016
        %3018 = vmatmul.f32.gmra.mxu0 %v2898
        %v3019 = vpop.f32.mrf.mxu0
        %v3020 = vadd.f32 0.0, %v3019
        %3021 = vmatmul.f32.gmra.mxu0 %v2900
        %v3022 = vpop.f32.mrf.mxu0
        %v3023 = vadd.f32 0.0, %v3022
        %3024 = vmatmul.f32.gmra.mxu0 %v2902
        %v3025 = vpop.f32.mrf.mxu0
        %v3026 = vadd.f32 0.0, %v3025
        %3027 = vmatmul.f32.gmra.mxu0 %v2904
        %v3028 = vpop.f32.mrf.mxu0
        %v3029 = vadd.f32 0.0, %v3028
        %3030 = vmatmul.f32.gmra.mxu0 %v2906
        %v3031 = vpop.f32.mrf.mxu0
        %v3032 = vadd.f32 0.0, %v3031
        %3033 = vmatmul.f32.gmra.mxu0 %v2908
        %v3034 = vpop.f32.mrf.mxu0
        %v3035 = vadd.f32 0.0, %v3034
        %3036 = vmatmul.f32.gmra.mxu0 %v2910
        %v3037 = vpop.f32.mrf.mxu0
        %v3038 = vadd.f32 0.0, %v3037
        %3039 = vmatmul.f32.gmra.mxu0 %v2912
        %v3040 = vpop.f32.mrf.mxu0
        %v3041 = vadd.f32 0.0, %v3040
        %3042 = vmatmul.f32.gmra.mxu0 %v2914
        %v3043 = vpop.f32.mrf.mxu0
        %v3044 = vadd.f32 0.0, %v3043
        %3045 = vmatmul.f32.gmra.mxu0 %v2916
        %v3046 = vpop.f32.mrf.mxu0
        %v3047 = vadd.f32 0.0, %v3046
        %3048 = vmatmul.f32.gmra.mxu0 %v2918
        %v3049 = vpop.f32.mrf.mxu0
        %v3050 = vadd.f32 0.0, %v3049
        %3051 = vmatmul.f32.gmra.mxu0 %v2920
        %v3052 = vpop.f32.mrf.mxu0
        %v3053 = vadd.f32 0.0, %v3052
        %3054 = vmatmul.f32.gmra.mxu0 %v2922
        %v3055 = vpop.f32.mrf.mxu0
        %v3056 = vadd.f32 0.0, %v3055
        %3057 = vmatmul.f32.gmra.mxu0 %v2924
        %v3058 = vpop.f32.mrf.mxu0
        %v3059 = vadd.f32 0.0, %v3058
        %3060 = vmatmul.f32.gmra.mxu0 %v2926
        %v3061 = vpop.f32.mrf.mxu0
        %v3062 = vadd.f32 0.0, %v3061
        %3063 = vmatmul.f32.gmra.mxu0 %v2928
        %v3064 = vpop.f32.mrf.mxu0
        %v3065 = vadd.f32 0.0, %v3064
        %3066 = vmatmul.f32.gmra.mxu0 %v2930
        %v3067 = vpop.f32.mrf.mxu0
        %v3068 = vadd.f32 0.0, %v3067
        %3069 = vmatmul.f32.gmra.mxu0 %v2932
        %v3070 = vpop.f32.mrf.mxu0
        %v3071 = vadd.f32 0.0, %v3070
        %3072 = vmatmul.f32.gmra.mxu0 %v2934
        %v3073 = vpop.f32.mrf.mxu0
        %v3074 = vadd.f32 0.0, %v3073
        %3075 = vmatmul.f32.gmra.mxu0 %v2936
        %v3076 = vpop.f32.mrf.mxu0
        %v3077 = vadd.f32 0.0, %v3076
        %3078 = vmatmul.f32.gmra.mxu0 %v2938
        %v3079 = vpop.f32.mrf.mxu0
        %v3080 = vadd.f32 0.0, %v3079
        %3081 = vmatmul.f32.gmra.mxu0 %v2940
        %v3082 = vpop.f32.mrf.mxu0
        %v3083 = vadd.f32 0.0, %v3082
        %3084 = vdwg.mxu0
        %v3085 = vadd.f32 %v2598, %v2963
        %v3086 = vadd.f32 %v2599, %v2966
        %v3087 = vadd.f32 %v2600, %v2969
        %v3088 = vadd.f32 %v2601, %v2972
        %v3089 = vadd.f32 %v2602, %v2975
        %v3090 = vadd.f32 %v2603, %v2978
        %v3091 = vadd.f32 %v2604, %v2981
        %v3092 = vadd.f32 %v2605, %v2984
        %v3093 = vadd.f32 %v2606, %v2987
        %v3094 = vadd.f32 %v2607, %v2990
        %v3095 = vadd.f32 %v2608, %v2993
        %v3096 = vadd.f32 %v2609, %v2996
        %v3097 = vadd.f32 %v2610, %v2999
        %v3098 = vadd.f32 %v2611, %v3002
        %v3099 = vadd.f32 %v2612, %v3005
        %v3100 = vadd.f32 %v2613, %v3008
        %v3101 = vadd.f32 %v2614, %v3011
        %v3102 = vadd.f32 %v2615, %v3014
        %v3103 = vadd.f32 %v2616, %v3017
        %v3104 = vadd.f32 %v2617, %v3020
        %v3105 = vadd.f32 %v2618, %v3023
        %v3106 = vadd.f32 %v2619, %v3026
        %v3107 = vadd.f32 %v2620, %v3029
        %v3108 = vadd.f32 %v2621, %v3032
        %v3109 = vadd.f32 %v2622, %v3035
        %v3110 = vadd.f32 %v2623, %v3038
        %v3111 = vadd.f32 %v2624, %v3041
        %v3112 = vadd.f32 %v2625, %v3044
        %v3113 = vadd.f32 %v2626, %v3047
        %v3114 = vadd.f32 %v2627, %v3050
        %v3115 = vadd.f32 %v2628, %v3053
        %v3116 = vadd.f32 %v2629, %v3056
        %v3117 = vadd.f32 %v2630, %v3059
        %v3118 = vadd.f32 %v2631, %v3062
        %v3119 = vadd.f32 %v2632, %v3065
        %v3120 = vadd.f32 %v2633, %v3068
        %v3121 = vadd.f32 %v2634, %v3071
        %v3122 = vadd.f32 %v2635, %v3074
        %v3123 = vadd.f32 %v2636, %v3077
        %v3124 = vadd.f32 %v2637, %v3080
        %v3125 = vadd.f32 %v2638, %v3083
        %v3126 = vrot.slane %v368, 2
        %v3127 = vrot.slane %v366, 7
        %v3128 = vrot.slane %v3127, 2
        %v3129 = vrot.slane %v2642, 7
        %v3130 = vsel %vm559, %v3128, %v3129
        %v3131 = vrot.slane %v3129, 2
        %v3132 = vrot.slane %v2643, 7
        %v3133 = vsel %vm559, %v3131, %v3132
        %v3134 = vrot.slane %v3132, 2
        %v3135 = vrot.slane %v2644, 7
        %v3136 = vsel %vm559, %v3134, %v3135
        %v3137 = vrot.slane %v3135, 2
        %v3138 = vrot.slane %v367, 7
        %v3139 = vsel %vm559, %v3137, %v3138
        %v3140 = vrot.slane %v3138, 2
        %v3141 = vrot.slane %v2645, 7
        %v3142 = vsel %vm559, %v3140, %v3141
        %v3143 = vrot.slane %v3141, 2
        %v3144 = vrot.slane %v2646, 7
        %v3145 = vsel %vm559, %v3143, %v3144
        %v3146 = vrot.slane %v3144, 2
        %v3147 = vrot.slane %v2647, 7
        %v3148 = vsel %vm559, %v3146, %v3147
        %v3149 = vrot.slane %v3147, 2
        %v3150 = vrot.slane %v368, 7
        %v3151 = vsel %vm559, %v3149, %v3150
        %v3152 = vrot.slane %v3150, 2
        %v3153 = vrot.slane %v3126, 7
        %v3154 = vsel %vm559, %v3152, %v3153
        %s3155 = scalar_lea.vmem %s1, 16
        %v3156 = vld [vmem:[%s3155] sm:$0xf]
        %3157 = vst [vmem:[#allocation1] ss:$4 sm:$0xff] %v591
        %s3158 = scalar_lea.vmem [#allocation1], 1
        %3159 = vst [vmem:[%s3158] ss:$4 sm:$0xff] %v594
        %s3160 = scalar_lea.vmem [#allocation1], 2
        %3161 = vst [vmem:[%s3160] ss:$4 sm:$0xff] %v597
        %s3162 = scalar_lea.vmem [#allocation1], 3
        %3163 = vst [vmem:[%s3162] ss:$4 sm:$0xff] %v600
        %s3164 = scalar_lea.vmem [#allocation1], 32
        %3165 = vst [vmem:[%s3164] ss:$4 sm:$0xff] %v603
        %s3166 = scalar_lea.vmem [#allocation1], 33
        %3167 = vst [vmem:[%s3166] ss:$4 sm:$0xff] %v606
        %s3168 = scalar_lea.vmem [#allocation1], 34
        %3169 = vst [vmem:[%s3168] ss:$4 sm:$0xff] %v609
        %s3170 = scalar_lea.vmem [#allocation1], 35
        %3171 = vst [vmem:[%s3170] ss:$4 sm:$0xff] %v612
        %v3172 = vld.sshfl [vmem:[#allocation1] sm:$0xff pattern:$0x73625140]
        %v3173 = vld.sshfl [vmem:[#allocation1 + $0x20] sm:$0xff pattern:$0x73625140]
        %3174 = vst [vmem:[#allocation1] ss:$4 sm:$0xff] %v615
        %3175 = vst [vmem:[%s3158] ss:$4 sm:$0xff] %v619
        %3176 = vst [vmem:[%s3160] ss:$4 sm:$0xff] %v622
        %3177 = vst [vmem:[%s3162] ss:$4 sm:$0xff] %v625
        %3178 = vst [vmem:[%s3164] ss:$4 sm:$0xff] %v628
        %3179 = vst [vmem:[%s3166] ss:$4 sm:$0xff] %v631
        %3180 = vst [vmem:[%s3168] ss:$4 sm:$0xff] %v634
        %3181 = vst [vmem:[%s3170] ss:$4 sm:$0xff] %v637
        %v3182 = vld.sshfl [vmem:[#allocation1] sm:$0xff pattern:$0x73625140]
        %v3183 = vld.sshfl [vmem:[#allocation1 + $0x20] sm:$0xff pattern:$0x73625140]
        %3184 = vst [vmem:[#allocation1] ss:$4 sm:$0xff] %v640
        %3185 = vst [vmem:[%s3158] ss:$4 sm:$0xff] %v643
        %3186 = vst [vmem:[%s3160] ss:$4 sm:$0xff] %v647
        %3187 = vst [vmem:[%s3162] ss:$4 sm:$0xff] %v650
        %3188 = vst [vmem:[%s3164] ss:$4 sm:$0xff] %v653
        %3189 = vst [vmem:[%s3166] ss:$4 sm:$0xff] %v656
        %3190 = vst [vmem:[%s3168] ss:$4 sm:$0xff] %v659
        %3191 = vst [vmem:[%s3170] ss:$4 sm:$0xff] %v662
        %v3192 = vld.sshfl [vmem:[#allocation1] sm:$0xff pattern:$0x73625140]
        %v3193 = vld.sshfl [vmem:[#allocation1 + $0x20] sm:$0xff pattern:$0x73625140]
        %3194 = vst [vmem:[#allocation1] ss:$4 sm:$0xff] %v665
        %3195 = vst [vmem:[%s3158] ss:$4 sm:$0xff] %v668
        %3196 = vst [vmem:[%s3160] ss:$4 sm:$0xff] %v671
        %3197 = vst [vmem:[%s3162] ss:$4 sm:$0xff] %v675
        %3198 = vst [vmem:[%s3164] ss:$4 sm:$0xff] %v678
        %3199 = vst [vmem:[%s3166] ss:$4 sm:$0xff] %v681
        %3200 = vst [vmem:[%s3168] ss:$4 sm:$0xff] %v684
        %3201 = vst [vmem:[%s3170] ss:$4 sm:$0xff] %v687
        %v3202 = vld.sshfl [vmem:[#allocation1] sm:$0xff pattern:$0x73625140]
        %v3203 = vld.sshfl [vmem:[#allocation1 + $0x20] sm:$0xff pattern:$0x73625140]
        %3204 = vst [vmem:[#allocation1] ss:$4 sm:$0xff] %v690
        %3205 = vst [vmem:[%s3158] ss:$4 sm:$0xff] %v693
        %3206 = vst [vmem:[%s3160] ss:$4 sm:$0xff] %v696
        %3207 = vst [vmem:[%s3162] ss:$4 sm:$0xff] %v699
        %3208 = vst [vmem:[%s3164] ss:$4 sm:$0xff] %v703
        %3209 = vst [vmem:[%s3166] ss:$4 sm:$0xff] %v706
        %3210 = vst [vmem:[%s3168] ss:$4 sm:$0xff] %v709
        %3211 = vst [vmem:[%s3170] ss:$4 sm:$0xff] %v712
        %v3212 = vld.sshfl [vmem:[#allocation1] sm:$0xff pattern:$0x73625140]
        %v3213 = vld.sshfl [vmem:[#allocation1 + $0x20] sm:$0xff pattern:$0x73625140]
        %3214 = vst [vmem:[#allocation1] ss:$4 sm:$0xff] %v715
        %3215 = vst [vmem:[%s3158] ss:$4 sm:$0xff] %v718
        %3216 = vst [vmem:[%s3160] ss:$4 sm:$0xff] %v721
        %3217 = vst [vmem:[%s3162] ss:$4 sm:$0xff] %v724
        %3218 = vst [vmem:[%s3164] ss:$4 sm:$0xff] %v727
        %3219 = vst [vmem:[%s3166] ss:$4 sm:$0xff] %v731
        %3220 = vst [vmem:[%s3168] ss:$4 sm:$0xff] %v734
        %3221 = vst [vmem:[%s3170] ss:$4 sm:$0xff] %v737
        %v3222 = vld.sshfl [vmem:[#allocation1] sm:$0xff pattern:$0x73625140]
        %v3223 = vld.sshfl [vmem:[#allocation1 + $0x20] sm:$0xff pattern:$0x73625140]
        %3224 = vst [vmem:[#allocation1] ss:$4 sm:$0xff] %v740
        %3225 = vst [vmem:[%s3158] ss:$4 sm:$0xff] %v743
        %3226 = vst [vmem:[%s3160] ss:$4 sm:$0xff] %v746
        %3227 = vst [vmem:[%s3162] ss:$4 sm:$0xff] %v749
        %3228 = vst [vmem:[%s3164] ss:$4 sm:$0xff] %v752
        %3229 = vst [vmem:[%s3166] ss:$4 sm:$0xff] %v755
        %3230 = vst [vmem:[%s3168] ss:$4 sm:$0xff] %v759
        %3231 = vst [vmem:[%s3170] ss:$4 sm:$0xff] %v762
        %v3232 = vld.sshfl [vmem:[#allocation1] sm:$0xff pattern:$0x73625140]
        %v3233 = vld.sshfl [vmem:[#allocation1 + $0x20] sm:$0xff pattern:$0x73625140]
        %3234 = vst [vmem:[#allocation1] ss:$4 sm:$0xff] %v765
        %3235 = vst [vmem:[%s3158] ss:$4 sm:$0xff] %v768
        %3236 = vst [vmem:[%s3160] ss:$4 sm:$0xff] %v771
        %3237 = vst [vmem:[%s3162] ss:$4 sm:$0xff] %v774
        %3238 = vst [vmem:[%s3164] ss:$4 sm:$0xff] %v777
        %3239 = vst [vmem:[%s3166] ss:$4 sm:$0xff] %v780
        %3240 = vst [vmem:[%s3168] ss:$4 sm:$0xff] %v783
        %3241 = vst [vmem:[%s3170] ss:$4 sm:$0xff] %v787
        %v3242 = vld.sshfl [vmem:[#allocation1] sm:$0xff pattern:$0x73625140]
        %v3243 = vld.sshfl [vmem:[#allocation1 + $0x20] sm:$0xff pattern:$0x73625140]
        %3244 = vst [vmem:[#allocation1] ss:$4 sm:$0xff] %v790
        %3245 = vst [vmem:[%s3158] ss:$4 sm:$0xff] %v793
        %3246 = vst [vmem:[%s3160] ss:$4 sm:$0xff] %v796
        %3247 = vst [vmem:[%s3162] ss:$4 sm:$0xff] %v799
        %3248 = vst [vmem:[%s3164] ss:$4 sm:$0xff] %v802
        %3249 = vst [vmem:[%s3166] ss:$4 sm:$0xff] %v805
        %3250 = vst [vmem:[%s3168] ss:$4 sm:$0xff] %v808
        %3251 = vst [vmem:[%s3170] ss:$4 sm:$0xff] %v811
        %v3252 = vld.sshfl [vmem:[#allocation1] sm:$0xff pattern:$0x73625140]
        %v3253 = vld.sshfl [vmem:[#allocation1 + $0x20] sm:$0xff pattern:$0x73625140]
        %3254 = vst [vmem:[#allocation1] ss:$4 sm:$0xff] %v815
        %3255 = vst [vmem:[%s3158] ss:$4 sm:$0xff] %v818
        %3256 = vst [vmem:[%s3160] ss:$4 sm:$0xff] %v821
        %3257 = vst [vmem:[%s3162] ss:$4 sm:$0xff] %v824
        %3258 = vst [vmem:[%s3164] ss:$4 sm:$0xff] %v827
        %3259 = vst [vmem:[%s3166] ss:$4 sm:$0xff] %v830
        %3260 = vst [vmem:[%s3168] ss:$4 sm:$0xff] %v833
        %3261 = vst [vmem:[%s3170] ss:$4 sm:$0xff] %v836
        %v3262 = vld.sshfl [vmem:[#allocation1] sm:$0xff pattern:$0x73625140]
        %v3263 = vld.sshfl [vmem:[#allocation1 + $0x20] sm:$0xff pattern:$0x73625140]
        %3264 = vst [vmem:[#allocation1] ss:$4 sm:$0xff] %v839
        %3265 = vst [vmem:[%s3158] ss:$4 sm:$0xff] %v843
        %3266 = vst [vmem:[%s3160] ss:$4 sm:$0xff] %v846
        %3267 = vst [vmem:[%s3162] ss:$4 sm:$0xff] %v849
        %3268 = vst [vmem:[%s3164] ss:$4 sm:$0xff] %v852
        %3269 = vst [vmem:[%s3166] ss:$4 sm:$0xff] %v855
        %3270 = vst [vmem:[%s3168] ss:$4 sm:$0xff] %v858
        %3271 = vst [vmem:[%s3170] ss:$4 sm:$0xff] %v861
        %v3272 = vld.sshfl [vmem:[#allocation1] sm:$0xff pattern:$0x73625140]
        %v3273 = vld.sshfl [vmem:[#allocation1 + $0x20] sm:$0xff pattern:$0x73625140]
        %3274 = vst [vmem:[#allocation1] ss:$4 sm:$0xff] %v864
        %3275 = vst [vmem:[%s3158] ss:$4 sm:$0xff] %v867
        %3276 = vst [vmem:[%s3160] ss:$4 sm:$0xff] %v871
        %3277 = vst [vmem:[%s3162] ss:$4 sm:$0xff] %v874
        %3278 = vst [vmem:[%s3164] ss:$4 sm:$0xff] %v877
        %3279 = vst [vmem:[%s3166] ss:$4 sm:$0xff] %v880
        %3280 = vst [vmem:[%s3168] ss:$4 sm:$0xff] %v883
        %3281 = vst [vmem:[%s3170] ss:$4 sm:$0xff] %v886
        %v3282 = vld.sshfl [vmem:[#allocation1] sm:$0xff pattern:$0x73625140]
        %v3283 = vld.sshfl [vmem:[#allocation1 + $0x20] sm:$0xff pattern:$0x73625140]
        %3284 = vst [vmem:[#allocation1] ss:$4 sm:$0xff] %v889
        %3285 = vst [vmem:[%s3158] ss:$4 sm:$0xff] %v892
        %3286 = vst [vmem:[%s3160] ss:$4 sm:$0xff] %v895
        %3287 = vst [vmem:[%s3162] ss:$4 sm:$0xff] %v899
        %3288 = vst [vmem:[%s3164] ss:$4 sm:$0xff] %v902
        %3289 = vst [vmem:[%s3166] ss:$4 sm:$0xff] %v905
        %3290 = vst [vmem:[%s3168] ss:$4 sm:$0xff] %v908
        %3291 = vst [vmem:[%s3170] ss:$4 sm:$0xff] %v911
        %v3292 = vld.sshfl [vmem:[#allocation1] sm:$0xff pattern:$0x73625140]
        %v3293 = vld.sshfl [vmem:[#allocation1 + $0x20] sm:$0xff pattern:$0x73625140]
        %3294 = vst [vmem:[#allocation1] ss:$4 sm:$0xff] %v914
        %3295 = vst [vmem:[%s3158] ss:$4 sm:$0xff] %v917
        %3296 = vst [vmem:[%s3160] ss:$4 sm:$0xff] %v920
        %3297 = vst [vmem:[%s3162] ss:$4 sm:$0xff] %v923
        %3298 = vst [vmem:[%s3164] ss:$4 sm:$0xff] %v927
        %3299 = vst [vmem:[%s3166] ss:$4 sm:$0xff] %v930
        %3300 = vst [vmem:[%s3168] ss:$4 sm:$0xff] %v933
        %3301 = vst [vmem:[%s3170] ss:$4 sm:$0xff] %v936
        %v3302 = vld.sshfl [vmem:[#allocation1] sm:$0xff pattern:$0x73625140]
        %v3303 = vld.sshfl [vmem:[#allocation1 + $0x20] sm:$0xff pattern:$0x73625140]
        %3304 = vst [vmem:[#allocation1] ss:$4 sm:$0xff] %v939
        %3305 = vst [vmem:[%s3158] ss:$4 sm:$0xff] %v942
        %3306 = vst [vmem:[%s3160] ss:$4 sm:$0xff] %v945
        %3307 = vst [vmem:[%s3162] ss:$4 sm:$0xff] %v948
        %3308 = vst [vmem:[%s3164] ss:$4 sm:$0xff] %v951
        %3309 = vst [vmem:[%s3166] ss:$4 sm:$0xff] %v955
        %3310 = vst [vmem:[%s3168] ss:$4 sm:$0xff] %v958
        %3311 = vst [vmem:[%s3170] ss:$4 sm:$0xff] %v961
        %v3312 = vld.sshfl [vmem:[#allocation1] sm:$0xff pattern:$0x73625140]
        %v3313 = vld.sshfl [vmem:[#allocation1 + $0x20] sm:$0xff pattern:$0x73625140]
        %3314 = vst [vmem:[#allocation1] ss:$4 sm:$0xff] %v964
        %3315 = vst [vmem:[%s3158] ss:$4 sm:$0xff] %v967
        %3316 = vst [vmem:[%s3160] ss:$4 sm:$0xff] %v970
        %3317 = vst [vmem:[%s3162] ss:$4 sm:$0xff] %v973
        %3318 = vst [vmem:[%s3164] ss:$4 sm:$0xff] %v976
        %3319 = vst [vmem:[%s3166] ss:$4 sm:$0xff] %v979
        %3320 = vst [vmem:[%s3168] ss:$4 sm:$0xff] %v983
        %3321 = vst [vmem:[%s3170] ss:$4 sm:$0xff] %v986
        %v3322 = vld.sshfl [vmem:[#allocation1] sm:$0xff pattern:$0x73625140]
        %v3323 = vld.sshfl [vmem:[#allocation1 + $0x20] sm:$0xff pattern:$0x73625140]
        %3324 = vst [vmem:[#allocation1] ss:$4 sm:$0xff] %v989
        %3325 = vst [vmem:[%s3158] ss:$4 sm:$0xff] %v992
        %3326 = vst [vmem:[%s3160] ss:$4 sm:$0xff] %v995
        %3327 = vst [vmem:[%s3162] ss:$4 sm:$0xff] %v998
        %3328 = vst [vmem:[%s3164] ss:$4 sm:$0xff] %v1001
        %3329 = vst [vmem:[%s3166] ss:$4 sm:$0xff] %v1004
        %3330 = vst [vmem:[%s3168] ss:$4 sm:$0xff] %v1007
        %3331 = vst [vmem:[%s3170] ss:$4 sm:$0xff] %v1011
        %v3332 = vld.sshfl [vmem:[#allocation1] sm:$0xff pattern:$0x73625140]
        %v3333 = vld.sshfl [vmem:[#allocation1 + $0x20] sm:$0xff pattern:$0x73625140]
        %3334 = vst [vmem:[#allocation1] ss:$4 sm:$0xff] %v1014
        %3335 = vst [vmem:[%s3158] ss:$4 sm:$0xff] %v1017
        %3336 = vst [vmem:[%s3160] ss:$4 sm:$0xff] %v1020
        %3337 = vst [vmem:[%s3162] ss:$4 sm:$0xff] %v1023
        %3338 = vst [vmem:[%s3164] ss:$4 sm:$0xff] %v1026
        %3339 = vst [vmem:[%s3166] ss:$4 sm:$0xff] %v1029
        %3340 = vst [vmem:[%s3168] ss:$4 sm:$0xff] %v1032
        %3341 = vst [vmem:[%s3170] ss:$4 sm:$0xff] %v1035
        %v3342 = vld.sshfl [vmem:[#allocation1] sm:$0xff pattern:$0x73625140]
        %v3343 = vld.sshfl [vmem:[#allocation1 + $0x20] sm:$0xff pattern:$0x73625140]
        %3344 = vst [vmem:[#allocation1] ss:$4 sm:$0xff] %v1039
        %3345 = vst [vmem:[%s3158] ss:$4 sm:$0xff] %v1042
        %3346 = vst [vmem:[%s3160] ss:$4 sm:$0xff] %v1045
        %3347 = vst [vmem:[%s3162] ss:$4 sm:$0xff] %v1048
        %3348 = vst [vmem:[%s3164] ss:$4 sm:$0xff] %v1051
        %3349 = vst [vmem:[%s3166] ss:$4 sm:$0xff] %v1054
        %3350 = vst [vmem:[%s3168] ss:$4 sm:$0xff] %v1057
        %3351 = vst [vmem:[%s3170] ss:$4 sm:$0xff] %v1060
        %v3352 = vld.sshfl [vmem:[#allocation1] sm:$0xff pattern:$0x73625140]
        %v3353 = vld.sshfl [vmem:[#allocation1 + $0x20] sm:$0xff pattern:$0x73625140]
        %3354 = vst [vmem:[#allocation1] ss:$4 sm:$0xff] %v1063
        %3355 = vst [vmem:[%s3158] ss:$4 sm:$0xff] %v3130
        %3356 = vst [vmem:[%s3160] ss:$4 sm:$0xff] %v3133
        %3357 = vst [vmem:[%s3162] ss:$4 sm:$0xff] %v3136
        %3358 = vst [vmem:[%s3164] ss:$4 sm:$0xff] %v3139
        %3359 = vst [vmem:[%s3166] ss:$4 sm:$0xff] %v3142
        %3360 = vst [vmem:[%s3168] ss:$4 sm:$0xff] %v3145
        %3361 = vst [vmem:[%s3170] ss:$4 sm:$0xff] %v3148
        %v3362 = vld.sshfl [vmem:[#allocation1] sm:$0xff pattern:$0x73625140]
        %v3363 = vld.sshfl [vmem:[#allocation1 + $0x20] sm:$0xff pattern:$0x73625140]
        %3364 = vst [vmem:[#allocation1] ss:$4 sm:$0xff] %v3151
        %3365 = vst [vmem:[%s3158] ss:$4 sm:$0xff] %v3154
        %v3366 = vld.sshfl [vmem:[#allocation1] sm:$0xff pattern:$0x73625140]
        %v3367 = vsel %vm1276, %v3172, 0
        %v3369 = vsel %vm1276, %v3173, 0
        %v3371 = vsel %vm1276, %v3182, 0
        %v3373 = vsel %vm1276, %v3183, 0
        %v3375 = vsel %vm1276, %v3192, 0
        %v3377 = vsel %vm1276, %v3193, 0
        %v3379 = vsel %vm1276, %v3202, 0
        %v3381 = vsel %vm1276, %v3203, 0
        %v3383 = vsel %vm1276, %v3212, 0
        %v3385 = vsel %vm1276, %v3213, 0
        %v3387 = vsel %vm1276, %v3222, 0
        %v3389 = vsel %vm1276, %v3223, 0
        %v3391 = vsel %vm1276, %v3232, 0
        %v3393 = vsel %vm1276, %v3233, 0
        %v3395 = vsel %vm1276, %v3242, 0
        %v3397 = vsel %vm1276, %v3243, 0
        %v3399 = vsel %vm1276, %v3252, 0
        %v3401 = vsel %vm1276, %v3253, 0
        %v3403 = vsel %vm1276, %v3262, 0
        %v3405 = vsel %vm1276, %v3263, 0
        %v3407 = vsel %vm1276, %v3272, 0
        %v3409 = vsel %vm1276, %v3273, 0
        %v3411 = vsel %vm1276, %v3282, 0
        %v3413 = vsel %vm1276, %v3283, 0
        %v3415 = vsel %vm1276, %v3292, 0
        %v3417 = vsel %vm1276, %v3293, 0
        %v3419 = vsel %vm1276, %v3302, 0
        %v3421 = vsel %vm1276, %v3303, 0
        %v3423 = vsel %vm1276, %v3312, 0
        %v3425 = vsel %vm1276, %v3313, 0
        %v3427 = vsel %vm1276, %v3322, 0
        %v3429 = vsel %vm1276, %v3323, 0
        %v3431 = vsel %vm1276, %v3332, 0
        %v3433 = vsel %vm1276, %v3333, 0
        %v3435 = vsel %vm1276, %v3342, 0
        %v3437 = vsel %vm1276, %v3343, 0
        %v3439 = vsel %vm1276, %v3352, 0
        %v3441 = vsel %vm1276, %v3353, 0
        %v3443 = vsel %vm1276, %v3362, 0
        %v3445 = vsel %vm1276, %v3363, 0
        %v3447 = vsel %vm1276, %v3366, 0
        %v3450 = vsel %vm1359, %v3156, 0
        %3452 = vmatpush.msra.mxu0 0.0
        %3453 = vmatpush.msra.mxu0 0.0
        %3454 = vmatpush.msra.mxu0 0.0
        %3455 = vmatpush.msra.mxu0 0.0
        %3456 = vmatpush.msra.mxu0 0.0
        %3457 = vmatpush.msra.mxu0 0.0
        %3458 = vmatpush.msra.mxu0 0.0
        %3459 = vmatpush.msra.mxu0 0.0
        %3460 = vmatpush.msra.mxu0 0.0
        %3461 = vmatpush.msra.mxu0 0.0
        %3462 = vmatpush.msra.mxu0 0.0
        %3463 = vmatpush.msra.mxu0 0.0
        %3464 = vmatpush.msra.mxu0 0.0
        %3465 = vmatpush.msra.mxu0 0.0
        %3466 = vmatpush.msra.mxu0 0.0
        %3467 = vmatpush.msra.mxu0 %v3450
        %3468 = vmatmul.f32.gmra.mxu0 %v3367
        %v3469 = vpop.f32.mrf.mxu0
        %v3470 = vadd.f32 0.0, %v3469
        %3471 = vmatmul.f32.gmra.mxu0 %v3369
        %v3472 = vpop.f32.mrf.mxu0
        %v3473 = vadd.f32 0.0, %v3472
        %3474 = vmatmul.f32.gmra.mxu0 %v3371
        %v3475 = vpop.f32.mrf.mxu0
        %v3476 = vadd.f32 0.0, %v3475
        %3477 = vmatmul.f32.gmra.mxu0 %v3373
        %v3478 = vpop.f32.mrf.mxu0
        %v3479 = vadd.f32 0.0, %v3478
        %3480 = vmatmul.f32.gmra.mxu0 %v3375
        %v3481 = vpop.f32.mrf.mxu0
        %v3482 = vadd.f32 0.0, %v3481
        %3483 = vmatmul.f32.gmra.mxu0 %v3377
        %v3484 = vpop.f32.mrf.mxu0
        %v3485 = vadd.f32 0.0, %v3484
        %3486 = vmatmul.f32.gmra.mxu0 %v3379
        %v3487 = vpop.f32.mrf.mxu0
        %v3488 = vadd.f32 0.0, %v3487
        %3489 = vmatmul.f32.gmra.mxu0 %v3381
        %v3490 = vpop.f32.mrf.mxu0
        %v3491 = vadd.f32 0.0, %v3490
        %3492 = vmatmul.f32.gmra.mxu0 %v3383
        %v3493 = vpop.f32.mrf.mxu0
        %v3494 = vadd.f32 0.0, %v3493
        %3495 = vmatmul.f32.gmra.mxu0 %v3385
        %v3496 = vpop.f32.mrf.mxu0
        %v3497 = vadd.f32 0.0, %v3496
        %3498 = vmatmul.f32.gmra.mxu0 %v3387
        %v3499 = vpop.f32.mrf.mxu0
        %v3500 = vadd.f32 0.0, %v3499
        %3501 = vmatmul.f32.gmra.mxu0 %v3389
        %v3502 = vpop.f32.mrf.mxu0
        %v3503 = vadd.f32 0.0, %v3502
        %3504 = vmatmul.f32.gmra.mxu0 %v3391
        %v3505 = vpop.f32.mrf.mxu0
        %v3506 = vadd.f32 0.0, %v3505
        %3507 = vmatmul.f32.gmra.mxu0 %v3393
        %v3508 = vpop.f32.mrf.mxu0
        %v3509 = vadd.f32 0.0, %v3508
        %3510 = vmatmul.f32.gmra.mxu0 %v3395
        %v3511 = vpop.f32.mrf.mxu0
        %v3512 = vadd.f32 0.0, %v3511
        %3513 = vmatmul.f32.gmra.mxu0 %v3397
        %v3514 = vpop.f32.mrf.mxu0
        %v3515 = vadd.f32 0.0, %v3514
        %3516 = vmatmul.f32.gmra.mxu0 %v3399
        %v3517 = vpop.f32.mrf.mxu0
        %v3518 = vadd.f32 0.0, %v3517
        %3519 = vmatmul.f32.gmra.mxu0 %v3401
        %v3520 = vpop.f32.mrf.mxu0
        %v3521 = vadd.f32 0.0, %v3520
        %3522 = vmatmul.f32.gmra.mxu0 %v3403
        %v3523 = vpop.f32.mrf.mxu0
        %v3524 = vadd.f32 0.0, %v3523
        %3525 = vmatmul.f32.gmra.mxu0 %v3405
        %v3526 = vpop.f32.mrf.mxu0
        %v3527 = vadd.f32 0.0, %v3526
        %3528 = vmatmul.f32.gmra.mxu0 %v3407
        %v3529 = vpop.f32.mrf.mxu0
        %v3530 = vadd.f32 0.0, %v3529
        %3531 = vmatmul.f32.gmra.mxu0 %v3409
        %v3532 = vpop.f32.mrf.mxu0
        %v3533 = vadd.f32 0.0, %v3532
        %3534 = vmatmul.f32.gmra.mxu0 %v3411
        %v3535 = vpop.f32.mrf.mxu0
        %v3536 = vadd.f32 0.0, %v3535
        %3537 = vmatmul.f32.gmra.mxu0 %v3413
        %v3538 = vpop.f32.mrf.mxu0
        %v3539 = vadd.f32 0.0, %v3538
        %3540 = vmatmul.f32.gmra.mxu0 %v3415
        %v3541 = vpop.f32.mrf.mxu0
        %v3542 = vadd.f32 0.0, %v3541
        %3543 = vmatmul.f32.gmra.mxu0 %v3417
        %v3544 = vpop.f32.mrf.mxu0
        %v3545 = vadd.f32 0.0, %v3544
        %3546 = vmatmul.f32.gmra.mxu0 %v3419
        %v3547 = vpop.f32.mrf.mxu0
        %v3548 = vadd.f32 0.0, %v3547
        %3549 = vmatmul.f32.gmra.mxu0 %v3421
        %v3550 = vpop.f32.mrf.mxu0
        %v3551 = vadd.f32 0.0, %v3550
        %3552 = vmatmul.f32.gmra.mxu0 %v3423
        %v3553 = vpop.f32.mrf.mxu0
        %v3554 = vadd.f32 0.0, %v3553
        %3555 = vmatmul.f32.gmra.mxu0 %v3425
        %v3556 = vpop.f32.mrf.mxu0
        %v3557 = vadd.f32 0.0, %v3556
        %3558 = vmatmul.f32.gmra.mxu0 %v3427
        %v3559 = vpop.f32.mrf.mxu0
        %v3560 = vadd.f32 0.0, %v3559
        %3561 = vmatmul.f32.gmra.mxu0 %v3429
        %v3562 = vpop.f32.mrf.mxu0
        %v3563 = vadd.f32 0.0, %v3562
        %3564 = vmatmul.f32.gmra.mxu0 %v3431
        %v3565 = vpop.f32.mrf.mxu0
        %v3566 = vadd.f32 0.0, %v3565
        %3567 = vmatmul.f32.gmra.mxu0 %v3433
        %v3568 = vpop.f32.mrf.mxu0
        %v3569 = vadd.f32 0.0, %v3568
        %3570 = vmatmul.f32.gmra.mxu0 %v3435
        %v3571 = vpop.f32.mrf.mxu0
        %v3572 = vadd.f32 0.0, %v3571
        %3573 = vmatmul.f32.gmra.mxu0 %v3437
        %v3574 = vpop.f32.mrf.mxu0
        %v3575 = vadd.f32 0.0, %v3574
        %3576 = vmatmul.f32.gmra.mxu0 %v3439
        %v3577 = vpop.f32.mrf.mxu0
        %v3578 = vadd.f32 0.0, %v3577
        %3579 = vmatmul.f32.gmra.mxu0 %v3441
        %v3580 = vpop.f32.mrf.mxu0
        %v3581 = vadd.f32 0.0, %v3580
        %3582 = vmatmul.f32.gmra.mxu0 %v3443
        %v3583 = vpop.f32.mrf.mxu0
        %v3584 = vadd.f32 0.0, %v3583
        %3585 = vmatmul.f32.gmra.mxu0 %v3445
        %v3586 = vpop.f32.mrf.mxu0
        %v3587 = vadd.f32 0.0, %v3586
        %3588 = vmatmul.f32.gmra.mxu0 %v3447
        %v3589 = vpop.f32.mrf.mxu0
        %v3590 = vadd.f32 0.0, %v3589
        %3591 = vdwg.mxu0
        %v3592 = vadd.f32 %v3085, %v3470
        %v3593 = vadd.f32 %v3086, %v3473
        %v3594 = vadd.f32 %v3087, %v3476
        %v3595 = vadd.f32 %v3088, %v3479
        %v3596 = vadd.f32 %v3089, %v3482
        %v3597 = vadd.f32 %v3090, %v3485
        %v3598 = vadd.f32 %v3091, %v3488
        %v3599 = vadd.f32 %v3092, %v3491
        %v3600 = vadd.f32 %v3093, %v3494
        %v3601 = vadd.f32 %v3094, %v3497
        %v3602 = vadd.f32 %v3095, %v3500
        %v3603 = vadd.f32 %v3096, %v3503
        %v3604 = vadd.f32 %v3097, %v3506
        %v3605 = vadd.f32 %v3098, %v3509
        %v3606 = vadd.f32 %v3099, %v3512
        %v3607 = vadd.f32 %v3100, %v3515
        %v3608 = vadd.f32 %v3101, %v3518
        %v3609 = vadd.f32 %v3102, %v3521
        %v3610 = vadd.f32 %v3103, %v3524
        %v3611 = vadd.f32 %v3104, %v3527
        %v3612 = vadd.f32 %v3105, %v3530
        %v3613 = vadd.f32 %v3106, %v3533
        %v3614 = vadd.f32 %v3107, %v3536
        %v3615 = vadd.f32 %v3108, %v3539
        %v3616 = vadd.f32 %v3109, %v3542
        %v3617 = vadd.f32 %v3110, %v3545
        %v3618 = vadd.f32 %v3111, %v3548
        %v3619 = vadd.f32 %v3112, %v3551
        %v3620 = vadd.f32 %v3113, %v3554
        %v3621 = vadd.f32 %v3114, %v3557
        %v3622 = vadd.f32 %v3115, %v3560
        %v3623 = vadd.f32 %v3116, %v3563
        %v3624 = vadd.f32 %v3117, %v3566
        %v3625 = vadd.f32 %v3118, %v3569
        %v3626 = vadd.f32 %v3119, %v3572
        %v3627 = vadd.f32 %v3120, %v3575
        %v3628 = vadd.f32 %v3121, %v3578
        %v3629 = vadd.f32 %v3122, %v3581
        %v3630 = vadd.f32 %v3123, %v3584
        %v3631 = vadd.f32 %v3124, %v3587
        %v3632 = vadd.f32 %v3125, %v3590
        %3633 = vst.sshfl [vmem:[#allocation1] sm:$0xff pattern:$0x73625140] %v315
        %3634 = vst.sshfl [vmem:[#allocation1 + $0x20] sm:$0xff pattern:$0x73625140] %v316
        %s3635 = scalar_lea.vmem [#allocation1], 1
        %v3636 = vld [vmem:[%s3635] ss:$4 sm:$0xff]
        %s3637 = scalar_lea.vmem [#allocation1], 2
        %v3638 = vld [vmem:[%s3637] ss:$4 sm:$0xff]
        %s3639 = scalar_lea.vmem [#allocation1], 3
        %v3640 = vld [vmem:[%s3639] ss:$4 sm:$0xff]
        %s3641 = scalar_lea.vmem [#allocation1], 32
        %v3642 = vld [vmem:[%s3641] ss:$4 sm:$0xff]
        %s3643 = scalar_lea.vmem [#allocation1], 33
        %v3644 = vld [vmem:[%s3643] ss:$4 sm:$0xff]
        %s3645 = scalar_lea.vmem [#allocation1], 34
        %v3646 = vld [vmem:[%s3645] ss:$4 sm:$0xff]
        %s3647 = scalar_lea.vmem [#allocation1], 35
        %v3648 = vld [vmem:[%s3647] ss:$4 sm:$0xff]
        %3649 = vst.sshfl [vmem:[#allocation1] sm:$0xff pattern:$0x73625140] %v317
        %v3650 = vld [vmem:[#allocation1] ss:$4 sm:$0xff]
        %v3651 = vld [vmem:[%s3635] ss:$4 sm:$0xff]
        %3652 = vst.sshfl [vmem:[#allocation1 + $0x20] sm:$0xff pattern:$0x73625140] %v318
        %v3653 = vld [vmem:[%s3643] ss:$4 sm:$0xff]
        %v3654 = vld [vmem:[%s3645] ss:$4 sm:$0xff]
        %v3655 = vld [vmem:[%s3647] ss:$4 sm:$0xff]
        %3656 = vst.sshfl [vmem:[#allocation1] sm:$0xff pattern:$0x73625140] %v319
        %3657 = vst.sshfl [vmem:[#allocation1 + $0x20] sm:$0xff pattern:$0x73625140] %v320
        %v3658 = vld [vmem:[#allocation1] ss:$4 sm:$0xff]
        %v3659 = vld [vmem:[%s3635] ss:$4 sm:$0xff]
        %v3660 = vld [vmem:[%s3637] ss:$4 sm:$0xff]
        %v3661 = vld [vmem:[%s3639] ss:$4 sm:$0xff]
        %v3662 = vld [vmem:[%s3641] ss:$4 sm:$0xff]
        %v3663 = vld [vmem:[%s3643] ss:$4 sm:$0xff]
        %3664 = vst.sshfl [vmem:[#allocation1] sm:$0xff pattern:$0x73625140] %v321
        %3665 = vst.sshfl [vmem:[#allocation1 + $0x20] sm:$0xff pattern:$0x73625140] %v322
        %v3666 = vld [vmem:[%s3635] ss:$4 sm:$0xff]
        %v3667 = vld [vmem:[%s3637] ss:$4 sm:$0xff]
        %v3668 = vld [vmem:[%s3639] ss:$4 sm:$0xff]
        %v3669 = vld [vmem:[%s3641] ss:$4 sm:$0xff]
        %v3670 = vld [vmem:[%s3643] ss:$4 sm:$0xff]
        %v3671 = vld [vmem:[%s3645] ss:$4 sm:$0xff]
        %v3672 = vld [vmem:[%s3647] ss:$4 sm:$0xff]
        %3673 = vst.sshfl [vmem:[#allocation1] sm:$0xff pattern:$0x73625140] %v323
        %v3674 = vld [vmem:[#allocation1] ss:$4 sm:$0xff]
        %v3675 = vld [vmem:[%s3635] ss:$4 sm:$0xff]
        %3676 = vst.sshfl [vmem:[#allocation1 + $0x20] sm:$0xff pattern:$0x73625140] %v324
        %v3677 = vld [vmem:[%s3643] ss:$4 sm:$0xff]
        %v3678 = vld [vmem:[%s3645] ss:$4 sm:$0xff]
        %v3679 = vld [vmem:[%s3647] ss:$4 sm:$0xff]
        %3680 = vst.sshfl [vmem:[#allocation1] sm:$0xff pattern:$0x73625140] %v325
        %3681 = vst.sshfl [vmem:[#allocation1 + $0x20] sm:$0xff pattern:$0x73625140] %v326
        %v3682 = vld [vmem:[#allocation1] ss:$4 sm:$0xff]
        %v3683 = vld [vmem:[%s3635] ss:$4 sm:$0xff]
        %v3684 = vld [vmem:[%s3637] ss:$4 sm:$0xff]
        %v3685 = vld [vmem:[%s3639] ss:$4 sm:$0xff]
        %v3686 = vld [vmem:[%s3641] ss:$4 sm:$0xff]
        %v3687 = vld [vmem:[%s3643] ss:$4 sm:$0xff]
        %3688 = vst.sshfl [vmem:[#allocation1] sm:$0xff pattern:$0x73625140] %v327
        %3689 = vst.sshfl [vmem:[#allocation1 + $0x20] sm:$0xff pattern:$0x73625140] %v328
        %v3690 = vld [vmem:[%s3635] ss:$4 sm:$0xff]
        %v3691 = vld [vmem:[%s3637] ss:$4 sm:$0xff]
        %v3692 = vld [vmem:[%s3639] ss:$4 sm:$0xff]
        %v3693 = vld [vmem:[%s3641] ss:$4 sm:$0xff]
        %v3694 = vld [vmem:[%s3643] ss:$4 sm:$0xff]
        %v3695 = vld [vmem:[%s3645] ss:$4 sm:$0xff]
        %v3696 = vld [vmem:[%s3647] ss:$4 sm:$0xff]
        %3697 = vst.sshfl [vmem:[#allocation1] sm:$0xff pattern:$0x73625140] %v329
        %v3698 = vld [vmem:[#allocation1] ss:$4 sm:$0xff]
        %v3699 = vld [vmem:[%s3635] ss:$4 sm:$0xff]
        %3700 = vst.sshfl [vmem:[#allocation1 + $0x20] sm:$0xff pattern:$0x73625140] %v330
        %v3701 = vld [vmem:[%s3643] ss:$4 sm:$0xff]
        %v3702 = vld [vmem:[%s3645] ss:$4 sm:$0xff]
        %v3703 = vld [vmem:[%s3647] ss:$4 sm:$0xff]
        %3704 = vst.sshfl [vmem:[#allocation1] sm:$0xff pattern:$0x73625140] %v331
        %3705 = vst.sshfl [vmem:[#allocation1 + $0x20] sm:$0xff pattern:$0x73625140] %v332
        %v3706 = vld [vmem:[#allocation1] ss:$4 sm:$0xff]
        %v3707 = vld [vmem:[%s3635] ss:$4 sm:$0xff]
        %v3708 = vld [vmem:[%s3637] ss:$4 sm:$0xff]
        %v3709 = vld [vmem:[%s3639] ss:$4 sm:$0xff]
        %v3710 = vld [vmem:[%s3641] ss:$4 sm:$0xff]
        %v3711 = vld [vmem:[%s3643] ss:$4 sm:$0xff]
        %3712 = vst.sshfl [vmem:[#allocation1] sm:$0xff pattern:$0x73625140] %v333
        %3713 = vst.sshfl [vmem:[#allocation1 + $0x20] sm:$0xff pattern:$0x73625140] %v334
        %v3714 = vld [vmem:[%s3635] ss:$4 sm:$0xff]
        %v3715 = vld [vmem:[%s3637] ss:$4 sm:$0xff]
        %v3716 = vld [vmem:[%s3639] ss:$4 sm:$0xff]
        %v3717 = vld [vmem:[%s3641] ss:$4 sm:$0xff]
        %v3718 = vld [vmem:[%s3643] ss:$4 sm:$0xff]
        %v3719 = vld [vmem:[%s3645] ss:$4 sm:$0xff]
        %v3720 = vld [vmem:[%s3647] ss:$4 sm:$0xff]
        %3721 = vst.sshfl [vmem:[#allocation1] sm:$0xff pattern:$0x73625140] %v335
        %v3722 = vld [vmem:[#allocation1] ss:$4 sm:$0xff]
        %v3723 = vld [vmem:[%s3635] ss:$4 sm:$0xff]
        %3724 = vst.sshfl [vmem:[#allocation1 + $0x20] sm:$0xff pattern:$0x73625140] %v336
        %v3725 = vld [vmem:[%s3643] ss:$4 sm:$0xff]
        %v3726 = vld [vmem:[%s3645] ss:$4 sm:$0xff]
        %v3727 = vld [vmem:[%s3647] ss:$4 sm:$0xff]
        %3728 = vst.sshfl [vmem:[#allocation1] sm:$0xff pattern:$0x73625140] %v337
        %3729 = vst.sshfl [vmem:[#allocation1 + $0x20] sm:$0xff pattern:$0x73625140] %v338
        %v3730 = vld [vmem:[#allocation1] ss:$4 sm:$0xff]
        %v3731 = vld [vmem:[%s3635] ss:$4 sm:$0xff]
        %v3732 = vld [vmem:[%s3637] ss:$4 sm:$0xff]
        %v3733 = vld [vmem:[%s3639] ss:$4 sm:$0xff]
        %v3734 = vld [vmem:[%s3641] ss:$4 sm:$0xff]
        %v3735 = vld [vmem:[%s3643] ss:$4 sm:$0xff]
        %3736 = vst.sshfl [vmem:[#allocation1] sm:$0xff pattern:$0x73625140] %v339
        %3737 = vst.sshfl [vmem:[#allocation1 + $0x20] sm:$0xff pattern:$0x73625140] %v340
        %v3738 = vld [vmem:[%s3635] ss:$4 sm:$0xff]
        %v3739 = vld [vmem:[%s3637] ss:$4 sm:$0xff]
        %v3740 = vld [vmem:[%s3639] ss:$4 sm:$0xff]
        %v3741 = vld [vmem:[%s3641] ss:$4 sm:$0xff]
        %v3742 = vld [vmem:[%s3643] ss:$4 sm:$0xff]
        %v3743 = vld [vmem:[%s3645] ss:$4 sm:$0xff]
        %v3744 = vld [vmem:[%s3647] ss:$4 sm:$0xff]
        %3745 = vst.sshfl [vmem:[#allocation1] sm:$0xff pattern:$0x73625140] %v341
        %v3746 = vld [vmem:[#allocation1] ss:$4 sm:$0xff]
        %v3747 = vld [vmem:[%s3635] ss:$4 sm:$0xff]
        %3748 = vst.sshfl [vmem:[#allocation1 + $0x20] sm:$0xff pattern:$0x73625140] %v342
        %v3749 = vld [vmem:[%s3643] ss:$4 sm:$0xff]
        %v3750 = vld [vmem:[%s3645] ss:$4 sm:$0xff]
        %v3751 = vld [vmem:[%s3647] ss:$4 sm:$0xff]
        %3752 = vst.sshfl [vmem:[#allocation1] sm:$0xff pattern:$0x73625140] %v343
        %3753 = vst.sshfl [vmem:[#allocation1 + $0x20] sm:$0xff pattern:$0x73625140] %v344
        %v3754 = vld [vmem:[#allocation1] ss:$4 sm:$0xff]
        %v3755 = vld [vmem:[%s3635] ss:$4 sm:$0xff]
        %v3756 = vld [vmem:[%s3637] ss:$4 sm:$0xff]
        %v3757 = vld [vmem:[%s3639] ss:$4 sm:$0xff]
        %v3758 = vld [vmem:[%s3641] ss:$4 sm:$0xff]
        %v3759 = vld [vmem:[%s3643] ss:$4 sm:$0xff]
        %3760 = vst.sshfl [vmem:[#allocation1] sm:$0xff pattern:$0x73625140] %v345
        %3761 = vst.sshfl [vmem:[#allocation1 + $0x20] sm:$0xff pattern:$0x73625140] %v346
        %v3762 = vld [vmem:[%s3635] ss:$4 sm:$0xff]
        %v3763 = vld [vmem:[%s3637] ss:$4 sm:$0xff]
        %v3764 = vld [vmem:[%s3639] ss:$4 sm:$0xff]
        %v3765 = vld [vmem:[%s3641] ss:$4 sm:$0xff]
        %v3766 = vld [vmem:[%s3643] ss:$4 sm:$0xff]
        %v3767 = vld [vmem:[%s3645] ss:$4 sm:$0xff]
        %v3768 = vld [vmem:[%s3647] ss:$4 sm:$0xff]
        %3769 = vst.sshfl [vmem:[#allocation1] sm:$0xff pattern:$0x73625140] %v347
        %v3770 = vld [vmem:[#allocation1] ss:$4 sm:$0xff]
        %v3771 = vld [vmem:[%s3635] ss:$4 sm:$0xff]
        %3772 = vst.sshfl [vmem:[#allocation1 + $0x20] sm:$0xff pattern:$0x73625140] %v348
        %v3773 = vld [vmem:[%s3643] ss:$4 sm:$0xff]
        %v3774 = vld [vmem:[%s3645] ss:$4 sm:$0xff]
        %v3775 = vld [vmem:[%s3647] ss:$4 sm:$0xff]
        %3776 = vst.sshfl [vmem:[#allocation1] sm:$0xff pattern:$0x73625140] %v349
        %3777 = vst.sshfl [vmem:[#allocation1 + $0x20] sm:$0xff pattern:$0x73625140] %v350
        %v3778 = vld [vmem:[#allocation1] ss:$4 sm:$0xff]
        %v3779 = vld [vmem:[%s3635] ss:$4 sm:$0xff]
        %v3780 = vld [vmem:[%s3637] ss:$4 sm:$0xff]
        %v3781 = vld [vmem:[%s3639] ss:$4 sm:$0xff]
        %v3782 = vld [vmem:[%s3641] ss:$4 sm:$0xff]
        %v3783 = vld [vmem:[%s3643] ss:$4 sm:$0xff]
        %3784 = vst.sshfl [vmem:[#allocation1] sm:$0xff pattern:$0x73625140] %v351
        %3785 = vst.sshfl [vmem:[#allocation1 + $0x20] sm:$0xff pattern:$0x73625140] %v352
        %v3786 = vld [vmem:[%s3635] ss:$4 sm:$0xff]
        %v3787 = vld [vmem:[%s3637] ss:$4 sm:$0xff]
        %v3788 = vld [vmem:[%s3639] ss:$4 sm:$0xff]
        %v3789 = vld [vmem:[%s3641] ss:$4 sm:$0xff]
        %v3790 = vld [vmem:[%s3643] ss:$4 sm:$0xff]
        %v3791 = vld [vmem:[%s3645] ss:$4 sm:$0xff]
        %v3792 = vld [vmem:[%s3647] ss:$4 sm:$0xff]
        %3793 = vst.sshfl [vmem:[#allocation1] sm:$0xff pattern:$0x73625140] %v353
        %v3794 = vld [vmem:[#allocation1] ss:$4 sm:$0xff]
        %v3795 = vld [vmem:[%s3635] ss:$4 sm:$0xff]
        %3796 = vst.sshfl [vmem:[#allocation1 + $0x20] sm:$0xff pattern:$0x73625140] %v354
        %v3797 = vld [vmem:[%s3643] ss:$4 sm:$0xff]
        %v3798 = vld [vmem:[%s3645] ss:$4 sm:$0xff]
        %v3799 = vld [vmem:[%s3647] ss:$4 sm:$0xff]
        %3800 = vst.sshfl [vmem:[#allocation1] sm:$0xff pattern:$0x73625140] %v355
        %3801 = vst.sshfl [vmem:[#allocation1 + $0x20] sm:$0xff pattern:$0x73625140] %v356
        %v3802 = vld [vmem:[#allocation1] ss:$4 sm:$0xff]
        %v3803 = vld [vmem:[%s3635] ss:$4 sm:$0xff]
        %v3804 = vld [vmem:[%s3637] ss:$4 sm:$0xff]
        %v3805 = vld [vmem:[%s3639] ss:$4 sm:$0xff]
        %v3806 = vld [vmem:[%s3641] ss:$4 sm:$0xff]
        %v3807 = vld [vmem:[%s3643] ss:$4 sm:$0xff]
        %3808 = vst.sshfl [vmem:[#allocation1] sm:$0xff pattern:$0x73625140] %v357
        %3809 = vst.sshfl [vmem:[#allocation1 + $0x20] sm:$0xff pattern:$0x73625140] %v358
        %v3810 = vld [vmem:[%s3635] ss:$4 sm:$0xff]
        %v3811 = vld [vmem:[%s3637] ss:$4 sm:$0xff]
        %v3812 = vld [vmem:[%s3639] ss:$4 sm:$0xff]
        %v3813 = vld [vmem:[%s3641] ss:$4 sm:$0xff]
        %v3814 = vld [vmem:[%s3643] ss:$4 sm:$0xff]
        %v3815 = vld [vmem:[%s3645] ss:$4 sm:$0xff]
        %v3816 = vld [vmem:[%s3647] ss:$4 sm:$0xff]
        %3817 = vst.sshfl [vmem:[#allocation1] sm:$0xff pattern:$0x73625140] %v359
        %v3818 = vld [vmem:[#allocation1] ss:$4 sm:$0xff]
        %v3819 = vld [vmem:[%s3635] ss:$4 sm:$0xff]
        %3820 = vst.sshfl [vmem:[#allocation1 + $0x20] sm:$0xff pattern:$0x73625140] %v360
        %v3821 = vld [vmem:[%s3643] ss:$4 sm:$0xff]
        %v3822 = vld [vmem:[%s3645] ss:$4 sm:$0xff]
        %v3823 = vld [vmem:[%s3647] ss:$4 sm:$0xff]
        %3824 = vst.sshfl [vmem:[#allocation1] sm:$0xff pattern:$0x73625140] %v361
        %3825 = vst.sshfl [vmem:[#allocation1 + $0x20] sm:$0xff pattern:$0x73625140] %v362
        %v3826 = vld [vmem:[#allocation1] ss:$4 sm:$0xff]
        %v3827 = vld [vmem:[%s3635] ss:$4 sm:$0xff]
        %v3828 = vld [vmem:[%s3637] ss:$4 sm:$0xff]
        %v3829 = vld [vmem:[%s3639] ss:$4 sm:$0xff]
        %v3830 = vld [vmem:[%s3641] ss:$4 sm:$0xff]
        %v3831 = vld [vmem:[%s3643] ss:$4 sm:$0xff]
        %3832 = vst.sshfl [vmem:[#allocation1] sm:$0xff pattern:$0x73625140] %v363
        %3833 = vst.sshfl [vmem:[#allocation1 + $0x20] sm:$0xff pattern:$0x73625140] %v364
        %v3834 = vld [vmem:[%s3635] ss:$4 sm:$0xff]
        %v3835 = vld [vmem:[%s3637] ss:$4 sm:$0xff]
        %v3836 = vld [vmem:[%s3639] ss:$4 sm:$0xff]
        %v3837 = vld [vmem:[%s3641] ss:$4 sm:$0xff]
        %v3838 = vld [vmem:[%s3643] ss:$4 sm:$0xff]
        %v3839 = vld [vmem:[%s3645] ss:$4 sm:$0xff]
        %v3840 = vld [vmem:[%s3647] ss:$4 sm:$0xff]
        %3841 = vst.sshfl [vmem:[#allocation1] sm:$0xff pattern:$0x73625140] %v365
        %v3842 = vld [vmem:[#allocation1] ss:$4 sm:$0xff]
        %v3843 = vld [vmem:[%s3635] ss:$4 sm:$0xff]
        %3844 = vst.sshfl [vmem:[#allocation1 + $0x20] sm:$0xff pattern:$0x73625140] %v366
        %v3845 = vld [vmem:[%s3643] ss:$4 sm:$0xff]
        %v3846 = vld [vmem:[%s3645] ss:$4 sm:$0xff]
        %v3847 = vld [vmem:[%s3647] ss:$4 sm:$0xff]
        %3848 = vst.sshfl [vmem:[#allocation1] sm:$0xff pattern:$0x73625140] %v367
        %3849 = vst.sshfl [vmem:[#allocation1 + $0x20] sm:$0xff pattern:$0x73625140] %v368
        %v3850 = vld [vmem:[#allocation1] ss:$4 sm:$0xff]
        %v3851 = vld [vmem:[%s3635] ss:$4 sm:$0xff]
        %v3852 = vld [vmem:[%s3637] ss:$4 sm:$0xff]
        %v3853 = vld [vmem:[%s3639] ss:$4 sm:$0xff]
        %v3854 = vld [vmem:[%s3641] ss:$4 sm:$0xff]
        %v3855 = vld [vmem:[%s3643] ss:$4 sm:$0xff]
        %s3856 = scalar_lea.vmem %s1, 20
        %v3857 = vld [vmem:[%s3856] sm:$0xf]
        %3858 = vst [vmem:[#allocation1] ss:$4 sm:$0xff] %v3636
        %s3859 = scalar_lea.vmem [#allocation1], 1
        %3860 = vst [vmem:[%s3859] ss:$4 sm:$0xff] %v3638
        %s3861 = scalar_lea.vmem [#allocation1], 2
        %3862 = vst [vmem:[%s3861] ss:$4 sm:$0xff] %v3640
        %s3863 = scalar_lea.vmem [#allocation1], 3
        %3864 = vst [vmem:[%s3863] ss:$4 sm:$0xff] %v3642
        %s3865 = scalar_lea.vmem [#allocation1], 32
        %3866 = vst [vmem:[%s3865] ss:$4 sm:$0xff] %v3644
        %s3867 = scalar_lea.vmem [#allocation1], 33
        %3868 = vst [vmem:[%s3867] ss:$4 sm:$0xff] %v3646
        %s3869 = scalar_lea.vmem [#allocation1], 34
        %3870 = vst [vmem:[%s3869] ss:$4 sm:$0xff] %v3648
        %s3871 = scalar_lea.vmem [#allocation1], 35
        %3872 = vst [vmem:[%s3871] ss:$4 sm:$0xff] %v3650
        %v3873 = vld.sshfl [vmem:[#allocation1] sm:$0xff pattern:$0x73625140]
        %v3874 = vld.sshfl [vmem:[#allocation1 + $0x20] sm:$0xff pattern:$0x73625140]
        %3875 = vst [vmem:[#allocation1] ss:$4 sm:$0xff] %v3651
        %3876 = vst [vmem:[%s3859] ss:$4 sm:$0xff] %v3653
        %3877 = vst [vmem:[%s3861] ss:$4 sm:$0xff] %v3654
        %3878 = vst [vmem:[%s3863] ss:$4 sm:$0xff] %v3655
        %3879 = vst [vmem:[%s3865] ss:$4 sm:$0xff] %v3658
        %3880 = vst [vmem:[%s3867] ss:$4 sm:$0xff] %v3659
        %3881 = vst [vmem:[%s3869] ss:$4 sm:$0xff] %v3660
        %3882 = vst [vmem:[%s3871] ss:$4 sm:$0xff] %v3661
        %v3883 = vld.sshfl [vmem:[#allocation1] sm:$0xff pattern:$0x73625140]
        %v3884 = vld.sshfl [vmem:[#allocation1 + $0x20] sm:$0xff pattern:$0x73625140]
        %3885 = vst [vmem:[#allocation1] ss:$4 sm:$0xff] %v3662
        %3886 = vst [vmem:[%s3859] ss:$4 sm:$0xff] %v3663
        %3887 = vst [vmem:[%s3861] ss:$4 sm:$0xff] %v3666
        %3888 = vst [vmem:[%s3863] ss:$4 sm:$0xff] %v3667
        %3889 = vst [vmem:[%s3865] ss:$4 sm:$0xff] %v3668
        %3890 = vst [vmem:[%s3867] ss:$4 sm:$0xff] %v3669
        %3891 = vst [vmem:[%s3869] ss:$4 sm:$0xff] %v3670
        %3892 = vst [vmem:[%s3871] ss:$4 sm:$0xff] %v3671
        %v3893 = vld.sshfl [vmem:[#allocation1] sm:$0xff pattern:$0x73625140]
        %v3894 = vld.sshfl [vmem:[#allocation1 + $0x20] sm:$0xff pattern:$0x73625140]
        %3895 = vst [vmem:[#allocation1] ss:$4 sm:$0xff] %v3672
        %3896 = vst [vmem:[%s3859] ss:$4 sm:$0xff] %v3674
        %3897 = vst [vmem:[%s3861] ss:$4 sm:$0xff] %v3675
        %3898 = vst [vmem:[%s3863] ss:$4 sm:$0xff] %v3677
        %3899 = vst [vmem:[%s3865] ss:$4 sm:$0xff] %v3678
        %3900 = vst [vmem:[%s3867] ss:$4 sm:$0xff] %v3679
        %3901 = vst [vmem:[%s3869] ss:$4 sm:$0xff] %v3682
        %3902 = vst [vmem:[%s3871] ss:$4 sm:$0xff] %v3683
        %v3903 = vld.sshfl [vmem:[#allocation1] sm:$0xff pattern:$0x73625140]
        %v3904 = vld.sshfl [vmem:[#allocation1 + $0x20] sm:$0xff pattern:$0x73625140]
        %3905 = vst [vmem:[#allocation1] ss:$4 sm:$0xff] %v3684
        %3906 = vst [vmem:[%s3859] ss:$4 sm:$0xff] %v3685
        %3907 = vst [vmem:[%s3861] ss:$4 sm:$0xff] %v3686
        %3908 = vst [vmem:[%s3863] ss:$4 sm:$0xff] %v3687
        %3909 = vst [vmem:[%s3865] ss:$4 sm:$0xff] %v3690
        %3910 = vst [vmem:[%s3867] ss:$4 sm:$0xff] %v3691
        %3911 = vst [vmem:[%s3869] ss:$4 sm:$0xff] %v3692
        %3912 = vst [vmem:[%s3871] ss:$4 sm:$0xff] %v3693
        %v3913 = vld.sshfl [vmem:[#allocation1] sm:$0xff pattern:$0x73625140]
        %v3914 = vld.sshfl [vmem:[#allocation1 + $0x20] sm:$0xff pattern:$0x73625140]
        %3915 = vst [vmem:[#allocation1] ss:$4 sm:$0xff] %v3694
        %3916 = vst [vmem:[%s3859] ss:$4 sm:$0xff] %v3695
        %3917 = vst [vmem:[%s3861] ss:$4 sm:$0xff] %v3696
        %3918 = vst [vmem:[%s3863] ss:$4 sm:$0xff] %v3698
        %3919 = vst [vmem:[%s3865] ss:$4 sm:$0xff] %v3699
        %3920 = vst [vmem:[%s3867] ss:$4 sm:$0xff] %v3701
        %3921 = vst [vmem:[%s3869] ss:$4 sm:$0xff] %v3702
        %3922 = vst [vmem:[%s3871] ss:$4 sm:$0xff] %v3703
        %v3923 = vld.sshfl [vmem:[#allocation1] sm:$0xff pattern:$0x73625140]
        %v3924 = vld.sshfl [vmem:[#allocation1 + $0x20] sm:$0xff pattern:$0x73625140]
        %3925 = vst [vmem:[#allocation1] ss:$4 sm:$0xff] %v3706
        %3926 = vst [vmem:[%s3859] ss:$4 sm:$0xff] %v3707
        %3927 = vst [vmem:[%s3861] ss:$4 sm:$0xff] %v3708
        %3928 = vst [vmem:[%s3863] ss:$4 sm:$0xff] %v3709
        %3929 = vst [vmem:[%s3865] ss:$4 sm:$0xff] %v3710
        %3930 = vst [vmem:[%s3867] ss:$4 sm:$0xff] %v3711
        %3931 = vst [vmem:[%s3869] ss:$4 sm:$0xff] %v3714
        %3932 = vst [vmem:[%s3871] ss:$4 sm:$0xff] %v3715
        %v3933 = vld.sshfl [vmem:[#allocation1] sm:$0xff pattern:$0x73625140]
        %v3934 = vld.sshfl [vmem:[#allocation1 + $0x20] sm:$0xff pattern:$0x73625140]
        %3935 = vst [vmem:[#allocation1] ss:$4 sm:$0xff] %v3716
        %3936 = vst [vmem:[%s3859] ss:$4 sm:$0xff] %v3717
        %3937 = vst [vmem:[%s3861] ss:$4 sm:$0xff] %v3718
        %3938 = vst [vmem:[%s3863] ss:$4 sm:$0xff] %v3719
        %3939 = vst [vmem:[%s3865] ss:$4 sm:$0xff] %v3720
        %3940 = vst [vmem:[%s3867] ss:$4 sm:$0xff] %v3722
        %3941 = vst [vmem:[%s3869] ss:$4 sm:$0xff] %v3723
        %3942 = vst [vmem:[%s3871] ss:$4 sm:$0xff] %v3725
        %v3943 = vld.sshfl [vmem:[#allocation1] sm:$0xff pattern:$0x73625140]
        %v3944 = vld.sshfl [vmem:[#allocation1 + $0x20] sm:$0xff pattern:$0x73625140]
        %3945 = vst [vmem:[#allocation1] ss:$4 sm:$0xff] %v3726
        %3946 = vst [vmem:[%s3859] ss:$4 sm:$0xff] %v3727
        %3947 = vst [vmem:[%s3861] ss:$4 sm:$0xff] %v3730
        %3948 = vst [vmem:[%s3863] ss:$4 sm:$0xff] %v3731
        %3949 = vst [vmem:[%s3865] ss:$4 sm:$0xff] %v3732
        %3950 = vst [vmem:[%s3867] ss:$4 sm:$0xff] %v3733
        %3951 = vst [vmem:[%s3869] ss:$4 sm:$0xff] %v3734
        %3952 = vst [vmem:[%s3871] ss:$4 sm:$0xff] %v3735
        %v3953 = vld.sshfl [vmem:[#allocation1] sm:$0xff pattern:$0x73625140]
        %v3954 = vld.sshfl [vmem:[#allocation1 + $0x20] sm:$0xff pattern:$0x73625140]
        %3955 = vst [vmem:[#allocation1] ss:$4 sm:$0xff] %v3738
        %3956 = vst [vmem:[%s3859] ss:$4 sm:$0xff] %v3739
        %3957 = vst [vmem:[%s3861] ss:$4 sm:$0xff] %v3740
        %3958 = vst [vmem:[%s3863] ss:$4 sm:$0xff] %v3741
        %3959 = vst [vmem:[%s3865] ss:$4 sm:$0xff] %v3742
        %3960 = vst [vmem:[%s3867] ss:$4 sm:$0xff] %v3743
        %3961 = vst [vmem:[%s3869] ss:$4 sm:$0xff] %v3744
        %3962 = vst [vmem:[%s3871] ss:$4 sm:$0xff] %v3746
        %v3963 = vld.sshfl [vmem:[#allocation1] sm:$0xff pattern:$0x73625140]
        %v3964 = vld.sshfl [vmem:[#allocation1 + $0x20] sm:$0xff pattern:$0x73625140]
        %3965 = vst [vmem:[#allocation1] ss:$4 sm:$0xff] %v3747
        %3966 = vst [vmem:[%s3859] ss:$4 sm:$0xff] %v3749
        %3967 = vst [vmem:[%s3861] ss:$4 sm:$0xff] %v3750
        %3968 = vst [vmem:[%s3863] ss:$4 sm:$0xff] %v3751
        %3969 = vst [vmem:[%s3865] ss:$4 sm:$0xff] %v3754
        %3970 = vst [vmem:[%s3867] ss:$4 sm:$0xff] %v3755
        %3971 = vst [vmem:[%s3869] ss:$4 sm:$0xff] %v3756
        %3972 = vst [vmem:[%s3871] ss:$4 sm:$0xff] %v3757
        %v3973 = vld.sshfl [vmem:[#allocation1] sm:$0xff pattern:$0x73625140]
        %v3974 = vld.sshfl [vmem:[#allocation1 + $0x20] sm:$0xff pattern:$0x73625140]
        %3975 = vst [vmem:[#allocation1] ss:$4 sm:$0xff] %v3758
        %3976 = vst [vmem:[%s3859] ss:$4 sm:$0xff] %v3759
        %3977 = vst [vmem:[%s3861] ss:$4 sm:$0xff] %v3762
        %3978 = vst [vmem:[%s3863] ss:$4 sm:$0xff] %v3763
        %3979 = vst [vmem:[%s3865] ss:$4 sm:$0xff] %v3764
        %3980 = vst [vmem:[%s3867] ss:$4 sm:$0xff] %v3765
        %3981 = vst [vmem:[%s3869] ss:$4 sm:$0xff] %v3766
        %3982 = vst [vmem:[%s3871] ss:$4 sm:$0xff] %v3767
        %v3983 = vld.sshfl [vmem:[#allocation1] sm:$0xff pattern:$0x73625140]
        %v3984 = vld.sshfl [vmem:[#allocation1 + $0x20] sm:$0xff pattern:$0x73625140]
        %3985 = vst [vmem:[#allocation1] ss:$4 sm:$0xff] %v3768
        %3986 = vst [vmem:[%s3859] ss:$4 sm:$0xff] %v3770
        %3987 = vst [vmem:[%s3861] ss:$4 sm:$0xff] %v3771
        %3988 = vst [vmem:[%s3863] ss:$4 sm:$0xff] %v3773
        %3989 = vst [vmem:[%s3865] ss:$4 sm:$0xff] %v3774
        %3990 = vst [vmem:[%s3867] ss:$4 sm:$0xff] %v3775
        %3991 = vst [vmem:[%s3869] ss:$4 sm:$0xff] %v3778
        %3992 = vst [vmem:[%s3871] ss:$4 sm:$0xff] %v3779
        %v3993 = vld.sshfl [vmem:[#allocation1] sm:$0xff pattern:$0x73625140]
        %v3994 = vld.sshfl [vmem:[#allocation1 + $0x20] sm:$0xff pattern:$0x73625140]
        %3995 = vst [vmem:[#allocation1] ss:$4 sm:$0xff] %v3780
        %3996 = vst [vmem:[%s3859] ss:$4 sm:$0xff] %v3781
        %3997 = vst [vmem:[%s3861] ss:$4 sm:$0xff] %v3782
        %3998 = vst [vmem:[%s3863] ss:$4 sm:$0xff] %v3783
        %3999 = vst [vmem:[%s3865] ss:$4 sm:$0xff] %v3786
        %4000 = vst [vmem:[%s3867] ss:$4 sm:$0xff] %v3787
        %4001 = vst [vmem:[%s3869] ss:$4 sm:$0xff] %v3788
        %4002 = vst [vmem:[%s3871] ss:$4 sm:$0xff] %v3789
        %v4003 = vld.sshfl [vmem:[#allocation1] sm:$0xff pattern:$0x73625140]
        %v4004 = vld.sshfl [vmem:[#allocation1 + $0x20] sm:$0xff pattern:$0x73625140]
        %4005 = vst [vmem:[#allocation1] ss:$4 sm:$0xff] %v3790
        %4006 = vst [vmem:[%s3859] ss:$4 sm:$0xff] %v3791
        %4007 = vst [vmem:[%s3861] ss:$4 sm:$0xff] %v3792
        %4008 = vst [vmem:[%s3863] ss:$4 sm:$0xff] %v3794
        %4009 = vst [vmem:[%s3865] ss:$4 sm:$0xff] %v3795
        %4010 = vst [vmem:[%s3867] ss:$4 sm:$0xff] %v3797
        %4011 = vst [vmem:[%s3869] ss:$4 sm:$0xff] %v3798
        %4012 = vst [vmem:[%s3871] ss:$4 sm:$0xff] %v3799
        %v4013 = vld.sshfl [vmem:[#allocation1] sm:$0xff pattern:$0x73625140]
        %v4014 = vld.sshfl [vmem:[#allocation1 + $0x20] sm:$0xff pattern:$0x73625140]
        %4015 = vst [vmem:[#allocation1] ss:$4 sm:$0xff] %v3802
        %4016 = vst [vmem:[%s3859] ss:$4 sm:$0xff] %v3803
        %4017 = vst [vmem:[%s3861] ss:$4 sm:$0xff] %v3804
        %4018 = vst [vmem:[%s3863] ss:$4 sm:$0xff] %v3805
        %4019 = vst [vmem:[%s3865] ss:$4 sm:$0xff] %v3806
        %4020 = vst [vmem:[%s3867] ss:$4 sm:$0xff] %v3807
        %4021 = vst [vmem:[%s3869] ss:$4 sm:$0xff] %v3810
        %4022 = vst [vmem:[%s3871] ss:$4 sm:$0xff] %v3811
        %v4023 = vld.sshfl [vmem:[#allocation1] sm:$0xff pattern:$0x73625140]
        %v4024 = vld.sshfl [vmem:[#allocation1 + $0x20] sm:$0xff pattern:$0x73625140]
        %4025 = vst [vmem:[#allocation1] ss:$4 sm:$0xff] %v3812
        %4026 = vst [vmem:[%s3859] ss:$4 sm:$0xff] %v3813
        %4027 = vst [vmem:[%s3861] ss:$4 sm:$0xff] %v3814
        %4028 = vst [vmem:[%s3863] ss:$4 sm:$0xff] %v3815
        %4029 = vst [vmem:[%s3865] ss:$4 sm:$0xff] %v3816
        %4030 = vst [vmem:[%s3867] ss:$4 sm:$0xff] %v3818
        %4031 = vst [vmem:[%s3869] ss:$4 sm:$0xff] %v3819
        %4032 = vst [vmem:[%s3871] ss:$4 sm:$0xff] %v3821
        %v4033 = vld.sshfl [vmem:[#allocation1] sm:$0xff pattern:$0x73625140]
        %v4034 = vld.sshfl [vmem:[#allocation1 + $0x20] sm:$0xff pattern:$0x73625140]
        %4035 = vst [vmem:[#allocation1] ss:$4 sm:$0xff] %v3822
        %4036 = vst [vmem:[%s3859] ss:$4 sm:$0xff] %v3823
        %4037 = vst [vmem:[%s3861] ss:$4 sm:$0xff] %v3826
        %4038 = vst [vmem:[%s3863] ss:$4 sm:$0xff] %v3827
        %4039 = vst [vmem:[%s3865] ss:$4 sm:$0xff] %v3828
        %4040 = vst [vmem:[%s3867] ss:$4 sm:$0xff] %v3829
        %4041 = vst [vmem:[%s3869] ss:$4 sm:$0xff] %v3830
        %4042 = vst [vmem:[%s3871] ss:$4 sm:$0xff] %v3831
        %v4043 = vld.sshfl [vmem:[#allocation1] sm:$0xff pattern:$0x73625140]
        %v4044 = vld.sshfl [vmem:[#allocation1 + $0x20] sm:$0xff pattern:$0x73625140]
        %4045 = vst [vmem:[#allocation1] ss:$4 sm:$0xff] %v3834
        %4046 = vst [vmem:[%s3859] ss:$4 sm:$0xff] %v3835
        %4047 = vst [vmem:[%s3861] ss:$4 sm:$0xff] %v3836
        %4048 = vst [vmem:[%s3863] ss:$4 sm:$0xff] %v3837
        %4049 = vst [vmem:[%s3865] ss:$4 sm:$0xff] %v3838
        %4050 = vst [vmem:[%s3867] ss:$4 sm:$0xff] %v3839
        %4051 = vst [vmem:[%s3869] ss:$4 sm:$0xff] %v3840
        %4052 = vst [vmem:[%s3871] ss:$4 sm:$0xff] %v3842
        %v4053 = vld.sshfl [vmem:[#allocation1] sm:$0xff pattern:$0x73625140]
        %v4054 = vld.sshfl [vmem:[#allocation1 + $0x20] sm:$0xff pattern:$0x73625140]
        %4055 = vst [vmem:[#allocation1] ss:$4 sm:$0xff] %v3843
        %4056 = vst [vmem:[%s3859] ss:$4 sm:$0xff] %v3845
        %4057 = vst [vmem:[%s3861] ss:$4 sm:$0xff] %v3846
        %4058 = vst [vmem:[%s3863] ss:$4 sm:$0xff] %v3847
        %4059 = vst [vmem:[%s3865] ss:$4 sm:$0xff] %v3850
        %4060 = vst [vmem:[%s3867] ss:$4 sm:$0xff] %v3851
        %4061 = vst [vmem:[%s3869] ss:$4 sm:$0xff] %v3852
        %4062 = vst [vmem:[%s3871] ss:$4 sm:$0xff] %v3853
        %v4063 = vld.sshfl [vmem:[#allocation1] sm:$0xff pattern:$0x73625140]
        %v4064 = vld.sshfl [vmem:[#allocation1 + $0x20] sm:$0xff pattern:$0x73625140]
        %4065 = vst [vmem:[#allocation1] ss:$4 sm:$0xff] %v3854
        %4066 = vst [vmem:[%s3859] ss:$4 sm:$0xff] %v3855
        %v4067 = vld.sshfl [vmem:[#allocation1] sm:$0xff pattern:$0x73625140]
        %v4068 = vsel %vm1276, %v3873, 0
        %v4070 = vsel %vm1276, %v3874, 0
        %v4072 = vsel %vm1276, %v3883, 0
        %v4074 = vsel %vm1276, %v3884, 0
        %v4076 = vsel %vm1276, %v3893, 0
        %v4078 = vsel %vm1276, %v3894, 0
        %v4080 = vsel %vm1276, %v3903, 0
        %v4082 = vsel %vm1276, %v3904, 0
        %v4084 = vsel %vm1276, %v3913, 0
        %v4086 = vsel %vm1276, %v3914, 0
        %v4088 = vsel %vm1276, %v3923, 0
        %v4090 = vsel %vm1276, %v3924, 0
        %v4092 = vsel %vm1276, %v3933, 0
        %v4094 = vsel %vm1276, %v3934, 0
        %v4096 = vsel %vm1276, %v3943, 0
        %v4098 = vsel %vm1276, %v3944, 0
        %v4100 = vsel %vm1276, %v3953, 0
        %v4102 = vsel %vm1276, %v3954, 0
        %v4104 = vsel %vm1276, %v3963, 0
        %v4106 = vsel %vm1276, %v3964, 0
        %v4108 = vsel %vm1276, %v3973, 0
        %v4110 = vsel %vm1276, %v3974, 0
        %v4112 = vsel %vm1276, %v3983, 0
        %v4114 = vsel %vm1276, %v3984, 0
        %v4116 = vsel %vm1276, %v3993, 0
        %v4118 = vsel %vm1276, %v3994, 0
        %v4120 = vsel %vm1276, %v4003, 0
        %v4122 = vsel %vm1276, %v4004, 0
        %v4124 = vsel %vm1276, %v4013, 0
        %v4126 = vsel %vm1276, %v4014, 0
        %v4128 = vsel %vm1276, %v4023, 0
        %v4130 = vsel %vm1276, %v4024, 0
        %v4132 = vsel %vm1276, %v4033, 0
        %v4134 = vsel %vm1276, %v4034, 0
        %v4136 = vsel %vm1276, %v4043, 0
        %v4138 = vsel %vm1276, %v4044, 0
        %v4140 = vsel %vm1276, %v4053, 0
        %v4142 = vsel %vm1276, %v4054, 0
        %v4144 = vsel %vm1276, %v4063, 0
        %v4146 = vsel %vm1276, %v4064, 0
        %v4148 = vsel %vm1276, %v4067, 0
        %v4151 = vsel %vm1359, %v3857, 0
        %4153 = vmatpush.msra.mxu0 0.0
        %4154 = vmatpush.msra.mxu0 0.0
        %4155 = vmatpush.msra.mxu0 0.0
        %4156 = vmatpush.msra.mxu0 0.0
        %4157 = vmatpush.msra.mxu0 0.0
        %4158 = vmatpush.msra.mxu0 0.0
        %4159 = vmatpush.msra.mxu0 0.0
        %4160 = vmatpush.msra.mxu0 0.0
        %4161 = vmatpush.msra.mxu0 0.0
        %4162 = vmatpush.msra.mxu0 0.0
        %4163 = vmatpush.msra.mxu0 0.0
        %4164 = vmatpush.msra.mxu0 0.0
        %4165 = vmatpush.msra.mxu0 0.0
        %4166 = vmatpush.msra.mxu0 0.0
        %4167 = vmatpush.msra.mxu0 0.0
        %4168 = vmatpush.msra.mxu0 %v4151
        %4169 = vmatmul.f32.gmra.mxu0 %v4068
        %v4170 = vpop.f32.mrf.mxu0
        %v4171 = vadd.f32 0.0, %v4170
        %4172 = vmatmul.f32.gmra.mxu0 %v4070
        %v4173 = vpop.f32.mrf.mxu0
        %v4174 = vadd.f32 0.0, %v4173
        %4175 = vmatmul.f32.gmra.mxu0 %v4072
        %v4176 = vpop.f32.mrf.mxu0
        %v4177 = vadd.f32 0.0, %v4176
        %4178 = vmatmul.f32.gmra.mxu0 %v4074
        %v4179 = vpop.f32.mrf.mxu0
        %v4180 = vadd.f32 0.0, %v4179
        %4181 = vmatmul.f32.gmra.mxu0 %v4076
        %v4182 = vpop.f32.mrf.mxu0
        %v4183 = vadd.f32 0.0, %v4182
        %4184 = vmatmul.f32.gmra.mxu0 %v4078
        %v4185 = vpop.f32.mrf.mxu0
        %v4186 = vadd.f32 0.0, %v4185
        %4187 = vmatmul.f32.gmra.mxu0 %v4080
        %v4188 = vpop.f32.mrf.mxu0
        %v4189 = vadd.f32 0.0, %v4188
        %4190 = vmatmul.f32.gmra.mxu0 %v4082
        %v4191 = vpop.f32.mrf.mxu0
        %v4192 = vadd.f32 0.0, %v4191
        %4193 = vmatmul.f32.gmra.mxu0 %v4084
        %v4194 = vpop.f32.mrf.mxu0
        %v4195 = vadd.f32 0.0, %v4194
        %4196 = vmatmul.f32.gmra.mxu0 %v4086
        %v4197 = vpop.f32.mrf.mxu0
        %v4198 = vadd.f32 0.0, %v4197
        %4199 = vmatmul.f32.gmra.mxu0 %v4088
        %v4200 = vpop.f32.mrf.mxu0
        %v4201 = vadd.f32 0.0, %v4200
        %4202 = vmatmul.f32.gmra.mxu0 %v4090
        %v4203 = vpop.f32.mrf.mxu0
        %v4204 = vadd.f32 0.0, %v4203
        %4205 = vmatmul.f32.gmra.mxu0 %v4092
        %v4206 = vpop.f32.mrf.mxu0
        %v4207 = vadd.f32 0.0, %v4206
        %4208 = vmatmul.f32.gmra.mxu0 %v4094
        %v4209 = vpop.f32.mrf.mxu0
        %v4210 = vadd.f32 0.0, %v4209
        %4211 = vmatmul.f32.gmra.mxu0 %v4096
        %v4212 = vpop.f32.mrf.mxu0
        %v4213 = vadd.f32 0.0, %v4212
        %4214 = vmatmul.f32.gmra.mxu0 %v4098
        %v4215 = vpop.f32.mrf.mxu0
        %v4216 = vadd.f32 0.0, %v4215
        %4217 = vmatmul.f32.gmra.mxu0 %v4100
        %v4218 = vpop.f32.mrf.mxu0
        %v4219 = vadd.f32 0.0, %v4218
        %4220 = vmatmul.f32.gmra.mxu0 %v4102
        %v4221 = vpop.f32.mrf.mxu0
        %v4222 = vadd.f32 0.0, %v4221
        %4223 = vmatmul.f32.gmra.mxu0 %v4104
        %v4224 = vpop.f32.mrf.mxu0
        %v4225 = vadd.f32 0.0, %v4224
        %4226 = vmatmul.f32.gmra.mxu0 %v4106
        %v4227 = vpop.f32.mrf.mxu0
        %v4228 = vadd.f32 0.0, %v4227
        %4229 = vmatmul.f32.gmra.mxu0 %v4108
        %v4230 = vpop.f32.mrf.mxu0
        %v4231 = vadd.f32 0.0, %v4230
        %4232 = vmatmul.f32.gmra.mxu0 %v4110
        %v4233 = vpop.f32.mrf.mxu0
        %v4234 = vadd.f32 0.0, %v4233
        %4235 = vmatmul.f32.gmra.mxu0 %v4112
        %v4236 = vpop.f32.mrf.mxu0
        %v4237 = vadd.f32 0.0, %v4236
        %4238 = vmatmul.f32.gmra.mxu0 %v4114
        %v4239 = vpop.f32.mrf.mxu0
        %v4240 = vadd.f32 0.0, %v4239
        %4241 = vmatmul.f32.gmra.mxu0 %v4116
        %v4242 = vpop.f32.mrf.mxu0
        %v4243 = vadd.f32 0.0, %v4242
        %4244 = vmatmul.f32.gmra.mxu0 %v4118
        %v4245 = vpop.f32.mrf.mxu0
        %v4246 = vadd.f32 0.0, %v4245
        %4247 = vmatmul.f32.gmra.mxu0 %v4120
        %v4248 = vpop.f32.mrf.mxu0
        %v4249 = vadd.f32 0.0, %v4248
        %4250 = vmatmul.f32.gmra.mxu0 %v4122
        %v4251 = vpop.f32.mrf.mxu0
        %v4252 = vadd.f32 0.0, %v4251
        %4253 = vmatmul.f32.gmra.mxu0 %v4124
        %v4254 = vpop.f32.mrf.mxu0
        %v4255 = vadd.f32 0.0, %v4254
        %4256 = vmatmul.f32.gmra.mxu0 %v4126
        %v4257 = vpop.f32.mrf.mxu0
        %v4258 = vadd.f32 0.0, %v4257
        %4259 = vmatmul.f32.gmra.mxu0 %v4128
        %v4260 = vpop.f32.mrf.mxu0
        %v4261 = vadd.f32 0.0, %v4260
        %4262 = vmatmul.f32.gmra.mxu0 %v4130
        %v4263 = vpop.f32.mrf.mxu0
        %v4264 = vadd.f32 0.0, %v4263
        %4265 = vmatmul.f32.gmra.mxu0 %v4132
        %v4266 = vpop.f32.mrf.mxu0
        %v4267 = vadd.f32 0.0, %v4266
        %4268 = vmatmul.f32.gmra.mxu0 %v4134
        %v4269 = vpop.f32.mrf.mxu0
        %v4270 = vadd.f32 0.0, %v4269
        %4271 = vmatmul.f32.gmra.mxu0 %v4136
        %v4272 = vpop.f32.mrf.mxu0
        %v4273 = vadd.f32 0.0, %v4272
        %4274 = vmatmul.f32.gmra.mxu0 %v4138
        %v4275 = vpop.f32.mrf.mxu0
        %v4276 = vadd.f32 0.0, %v4275
        %4277 = vmatmul.f32.gmra.mxu0 %v4140
        %v4278 = vpop.f32.mrf.mxu0
        %v4279 = vadd.f32 0.0, %v4278
        %4280 = vmatmul.f32.gmra.mxu0 %v4142
        %v4281 = vpop.f32.mrf.mxu0
        %v4282 = vadd.f32 0.0, %v4281
        %4283 = vmatmul.f32.gmra.mxu0 %v4144
        %v4284 = vpop.f32.mrf.mxu0
        %v4285 = vadd.f32 0.0, %v4284
        %4286 = vmatmul.f32.gmra.mxu0 %v4146
        %v4287 = vpop.f32.mrf.mxu0
        %v4288 = vadd.f32 0.0, %v4287
        %4289 = vmatmul.f32.gmra.mxu0 %v4148
        %v4290 = vpop.f32.mrf.mxu0
        %v4291 = vadd.f32 0.0, %v4290
        %4292 = vdwg.mxu0
        %v4293 = vadd.f32 %v3592, %v4171
        %v4294 = vadd.f32 %v3593, %v4174
        %v4295 = vadd.f32 %v3594, %v4177
        %v4296 = vadd.f32 %v3595, %v4180
        %v4297 = vadd.f32 %v3596, %v4183
        %v4298 = vadd.f32 %v3597, %v4186
        %v4299 = vadd.f32 %v3598, %v4189
        %v4300 = vadd.f32 %v3599, %v4192
        %v4301 = vadd.f32 %v3600, %v4195
        %v4302 = vadd.f32 %v3601, %v4198
        %v4303 = vadd.f32 %v3602, %v4201
        %v4304 = vadd.f32 %v3603, %v4204
        %v4305 = vadd.f32 %v3604, %v4207
        %v4306 = vadd.f32 %v3605, %v4210
        %v4307 = vadd.f32 %v3606, %v4213
        %v4308 = vadd.f32 %v3607, %v4216
        %v4309 = vadd.f32 %v3608, %v4219
        %v4310 = vadd.f32 %v3609, %v4222
        %v4311 = vadd.f32 %v3610, %v4225
        %v4312 = vadd.f32 %v3611, %v4228
        %v4313 = vadd.f32 %v3612, %v4231
        %v4314 = vadd.f32 %v3613, %v4234
        %v4315 = vadd.f32 %v3614, %v4237
        %v4316 = vadd.f32 %v3615, %v4240
        %v4317 = vadd.f32 %v3616, %v4243
        %v4318 = vadd.f32 %v3617, %v4246
        %v4319 = vadd.f32 %v3618, %v4249
        %v4320 = vadd.f32 %v3619, %v4252
        %v4321 = vadd.f32 %v3620, %v4255
        %v4322 = vadd.f32 %v3621, %v4258
        %v4323 = vadd.f32 %v3622, %v4261
        %v4324 = vadd.f32 %v3623, %v4264
        %v4325 = vadd.f32 %v3624, %v4267
        %v4326 = vadd.f32 %v3625, %v4270
        %v4327 = vadd.f32 %v3626, %v4273
        %v4328 = vadd.f32 %v3627, %v4276
        %v4329 = vadd.f32 %v3628, %v4279
        %v4330 = vadd.f32 %v3629, %v4282
        %v4331 = vadd.f32 %v3630, %v4285
        %v4332 = vadd.f32 %v3631, %v4288
        %v4333 = vadd.f32 %v3632, %v4291
        %v4337 = vrot.slane %v369, 2
        %v4338 = vrot.slane %v369, 4
        %v4339 = vrot.slane %v369, 6
        %v4340 = vrot.slane %v370, 2
        %v4341 = vrot.slane %v370, 4
        %v4342 = vrot.slane %v370, 6
        %s4343 = scalar_lea.vmem %s1, 24
        %v4344 = vld [vmem:[%s4343] sm:$0xf]
        %4345 = vst [vmem:[#allocation1] ss:$4 sm:$0xff] %v318
        %s4346 = scalar_lea.vmem [#allocation1], 1
        %4347 = vst [vmem:[%s4346] ss:$4 sm:$0xff] %v438
        %s4348 = scalar_lea.vmem [#allocation1], 2
        %4349 = vst [vmem:[%s4348] ss:$4 sm:$0xff] %v439
        %s4350 = scalar_lea.vmem [#allocation1], 3
        %4351 = vst [vmem:[%s4350] ss:$4 sm:$0xff] %v440
        %s4352 = scalar_lea.vmem [#allocation1], 32
        %4353 = vst [vmem:[%s4352] ss:$4 sm:$0xff] %v319
        %s4354 = scalar_lea.vmem [#allocation1], 33
        %4355 = vst [vmem:[%s4354] ss:$4 sm:$0xff] %v441
        %s4356 = scalar_lea.vmem [#allocation1], 34
        %4357 = vst [vmem:[%s4356] ss:$4 sm:$0xff] %v442
        %s4358 = scalar_lea.vmem [#allocation1], 35
        %4359 = vst [vmem:[%s4358] ss:$4 sm:$0xff] %v443
        %v4360 = vld.sshfl [vmem:[#allocation1] sm:$0xff pattern:$0x73625140]
        %v4361 = vld.sshfl [vmem:[#allocation1 + $0x20] sm:$0xff pattern:$0x73625140]
        %4362 = vst [vmem:[#allocation1] ss:$4 sm:$0xff] %v320
        %4363 = vst [vmem:[%s4346] ss:$4 sm:$0xff] %v321
        %4364 = vst [vmem:[%s4348] ss:$4 sm:$0xff] %v444
        %4365 = vst [vmem:[%s4350] ss:$4 sm:$0xff] %v445
        %4366 = vst [vmem:[%s4352] ss:$4 sm:$0xff] %v446
        %4367 = vst [vmem:[%s4354] ss:$4 sm:$0xff] %v322
        %4368 = vst [vmem:[%s4356] ss:$4 sm:$0xff] %v447
        %4369 = vst [vmem:[%s4358] ss:$4 sm:$0xff] %v448
        %v4370 = vld.sshfl [vmem:[#allocation1] sm:$0xff pattern:$0x73625140]
        %v4371 = vld.sshfl [vmem:[#allocation1 + $0x20] sm:$0xff pattern:$0x73625140]
        %4372 = vst [vmem:[#allocation1] ss:$4 sm:$0xff] %v449
        %4373 = vst [vmem:[%s4346] ss:$4 sm:$0xff] %v323
        %4374 = vst [vmem:[%s4348] ss:$4 sm:$0xff] %v324
        %4375 = vst [vmem:[%s4350] ss:$4 sm:$0xff] %v450
        %4376 = vst [vmem:[%s4352] ss:$4 sm:$0xff] %v451
        %4377 = vst [vmem:[%s4354] ss:$4 sm:$0xff] %v452
        %4378 = vst [vmem:[%s4356] ss:$4 sm:$0xff] %v325
        %4379 = vst [vmem:[%s4358] ss:$4 sm:$0xff] %v453
        %v4380 = vld.sshfl [vmem:[#allocation1] sm:$0xff pattern:$0x73625140]
        %v4381 = vld.sshfl [vmem:[#allocation1 + $0x20] sm:$0xff pattern:$0x73625140]
        %4382 = vst [vmem:[#allocation1] ss:$4 sm:$0xff] %v454
        %4383 = vst [vmem:[%s4346] ss:$4 sm:$0xff] %v455
        %4384 = vst [vmem:[%s4348] ss:$4 sm:$0xff] %v326
        %4385 = vst [vmem:[%s4350] ss:$4 sm:$0xff] %v327
        %4386 = vst [vmem:[%s4352] ss:$4 sm:$0xff] %v456
        %4387 = vst [vmem:[%s4354] ss:$4 sm:$0xff] %v457
        %4388 = vst [vmem:[%s4356] ss:$4 sm:$0xff] %v458
        %4389 = vst [vmem:[%s4358] ss:$4 sm:$0xff] %v328
        %v4390 = vld.sshfl [vmem:[#allocation1] sm:$0xff pattern:$0x73625140]
        %v4391 = vld.sshfl [vmem:[#allocation1 + $0x20] sm:$0xff pattern:$0x73625140]
        %4392 = vst [vmem:[#allocation1] ss:$4 sm:$0xff] %v459
        %4393 = vst [vmem:[%s4346] ss:$4 sm:$0xff] %v460
        %4394 = vst [vmem:[%s4348] ss:$4 sm:$0xff] %v461
        %4395 = vst [vmem:[%s4350] ss:$4 sm:$0xff] %v329
        %4396 = vst [vmem:[%s4352] ss:$4 sm:$0xff] %v330
        %4397 = vst [vmem:[%s4354] ss:$4 sm:$0xff] %v462
        %4398 = vst [vmem:[%s4356] ss:$4 sm:$0xff] %v463
        %4399 = vst [vmem:[%s4358] ss:$4 sm:$0xff] %v464
        %v4400 = vld.sshfl [vmem:[#allocation1] sm:$0xff pattern:$0x73625140]
        %v4401 = vld.sshfl [vmem:[#allocation1 + $0x20] sm:$0xff pattern:$0x73625140]
        %4402 = vst [vmem:[#allocation1] ss:$4 sm:$0xff] %v331
        %4403 = vst [vmem:[%s4346] ss:$4 sm:$0xff] %v465
        %4404 = vst [vmem:[%s4348] ss:$4 sm:$0xff] %v466
        %4405 = vst [vmem:[%s4350] ss:$4 sm:$0xff] %v467
        %4406 = vst [vmem:[%s4352] ss:$4 sm:$0xff] %v332
        %4407 = vst [vmem:[%s4354] ss:$4 sm:$0xff] %v333
        %4408 = vst [vmem:[%s4356] ss:$4 sm:$0xff] %v468
        %4409 = vst [vmem:[%s4358] ss:$4 sm:$0xff] %v469
        %v4410 = vld.sshfl [vmem:[#allocation1] sm:$0xff pattern:$0x73625140]
        %v4411 = vld.sshfl [vmem:[#allocation1 + $0x20] sm:$0xff pattern:$0x73625140]
        %4412 = vst [vmem:[#allocation1] ss:$4 sm:$0xff] %v470
        %4413 = vst [vmem:[%s4346] ss:$4 sm:$0xff] %v334
        %4414 = vst [vmem:[%s4348] ss:$4 sm:$0xff] %v471
        %4415 = vst [vmem:[%s4350] ss:$4 sm:$0xff] %v472
        %4416 = vst [vmem:[%s4352] ss:$4 sm:$0xff] %v473
        %4417 = vst [vmem:[%s4354] ss:$4 sm:$0xff] %v335
        %4418 = vst [vmem:[%s4356] ss:$4 sm:$0xff] %v336
        %4419 = vst [vmem:[%s4358] ss:$4 sm:$0xff] %v474
        %v4420 = vld.sshfl [vmem:[#allocation1] sm:$0xff pattern:$0x73625140]
        %v4421 = vld.sshfl [vmem:[#allocation1 + $0x20] sm:$0xff pattern:$0x73625140]
        %4422 = vst [vmem:[#allocation1] ss:$4 sm:$0xff] %v475
        %4423 = vst [vmem:[%s4346] ss:$4 sm:$0xff] %v476
        %4424 = vst [vmem:[%s4348] ss:$4 sm:$0xff] %v337
        %4425 = vst [vmem:[%s4350] ss:$4 sm:$0xff] %v477
        %4426 = vst [vmem:[%s4352] ss:$4 sm:$0xff] %v478
        %4427 = vst [vmem:[%s4354] ss:$4 sm:$0xff] %v479
        %4428 = vst [vmem:[%s4356] ss:$4 sm:$0xff] %v338
        %4429 = vst [vmem:[%s4358] ss:$4 sm:$0xff] %v339
        %v4430 = vld.sshfl [vmem:[#allocation1] sm:$0xff pattern:$0x73625140]
        %v4431 = vld.sshfl [vmem:[#allocation1 + $0x20] sm:$0xff pattern:$0x73625140]
        %4432 = vst [vmem:[#allocation1] ss:$4 sm:$0xff] %v480
        %4433 = vst [vmem:[%s4346] ss:$4 sm:$0xff] %v481
        %4434 = vst [vmem:[%s4348] ss:$4 sm:$0xff] %v482
        %4435 = vst [vmem:[%s4350] ss:$4 sm:$0xff] %v340
        %4436 = vst [vmem:[%s4352] ss:$4 sm:$0xff] %v483
        %4437 = vst [vmem:[%s4354] ss:$4 sm:$0xff] %v484
        %4438 = vst [vmem:[%s4356] ss:$4 sm:$0xff] %v485
        %4439 = vst [vmem:[%s4358] ss:$4 sm:$0xff] %v341
        %v4440 = vld.sshfl [vmem:[#allocation1] sm:$0xff pattern:$0x73625140]
        %v4441 = vld.sshfl [vmem:[#allocation1 + $0x20] sm:$0xff pattern:$0x73625140]
        %4442 = vst [vmem:[#allocation1] ss:$4 sm:$0xff] %v342
        %4443 = vst [vmem:[%s4346] ss:$4 sm:$0xff] %v486
        %4444 = vst [vmem:[%s4348] ss:$4 sm:$0xff] %v487
        %4445 = vst [vmem:[%s4350] ss:$4 sm:$0xff] %v488
        %4446 = vst [vmem:[%s4352] ss:$4 sm:$0xff] %v343
        %4447 = vst [vmem:[%s4354] ss:$4 sm:$0xff] %v489
        %4448 = vst [vmem:[%s4356] ss:$4 sm:$0xff] %v490
        %4449 = vst [vmem:[%s4358] ss:$4 sm:$0xff] %v491
        %v4450 = vld.sshfl [vmem:[#allocation1] sm:$0xff pattern:$0x73625140]
        %v4451 = vld.sshfl [vmem:[#allocation1 + $0x20] sm:$0xff pattern:$0x73625140]
        %4452 = vst [vmem:[#allocation1] ss:$4 sm:$0xff] %v344
        %4453 = vst [vmem:[%s4346] ss:$4 sm:$0xff] %v345
        %4454 = vst [vmem:[%s4348] ss:$4 sm:$0xff] %v492
        %4455 = vst [vmem:[%s4350] ss:$4 sm:$0xff] %v493
        %4456 = vst [vmem:[%s4352] ss:$4 sm:$0xff] %v494
        %4457 = vst [vmem:[%s4354] ss:$4 sm:$0xff] %v346
        %4458 = vst [vmem:[%s4356] ss:$4 sm:$0xff] %v495
        %4459 = vst [vmem:[%s4358] ss:$4 sm:$0xff] %v496
        %v4460 = vld.sshfl [vmem:[#allocation1] sm:$0xff pattern:$0x73625140]
        %v4461 = vld.sshfl [vmem:[#allocation1 + $0x20] sm:$0xff pattern:$0x73625140]
        %4462 = vst [vmem:[#allocation1] ss:$4 sm:$0xff] %v497
        %4463 = vst [vmem:[%s4346] ss:$4 sm:$0xff] %v347
        %4464 = vst [vmem:[%s4348] ss:$4 sm:$0xff] %v348
        %4465 = vst [vmem:[%s4350] ss:$4 sm:$0xff] %v498
        %4466 = vst [vmem:[%s4352] ss:$4 sm:$0xff] %v499
        %4467 = vst [vmem:[%s4354] ss:$4 sm:$0xff] %v500
        %4468 = vst [vmem:[%s4356] ss:$4 sm:$0xff] %v349
        %4469 = vst [vmem:[%s4358] ss:$4 sm:$0xff] %v501
        %v4470 = vld.sshfl [vmem:[#allocation1] sm:$0xff pattern:$0x73625140]
        %v4471 = vld.sshfl [vmem:[#allocation1 + $0x20] sm:$0xff pattern:$0x73625140]
        %4472 = vst [vmem:[#allocation1] ss:$4 sm:$0xff] %v502
        %4473 = vst [vmem:[%s4346] ss:$4 sm:$0xff] %v503
        %4474 = vst [vmem:[%s4348] ss:$4 sm:$0xff] %v350
        %4475 = vst [vmem:[%s4350] ss:$4 sm:$0xff] %v351
        %4476 = vst [vmem:[%s4352] ss:$4 sm:$0xff] %v504
        %4477 = vst [vmem:[%s4354] ss:$4 sm:$0xff] %v505
        %4478 = vst [vmem:[%s4356] ss:$4 sm:$0xff] %v506
        %4479 = vst [vmem:[%s4358] ss:$4 sm:$0xff] %v352
        %v4480 = vld.sshfl [vmem:[#allocation1] sm:$0xff pattern:$0x73625140]
        %v4481 = vld.sshfl [vmem:[#allocation1 + $0x20] sm:$0xff pattern:$0x73625140]
        %4482 = vst [vmem:[#allocation1] ss:$4 sm:$0xff] %v507
        %4483 = vst [vmem:[%s4346] ss:$4 sm:$0xff] %v508
        %4484 = vst [vmem:[%s4348] ss:$4 sm:$0xff] %v509
        %4485 = vst [vmem:[%s4350] ss:$4 sm:$0xff] %v353
        %4486 = vst [vmem:[%s4352] ss:$4 sm:$0xff] %v354
        %4487 = vst [vmem:[%s4354] ss:$4 sm:$0xff] %v510
        %4488 = vst [vmem:[%s4356] ss:$4 sm:$0xff] %v511
        %4489 = vst [vmem:[%s4358] ss:$4 sm:$0xff] %v512
        %v4490 = vld.sshfl [vmem:[#allocation1] sm:$0xff pattern:$0x73625140]
        %v4491 = vld.sshfl [vmem:[#allocation1 + $0x20] sm:$0xff pattern:$0x73625140]
        %4492 = vst [vmem:[#allocation1] ss:$4 sm:$0xff] %v355
        %4493 = vst [vmem:[%s4346] ss:$4 sm:$0xff] %v513
        %4494 = vst [vmem:[%s4348] ss:$4 sm:$0xff] %v514
        %4495 = vst [vmem:[%s4350] ss:$4 sm:$0xff] %v515
        %4496 = vst [vmem:[%s4352] ss:$4 sm:$0xff] %v356
        %4497 = vst [vmem:[%s4354] ss:$4 sm:$0xff] %v357
        %4498 = vst [vmem:[%s4356] ss:$4 sm:$0xff] %v516
        %4499 = vst [vmem:[%s4358] ss:$4 sm:$0xff] %v517
        %v4500 = vld.sshfl [vmem:[#allocation1] sm:$0xff pattern:$0x73625140]
        %v4501 = vld.sshfl [vmem:[#allocation1 + $0x20] sm:$0xff pattern:$0x73625140]
        %4502 = vst [vmem:[#allocation1] ss:$4 sm:$0xff] %v518
        %4503 = vst [vmem:[%s4346] ss:$4 sm:$0xff] %v358
        %4504 = vst [vmem:[%s4348] ss:$4 sm:$0xff] %v519
        %4505 = vst [vmem:[%s4350] ss:$4 sm:$0xff] %v520
        %4506 = vst [vmem:[%s4352] ss:$4 sm:$0xff] %v521
        %4507 = vst [vmem:[%s4354] ss:$4 sm:$0xff] %v359
        %4508 = vst [vmem:[%s4356] ss:$4 sm:$0xff] %v360
        %4509 = vst [vmem:[%s4358] ss:$4 sm:$0xff] %v522
        %v4510 = vld.sshfl [vmem:[#allocation1] sm:$0xff pattern:$0x73625140]
        %v4511 = vld.sshfl [vmem:[#allocation1 + $0x20] sm:$0xff pattern:$0x73625140]
        %4512 = vst [vmem:[#allocation1] ss:$4 sm:$0xff] %v523
        %4513 = vst [vmem:[%s4346] ss:$4 sm:$0xff] %v524
        %4514 = vst [vmem:[%s4348] ss:$4 sm:$0xff] %v361
        %4515 = vst [vmem:[%s4350] ss:$4 sm:$0xff] %v525
        %4516 = vst [vmem:[%s4352] ss:$4 sm:$0xff] %v526
        %4517 = vst [vmem:[%s4354] ss:$4 sm:$0xff] %v527
        %4518 = vst [vmem:[%s4356] ss:$4 sm:$0xff] %v362
        %4519 = vst [vmem:[%s4358] ss:$4 sm:$0xff] %v363
        %v4520 = vld.sshfl [vmem:[#allocation1] sm:$0xff pattern:$0x73625140]
        %v4521 = vld.sshfl [vmem:[#allocation1 + $0x20] sm:$0xff pattern:$0x73625140]
        %4522 = vst [vmem:[#allocation1] ss:$4 sm:$0xff] %v528
        %4523 = vst [vmem:[%s4346] ss:$4 sm:$0xff] %v529
        %4524 = vst [vmem:[%s4348] ss:$4 sm:$0xff] %v530
        %4525 = vst [vmem:[%s4350] ss:$4 sm:$0xff] %v364
        %4526 = vst [vmem:[%s4352] ss:$4 sm:$0xff] %v531
        %4527 = vst [vmem:[%s4354] ss:$4 sm:$0xff] %v532
        %4528 = vst [vmem:[%s4356] ss:$4 sm:$0xff] %v533
        %4529 = vst [vmem:[%s4358] ss:$4 sm:$0xff] %v365
        %v4530 = vld.sshfl [vmem:[#allocation1] sm:$0xff pattern:$0x73625140]
        %v4531 = vld.sshfl [vmem:[#allocation1 + $0x20] sm:$0xff pattern:$0x73625140]
        %4532 = vst [vmem:[#allocation1] ss:$4 sm:$0xff] %v366
        %4533 = vst [vmem:[%s4346] ss:$4 sm:$0xff] %v2642
        %4534 = vst [vmem:[%s4348] ss:$4 sm:$0xff] %v2643
        %4535 = vst [vmem:[%s4350] ss:$4 sm:$0xff] %v2644
        %4536 = vst [vmem:[%s4352] ss:$4 sm:$0xff] %v367
        %4537 = vst [vmem:[%s4354] ss:$4 sm:$0xff] %v2645
        %4538 = vst [vmem:[%s4356] ss:$4 sm:$0xff] %v2646
        %4539 = vst [vmem:[%s4358] ss:$4 sm:$0xff] %v2647
        %v4540 = vld.sshfl [vmem:[#allocation1] sm:$0xff pattern:$0x73625140]
        %v4541 = vld.sshfl [vmem:[#allocation1 + $0x20] sm:$0xff pattern:$0x73625140]
        %4542 = vst [vmem:[#allocation1] ss:$4 sm:$0xff] %v368
        %4543 = vst [vmem:[%s4346] ss:$4 sm:$0xff] %v369
        %4544 = vst [vmem:[%s4348] ss:$4 sm:$0xff] %v4337
        %4545 = vst [vmem:[%s4350] ss:$4 sm:$0xff] %v4338
        %4546 = vst [vmem:[%s4352] ss:$4 sm:$0xff] %v4339
        %4547 = vst [vmem:[%s4354] ss:$4 sm:$0xff] %v370
        %4548 = vst [vmem:[%s4356] ss:$4 sm:$0xff] %v4340
        %4549 = vst [vmem:[%s4358] ss:$4 sm:$0xff] %v4341
        %v4550 = vld.sshfl [vmem:[#allocation1] sm:$0xff pattern:$0x73625140]
        %v4551 = vld.sshfl [vmem:[#allocation1 + $0x20] sm:$0xff pattern:$0x73625140]
        %4552 = vst [vmem:[#allocation1] ss:$4 sm:$0xff] %v4342
        %4553 = vst [vmem:[%s4346] ss:$4 sm:$0xff] %v371
        %v4554 = vld.sshfl [vmem:[#allocation1] sm:$0xff pattern:$0x73625140]
        %v4555 = vsel %vm1276, %v4360, 0
        %v4557 = vsel %vm1276, %v4361, 0
        %v4559 = vsel %vm1276, %v4370, 0
        %v4561 = vsel %vm1276, %v4371, 0
        %v4563 = vsel %vm1276, %v4380, 0
        %v4565 = vsel %vm1276, %v4381, 0
        %v4567 = vsel %vm1276, %v4390, 0
        %v4569 = vsel %vm1276, %v4391, 0
        %v4571 = vsel %vm1276, %v4400, 0
        %v4573 = vsel %vm1276, %v4401, 0
        %v4575 = vsel %vm1276, %v4410, 0
        %v4577 = vsel %vm1276, %v4411, 0
        %v4579 = vsel %vm1276, %v4420, 0
        %v4581 = vsel %vm1276, %v4421, 0
        %v4583 = vsel %vm1276, %v4430, 0
        %v4585 = vsel %vm1276, %v4431, 0
        %v4587 = vsel %vm1276, %v4440, 0
        %v4589 = vsel %vm1276, %v4441, 0
        %v4591 = vsel %vm1276, %v4450, 0
        %v4593 = vsel %vm1276, %v4451, 0
        %v4595 = vsel %vm1276, %v4460, 0
        %v4597 = vsel %vm1276, %v4461, 0
        %v4599 = vsel %vm1276, %v4470, 0
        %v4601 = vsel %vm1276, %v4471, 0
        %v4603 = vsel %vm1276, %v4480, 0
        %v4605 = vsel %vm1276, %v4481, 0
        %v4607 = vsel %vm1276, %v4490, 0
        %v4609 = vsel %vm1276, %v4491, 0
        %v4611 = vsel %vm1276, %v4500, 0
        %v4613 = vsel %vm1276, %v4501, 0
        %v4615 = vsel %vm1276, %v4510, 0
        %v4617 = vsel %vm1276, %v4511, 0
        %v4619 = vsel %vm1276, %v4520, 0
        %v4621 = vsel %vm1276, %v4521, 0
        %v4623 = vsel %vm1276, %v4530, 0
        %v4625 = vsel %vm1276, %v4531, 0
        %v4627 = vsel %vm1276, %v4540, 0
        %v4629 = vsel %vm1276, %v4541, 0
        %v4631 = vsel %vm1276, %v4550, 0
        %v4633 = vsel %vm1276, %v4551, 0
        %v4635 = vsel %vm1276, %v4554, 0
        %v4638 = vsel %vm1359, %v4344, 0
        %4640 = vmatpush.msra.mxu0 0.0
        %4641 = vmatpush.msra.mxu0 0.0
        %4642 = vmatpush.msra.mxu0 0.0
        %4643 = vmatpush.msra.mxu0 0.0
        %4644 = vmatpush.msra.mxu0 0.0
        %4645 = vmatpush.msra.mxu0 0.0
        %4646 = vmatpush.msra.mxu0 0.0
        %4647 = vmatpush.msra.mxu0 0.0
        %4648 = vmatpush.msra.mxu0 0.0
        %4649 = vmatpush.msra.mxu0 0.0
        %4650 = vmatpush.msra.mxu0 0.0
        %4651 = vmatpush.msra.mxu0 0.0
        %4652 = vmatpush.msra.mxu0 0.0
        %4653 = vmatpush.msra.mxu0 0.0
        %4654 = vmatpush.msra.mxu0 0.0
        %4655 = vmatpush.msra.mxu0 %v4638
        %4656 = vmatmul.f32.gmra.mxu0 %v4555
        %v4657 = vpop.f32.mrf.mxu0
        %v4658 = vadd.f32 0.0, %v4657
        %4659 = vmatmul.f32.gmra.mxu0 %v4557
        %v4660 = vpop.f32.mrf.mxu0
        %v4661 = vadd.f32 0.0, %v4660
        %4662 = vmatmul.f32.gmra.mxu0 %v4559
        %v4663 = vpop.f32.mrf.mxu0
        %v4664 = vadd.f32 0.0, %v4663
        %4665 = vmatmul.f32.gmra.mxu0 %v4561
        %v4666 = vpop.f32.mrf.mxu0
        %v4667 = vadd.f32 0.0, %v4666
        %4668 = vmatmul.f32.gmra.mxu0 %v4563
        %v4669 = vpop.f32.mrf.mxu0
        %v4670 = vadd.f32 0.0, %v4669
        %4671 = vmatmul.f32.gmra.mxu0 %v4565
        %v4672 = vpop.f32.mrf.mxu0
        %v4673 = vadd.f32 0.0, %v4672
        %4674 = vmatmul.f32.gmra.mxu0 %v4567
        %v4675 = vpop.f32.mrf.mxu0
        %v4676 = vadd.f32 0.0, %v4675
        %4677 = vmatmul.f32.gmra.mxu0 %v4569
        %v4678 = vpop.f32.mrf.mxu0
        %v4679 = vadd.f32 0.0, %v4678
        %4680 = vmatmul.f32.gmra.mxu0 %v4571
        %v4681 = vpop.f32.mrf.mxu0
        %v4682 = vadd.f32 0.0, %v4681
        %4683 = vmatmul.f32.gmra.mxu0 %v4573
        %v4684 = vpop.f32.mrf.mxu0
        %v4685 = vadd.f32 0.0, %v4684
        %4686 = vmatmul.f32.gmra.mxu0 %v4575
        %v4687 = vpop.f32.mrf.mxu0
        %v4688 = vadd.f32 0.0, %v4687
        %4689 = vmatmul.f32.gmra.mxu0 %v4577
        %v4690 = vpop.f32.mrf.mxu0
        %v4691 = vadd.f32 0.0, %v4690
        %4692 = vmatmul.f32.gmra.mxu0 %v4579
        %v4693 = vpop.f32.mrf.mxu0
        %v4694 = vadd.f32 0.0, %v4693
        %4695 = vmatmul.f32.gmra.mxu0 %v4581
        %v4696 = vpop.f32.mrf.mxu0
        %v4697 = vadd.f32 0.0, %v4696
        %4698 = vmatmul.f32.gmra.mxu0 %v4583
        %v4699 = vpop.f32.mrf.mxu0
        %v4700 = vadd.f32 0.0, %v4699
        %4701 = vmatmul.f32.gmra.mxu0 %v4585
        %v4702 = vpop.f32.mrf.mxu0
        %v4703 = vadd.f32 0.0, %v4702
        %4704 = vmatmul.f32.gmra.mxu0 %v4587
        %v4705 = vpop.f32.mrf.mxu0
        %v4706 = vadd.f32 0.0, %v4705
        %4707 = vmatmul.f32.gmra.mxu0 %v4589
        %v4708 = vpop.f32.mrf.mxu0
        %v4709 = vadd.f32 0.0, %v4708
        %4710 = vmatmul.f32.gmra.mxu0 %v4591
        %v4711 = vpop.f32.mrf.mxu0
        %v4712 = vadd.f32 0.0, %v4711
        %4713 = vmatmul.f32.gmra.mxu0 %v4593
        %v4714 = vpop.f32.mrf.mxu0
        %v4715 = vadd.f32 0.0, %v4714
        %4716 = vmatmul.f32.gmra.mxu0 %v4595
        %v4717 = vpop.f32.mrf.mxu0
        %v4718 = vadd.f32 0.0, %v4717
        %4719 = vmatmul.f32.gmra.mxu0 %v4597
        %v4720 = vpop.f32.mrf.mxu0
        %v4721 = vadd.f32 0.0, %v4720
        %4722 = vmatmul.f32.gmra.mxu0 %v4599
        %v4723 = vpop.f32.mrf.mxu0
        %v4724 = vadd.f32 0.0, %v4723
        %4725 = vmatmul.f32.gmra.mxu0 %v4601
        %v4726 = vpop.f32.mrf.mxu0
        %v4727 = vadd.f32 0.0, %v4726
        %4728 = vmatmul.f32.gmra.mxu0 %v4603
        %v4729 = vpop.f32.mrf.mxu0
        %v4730 = vadd.f32 0.0, %v4729
        %4731 = vmatmul.f32.gmra.mxu0 %v4605
        %v4732 = vpop.f32.mrf.mxu0
        %v4733 = vadd.f32 0.0, %v4732
        %4734 = vmatmul.f32.gmra.mxu0 %v4607
        %v4735 = vpop.f32.mrf.mxu0
        %v4736 = vadd.f32 0.0, %v4735
        %4737 = vmatmul.f32.gmra.mxu0 %v4609
        %v4738 = vpop.f32.mrf.mxu0
        %v4739 = vadd.f32 0.0, %v4738
        %4740 = vmatmul.f32.gmra.mxu0 %v4611
        %v4741 = vpop.f32.mrf.mxu0
        %v4742 = vadd.f32 0.0, %v4741
        %4743 = vmatmul.f32.gmra.mxu0 %v4613
        %v4744 = vpop.f32.mrf.mxu0
        %v4745 = vadd.f32 0.0, %v4744
        %4746 = vmatmul.f32.gmra.mxu0 %v4615
        %v4747 = vpop.f32.mrf.mxu0
        %v4748 = vadd.f32 0.0, %v4747
        %4749 = vmatmul.f32.gmra.mxu0 %v4617
        %v4750 = vpop.f32.mrf.mxu0
        %v4751 = vadd.f32 0.0, %v4750
        %4752 = vmatmul.f32.gmra.mxu0 %v4619
        %v4753 = vpop.f32.mrf.mxu0
        %v4754 = vadd.f32 0.0, %v4753
        %4755 = vmatmul.f32.gmra.mxu0 %v4621
        %v4756 = vpop.f32.mrf.mxu0
        %v4757 = vadd.f32 0.0, %v4756
        %4758 = vmatmul.f32.gmra.mxu0 %v4623
        %v4759 = vpop.f32.mrf.mxu0
        %v4760 = vadd.f32 0.0, %v4759
        %4761 = vmatmul.f32.gmra.mxu0 %v4625
        %v4762 = vpop.f32.mrf.mxu0
        %v4763 = vadd.f32 0.0, %v4762
        %4764 = vmatmul.f32.gmra.mxu0 %v4627
        %v4765 = vpop.f32.mrf.mxu0
        %v4766 = vadd.f32 0.0, %v4765
        %4767 = vmatmul.f32.gmra.mxu0 %v4629
        %v4768 = vpop.f32.mrf.mxu0
        %v4769 = vadd.f32 0.0, %v4768
        %4770 = vmatmul.f32.gmra.mxu0 %v4631
        %v4771 = vpop.f32.mrf.mxu0
        %v4772 = vadd.f32 0.0, %v4771
        %4773 = vmatmul.f32.gmra.mxu0 %v4633
        %v4774 = vpop.f32.mrf.mxu0
        %v4775 = vadd.f32 0.0, %v4774
        %4776 = vmatmul.f32.gmra.mxu0 %v4635
        %v4777 = vpop.f32.mrf.mxu0
        %v4778 = vadd.f32 0.0, %v4777
        %4779 = vdwg.mxu0
        %v4780 = vadd.f32 %v4293, %v4658
        %v4781 = vadd.f32 %v4294, %v4661
        %v4782 = vadd.f32 %v4295, %v4664
        %v4783 = vadd.f32 %v4296, %v4667
        %v4784 = vadd.f32 %v4297, %v4670
        %v4785 = vadd.f32 %v4298, %v4673
        %v4786 = vadd.f32 %v4299, %v4676
        %v4787 = vadd.f32 %v4300, %v4679
        %v4788 = vadd.f32 %v4301, %v4682
        %v4789 = vadd.f32 %v4302, %v4685
        %v4790 = vadd.f32 %v4303, %v4688
        %v4791 = vadd.f32 %v4304, %v4691
        %v4792 = vadd.f32 %v4305, %v4694
        %v4793 = vadd.f32 %v4306, %v4697
        %v4794 = vadd.f32 %v4307, %v4700
        %v4795 = vadd.f32 %v4308, %v4703
        %v4796 = vadd.f32 %v4309, %v4706
        %v4797 = vadd.f32 %v4310, %v4709
        %v4798 = vadd.f32 %v4311, %v4712
        %v4799 = vadd.f32 %v4312, %v4715
        %v4800 = vadd.f32 %v4313, %v4718
        %v4801 = vadd.f32 %v4314, %v4721
        %v4802 = vadd.f32 %v4315, %v4724
        %v4803 = vadd.f32 %v4316, %v4727
        %v4804 = vadd.f32 %v4317, %v4730
        %v4805 = vadd.f32 %v4318, %v4733
        %v4806 = vadd.f32 %v4319, %v4736
        %v4807 = vadd.f32 %v4320, %v4739
        %v4808 = vadd.f32 %v4321, %v4742
        %v4809 = vadd.f32 %v4322, %v4745
        %v4810 = vadd.f32 %v4323, %v4748
        %v4811 = vadd.f32 %v4324, %v4751
        %v4812 = vadd.f32 %v4325, %v4754
        %v4813 = vadd.f32 %v4326, %v4757
        %v4814 = vadd.f32 %v4327, %v4760
        %v4815 = vadd.f32 %v4328, %v4763
        %v4816 = vadd.f32 %v4329, %v4766
        %v4817 = vadd.f32 %v4330, %v4769
        %v4818 = vadd.f32 %v4331, %v4772
        %v4819 = vadd.f32 %v4332, %v4775
        %v4820 = vadd.f32 %v4333, %v4778
        %v4821 = vrot.slane %v371, 2
        %v4822 = vrot.slane %v369, 7
        %v4823 = vrot.slane %v4822, 2
        %v4824 = vrot.slane %v4337, 7
        %v4825 = vsel %vm559, %v4823, %v4824
        %v4826 = vrot.slane %v4824, 2
        %v4827 = vrot.slane %v4338, 7
        %v4828 = vsel %vm559, %v4826, %v4827
        %v4829 = vrot.slane %v4827, 2
        %v4830 = vrot.slane %v4339, 7
        %v4831 = vsel %vm559, %v4829, %v4830
        %v4832 = vrot.slane %v4830, 2
        %v4833 = vrot.slane %v370, 7
        %v4834 = vsel %vm559, %v4832, %v4833
        %v4835 = vrot.slane %v4833, 2
        %v4836 = vrot.slane %v4340, 7
        %v4837 = vsel %vm559, %v4835, %v4836
        %v4838 = vrot.slane %v4836, 2
        %v4839 = vrot.slane %v4341, 7
        %v4840 = vsel %vm559, %v4838, %v4839
        %v4841 = vrot.slane %v4839, 2
        %v4842 = vrot.slane %v4342, 7
        %v4843 = vsel %vm559, %v4841, %v4842
        %v4844 = vrot.slane %v4842, 2
        %v4845 = vrot.slane %v371, 7
        %v4846 = vsel %vm559, %v4844, %v4845
        %v4847 = vrot.slane %v4845, 2
        %v4848 = vrot.slane %v4821, 7
        %v4849 = vsel %vm559, %v4847, %v4848
        %s4850 = scalar_lea.vmem %s1, 28
        %v4851 = vld [vmem:[%s4850] sm:$0xf]
        %4852 = vst [vmem:[#allocation1] ss:$4 sm:$0xff] %v619
        %s4853 = scalar_lea.vmem [#allocation1], 1
        %4854 = vst [vmem:[%s4853] ss:$4 sm:$0xff] %v622
        %s4855 = scalar_lea.vmem [#allocation1], 2
        %4856 = vst [vmem:[%s4855] ss:$4 sm:$0xff] %v625
        %s4857 = scalar_lea.vmem [#allocation1], 3
        %4858 = vst [vmem:[%s4857] ss:$4 sm:$0xff] %v628
        %s4859 = scalar_lea.vmem [#allocation1], 32
        %4860 = vst [vmem:[%s4859] ss:$4 sm:$0xff] %v631
        %s4861 = scalar_lea.vmem [#allocation1], 33
        %4862 = vst [vmem:[%s4861] ss:$4 sm:$0xff] %v634
        %s4863 = scalar_lea.vmem [#allocation1], 34
        %4864 = vst [vmem:[%s4863] ss:$4 sm:$0xff] %v637
        %s4865 = scalar_lea.vmem [#allocation1], 35
        %4866 = vst [vmem:[%s4865] ss:$4 sm:$0xff] %v640
        %v4867 = vld.sshfl [vmem:[#allocation1] sm:$0xff pattern:$0x73625140]
        %v4868 = vld.sshfl [vmem:[#allocation1 + $0x20] sm:$0xff pattern:$0x73625140]
        %4869 = vst [vmem:[#allocation1] ss:$4 sm:$0xff] %v643
        %4870 = vst [vmem:[%s4853] ss:$4 sm:$0xff] %v647
        %4871 = vst [vmem:[%s4855] ss:$4 sm:$0xff] %v650
        %4872 = vst [vmem:[%s4857] ss:$4 sm:$0xff] %v653
        %4873 = vst [vmem:[%s4859] ss:$4 sm:$0xff] %v656
        %4874 = vst [vmem:[%s4861] ss:$4 sm:$0xff] %v659
        %4875 = vst [vmem:[%s4863] ss:$4 sm:$0xff] %v662
        %4876 = vst [vmem:[%s4865] ss:$4 sm:$0xff] %v665
        %v4877 = vld.sshfl [vmem:[#allocation1] sm:$0xff pattern:$0x73625140]
        %v4878 = vld.sshfl [vmem:[#allocation1 + $0x20] sm:$0xff pattern:$0x73625140]
        %4879 = vst [vmem:[#allocation1] ss:$4 sm:$0xff] %v668
        %4880 = vst [vmem:[%s4853] ss:$4 sm:$0xff] %v671
        %4881 = vst [vmem:[%s4855] ss:$4 sm:$0xff] %v675
        %4882 = vst [vmem:[%s4857] ss:$4 sm:$0xff] %v678
        %4883 = vst [vmem:[%s4859] ss:$4 sm:$0xff] %v681
        %4884 = vst [vmem:[%s4861] ss:$4 sm:$0xff] %v684
        %4885 = vst [vmem:[%s4863] ss:$4 sm:$0xff] %v687
        %4886 = vst [vmem:[%s4865] ss:$4 sm:$0xff] %v690
        %v4887 = vld.sshfl [vmem:[#allocation1] sm:$0xff pattern:$0x73625140]
        %v4888 = vld.sshfl [vmem:[#allocation1 + $0x20] sm:$0xff pattern:$0x73625140]
        %4889 = vst [vmem:[#allocation1] ss:$4 sm:$0xff] %v693
        %4890 = vst [vmem:[%s4853] ss:$4 sm:$0xff] %v696
        %4891 = vst [vmem:[%s4855] ss:$4 sm:$0xff] %v699
        %4892 = vst [vmem:[%s4857] ss:$4 sm:$0xff] %v703
        %4893 = vst [vmem:[%s4859] ss:$4 sm:$0xff] %v706
        %4894 = vst [vmem:[%s4861] ss:$4 sm:$0xff] %v709
        %4895 = vst [vmem:[%s4863] ss:$4 sm:$0xff] %v712
        %4896 = vst [vmem:[%s4865] ss:$4 sm:$0xff] %v715
        %v4897 = vld.sshfl [vmem:[#allocation1] sm:$0xff pattern:$0x73625140]
        %v4898 = vld.sshfl [vmem:[#allocation1 + $0x20] sm:$0xff pattern:$0x73625140]
        %4899 = vst [vmem:[#allocation1] ss:$4 sm:$0xff] %v718
        %4900 = vst [vmem:[%s4853] ss:$4 sm:$0xff] %v721
        %4901 = vst [vmem:[%s4855] ss:$4 sm:$0xff] %v724
        %4902 = vst [vmem:[%s4857] ss:$4 sm:$0xff] %v727
        %4903 = vst [vmem:[%s4859] ss:$4 sm:$0xff] %v731
        %4904 = vst [vmem:[%s4861] ss:$4 sm:$0xff] %v734
        %4905 = vst [vmem:[%s4863] ss:$4 sm:$0xff] %v737
        %4906 = vst [vmem:[%s4865] ss:$4 sm:$0xff] %v740
        %v4907 = vld.sshfl [vmem:[#allocation1] sm:$0xff pattern:$0x73625140]
        %v4908 = vld.sshfl [vmem:[#allocation1 + $0x20] sm:$0xff pattern:$0x73625140]
        %4909 = vst [vmem:[#allocation1] ss:$4 sm:$0xff] %v743
        %4910 = vst [vmem:[%s4853] ss:$4 sm:$0xff] %v746
        %4911 = vst [vmem:[%s4855] ss:$4 sm:$0xff] %v749
        %4912 = vst [vmem:[%s4857] ss:$4 sm:$0xff] %v752
        %4913 = vst [vmem:[%s4859] ss:$4 sm:$0xff] %v755
        %4914 = vst [vmem:[%s4861] ss:$4 sm:$0xff] %v759
        %4915 = vst [vmem:[%s4863] ss:$4 sm:$0xff] %v762
        %4916 = vst [vmem:[%s4865] ss:$4 sm:$0xff] %v765
        %v4917 = vld.sshfl [vmem:[#allocation1] sm:$0xff pattern:$0x73625140]
        %v4918 = vld.sshfl [vmem:[#allocation1 + $0x20] sm:$0xff pattern:$0x73625140]
        %4919 = vst [vmem:[#allocation1] ss:$4 sm:$0xff] %v768
        %4920 = vst [vmem:[%s4853] ss:$4 sm:$0xff] %v771
        %4921 = vst [vmem:[%s4855] ss:$4 sm:$0xff] %v774
        %4922 = vst [vmem:[%s4857] ss:$4 sm:$0xff] %v777
        %4923 = vst [vmem:[%s4859] ss:$4 sm:$0xff] %v780
        %4924 = vst [vmem:[%s4861] ss:$4 sm:$0xff] %v783
        %4925 = vst [vmem:[%s4863] ss:$4 sm:$0xff] %v787
        %4926 = vst [vmem:[%s4865] ss:$4 sm:$0xff] %v790
        %v4927 = vld.sshfl [vmem:[#allocation1] sm:$0xff pattern:$0x73625140]
        %v4928 = vld.sshfl [vmem:[#allocation1 + $0x20] sm:$0xff pattern:$0x73625140]
        %4929 = vst [vmem:[#allocation1] ss:$4 sm:$0xff] %v793
        %4930 = vst [vmem:[%s4853] ss:$4 sm:$0xff] %v796
        %4931 = vst [vmem:[%s4855] ss:$4 sm:$0xff] %v799
        %4932 = vst [vmem:[%s4857] ss:$4 sm:$0xff] %v802
        %4933 = vst [vmem:[%s4859] ss:$4 sm:$0xff] %v805
        %4934 = vst [vmem:[%s4861] ss:$4 sm:$0xff] %v808
        %4935 = vst [vmem:[%s4863] ss:$4 sm:$0xff] %v811
        %4936 = vst [vmem:[%s4865] ss:$4 sm:$0xff] %v815
        %v4937 = vld.sshfl [vmem:[#allocation1] sm:$0xff pattern:$0x73625140]
        %v4938 = vld.sshfl [vmem:[#allocation1 + $0x20] sm:$0xff pattern:$0x73625140]
        %4939 = vst [vmem:[#allocation1] ss:$4 sm:$0xff] %v818
        %4940 = vst [vmem:[%s4853] ss:$4 sm:$0xff] %v821
        %4941 = vst [vmem:[%s4855] ss:$4 sm:$0xff] %v824
        %4942 = vst [vmem:[%s4857] ss:$4 sm:$0xff] %v827
        %4943 = vst [vmem:[%s4859] ss:$4 sm:$0xff] %v830
        %4944 = vst [vmem:[%s4861] ss:$4 sm:$0xff] %v833
        %4945 = vst [vmem:[%s4863] ss:$4 sm:$0xff] %v836
        %4946 = vst [vmem:[%s4865] ss:$4 sm:$0xff] %v839
        %v4947 = vld.sshfl [vmem:[#allocation1] sm:$0xff pattern:$0x73625140]
        %v4948 = vld.sshfl [vmem:[#allocation1 + $0x20] sm:$0xff pattern:$0x73625140]
        %4949 = vst [vmem:[#allocation1] ss:$4 sm:$0xff] %v843
        %4950 = vst [vmem:[%s4853] ss:$4 sm:$0xff] %v846
        %4951 = vst [vmem:[%s4855] ss:$4 sm:$0xff] %v849
        %4952 = vst [vmem:[%s4857] ss:$4 sm:$0xff] %v852
        %4953 = vst [vmem:[%s4859] ss:$4 sm:$0xff] %v855
        %4954 = vst [vmem:[%s4861] ss:$4 sm:$0xff] %v858
        %4955 = vst [vmem:[%s4863] ss:$4 sm:$0xff] %v861
        %4956 = vst [vmem:[%s4865] ss:$4 sm:$0xff] %v864
        %v4957 = vld.sshfl [vmem:[#allocation1] sm:$0xff pattern:$0x73625140]
        %v4958 = vld.sshfl [vmem:[#allocation1 + $0x20] sm:$0xff pattern:$0x73625140]
        %4959 = vst [vmem:[#allocation1] ss:$4 sm:$0xff] %v867
        %4960 = vst [vmem:[%s4853] ss:$4 sm:$0xff] %v871
        %4961 = vst [vmem:[%s4855] ss:$4 sm:$0xff] %v874
        %4962 = vst [vmem:[%s4857] ss:$4 sm:$0xff] %v877
        %4963 = vst [vmem:[%s4859] ss:$4 sm:$0xff] %v880
        %4964 = vst [vmem:[%s4861] ss:$4 sm:$0xff] %v883
        %4965 = vst [vmem:[%s4863] ss:$4 sm:$0xff] %v886
        %4966 = vst [vmem:[%s4865] ss:$4 sm:$0xff] %v889
        %v4967 = vld.sshfl [vmem:[#allocation1] sm:$0xff pattern:$0x73625140]
        %v4968 = vld.sshfl [vmem:[#allocation1 + $0x20] sm:$0xff pattern:$0x73625140]
        %4969 = vst [vmem:[#allocation1] ss:$4 sm:$0xff] %v892
        %4970 = vst [vmem:[%s4853] ss:$4 sm:$0xff] %v895
        %4971 = vst [vmem:[%s4855] ss:$4 sm:$0xff] %v899
        %4972 = vst [vmem:[%s4857] ss:$4 sm:$0xff] %v902
        %4973 = vst [vmem:[%s4859] ss:$4 sm:$0xff] %v905
        %4974 = vst [vmem:[%s4861] ss:$4 sm:$0xff] %v908
        %4975 = vst [vmem:[%s4863] ss:$4 sm:$0xff] %v911
        %4976 = vst [vmem:[%s4865] ss:$4 sm:$0xff] %v914
        %v4977 = vld.sshfl [vmem:[#allocation1] sm:$0xff pattern:$0x73625140]
        %v4978 = vld.sshfl [vmem:[#allocation1 + $0x20] sm:$0xff pattern:$0x73625140]
        %4979 = vst [vmem:[#allocation1] ss:$4 sm:$0xff] %v917
        %4980 = vst [vmem:[%s4853] ss:$4 sm:$0xff] %v920
        %4981 = vst [vmem:[%s4855] ss:$4 sm:$0xff] %v923
        %4982 = vst [vmem:[%s4857] ss:$4 sm:$0xff] %v927
        %4983 = vst [vmem:[%s4859] ss:$4 sm:$0xff] %v930
        %4984 = vst [vmem:[%s4861] ss:$4 sm:$0xff] %v933
        %4985 = vst [vmem:[%s4863] ss:$4 sm:$0xff] %v936
        %4986 = vst [vmem:[%s4865] ss:$4 sm:$0xff] %v939
        %v4987 = vld.sshfl [vmem:[#allocation1] sm:$0xff pattern:$0x73625140]
        %v4988 = vld.sshfl [vmem:[#allocation1 + $0x20] sm:$0xff pattern:$0x73625140]
        %4989 = vst [vmem:[#allocation1] ss:$4 sm:$0xff] %v942
        %4990 = vst [vmem:[%s4853] ss:$4 sm:$0xff] %v945
        %4991 = vst [vmem:[%s4855] ss:$4 sm:$0xff] %v948
        %4992 = vst [vmem:[%s4857] ss:$4 sm:$0xff] %v951
        %4993 = vst [vmem:[%s4859] ss:$4 sm:$0xff] %v955
        %4994 = vst [vmem:[%s4861] ss:$4 sm:$0xff] %v958
        %4995 = vst [vmem:[%s4863] ss:$4 sm:$0xff] %v961
        %4996 = vst [vmem:[%s4865] ss:$4 sm:$0xff] %v964
        %v4997 = vld.sshfl [vmem:[#allocation1] sm:$0xff pattern:$0x73625140]
        %v4998 = vld.sshfl [vmem:[#allocation1 + $0x20] sm:$0xff pattern:$0x73625140]
        %4999 = vst [vmem:[#allocation1] ss:$4 sm:$0xff] %v967
        %5000 = vst [vmem:[%s4853] ss:$4 sm:$0xff] %v970
        %5001 = vst [vmem:[%s4855] ss:$4 sm:$0xff] %v973
        %5002 = vst [vmem:[%s4857] ss:$4 sm:$0xff] %v976
        %5003 = vst [vmem:[%s4859] ss:$4 sm:$0xff] %v979
        %5004 = vst [vmem:[%s4861] ss:$4 sm:$0xff] %v983
        %5005 = vst [vmem:[%s4863] ss:$4 sm:$0xff] %v986
        %5006 = vst [vmem:[%s4865] ss:$4 sm:$0xff] %v989
        %v5007 = vld.sshfl [vmem:[#allocation1] sm:$0xff pattern:$0x73625140]
        %v5008 = vld.sshfl [vmem:[#allocation1 + $0x20] sm:$0xff pattern:$0x73625140]
        %5009 = vst [vmem:[#allocation1] ss:$4 sm:$0xff] %v992
        %5010 = vst [vmem:[%s4853] ss:$4 sm:$0xff] %v995
        %5011 = vst [vmem:[%s4855] ss:$4 sm:$0xff] %v998
        %5012 = vst [vmem:[%s4857] ss:$4 sm:$0xff] %v1001
        %5013 = vst [vmem:[%s4859] ss:$4 sm:$0xff] %v1004
        %5014 = vst [vmem:[%s4861] ss:$4 sm:$0xff] %v1007
        %5015 = vst [vmem:[%s4863] ss:$4 sm:$0xff] %v1011
        %5016 = vst [vmem:[%s4865] ss:$4 sm:$0xff] %v1014
        %v5017 = vld.sshfl [vmem:[#allocation1] sm:$0xff pattern:$0x73625140]
        %v5018 = vld.sshfl [vmem:[#allocation1 + $0x20] sm:$0xff pattern:$0x73625140]
        %5019 = vst [vmem:[#allocation1] ss:$4 sm:$0xff] %v1017
        %5020 = vst [vmem:[%s4853] ss:$4 sm:$0xff] %v1020
        %5021 = vst [vmem:[%s4855] ss:$4 sm:$0xff] %v1023
        %5022 = vst [vmem:[%s4857] ss:$4 sm:$0xff] %v1026
        %5023 = vst [vmem:[%s4859] ss:$4 sm:$0xff] %v1029
        %5024 = vst [vmem:[%s4861] ss:$4 sm:$0xff] %v1032
        %5025 = vst [vmem:[%s4863] ss:$4 sm:$0xff] %v1035
        %5026 = vst [vmem:[%s4865] ss:$4 sm:$0xff] %v1039
        %v5027 = vld.sshfl [vmem:[#allocation1] sm:$0xff pattern:$0x73625140]
        %v5028 = vld.sshfl [vmem:[#allocation1 + $0x20] sm:$0xff pattern:$0x73625140]
        %5029 = vst [vmem:[#allocation1] ss:$4 sm:$0xff] %v1042
        %5030 = vst [vmem:[%s4853] ss:$4 sm:$0xff] %v1045
        %5031 = vst [vmem:[%s4855] ss:$4 sm:$0xff] %v1048
        %5032 = vst [vmem:[%s4857] ss:$4 sm:$0xff] %v1051
        %5033 = vst [vmem:[%s4859] ss:$4 sm:$0xff] %v1054
        %5034 = vst [vmem:[%s4861] ss:$4 sm:$0xff] %v1057
        %5035 = vst [vmem:[%s4863] ss:$4 sm:$0xff] %v1060
        %5036 = vst [vmem:[%s4865] ss:$4 sm:$0xff] %v1063
        %v5037 = vld.sshfl [vmem:[#allocation1] sm:$0xff pattern:$0x73625140]
        %v5038 = vld.sshfl [vmem:[#allocation1 + $0x20] sm:$0xff pattern:$0x73625140]
        %5039 = vst [vmem:[#allocation1] ss:$4 sm:$0xff] %v3130
        %5040 = vst [vmem:[%s4853] ss:$4 sm:$0xff] %v3133
        %5041 = vst [vmem:[%s4855] ss:$4 sm:$0xff] %v3136
        %5042 = vst [vmem:[%s4857] ss:$4 sm:$0xff] %v3139
        %5043 = vst [vmem:[%s4859] ss:$4 sm:$0xff] %v3142
        %5044 = vst [vmem:[%s4861] ss:$4 sm:$0xff] %v3145
        %5045 = vst [vmem:[%s4863] ss:$4 sm:$0xff] %v3148
        %5046 = vst [vmem:[%s4865] ss:$4 sm:$0xff] %v3151
        %v5047 = vld.sshfl [vmem:[#allocation1] sm:$0xff pattern:$0x73625140]
        %v5048 = vld.sshfl [vmem:[#allocation1 + $0x20] sm:$0xff pattern:$0x73625140]
        %5049 = vst [vmem:[#allocation1] ss:$4 sm:$0xff] %v3154
        %5050 = vst [vmem:[%s4853] ss:$4 sm:$0xff] %v4825
        %5051 = vst [vmem:[%s4855] ss:$4 sm:$0xff] %v4828
        %5052 = vst [vmem:[%s4857] ss:$4 sm:$0xff] %v4831
        %5053 = vst [vmem:[%s4859] ss:$4 sm:$0xff] %v4834
        %5054 = vst [vmem:[%s4861] ss:$4 sm:$0xff] %v4837
        %5055 = vst [vmem:[%s4863] ss:$4 sm:$0xff] %v4840
        %5056 = vst [vmem:[%s4865] ss:$4 sm:$0xff] %v4843
        %v5057 = vld.sshfl [vmem:[#allocation1] sm:$0xff pattern:$0x73625140]
        %v5058 = vld.sshfl [vmem:[#allocation1 + $0x20] sm:$0xff pattern:$0x73625140]
        %5059 = vst [vmem:[#allocation1] ss:$4 sm:$0xff] %v4846
        %5060 = vst [vmem:[%s4853] ss:$4 sm:$0xff] %v4849
        %v5061 = vld.sshfl [vmem:[#allocation1] sm:$0xff pattern:$0x73625140]
        %v5062 = vsel %vm1276, %v4867, 0
        %v5064 = vsel %vm1276, %v4868, 0
        %v5066 = vsel %vm1276, %v4877, 0
        %v5068 = vsel %vm1276, %v4878, 0
        %v5070 = vsel %vm1276, %v4887, 0
        %v5072 = vsel %vm1276, %v4888, 0
        %v5074 = vsel %vm1276, %v4897, 0
        %v5076 = vsel %vm1276, %v4898, 0
        %v5078 = vsel %vm1276, %v4907, 0
        %v5080 = vsel %vm1276, %v4908, 0
        %v5082 = vsel %vm1276, %v4917, 0
        %v5084 = vsel %vm1276, %v4918, 0
        %v5086 = vsel %vm1276, %v4927, 0
        %v5088 = vsel %vm1276, %v4928, 0
        %v5090 = vsel %vm1276, %v4937, 0
        %v5092 = vsel %vm1276, %v4938, 0
        %v5094 = vsel %vm1276, %v4947, 0
        %v5096 = vsel %vm1276, %v4948, 0
        %v5098 = vsel %vm1276, %v4957, 0
        %v5100 = vsel %vm1276, %v4958, 0
        %v5102 = vsel %vm1276, %v4967, 0
        %v5104 = vsel %vm1276, %v4968, 0
        %v5106 = vsel %vm1276, %v4977, 0
        %v5108 = vsel %vm1276, %v4978, 0
        %v5110 = vsel %vm1276, %v4987, 0
        %v5112 = vsel %vm1276, %v4988, 0
        %v5114 = vsel %vm1276, %v4997, 0
        %v5116 = vsel %vm1276, %v4998, 0
        %v5118 = vsel %vm1276, %v5007, 0
        %v5120 = vsel %vm1276, %v5008, 0
        %v5122 = vsel %vm1276, %v5017, 0
        %v5124 = vsel %vm1276, %v5018, 0
        %v5126 = vsel %vm1276, %v5027, 0
        %v5128 = vsel %vm1276, %v5028, 0
        %v5130 = vsel %vm1276, %v5037, 0
        %v5132 = vsel %vm1276, %v5038, 0
        %v5134 = vsel %vm1276, %v5047, 0
        %v5136 = vsel %vm1276, %v5048, 0
        %v5138 = vsel %vm1276, %v5057, 0
        %v5140 = vsel %vm1276, %v5058, 0
        %v5142 = vsel %vm1276, %v5061, 0
        %v5145 = vsel %vm1359, %v4851, 0
        %5147 = vmatpush.msra.mxu0 0.0
        %5148 = vmatpush.msra.mxu0 0.0
        %5149 = vmatpush.msra.mxu0 0.0
        %5150 = vmatpush.msra.mxu0 0.0
        %5151 = vmatpush.msra.mxu0 0.0
        %5152 = vmatpush.msra.mxu0 0.0
        %5153 = vmatpush.msra.mxu0 0.0
        %5154 = vmatpush.msra.mxu0 0.0
        %5155 = vmatpush.msra.mxu0 0.0
        %5156 = vmatpush.msra.mxu0 0.0
        %5157 = vmatpush.msra.mxu0 0.0
        %5158 = vmatpush.msra.mxu0 0.0
        %5159 = vmatpush.msra.mxu0 0.0
        %5160 = vmatpush.msra.mxu0 0.0
        %5161 = vmatpush.msra.mxu0 0.0
        %5162 = vmatpush.msra.mxu0 %v5145
        %5163 = vmatmul.f32.gmra.mxu0 %v5062
        %v5164 = vpop.f32.mrf.mxu0
        %v5165 = vadd.f32 0.0, %v5164
        %5166 = vmatmul.f32.gmra.mxu0 %v5064
        %v5167 = vpop.f32.mrf.mxu0
        %v5168 = vadd.f32 0.0, %v5167
        %5169 = vmatmul.f32.gmra.mxu0 %v5066
        %v5170 = vpop.f32.mrf.mxu0
        %v5171 = vadd.f32 0.0, %v5170
        %5172 = vmatmul.f32.gmra.mxu0 %v5068
        %v5173 = vpop.f32.mrf.mxu0
        %v5174 = vadd.f32 0.0, %v5173
        %5175 = vmatmul.f32.gmra.mxu0 %v5070
        %v5176 = vpop.f32.mrf.mxu0
        %v5177 = vadd.f32 0.0, %v5176
        %5178 = vmatmul.f32.gmra.mxu0 %v5072
        %v5179 = vpop.f32.mrf.mxu0
        %v5180 = vadd.f32 0.0, %v5179
        %5181 = vmatmul.f32.gmra.mxu0 %v5074
        %v5182 = vpop.f32.mrf.mxu0
        %v5183 = vadd.f32 0.0, %v5182
        %5184 = vmatmul.f32.gmra.mxu0 %v5076
        %v5185 = vpop.f32.mrf.mxu0
        %v5186 = vadd.f32 0.0, %v5185
        %5187 = vmatmul.f32.gmra.mxu0 %v5078
        %v5188 = vpop.f32.mrf.mxu0
        %v5189 = vadd.f32 0.0, %v5188
        %5190 = vmatmul.f32.gmra.mxu0 %v5080
        %v5191 = vpop.f32.mrf.mxu0
        %v5192 = vadd.f32 0.0, %v5191
        %5193 = vmatmul.f32.gmra.mxu0 %v5082
        %v5194 = vpop.f32.mrf.mxu0
        %v5195 = vadd.f32 0.0, %v5194
        %5196 = vmatmul.f32.gmra.mxu0 %v5084
        %v5197 = vpop.f32.mrf.mxu0
        %v5198 = vadd.f32 0.0, %v5197
        %5199 = vmatmul.f32.gmra.mxu0 %v5086
        %v5200 = vpop.f32.mrf.mxu0
        %v5201 = vadd.f32 0.0, %v5200
        %5202 = vmatmul.f32.gmra.mxu0 %v5088
        %v5203 = vpop.f32.mrf.mxu0
        %v5204 = vadd.f32 0.0, %v5203
        %5205 = vmatmul.f32.gmra.mxu0 %v5090
        %v5206 = vpop.f32.mrf.mxu0
        %v5207 = vadd.f32 0.0, %v5206
        %5208 = vmatmul.f32.gmra.mxu0 %v5092
        %v5209 = vpop.f32.mrf.mxu0
        %v5210 = vadd.f32 0.0, %v5209
        %5211 = vmatmul.f32.gmra.mxu0 %v5094
        %v5212 = vpop.f32.mrf.mxu0
        %v5213 = vadd.f32 0.0, %v5212
        %5214 = vmatmul.f32.gmra.mxu0 %v5096
        %v5215 = vpop.f32.mrf.mxu0
        %v5216 = vadd.f32 0.0, %v5215
        %5217 = vmatmul.f32.gmra.mxu0 %v5098
        %v5218 = vpop.f32.mrf.mxu0
        %v5219 = vadd.f32 0.0, %v5218
        %5220 = vmatmul.f32.gmra.mxu0 %v5100
        %v5221 = vpop.f32.mrf.mxu0
        %v5222 = vadd.f32 0.0, %v5221
        %5223 = vmatmul.f32.gmra.mxu0 %v5102
        %v5224 = vpop.f32.mrf.mxu0
        %v5225 = vadd.f32 0.0, %v5224
        %5226 = vmatmul.f32.gmra.mxu0 %v5104
        %v5227 = vpop.f32.mrf.mxu0
        %v5228 = vadd.f32 0.0, %v5227
        %5229 = vmatmul.f32.gmra.mxu0 %v5106
        %v5230 = vpop.f32.mrf.mxu0
        %v5231 = vadd.f32 0.0, %v5230
        %5232 = vmatmul.f32.gmra.mxu0 %v5108
        %v5233 = vpop.f32.mrf.mxu0
        %v5234 = vadd.f32 0.0, %v5233
        %5235 = vmatmul.f32.gmra.mxu0 %v5110
        %v5236 = vpop.f32.mrf.mxu0
        %v5237 = vadd.f32 0.0, %v5236
        %5238 = vmatmul.f32.gmra.mxu0 %v5112
        %v5239 = vpop.f32.mrf.mxu0
        %v5240 = vadd.f32 0.0, %v5239
        %5241 = vmatmul.f32.gmra.mxu0 %v5114
        %v5242 = vpop.f32.mrf.mxu0
        %v5243 = vadd.f32 0.0, %v5242
        %5244 = vmatmul.f32.gmra.mxu0 %v5116
        %v5245 = vpop.f32.mrf.mxu0
        %v5246 = vadd.f32 0.0, %v5245
        %5247 = vmatmul.f32.gmra.mxu0 %v5118
        %v5248 = vpop.f32.mrf.mxu0
        %v5249 = vadd.f32 0.0, %v5248
        %5250 = vmatmul.f32.gmra.mxu0 %v5120
        %v5251 = vpop.f32.mrf.mxu0
        %v5252 = vadd.f32 0.0, %v5251
        %5253 = vmatmul.f32.gmra.mxu0 %v5122
        %v5254 = vpop.f32.mrf.mxu0
        %v5255 = vadd.f32 0.0, %v5254
        %5256 = vmatmul.f32.gmra.mxu0 %v5124
        %v5257 = vpop.f32.mrf.mxu0
        %v5258 = vadd.f32 0.0, %v5257
        %5259 = vmatmul.f32.gmra.mxu0 %v5126
        %v5260 = vpop.f32.mrf.mxu0
        %v5261 = vadd.f32 0.0, %v5260
        %5262 = vmatmul.f32.gmra.mxu0 %v5128
        %v5263 = vpop.f32.mrf.mxu0
        %v5264 = vadd.f32 0.0, %v5263
        %5265 = vmatmul.f32.gmra.mxu0 %v5130
        %v5266 = vpop.f32.mrf.mxu0
        %v5267 = vadd.f32 0.0, %v5266
        %5268 = vmatmul.f32.gmra.mxu0 %v5132
        %v5269 = vpop.f32.mrf.mxu0
        %v5270 = vadd.f32 0.0, %v5269
        %5271 = vmatmul.f32.gmra.mxu0 %v5134
        %v5272 = vpop.f32.mrf.mxu0
        %v5273 = vadd.f32 0.0, %v5272
        %5274 = vmatmul.f32.gmra.mxu0 %v5136
        %v5275 = vpop.f32.mrf.mxu0
        %v5276 = vadd.f32 0.0, %v5275
        %5277 = vmatmul.f32.gmra.mxu0 %v5138
        %v5278 = vpop.f32.mrf.mxu0
        %v5279 = vadd.f32 0.0, %v5278
        %5280 = vmatmul.f32.gmra.mxu0 %v5140
        %v5281 = vpop.f32.mrf.mxu0
        %v5282 = vadd.f32 0.0, %v5281
        %5283 = vmatmul.f32.gmra.mxu0 %v5142
        %v5284 = vpop.f32.mrf.mxu0
        %v5285 = vadd.f32 0.0, %v5284
        %5286 = vdwg.mxu0
        %v5287 = vadd.f32 %v4780, %v5165
        %v5288 = vadd.f32 %v4781, %v5168
        %v5289 = vadd.f32 %v4782, %v5171
        %v5290 = vadd.f32 %v4783, %v5174
        %v5291 = vadd.f32 %v4784, %v5177
        %v5292 = vadd.f32 %v4785, %v5180
        %v5293 = vadd.f32 %v4786, %v5183
        %v5294 = vadd.f32 %v4787, %v5186
        %v5295 = vadd.f32 %v4788, %v5189
        %v5296 = vadd.f32 %v4789, %v5192
        %v5297 = vadd.f32 %v4790, %v5195
        %v5298 = vadd.f32 %v4791, %v5198
        %v5299 = vadd.f32 %v4792, %v5201
        %v5300 = vadd.f32 %v4793, %v5204
        %v5301 = vadd.f32 %v4794, %v5207
        %v5302 = vadd.f32 %v4795, %v5210
        %v5303 = vadd.f32 %v4796, %v5213
        %v5304 = vadd.f32 %v4797, %v5216
        %v5305 = vadd.f32 %v4798, %v5219
        %v5306 = vadd.f32 %v4799, %v5222
        %v5307 = vadd.f32 %v4800, %v5225
        %v5308 = vadd.f32 %v4801, %v5228
        %v5309 = vadd.f32 %v4802, %v5231
        %v5310 = vadd.f32 %v4803, %v5234
        %v5311 = vadd.f32 %v4804, %v5237
        %v5312 = vadd.f32 %v4805, %v5240
        %v5313 = vadd.f32 %v4806, %v5243
        %v5314 = vadd.f32 %v4807, %v5246
        %v5315 = vadd.f32 %v4808, %v5249
        %v5316 = vadd.f32 %v4809, %v5252
        %v5317 = vadd.f32 %v4810, %v5255
        %v5318 = vadd.f32 %v4811, %v5258
        %v5319 = vadd.f32 %v4812, %v5261
        %v5320 = vadd.f32 %v4813, %v5264
        %v5321 = vadd.f32 %v4814, %v5267
        %v5322 = vadd.f32 %v4815, %v5270
        %v5323 = vadd.f32 %v4816, %v5273
        %v5324 = vadd.f32 %v4817, %v5276
        %v5325 = vadd.f32 %v4818, %v5279
        %v5326 = vadd.f32 %v4819, %v5282
        %v5327 = vadd.f32 %v4820, %v5285
        %5328 = vst.sshfl [vmem:[#allocation1] sm:$0xff pattern:$0x73625140] %v318
        %5329 = vst.sshfl [vmem:[#allocation1 + $0x20] sm:$0xff pattern:$0x73625140] %v319
        %s5330 = scalar_lea.vmem [#allocation1], 1
        %v5331 = vld [vmem:[%s5330] ss:$4 sm:$0xff]
        %s5332 = scalar_lea.vmem [#allocation1], 2
        %v5333 = vld [vmem:[%s5332] ss:$4 sm:$0xff]
        %s5334 = scalar_lea.vmem [#allocation1], 3
        %v5335 = vld [vmem:[%s5334] ss:$4 sm:$0xff]
        %s5336 = scalar_lea.vmem [#allocation1], 32
        %v5337 = vld [vmem:[%s5336] ss:$4 sm:$0xff]
        %s5338 = scalar_lea.vmem [#allocation1], 33
        %v5339 = vld [vmem:[%s5338] ss:$4 sm:$0xff]
        %s5340 = scalar_lea.vmem [#allocation1], 34
        %v5341 = vld [vmem:[%s5340] ss:$4 sm:$0xff]
        %s5342 = scalar_lea.vmem [#allocation1], 35
        %v5343 = vld [vmem:[%s5342] ss:$4 sm:$0xff]
        %5344 = vst.sshfl [vmem:[#allocation1] sm:$0xff pattern:$0x73625140] %v320
        %v5345 = vld [vmem:[#allocation1] ss:$4 sm:$0xff]
        %v5346 = vld [vmem:[%s5330] ss:$4 sm:$0xff]
        %5347 = vst.sshfl [vmem:[#allocation1 + $0x20] sm:$0xff pattern:$0x73625140] %v321
        %v5348 = vld [vmem:[%s5338] ss:$4 sm:$0xff]
        %v5349 = vld [vmem:[%s5340] ss:$4 sm:$0xff]
        %v5350 = vld [vmem:[%s5342] ss:$4 sm:$0xff]
        %5351 = vst.sshfl [vmem:[#allocation1] sm:$0xff pattern:$0x73625140] %v322
        %5352 = vst.sshfl [vmem:[#allocation1 + $0x20] sm:$0xff pattern:$0x73625140] %v323
        %v5353 = vld [vmem:[#allocation1] ss:$4 sm:$0xff]
        %v5354 = vld [vmem:[%s5330] ss:$4 sm:$0xff]
        %v5355 = vld [vmem:[%s5332] ss:$4 sm:$0xff]
        %v5356 = vld [vmem:[%s5334] ss:$4 sm:$0xff]
        %v5357 = vld [vmem:[%s5336] ss:$4 sm:$0xff]
        %v5358 = vld [vmem:[%s5338] ss:$4 sm:$0xff]
        %5359 = vst.sshfl [vmem:[#allocation1] sm:$0xff pattern:$0x73625140] %v324
        %5360 = vst.sshfl [vmem:[#allocation1 + $0x20] sm:$0xff pattern:$0x73625140] %v325
        %v5361 = vld [vmem:[%s5330] ss:$4 sm:$0xff]
        %v5362 = vld [vmem:[%s5332] ss:$4 sm:$0xff]
        %v5363 = vld [vmem:[%s5334] ss:$4 sm:$0xff]
        %v5364 = vld [vmem:[%s5336] ss:$4 sm:$0xff]
        %v5365 = vld [vmem:[%s5338] ss:$4 sm:$0xff]
        %v5366 = vld [vmem:[%s5340] ss:$4 sm:$0xff]
        %v5367 = vld [vmem:[%s5342] ss:$4 sm:$0xff]
        %5368 = vst.sshfl [vmem:[#allocation1] sm:$0xff pattern:$0x73625140] %v326
        %v5369 = vld [vmem:[#allocation1] ss:$4 sm:$0xff]
        %v5370 = vld [vmem:[%s5330] ss:$4 sm:$0xff]
        %5371 = vst.sshfl [vmem:[#allocation1 + $0x20] sm:$0xff pattern:$0x73625140] %v327
        %v5372 = vld [vmem:[%s5338] ss:$4 sm:$0xff]
        %v5373 = vld [vmem:[%s5340] ss:$4 sm:$0xff]
        %v5374 = vld [vmem:[%s5342] ss:$4 sm:$0xff]
        %5375 = vst.sshfl [vmem:[#allocation1] sm:$0xff pattern:$0x73625140] %v328
        %5376 = vst.sshfl [vmem:[#allocation1 + $0x20] sm:$0xff pattern:$0x73625140] %v329
        %v5377 = vld [vmem:[#allocation1] ss:$4 sm:$0xff]
        %v5378 = vld [vmem:[%s5330] ss:$4 sm:$0xff]
        %v5379 = vld [vmem:[%s5332] ss:$4 sm:$0xff]
        %v5380 = vld [vmem:[%s5334] ss:$4 sm:$0xff]
        %v5381 = vld [vmem:[%s5336] ss:$4 sm:$0xff]
        %v5382 = vld [vmem:[%s5338] ss:$4 sm:$0xff]
        %5383 = vst.sshfl [vmem:[#allocation1] sm:$0xff pattern:$0x73625140] %v330
        %5384 = vst.sshfl [vmem:[#allocation1 + $0x20] sm:$0xff pattern:$0x73625140] %v331
        %v5385 = vld [vmem:[%s5330] ss:$4 sm:$0xff]
        %v5386 = vld [vmem:[%s5332] ss:$4 sm:$0xff]
        %v5387 = vld [vmem:[%s5334] ss:$4 sm:$0xff]
        %v5388 = vld [vmem:[%s5336] ss:$4 sm:$0xff]
        %v5389 = vld [vmem:[%s5338] ss:$4 sm:$0xff]
        %v5390 = vld [vmem:[%s5340] ss:$4 sm:$0xff]
        %v5391 = vld [vmem:[%s5342] ss:$4 sm:$0xff]
        %5392 = vst.sshfl [vmem:[#allocation1] sm:$0xff pattern:$0x73625140] %v332
        %v5393 = vld [vmem:[#allocation1] ss:$4 sm:$0xff]
        %v5394 = vld [vmem:[%s5330] ss:$4 sm:$0xff]
        %5395 = vst.sshfl [vmem:[#allocation1 + $0x20] sm:$0xff pattern:$0x73625140] %v333
        %v5396 = vld [vmem:[%s5338] ss:$4 sm:$0xff]
        %v5397 = vld [vmem:[%s5340] ss:$4 sm:$0xff]
        %v5398 = vld [vmem:[%s5342] ss:$4 sm:$0xff]
        %5399 = vst.sshfl [vmem:[#allocation1] sm:$0xff pattern:$0x73625140] %v334
        %5400 = vst.sshfl [vmem:[#allocation1 + $0x20] sm:$0xff pattern:$0x73625140] %v335
        %v5401 = vld [vmem:[#allocation1] ss:$4 sm:$0xff]
        %v5402 = vld [vmem:[%s5330] ss:$4 sm:$0xff]
        %v5403 = vld [vmem:[%s5332] ss:$4 sm:$0xff]
        %v5404 = vld [vmem:[%s5334] ss:$4 sm:$0xff]
        %v5405 = vld [vmem:[%s5336] ss:$4 sm:$0xff]
        %v5406 = vld [vmem:[%s5338] ss:$4 sm:$0xff]
        %5407 = vst.sshfl [vmem:[#allocation1] sm:$0xff pattern:$0x73625140] %v336
        %5408 = vst.sshfl [vmem:[#allocation1 + $0x20] sm:$0xff pattern:$0x73625140] %v337
        %v5409 = vld [vmem:[%s5330] ss:$4 sm:$0xff]
        %v5410 = vld [vmem:[%s5332] ss:$4 sm:$0xff]
        %v5411 = vld [vmem:[%s5334] ss:$4 sm:$0xff]
        %v5412 = vld [vmem:[%s5336] ss:$4 sm:$0xff]
        %v5413 = vld [vmem:[%s5338] ss:$4 sm:$0xff]
        %v5414 = vld [vmem:[%s5340] ss:$4 sm:$0xff]
        %v5415 = vld [vmem:[%s5342] ss:$4 sm:$0xff]
        %5416 = vst.sshfl [vmem:[#allocation1] sm:$0xff pattern:$0x73625140] %v338
        %v5417 = vld [vmem:[#allocation1] ss:$4 sm:$0xff]
        %v5418 = vld [vmem:[%s5330] ss:$4 sm:$0xff]
        %5419 = vst.sshfl [vmem:[#allocation1 + $0x20] sm:$0xff pattern:$0x73625140] %v339
        %v5420 = vld [vmem:[%s5338] ss:$4 sm:$0xff]
        %v5421 = vld [vmem:[%s5340] ss:$4 sm:$0xff]
        %v5422 = vld [vmem:[%s5342] ss:$4 sm:$0xff]
        %5423 = vst.sshfl [vmem:[#allocation1] sm:$0xff pattern:$0x73625140] %v340
        %5424 = vst.sshfl [vmem:[#allocation1 + $0x20] sm:$0xff pattern:$0x73625140] %v341
        %v5425 = vld [vmem:[#allocation1] ss:$4 sm:$0xff]
        %v5426 = vld [vmem:[%s5330] ss:$4 sm:$0xff]
        %v5427 = vld [vmem:[%s5332] ss:$4 sm:$0xff]
        %v5428 = vld [vmem:[%s5334] ss:$4 sm:$0xff]
        %v5429 = vld [vmem:[%s5336] ss:$4 sm:$0xff]
        %v5430 = vld [vmem:[%s5338] ss:$4 sm:$0xff]
        %5431 = vst.sshfl [vmem:[#allocation1] sm:$0xff pattern:$0x73625140] %v342
        %5432 = vst.sshfl [vmem:[#allocation1 + $0x20] sm:$0xff pattern:$0x73625140] %v343
        %v5433 = vld [vmem:[%s5330] ss:$4 sm:$0xff]
        %v5434 = vld [vmem:[%s5332] ss:$4 sm:$0xff]
        %v5435 = vld [vmem:[%s5334] ss:$4 sm:$0xff]
        %v5436 = vld [vmem:[%s5336] ss:$4 sm:$0xff]
        %v5437 = vld [vmem:[%s5338] ss:$4 sm:$0xff]
        %v5438 = vld [vmem:[%s5340] ss:$4 sm:$0xff]
        %v5439 = vld [vmem:[%s5342] ss:$4 sm:$0xff]
        %5440 = vst.sshfl [vmem:[#allocation1] sm:$0xff pattern:$0x73625140] %v344
        %v5441 = vld [vmem:[#allocation1] ss:$4 sm:$0xff]
        %v5442 = vld [vmem:[%s5330] ss:$4 sm:$0xff]
        %5443 = vst.sshfl [vmem:[#allocation1 + $0x20] sm:$0xff pattern:$0x73625140] %v345
        %v5444 = vld [vmem:[%s5338] ss:$4 sm:$0xff]
        %v5445 = vld [vmem:[%s5340] ss:$4 sm:$0xff]
        %v5446 = vld [vmem:[%s5342] ss:$4 sm:$0xff]
        %5447 = vst.sshfl [vmem:[#allocation1] sm:$0xff pattern:$0x73625140] %v346
        %5448 = vst.sshfl [vmem:[#allocation1 + $0x20] sm:$0xff pattern:$0x73625140] %v347
        %v5449 = vld [vmem:[#allocation1] ss:$4 sm:$0xff]
        %v5450 = vld [vmem:[%s5330] ss:$4 sm:$0xff]
        %v5451 = vld [vmem:[%s5332] ss:$4 sm:$0xff]
        %v5452 = vld [vmem:[%s5334] ss:$4 sm:$0xff]
        %v5453 = vld [vmem:[%s5336] ss:$4 sm:$0xff]
        %v5454 = vld [vmem:[%s5338] ss:$4 sm:$0xff]
        %5455 = vst.sshfl [vmem:[#allocation1] sm:$0xff pattern:$0x73625140] %v348
        %5456 = vst.sshfl [vmem:[#allocation1 + $0x20] sm:$0xff pattern:$0x73625140] %v349
        %v5457 = vld [vmem:[%s5330] ss:$4 sm:$0xff]
        %v5458 = vld [vmem:[%s5332] ss:$4 sm:$0xff]
        %v5459 = vld [vmem:[%s5334] ss:$4 sm:$0xff]
        %v5460 = vld [vmem:[%s5336] ss:$4 sm:$0xff]
        %v5461 = vld [vmem:[%s5338] ss:$4 sm:$0xff]
        %v5462 = vld [vmem:[%s5340] ss:$4 sm:$0xff]
        %v5463 = vld [vmem:[%s5342] ss:$4 sm:$0xff]
        %5464 = vst.sshfl [vmem:[#allocation1] sm:$0xff pattern:$0x73625140] %v350
        %v5465 = vld [vmem:[#allocation1] ss:$4 sm:$0xff]
        %v5466 = vld [vmem:[%s5330] ss:$4 sm:$0xff]
        %5467 = vst.sshfl [vmem:[#allocation1 + $0x20] sm:$0xff pattern:$0x73625140] %v351
        %v5468 = vld [vmem:[%s5338] ss:$4 sm:$0xff]
        %v5469 = vld [vmem:[%s5340] ss:$4 sm:$0xff]
        %v5470 = vld [vmem:[%s5342] ss:$4 sm:$0xff]
        %5471 = vst.sshfl [vmem:[#allocation1] sm:$0xff pattern:$0x73625140] %v352
        %5472 = vst.sshfl [vmem:[#allocation1 + $0x20] sm:$0xff pattern:$0x73625140] %v353
        %v5473 = vld [vmem:[#allocation1] ss:$4 sm:$0xff]
        %v5474 = vld [vmem:[%s5330] ss:$4 sm:$0xff]
        %v5475 = vld [vmem:[%s5332] ss:$4 sm:$0xff]
        %v5476 = vld [vmem:[%s5334] ss:$4 sm:$0xff]
        %v5477 = vld [vmem:[%s5336] ss:$4 sm:$0xff]
        %v5478 = vld [vmem:[%s5338] ss:$4 sm:$0xff]
        %5479 = vst.sshfl [vmem:[#allocation1] sm:$0xff pattern:$0x73625140] %v354
        %5480 = vst.sshfl [vmem:[#allocation1 + $0x20] sm:$0xff pattern:$0x73625140] %v355
        %v5481 = vld [vmem:[%s5330] ss:$4 sm:$0xff]
        %v5482 = vld [vmem:[%s5332] ss:$4 sm:$0xff]
        %v5483 = vld [vmem:[%s5334] ss:$4 sm:$0xff]
        %v5484 = vld [vmem:[%s5336] ss:$4 sm:$0xff]
        %v5485 = vld [vmem:[%s5338] ss:$4 sm:$0xff]
        %v5486 = vld [vmem:[%s5340] ss:$4 sm:$0xff]
        %v5487 = vld [vmem:[%s5342] ss:$4 sm:$0xff]
        %5488 = vst.sshfl [vmem:[#allocation1] sm:$0xff pattern:$0x73625140] %v356
        %v5489 = vld [vmem:[#allocation1] ss:$4 sm:$0xff]
        %v5490 = vld [vmem:[%s5330] ss:$4 sm:$0xff]
        %5491 = vst.sshfl [vmem:[#allocation1 + $0x20] sm:$0xff pattern:$0x73625140] %v357
        %v5492 = vld [vmem:[%s5338] ss:$4 sm:$0xff]
        %v5493 = vld [vmem:[%s5340] ss:$4 sm:$0xff]
        %v5494 = vld [vmem:[%s5342] ss:$4 sm:$0xff]
        %5495 = vst.sshfl [vmem:[#allocation1] sm:$0xff pattern:$0x73625140] %v358
        %5496 = vst.sshfl [vmem:[#allocation1 + $0x20] sm:$0xff pattern:$0x73625140] %v359
        %v5497 = vld [vmem:[#allocation1] ss:$4 sm:$0xff]
        %v5498 = vld [vmem:[%s5330] ss:$4 sm:$0xff]
        %v5499 = vld [vmem:[%s5332] ss:$4 sm:$0xff]
        %v5500 = vld [vmem:[%s5334] ss:$4 sm:$0xff]
        %v5501 = vld [vmem:[%s5336] ss:$4 sm:$0xff]
        %v5502 = vld [vmem:[%s5338] ss:$4 sm:$0xff]
        %5503 = vst.sshfl [vmem:[#allocation1] sm:$0xff pattern:$0x73625140] %v360
        %5504 = vst.sshfl [vmem:[#allocation1 + $0x20] sm:$0xff pattern:$0x73625140] %v361
        %v5505 = vld [vmem:[%s5330] ss:$4 sm:$0xff]
        %v5506 = vld [vmem:[%s5332] ss:$4 sm:$0xff]
        %v5507 = vld [vmem:[%s5334] ss:$4 sm:$0xff]
        %v5508 = vld [vmem:[%s5336] ss:$4 sm:$0xff]
        %v5509 = vld [vmem:[%s5338] ss:$4 sm:$0xff]
        %v5510 = vld [vmem:[%s5340] ss:$4 sm:$0xff]
        %v5511 = vld [vmem:[%s5342] ss:$4 sm:$0xff]
        %5512 = vst.sshfl [vmem:[#allocation1] sm:$0xff pattern:$0x73625140] %v362
        %v5513 = vld [vmem:[#allocation1] ss:$4 sm:$0xff]
        %v5514 = vld [vmem:[%s5330] ss:$4 sm:$0xff]
        %5515 = vst.sshfl [vmem:[#allocation1 + $0x20] sm:$0xff pattern:$0x73625140] %v363
        %v5516 = vld [vmem:[%s5338] ss:$4 sm:$0xff]
        %v5517 = vld [vmem:[%s5340] ss:$4 sm:$0xff]
        %v5518 = vld [vmem:[%s5342] ss:$4 sm:$0xff]
        %5519 = vst.sshfl [vmem:[#allocation1] sm:$0xff pattern:$0x73625140] %v364
        %5520 = vst.sshfl [vmem:[#allocation1 + $0x20] sm:$0xff pattern:$0x73625140] %v365
        %v5521 = vld [vmem:[#allocation1] ss:$4 sm:$0xff]
        %v5522 = vld [vmem:[%s5330] ss:$4 sm:$0xff]
        %v5523 = vld [vmem:[%s5332] ss:$4 sm:$0xff]
        %v5524 = vld [vmem:[%s5334] ss:$4 sm:$0xff]
        %v5525 = vld [vmem:[%s5336] ss:$4 sm:$0xff]
        %v5526 = vld [vmem:[%s5338] ss:$4 sm:$0xff]
        %5527 = vst.sshfl [vmem:[#allocation1] sm:$0xff pattern:$0x73625140] %v366
        %5528 = vst.sshfl [vmem:[#allocation1 + $0x20] sm:$0xff pattern:$0x73625140] %v367
        %v5529 = vld [vmem:[%s5330] ss:$4 sm:$0xff]
        %v5530 = vld [vmem:[%s5332] ss:$4 sm:$0xff]
        %v5531 = vld [vmem:[%s5334] ss:$4 sm:$0xff]
        %v5532 = vld [vmem:[%s5336] ss:$4 sm:$0xff]
        %v5533 = vld [vmem:[%s5338] ss:$4 sm:$0xff]
        %v5534 = vld [vmem:[%s5340] ss:$4 sm:$0xff]
        %v5535 = vld [vmem:[%s5342] ss:$4 sm:$0xff]
        %5536 = vst.sshfl [vmem:[#allocation1] sm:$0xff pattern:$0x73625140] %v368
        %v5537 = vld [vmem:[#allocation1] ss:$4 sm:$0xff]
        %v5538 = vld [vmem:[%s5330] ss:$4 sm:$0xff]
        %5539 = vst.sshfl [vmem:[#allocation1 + $0x20] sm:$0xff pattern:$0x73625140] %v369
        %v5540 = vld [vmem:[%s5338] ss:$4 sm:$0xff]
        %v5541 = vld [vmem:[%s5340] ss:$4 sm:$0xff]
        %v5542 = vld [vmem:[%s5342] ss:$4 sm:$0xff]
        %5543 = vst.sshfl [vmem:[#allocation1] sm:$0xff pattern:$0x73625140] %v370
        %5544 = vst.sshfl [vmem:[#allocation1 + $0x20] sm:$0xff pattern:$0x73625140] %v371
        %v5545 = vld [vmem:[#allocation1] ss:$4 sm:$0xff]
        %v5546 = vld [vmem:[%s5330] ss:$4 sm:$0xff]
        %v5547 = vld [vmem:[%s5332] ss:$4 sm:$0xff]
        %v5548 = vld [vmem:[%s5334] ss:$4 sm:$0xff]
        %v5549 = vld [vmem:[%s5336] ss:$4 sm:$0xff]
        %v5550 = vld [vmem:[%s5338] ss:$4 sm:$0xff]
        %s5551 = scalar_lea.vmem %s1, 32
        %v5552 = vld [vmem:[%s5551] sm:$0xf]
        %5553 = vst [vmem:[#allocation1] ss:$4 sm:$0xff] %v5331
        %s5554 = scalar_lea.vmem [#allocation1], 1
        %5555 = vst [vmem:[%s5554] ss:$4 sm:$0xff] %v5333
        %s5556 = scalar_lea.vmem [#allocation1], 2
        %5557 = vst [vmem:[%s5556] ss:$4 sm:$0xff] %v5335
        %s5558 = scalar_lea.vmem [#allocation1], 3
        %5559 = vst [vmem:[%s5558] ss:$4 sm:$0xff] %v5337
        %s5560 = scalar_lea.vmem [#allocation1], 32
        %5561 = vst [vmem:[%s5560] ss:$4 sm:$0xff] %v5339
        %s5562 = scalar_lea.vmem [#allocation1], 33
        %5563 = vst [vmem:[%s5562] ss:$4 sm:$0xff] %v5341
        %s5564 = scalar_lea.vmem [#allocation1], 34
        %5565 = vst [vmem:[%s5564] ss:$4 sm:$0xff] %v5343
        %s5566 = scalar_lea.vmem [#allocation1], 35
        %5567 = vst [vmem:[%s5566] ss:$4 sm:$0xff] %v5345
        %v5568 = vld.sshfl [vmem:[#allocation1] sm:$0xff pattern:$0x73625140]
        %v5569 = vld.sshfl [vmem:[#allocation1 + $0x20] sm:$0xff pattern:$0x73625140]
        %5570 = vst [vmem:[#allocation1] ss:$4 sm:$0xff] %v5346
        %5571 = vst [vmem:[%s5554] ss:$4 sm:$0xff] %v5348
        %5572 = vst [vmem:[%s5556] ss:$4 sm:$0xff] %v5349
        %5573 = vst [vmem:[%s5558] ss:$4 sm:$0xff] %v5350
        %5574 = vst [vmem:[%s5560] ss:$4 sm:$0xff] %v5353
        %5575 = vst [vmem:[%s5562] ss:$4 sm:$0xff] %v5354
        %5576 = vst [vmem:[%s5564] ss:$4 sm:$0xff] %v5355
        %5577 = vst [vmem:[%s5566] ss:$4 sm:$0xff] %v5356
        %v5578 = vld.sshfl [vmem:[#allocation1] sm:$0xff pattern:$0x73625140]
        %v5579 = vld.sshfl [vmem:[#allocation1 + $0x20] sm:$0xff pattern:$0x73625140]
        %5580 = vst [vmem:[#allocation1] ss:$4 sm:$0xff] %v5357
        %5581 = vst [vmem:[%s5554] ss:$4 sm:$0xff] %v5358
        %5582 = vst [vmem:[%s5556] ss:$4 sm:$0xff] %v5361
        %5583 = vst [vmem:[%s5558] ss:$4 sm:$0xff] %v5362
        %5584 = vst [vmem:[%s5560] ss:$4 sm:$0xff] %v5363
        %5585 = vst [vmem:[%s5562] ss:$4 sm:$0xff] %v5364
        %5586 = vst [vmem:[%s5564] ss:$4 sm:$0xff] %v5365
        %5587 = vst [vmem:[%s5566] ss:$4 sm:$0xff] %v5366
        %v5588 = vld.sshfl [vmem:[#allocation1] sm:$0xff pattern:$0x73625140]
        %v5589 = vld.sshfl [vmem:[#allocation1 + $0x20] sm:$0xff pattern:$0x73625140]
        %5590 = vst [vmem:[#allocation1] ss:$4 sm:$0xff] %v5367
        %5591 = vst [vmem:[%s5554] ss:$4 sm:$0xff] %v5369
        %5592 = vst [vmem:[%s5556] ss:$4 sm:$0xff] %v5370
        %5593 = vst [vmem:[%s5558] ss:$4 sm:$0xff] %v5372
        %5594 = vst [vmem:[%s5560] ss:$4 sm:$0xff] %v5373
        %5595 = vst [vmem:[%s5562] ss:$4 sm:$0xff] %v5374
        %5596 = vst [vmem:[%s5564] ss:$4 sm:$0xff] %v5377
        %5597 = vst [vmem:[%s5566] ss:$4 sm:$0xff] %v5378
        %v5598 = vld.sshfl [vmem:[#allocation1] sm:$0xff pattern:$0x73625140]
        %v5599 = vld.sshfl [vmem:[#allocation1 + $0x20] sm:$0xff pattern:$0x73625140]
        %5600 = vst [vmem:[#allocation1] ss:$4 sm:$0xff] %v5379
        %5601 = vst [vmem:[%s5554] ss:$4 sm:$0xff] %v5380
        %5602 = vst [vmem:[%s5556] ss:$4 sm:$0xff] %v5381
        %5603 = vst [vmem:[%s5558] ss:$4 sm:$0xff] %v5382
        %5604 = vst [vmem:[%s5560] ss:$4 sm:$0xff] %v5385
        %5605 = vst [vmem:[%s5562] ss:$4 sm:$0xff] %v5386
        %5606 = vst [vmem:[%s5564] ss:$4 sm:$0xff] %v5387
        %5607 = vst [vmem:[%s5566] ss:$4 sm:$0xff] %v5388
        %v5608 = vld.sshfl [vmem:[#allocation1] sm:$0xff pattern:$0x73625140]
        %v5609 = vld.sshfl [vmem:[#allocation1 + $0x20] sm:$0xff pattern:$0x73625140]
        %5610 = vst [vmem:[#allocation1] ss:$4 sm:$0xff] %v5389
        %5611 = vst [vmem:[%s5554] ss:$4 sm:$0xff] %v5390
        %5612 = vst [vmem:[%s5556] ss:$4 sm:$0xff] %v5391
        %5613 = vst [vmem:[%s5558] ss:$4 sm:$0xff] %v5393
        %5614 = vst [vmem:[%s5560] ss:$4 sm:$0xff] %v5394
        %5615 = vst [vmem:[%s5562] ss:$4 sm:$0xff] %v5396
        %5616 = vst [vmem:[%s5564] ss:$4 sm:$0xff] %v5397
        %5617 = vst [vmem:[%s5566] ss:$4 sm:$0xff] %v5398
        %v5618 = vld.sshfl [vmem:[#allocation1] sm:$0xff pattern:$0x73625140]
        %v5619 = vld.sshfl [vmem:[#allocation1 + $0x20] sm:$0xff pattern:$0x73625140]
        %5620 = vst [vmem:[#allocation1] ss:$4 sm:$0xff] %v5401
        %5621 = vst [vmem:[%s5554] ss:$4 sm:$0xff] %v5402
        %5622 = vst [vmem:[%s5556] ss:$4 sm:$0xff] %v5403
        %5623 = vst [vmem:[%s5558] ss:$4 sm:$0xff] %v5404
        %5624 = vst [vmem:[%s5560] ss:$4 sm:$0xff] %v5405
        %5625 = vst [vmem:[%s5562] ss:$4 sm:$0xff] %v5406
        %5626 = vst [vmem:[%s5564] ss:$4 sm:$0xff] %v5409
        %5627 = vst [vmem:[%s5566] ss:$4 sm:$0xff] %v5410
        %v5628 = vld.sshfl [vmem:[#allocation1] sm:$0xff pattern:$0x73625140]
        %v5629 = vld.sshfl [vmem:[#allocation1 + $0x20] sm:$0xff pattern:$0x73625140]
        %5630 = vst [vmem:[#allocation1] ss:$4 sm:$0xff] %v5411
        %5631 = vst [vmem:[%s5554] ss:$4 sm:$0xff] %v5412
        %5632 = vst [vmem:[%s5556] ss:$4 sm:$0xff] %v5413
        %5633 = vst [vmem:[%s5558] ss:$4 sm:$0xff] %v5414
        %5634 = vst [vmem:[%s5560] ss:$4 sm:$0xff] %v5415
        %5635 = vst [vmem:[%s5562] ss:$4 sm:$0xff] %v5417
        %5636 = vst [vmem:[%s5564] ss:$4 sm:$0xff] %v5418
        %5637 = vst [vmem:[%s5566] ss:$4 sm:$0xff] %v5420
        %v5638 = vld.sshfl [vmem:[#allocation1] sm:$0xff pattern:$0x73625140]
        %v5639 = vld.sshfl [vmem:[#allocation1 + $0x20] sm:$0xff pattern:$0x73625140]
        %5640 = vst [vmem:[#allocation1] ss:$4 sm:$0xff] %v5421
        %5641 = vst [vmem:[%s5554] ss:$4 sm:$0xff] %v5422
        %5642 = vst [vmem:[%s5556] ss:$4 sm:$0xff] %v5425
        %5643 = vst [vmem:[%s5558] ss:$4 sm:$0xff] %v5426
        %5644 = vst [vmem:[%s5560] ss:$4 sm:$0xff] %v5427
        %5645 = vst [vmem:[%s5562] ss:$4 sm:$0xff] %v5428
        %5646 = vst [vmem:[%s5564] ss:$4 sm:$0xff] %v5429
        %5647 = vst [vmem:[%s5566] ss:$4 sm:$0xff] %v5430
        %v5648 = vld.sshfl [vmem:[#allocation1] sm:$0xff pattern:$0x73625140]
        %v5649 = vld.sshfl [vmem:[#allocation1 + $0x20] sm:$0xff pattern:$0x73625140]
        %5650 = vst [vmem:[#allocation1] ss:$4 sm:$0xff] %v5433
        %5651 = vst [vmem:[%s5554] ss:$4 sm:$0xff] %v5434
        %5652 = vst [vmem:[%s5556] ss:$4 sm:$0xff] %v5435
        %5653 = vst [vmem:[%s5558] ss:$4 sm:$0xff] %v5436
        %5654 = vst [vmem:[%s5560] ss:$4 sm:$0xff] %v5437
        %5655 = vst [vmem:[%s5562] ss:$4 sm:$0xff] %v5438
        %5656 = vst [vmem:[%s5564] ss:$4 sm:$0xff] %v5439
        %5657 = vst [vmem:[%s5566] ss:$4 sm:$0xff] %v5441
        %v5658 = vld.sshfl [vmem:[#allocation1] sm:$0xff pattern:$0x73625140]
        %v5659 = vld.sshfl [vmem:[#allocation1 + $0x20] sm:$0xff pattern:$0x73625140]
        %5660 = vst [vmem:[#allocation1] ss:$4 sm:$0xff] %v5442
        %5661 = vst [vmem:[%s5554] ss:$4 sm:$0xff] %v5444
        %5662 = vst [vmem:[%s5556] ss:$4 sm:$0xff] %v5445
        %5663 = vst [vmem:[%s5558] ss:$4 sm:$0xff] %v5446
        %5664 = vst [vmem:[%s5560] ss:$4 sm:$0xff] %v5449
        %5665 = vst [vmem:[%s5562] ss:$4 sm:$0xff] %v5450
        %5666 = vst [vmem:[%s5564] ss:$4 sm:$0xff] %v5451
        %5667 = vst [vmem:[%s5566] ss:$4 sm:$0xff] %v5452
        %v5668 = vld.sshfl [vmem:[#allocation1] sm:$0xff pattern:$0x73625140]
        %v5669 = vld.sshfl [vmem:[#allocation1 + $0x20] sm:$0xff pattern:$0x73625140]
        %5670 = vst [vmem:[#allocation1] ss:$4 sm:$0xff] %v5453
        %5671 = vst [vmem:[%s5554] ss:$4 sm:$0xff] %v5454
        %5672 = vst [vmem:[%s5556] ss:$4 sm:$0xff] %v5457
        %5673 = vst [vmem:[%s5558] ss:$4 sm:$0xff] %v5458
        %5674 = vst [vmem:[%s5560] ss:$4 sm:$0xff] %v5459
        %5675 = vst [vmem:[%s5562] ss:$4 sm:$0xff] %v5460
        %5676 = vst [vmem:[%s5564] ss:$4 sm:$0xff] %v5461
        %5677 = vst [vmem:[%s5566] ss:$4 sm:$0xff] %v5462
        %v5678 = vld.sshfl [vmem:[#allocation1] sm:$0xff pattern:$0x73625140]
        %v5679 = vld.sshfl [vmem:[#allocation1 + $0x20] sm:$0xff pattern:$0x73625140]
        %5680 = vst [vmem:[#allocation1] ss:$4 sm:$0xff] %v5463
        %5681 = vst [vmem:[%s5554] ss:$4 sm:$0xff] %v5465
        %5682 = vst [vmem:[%s5556] ss:$4 sm:$0xff] %v5466
        %5683 = vst [vmem:[%s5558] ss:$4 sm:$0xff] %v5468
        %5684 = vst [vmem:[%s5560] ss:$4 sm:$0xff] %v5469
        %5685 = vst [vmem:[%s5562] ss:$4 sm:$0xff] %v5470
        %5686 = vst [vmem:[%s5564] ss:$4 sm:$0xff] %v5473
        %5687 = vst [vmem:[%s5566] ss:$4 sm:$0xff] %v5474
        %v5688 = vld.sshfl [vmem:[#allocation1] sm:$0xff pattern:$0x73625140]
        %v5689 = vld.sshfl [vmem:[#allocation1 + $0x20] sm:$0xff pattern:$0x73625140]
        %5690 = vst [vmem:[#allocation1] ss:$4 sm:$0xff] %v5475
        %5691 = vst [vmem:[%s5554] ss:$4 sm:$0xff] %v5476
        %5692 = vst [vmem:[%s5556] ss:$4 sm:$0xff] %v5477
        %5693 = vst [vmem:[%s5558] ss:$4 sm:$0xff] %v5478
        %5694 = vst [vmem:[%s5560] ss:$4 sm:$0xff] %v5481
        %5695 = vst [vmem:[%s5562] ss:$4 sm:$0xff] %v5482
        %5696 = vst [vmem:[%s5564] ss:$4 sm:$0xff] %v5483
        %5697 = vst [vmem:[%s5566] ss:$4 sm:$0xff] %v5484
        %v5698 = vld.sshfl [vmem:[#allocation1] sm:$0xff pattern:$0x73625140]
        %v5699 = vld.sshfl [vmem:[#allocation1 + $0x20] sm:$0xff pattern:$0x73625140]
        %5700 = vst [vmem:[#allocation1] ss:$4 sm:$0xff] %v5485
        %5701 = vst [vmem:[%s5554] ss:$4 sm:$0xff] %v5486
        %5702 = vst [vmem:[%s5556] ss:$4 sm:$0xff] %v5487
        %5703 = vst [vmem:[%s5558] ss:$4 sm:$0xff] %v5489
        %5704 = vst [vmem:[%s5560] ss:$4 sm:$0xff] %v5490
        %5705 = vst [vmem:[%s5562] ss:$4 sm:$0xff] %v5492
        %5706 = vst [vmem:[%s5564] ss:$4 sm:$0xff] %v5493
        %5707 = vst [vmem:[%s5566] ss:$4 sm:$0xff] %v5494
        %v5708 = vld.sshfl [vmem:[#allocation1] sm:$0xff pattern:$0x73625140]
        %v5709 = vld.sshfl [vmem:[#allocation1 + $0x20] sm:$0xff pattern:$0x73625140]
        %5710 = vst [vmem:[#allocation1] ss:$4 sm:$0xff] %v5497
        %5711 = vst [vmem:[%s5554] ss:$4 sm:$0xff] %v5498
        %5712 = vst [vmem:[%s5556] ss:$4 sm:$0xff] %v5499
        %5713 = vst [vmem:[%s5558] ss:$4 sm:$0xff] %v5500
        %5714 = vst [vmem:[%s5560] ss:$4 sm:$0xff] %v5501
        %5715 = vst [vmem:[%s5562] ss:$4 sm:$0xff] %v5502
        %5716 = vst [vmem:[%s5564] ss:$4 sm:$0xff] %v5505
        %5717 = vst [vmem:[%s5566] ss:$4 sm:$0xff] %v5506
        %v5718 = vld.sshfl [vmem:[#allocation1] sm:$0xff pattern:$0x73625140]
        %v5719 = vld.sshfl [vmem:[#allocation1 + $0x20] sm:$0xff pattern:$0x73625140]
        %5720 = vst [vmem:[#allocation1] ss:$4 sm:$0xff] %v5507
        %5721 = vst [vmem:[%s5554] ss:$4 sm:$0xff] %v5508
        %5722 = vst [vmem:[%s5556] ss:$4 sm:$0xff] %v5509
        %5723 = vst [vmem:[%s5558] ss:$4 sm:$0xff] %v5510
        %5724 = vst [vmem:[%s5560] ss:$4 sm:$0xff] %v5511
        %5725 = vst [vmem:[%s5562] ss:$4 sm:$0xff] %v5513
        %5726 = vst [vmem:[%s5564] ss:$4 sm:$0xff] %v5514
        %5727 = vst [vmem:[%s5566] ss:$4 sm:$0xff] %v5516
        %v5728 = vld.sshfl [vmem:[#allocation1] sm:$0xff pattern:$0x73625140]
        %v5729 = vld.sshfl [vmem:[#allocation1 + $0x20] sm:$0xff pattern:$0x73625140]
        %5730 = vst [vmem:[#allocation1] ss:$4 sm:$0xff] %v5517
        %5731 = vst [vmem:[%s5554] ss:$4 sm:$0xff] %v5518
        %5732 = vst [vmem:[%s5556] ss:$4 sm:$0xff] %v5521
        %5733 = vst [vmem:[%s5558] ss:$4 sm:$0xff] %v5522
        %5734 = vst [vmem:[%s5560] ss:$4 sm:$0xff] %v5523
        %5735 = vst [vmem:[%s5562] ss:$4 sm:$0xff] %v5524
        %5736 = vst [vmem:[%s5564] ss:$4 sm:$0xff] %v5525
        %5737 = vst [vmem:[%s5566] ss:$4 sm:$0xff] %v5526
        %v5738 = vld.sshfl [vmem:[#allocation1] sm:$0xff pattern:$0x73625140]
        %v5739 = vld.sshfl [vmem:[#allocation1 + $0x20] sm:$0xff pattern:$0x73625140]
        %5740 = vst [vmem:[#allocation1] ss:$4 sm:$0xff] %v5529
        %5741 = vst [vmem:[%s5554] ss:$4 sm:$0xff] %v5530
        %5742 = vst [vmem:[%s5556] ss:$4 sm:$0xff] %v5531
        %5743 = vst [vmem:[%s5558] ss:$4 sm:$0xff] %v5532
        %5744 = vst [vmem:[%s5560] ss:$4 sm:$0xff] %v5533
        %5745 = vst [vmem:[%s5562] ss:$4 sm:$0xff] %v5534
        %5746 = vst [vmem:[%s5564] ss:$4 sm:$0xff] %v5535
        %5747 = vst [vmem:[%s5566] ss:$4 sm:$0xff] %v5537
        %v5748 = vld.sshfl [vmem:[#allocation1] sm:$0xff pattern:$0x73625140]
        %v5749 = vld.sshfl [vmem:[#allocation1 + $0x20] sm:$0xff pattern:$0x73625140]
        %5750 = vst [vmem:[#allocation1] ss:$4 sm:$0xff] %v5538
        %5751 = vst [vmem:[%s5554] ss:$4 sm:$0xff] %v5540
        %5752 = vst [vmem:[%s5556] ss:$4 sm:$0xff] %v5541
        %5753 = vst [vmem:[%s5558] ss:$4 sm:$0xff] %v5542
        %5754 = vst [vmem:[%s5560] ss:$4 sm:$0xff] %v5545
        %5755 = vst [vmem:[%s5562] ss:$4 sm:$0xff] %v5546
        %5756 = vst [vmem:[%s5564] ss:$4 sm:$0xff] %v5547
        %5757 = vst [vmem:[%s5566] ss:$4 sm:$0xff] %v5548
        %v5758 = vld.sshfl [vmem:[#allocation1] sm:$0xff pattern:$0x73625140]
        %v5759 = vld.sshfl [vmem:[#allocation1 + $0x20] sm:$0xff pattern:$0x73625140]
        %5760 = vst [vmem:[#allocation1] ss:$4 sm:$0xff] %v5549
        %5761 = vst [vmem:[%s5554] ss:$4 sm:$0xff] %v5550
        %v5762 = vld.sshfl [vmem:[#allocation1] sm:$0xff pattern:$0x73625140]
        %v5763 = vsel %vm1276, %v5568, 0
        %v5765 = vsel %vm1276, %v5569, 0
        %v5767 = vsel %vm1276, %v5578, 0
        %v5769 = vsel %vm1276, %v5579, 0
        %v5771 = vsel %vm1276, %v5588, 0
        %v5773 = vsel %vm1276, %v5589, 0
        %v5775 = vsel %vm1276, %v5598, 0
        %v5777 = vsel %vm1276, %v5599, 0
        %v5779 = vsel %vm1276, %v5608, 0
        %v5781 = vsel %vm1276, %v5609, 0
        %v5783 = vsel %vm1276, %v5618, 0
        %v5785 = vsel %vm1276, %v5619, 0
        %v5787 = vsel %vm1276, %v5628, 0
        %v5789 = vsel %vm1276, %v5629, 0
        %v5791 = vsel %vm1276, %v5638, 0
        %v5793 = vsel %vm1276, %v5639, 0
        %v5795 = vsel %vm1276, %v5648, 0
        %v5797 = vsel %vm1276, %v5649, 0
        %v5799 = vsel %vm1276, %v5658, 0
        %v5801 = vsel %vm1276, %v5659, 0
        %v5803 = vsel %vm1276, %v5668, 0
        %v5805 = vsel %vm1276, %v5669, 0
        %v5807 = vsel %vm1276, %v5678, 0
        %v5809 = vsel %vm1276, %v5679, 0
        %v5811 = vsel %vm1276, %v5688, 0
        %v5813 = vsel %vm1276, %v5689, 0
        %v5815 = vsel %vm1276, %v5698, 0
        %v5817 = vsel %vm1276, %v5699, 0
        %v5819 = vsel %vm1276, %v5708, 0
        %v5821 = vsel %vm1276, %v5709, 0
        %v5823 = vsel %vm1276, %v5718, 0
        %v5825 = vsel %vm1276, %v5719, 0
        %v5827 = vsel %vm1276, %v5728, 0
        %v5829 = vsel %vm1276, %v5729, 0
        %v5831 = vsel %vm1276, %v5738, 0
        %v5833 = vsel %vm1276, %v5739, 0
        %v5835 = vsel %vm1276, %v5748, 0
        %v5837 = vsel %vm1276, %v5749, 0
        %v5839 = vsel %vm1276, %v5758, 0
        %v5841 = vsel %vm1276, %v5759, 0
        %v5843 = vsel %vm1276, %v5762, 0
        %v5846 = vsel %vm1359, %v5552, 0
        %5848 = vmatpush.msra.mxu0 0.0
        %5849 = vmatpush.msra.mxu0 0.0
        %5850 = vmatpush.msra.mxu0 0.0
        %5851 = vmatpush.msra.mxu0 0.0
        %5852 = vmatpush.msra.mxu0 0.0
        %5853 = vmatpush.msra.mxu0 0.0
        %5854 = vmatpush.msra.mxu0 0.0
        %5855 = vmatpush.msra.mxu0 0.0
        %5856 = vmatpush.msra.mxu0 0.0
        %5857 = vmatpush.msra.mxu0 0.0
        %5858 = vmatpush.msra.mxu0 0.0
        %5859 = vmatpush.msra.mxu0 0.0
        %5860 = vmatpush.msra.mxu0 0.0
        %5861 = vmatpush.msra.mxu0 0.0
        %5862 = vmatpush.msra.mxu0 0.0
        %5863 = vmatpush.msra.mxu0 %v5846
        %5864 = vmatmul.f32.gmra.mxu0 %v5763
        %v5865 = vpop.f32.mrf.mxu0
        %v5866 = vadd.f32 0.0, %v5865
        %5867 = vmatmul.f32.gmra.mxu0 %v5765
        %v5868 = vpop.f32.mrf.mxu0
        %v5869 = vadd.f32 0.0, %v5868
        %5870 = vmatmul.f32.gmra.mxu0 %v5767
        %v5871 = vpop.f32.mrf.mxu0
        %v5872 = vadd.f32 0.0, %v5871
        %5873 = vmatmul.f32.gmra.mxu0 %v5769
        %v5874 = vpop.f32.mrf.mxu0
        %v5875 = vadd.f32 0.0, %v5874
        %5876 = vmatmul.f32.gmra.mxu0 %v5771
        %v5877 = vpop.f32.mrf.mxu0
        %v5878 = vadd.f32 0.0, %v5877
        %5879 = vmatmul.f32.gmra.mxu0 %v5773
        %v5880 = vpop.f32.mrf.mxu0
        %v5881 = vadd.f32 0.0, %v5880
        %5882 = vmatmul.f32.gmra.mxu0 %v5775
        %v5883 = vpop.f32.mrf.mxu0
        %v5884 = vadd.f32 0.0, %v5883
        %5885 = vmatmul.f32.gmra.mxu0 %v5777
        %v5886 = vpop.f32.mrf.mxu0
        %v5887 = vadd.f32 0.0, %v5886
        %5888 = vmatmul.f32.gmra.mxu0 %v5779
        %v5889 = vpop.f32.mrf.mxu0
        %v5890 = vadd.f32 0.0, %v5889
        %5891 = vmatmul.f32.gmra.mxu0 %v5781
        %v5892 = vpop.f32.mrf.mxu0
        %v5893 = vadd.f32 0.0, %v5892
        %5894 = vmatmul.f32.gmra.mxu0 %v5783
        %v5895 = vpop.f32.mrf.mxu0
        %v5896 = vadd.f32 0.0, %v5895
        %5897 = vmatmul.f32.gmra.mxu0 %v5785
        %v5898 = vpop.f32.mrf.mxu0
        %v5899 = vadd.f32 0.0, %v5898
        %5900 = vmatmul.f32.gmra.mxu0 %v5787
        %v5901 = vpop.f32.mrf.mxu0
        %v5902 = vadd.f32 0.0, %v5901
        %5903 = vmatmul.f32.gmra.mxu0 %v5789
        %v5904 = vpop.f32.mrf.mxu0
        %v5905 = vadd.f32 0.0, %v5904
        %5906 = vmatmul.f32.gmra.mxu0 %v5791
        %v5907 = vpop.f32.mrf.mxu0
        %v5908 = vadd.f32 0.0, %v5907
        %5909 = vmatmul.f32.gmra.mxu0 %v5793
        %v5910 = vpop.f32.mrf.mxu0
        %v5911 = vadd.f32 0.0, %v5910
        %5912 = vmatmul.f32.gmra.mxu0 %v5795
        %v5913 = vpop.f32.mrf.mxu0
        %v5914 = vadd.f32 0.0, %v5913
        %5915 = vmatmul.f32.gmra.mxu0 %v5797
        %v5916 = vpop.f32.mrf.mxu0
        %v5917 = vadd.f32 0.0, %v5916
        %5918 = vmatmul.f32.gmra.mxu0 %v5799
        %v5919 = vpop.f32.mrf.mxu0
        %v5920 = vadd.f32 0.0, %v5919
        %5921 = vmatmul.f32.gmra.mxu0 %v5801
        %v5922 = vpop.f32.mrf.mxu0
        %v5923 = vadd.f32 0.0, %v5922
        %5924 = vmatmul.f32.gmra.mxu0 %v5803
        %v5925 = vpop.f32.mrf.mxu0
        %v5926 = vadd.f32 0.0, %v5925
        %5927 = vmatmul.f32.gmra.mxu0 %v5805
        %v5928 = vpop.f32.mrf.mxu0
        %v5929 = vadd.f32 0.0, %v5928
        %5930 = vmatmul.f32.gmra.mxu0 %v5807
        %v5931 = vpop.f32.mrf.mxu0
        %v5932 = vadd.f32 0.0, %v5931
        %5933 = vmatmul.f32.gmra.mxu0 %v5809
        %v5934 = vpop.f32.mrf.mxu0
        %v5935 = vadd.f32 0.0, %v5934
        %5936 = vmatmul.f32.gmra.mxu0 %v5811
        %v5937 = vpop.f32.mrf.mxu0
        %v5938 = vadd.f32 0.0, %v5937
        %5939 = vmatmul.f32.gmra.mxu0 %v5813
        %v5940 = vpop.f32.mrf.mxu0
        %v5941 = vadd.f32 0.0, %v5940
        %5942 = vmatmul.f32.gmra.mxu0 %v5815
        %v5943 = vpop.f32.mrf.mxu0
        %v5944 = vadd.f32 0.0, %v5943
        %5945 = vmatmul.f32.gmra.mxu0 %v5817
        %v5946 = vpop.f32.mrf.mxu0
        %v5947 = vadd.f32 0.0, %v5946
        %5948 = vmatmul.f32.gmra.mxu0 %v5819
        %v5949 = vpop.f32.mrf.mxu0
        %v5950 = vadd.f32 0.0, %v5949
        %5951 = vmatmul.f32.gmra.mxu0 %v5821
        %v5952 = vpop.f32.mrf.mxu0
        %v5953 = vadd.f32 0.0, %v5952
        %5954 = vmatmul.f32.gmra.mxu0 %v5823
        %v5955 = vpop.f32.mrf.mxu0
        %v5956 = vadd.f32 0.0, %v5955
        %5957 = vmatmul.f32.gmra.mxu0 %v5825
        %v5958 = vpop.f32.mrf.mxu0
        %v5959 = vadd.f32 0.0, %v5958
        %5960 = vmatmul.f32.gmra.mxu0 %v5827
        %v5961 = vpop.f32.mrf.mxu0
        %v5962 = vadd.f32 0.0, %v5961
        %5963 = vmatmul.f32.gmra.mxu0 %v5829
        %v5964 = vpop.f32.mrf.mxu0
        %v5965 = vadd.f32 0.0, %v5964
        %5966 = vmatmul.f32.gmra.mxu0 %v5831
        %v5967 = vpop.f32.mrf.mxu0
        %v5968 = vadd.f32 0.0, %v5967
        %5969 = vmatmul.f32.gmra.mxu0 %v5833
        %v5970 = vpop.f32.mrf.mxu0
        %v5971 = vadd.f32 0.0, %v5970
        %5972 = vmatmul.f32.gmra.mxu0 %v5835
        %v5973 = vpop.f32.mrf.mxu0
        %v5974 = vadd.f32 0.0, %v5973
        %5975 = vmatmul.f32.gmra.mxu0 %v5837
        %v5976 = vpop.f32.mrf.mxu0
        %v5977 = vadd.f32 0.0, %v5976
        %5978 = vmatmul.f32.gmra.mxu0 %v5839
        %v5979 = vpop.f32.mrf.mxu0
        %v5980 = vadd.f32 0.0, %v5979
        %5981 = vmatmul.f32.gmra.mxu0 %v5841
        %v5982 = vpop.f32.mrf.mxu0
        %v5983 = vadd.f32 0.0, %v5982
        %5984 = vmatmul.f32.gmra.mxu0 %v5843
        %v5985 = vpop.f32.mrf.mxu0
        %v5986 = vadd.f32 0.0, %v5985
        %5987 = vdwg.mxu0
        %v5988 = vadd.f32 %v5287, %v5866
        %v5989 = vadd.f32 %v5288, %v5869
        %v5990 = vadd.f32 %v5289, %v5872
        %v5991 = vadd.f32 %v5290, %v5875
        %v5992 = vadd.f32 %v5291, %v5878
        %v5993 = vadd.f32 %v5292, %v5881
        %v5994 = vadd.f32 %v5293, %v5884
        %v5995 = vadd.f32 %v5294, %v5887
        %v5996 = vadd.f32 %v5295, %v5890
        %v5997 = vadd.f32 %v5296, %v5893
        %v5998 = vadd.f32 %v5297, %v5896
        %v5999 = vadd.f32 %v5298, %v5899
        %v6000 = vadd.f32 %v5299, %v5902
        %v6001 = vadd.f32 %v5300, %v5905
        %v6002 = vadd.f32 %v5301, %v5908
        %v6003 = vadd.f32 %v5302, %v5911
        %v6004 = vadd.f32 %v5303, %v5914
        %v6005 = vadd.f32 %v5304, %v5917
        %v6006 = vadd.f32 %v5305, %v5920
        %v6007 = vadd.f32 %v5306, %v5923
        %v6008 = vadd.f32 %v5307, %v5926
        %v6009 = vadd.f32 %v5308, %v5929
        %v6010 = vadd.f32 %v5309, %v5932
        %v6011 = vadd.f32 %v5310, %v5935
        %v6012 = vadd.f32 %v5311, %v5938
        %v6013 = vadd.f32 %v5312, %v5941
        %v6014 = vadd.f32 %v5313, %v5944
        %v6015 = vadd.f32 %v5314, %v5947
        %v6016 = vadd.f32 %v5315, %v5950
        %v6017 = vadd.f32 %v5316, %v5953
        %v6018 = vadd.f32 %v5317, %v5956
        %v6019 = vadd.f32 %v5318, %v5959
        %v6020 = vadd.f32 %v5319, %v5962
        %v6021 = vadd.f32 %v5320, %v5965
        %v6022 = vadd.f32 %v5321, %v5968
        %v6023 = vadd.f32 %v5322, %v5971
        %v6024 = vadd.f32 %v5323, %v5974
        %v6025 = vadd.f32 %v5324, %v5977
        %v6026 = vadd.f32 %v5325, %v5980
        %v6027 = vadd.f32 %v5326, %v5983
        %v6028 = vadd.f32 %v5327, %v5986
        %v6029 = vld [vmem:[%s2] sm:$0x1]
        %v6031 = vperm.slane %v6029, 0
        %v6033 = vadd.f32 %v5988, %v6031
        %v6034 = vadd.f32 %v5989, %v6031
        %v6035 = vadd.f32 %v5990, %v6031
        %v6036 = vadd.f32 %v5991, %v6031
        %v6037 = vadd.f32 %v5992, %v6031
        %v6038 = vadd.f32 %v5993, %v6031
        %v6039 = vadd.f32 %v5994, %v6031
        %v6040 = vadd.f32 %v5995, %v6031
        %v6041 = vadd.f32 %v5996, %v6031
        %v6042 = vadd.f32 %v5997, %v6031
        %v6043 = vadd.f32 %v5998, %v6031
        %v6044 = vadd.f32 %v5999, %v6031
        %v6045 = vadd.f32 %v6000, %v6031
        %v6046 = vadd.f32 %v6001, %v6031
        %v6047 = vadd.f32 %v6002, %v6031
        %v6048 = vadd.f32 %v6003, %v6031
        %v6049 = vadd.f32 %v6004, %v6031
        %v6050 = vadd.f32 %v6005, %v6031
        %v6051 = vadd.f32 %v6006, %v6031
        %v6052 = vadd.f32 %v6007, %v6031
        %v6053 = vadd.f32 %v6008, %v6031
        %v6054 = vadd.f32 %v6009, %v6031
        %v6055 = vadd.f32 %v6010, %v6031
        %v6056 = vadd.f32 %v6011, %v6031
        %v6057 = vadd.f32 %v6012, %v6031
        %v6058 = vadd.f32 %v6013, %v6031
        %v6059 = vadd.f32 %v6014, %v6031
        %v6060 = vadd.f32 %v6015, %v6031
        %v6061 = vadd.f32 %v6016, %v6031
        %v6062 = vadd.f32 %v6017, %v6031
        %v6063 = vadd.f32 %v6018, %v6031
        %v6064 = vadd.f32 %v6019, %v6031
        %v6065 = vadd.f32 %v6020, %v6031
        %v6066 = vadd.f32 %v6021, %v6031
        %v6067 = vadd.f32 %v6022, %v6031
        %v6068 = vadd.f32 %v6023, %v6031
        %v6069 = vadd.f32 %v6024, %v6031
        %v6070 = vadd.f32 %v6025, %v6031
        %v6071 = vadd.f32 %v6026, %v6031
        %v6072 = vadd.f32 %v6027, %v6031
        %v6073 = vadd.f32 %v6028, %v6031
        %vm6074 = vcmp.gt.f32.partialorder %v6033, 0.0
        %vm6075 = vcmp.gt.f32.partialorder %v6034, 0.0
        %vm6076 = vcmp.gt.f32.partialorder %v6035, 0.0
        %vm6077 = vcmp.gt.f32.partialorder %v6036, 0.0
        %vm6078 = vcmp.gt.f32.partialorder %v6037, 0.0
        %vm6079 = vcmp.gt.f32.partialorder %v6038, 0.0
        %vm6080 = vcmp.gt.f32.partialorder %v6039, 0.0
        %vm6081 = vcmp.gt.f32.partialorder %v6040, 0.0
        %vm6082 = vcmp.gt.f32.partialorder %v6041, 0.0
        %vm6083 = vcmp.gt.f32.partialorder %v6042, 0.0
        %vm6084 = vcmp.gt.f32.partialorder %v6043, 0.0
        %vm6085 = vcmp.gt.f32.partialorder %v6044, 0.0
        %vm6086 = vcmp.gt.f32.partialorder %v6045, 0.0
        %vm6087 = vcmp.gt.f32.partialorder %v6046, 0.0
        %vm6088 = vcmp.gt.f32.partialorder %v6047, 0.0
        %vm6089 = vcmp.gt.f32.partialorder %v6048, 0.0
        %vm6090 = vcmp.gt.f32.partialorder %v6049, 0.0
        %vm6091 = vcmp.gt.f32.partialorder %v6050, 0.0
        %vm6092 = vcmp.gt.f32.partialorder %v6051, 0.0
        %vm6093 = vcmp.gt.f32.partialorder %v6052, 0.0
        %vm6094 = vcmp.gt.f32.partialorder %v6053, 0.0
        %vm6095 = vcmp.gt.f32.partialorder %v6054, 0.0
        %vm6096 = vcmp.gt.f32.partialorder %v6055, 0.0
        %vm6097 = vcmp.gt.f32.partialorder %v6056, 0.0
        %vm6098 = vcmp.gt.f32.partialorder %v6057, 0.0
        %vm6099 = vcmp.gt.f32.partialorder %v6058, 0.0
        %vm6100 = vcmp.gt.f32.partialorder %v6059, 0.0
        %vm6101 = vcmp.gt.f32.partialorder %v6060, 0.0
        %vm6102 = vcmp.gt.f32.partialorder %v6061, 0.0
        %vm6103 = vcmp.gt.f32.partialorder %v6062, 0.0
        %vm6104 = vcmp.gt.f32.partialorder %v6063, 0.0
        %vm6105 = vcmp.gt.f32.partialorder %v6064, 0.0
        %vm6106 = vcmp.gt.f32.partialorder %v6065, 0.0
        %vm6107 = vcmp.gt.f32.partialorder %v6066, 0.0
        %vm6108 = vcmp.gt.f32.partialorder %v6067, 0.0
        %vm6109 = vcmp.gt.f32.partialorder %v6068, 0.0
        %vm6110 = vcmp.gt.f32.partialorder %v6069, 0.0
        %vm6111 = vcmp.gt.f32.partialorder %v6070, 0.0
        %vm6112 = vcmp.gt.f32.partialorder %v6071, 0.0
        %vm6113 = vcmp.gt.f32.partialorder %v6072, 0.0
        %vm6114 = vcmp.gt.f32.partialorder %v6073, 0.0
        %v6115 = vmul.f32 %v6033, 0.01
        %v6116 = vmul.f32 %v6034, 0.01
        %v6117 = vmul.f32 %v6035, 0.01
        %v6118 = vmul.f32 %v6036, 0.01
        %v6119 = vmul.f32 %v6037, 0.01
        %v6120 = vmul.f32 %v6038, 0.01
        %v6121 = vmul.f32 %v6039, 0.01
        %v6122 = vmul.f32 %v6040, 0.01
        %v6123 = vmul.f32 %v6041, 0.01
        %v6124 = vmul.f32 %v6042, 0.01
        %v6125 = vmul.f32 %v6043, 0.01
        %v6126 = vmul.f32 %v6044, 0.01
        %v6127 = vmul.f32 %v6045, 0.01
        %v6128 = vmul.f32 %v6046, 0.01
        %v6129 = vmul.f32 %v6047, 0.01
        %v6130 = vmul.f32 %v6048, 0.01
        %v6131 = vmul.f32 %v6049, 0.01
        %v6132 = vmul.f32 %v6050, 0.01
        %v6133 = vmul.f32 %v6051, 0.01
        %v6134 = vmul.f32 %v6052, 0.01
        %v6135 = vmul.f32 %v6053, 0.01
        %v6136 = vmul.f32 %v6054, 0.01
        %v6137 = vmul.f32 %v6055, 0.01
        %v6138 = vmul.f32 %v6056, 0.01
        %v6139 = vmul.f32 %v6057, 0.01
        %v6140 = vmul.f32 %v6058, 0.01
        %v6141 = vmul.f32 %v6059, 0.01
        %v6142 = vmul.f32 %v6060, 0.01
        %v6143 = vmul.f32 %v6061, 0.01
        %v6144 = vmul.f32 %v6062, 0.01
        %v6145 = vmul.f32 %v6063, 0.01
        %v6146 = vmul.f32 %v6064, 0.01
        %v6147 = vmul.f32 %v6065, 0.01
        %v6148 = vmul.f32 %v6066, 0.01
        %v6149 = vmul.f32 %v6067, 0.01
        %v6150 = vmul.f32 %v6068, 0.01
        %v6151 = vmul.f32 %v6069, 0.01
        %v6152 = vmul.f32 %v6070, 0.01
        %v6153 = vmul.f32 %v6071, 0.01
        %v6154 = vmul.f32 %v6072, 0.01
        %v6155 = vmul.f32 %v6073, 0.01
        %v6156 = vsel %vm6074, %v6033, %v6115
        %v6157 = vsel %vm6075, %v6034, %v6116
        %v6158 = vsel %vm6076, %v6035, %v6117
        %v6159 = vsel %vm6077, %v6036, %v6118
        %v6160 = vsel %vm6078, %v6037, %v6119
        %v6161 = vsel %vm6079, %v6038, %v6120
        %v6162 = vsel %vm6080, %v6039, %v6121
        %v6163 = vsel %vm6081, %v6040, %v6122
        %v6164 = vsel %vm6082, %v6041, %v6123
        %v6165 = vsel %vm6083, %v6042, %v6124
        %v6166 = vsel %vm6084, %v6043, %v6125
        %v6167 = vsel %vm6085, %v6044, %v6126
        %v6168 = vsel %vm6086, %v6045, %v6127
        %v6169 = vsel %vm6087, %v6046, %v6128
        %v6170 = vsel %vm6088, %v6047, %v6129
        %v6171 = vsel %vm6089, %v6048, %v6130
        %v6172 = vsel %vm6090, %v6049, %v6131
        %v6173 = vsel %vm6091, %v6050, %v6132
        %v6174 = vsel %vm6092, %v6051, %v6133
        %v6175 = vsel %vm6093, %v6052, %v6134
        %v6176 = vsel %vm6094, %v6053, %v6135
        %v6177 = vsel %vm6095, %v6054, %v6136
        %v6178 = vsel %vm6096, %v6055, %v6137
        %v6179 = vsel %vm6097, %v6056, %v6138
        %v6180 = vsel %vm6098, %v6057, %v6139
        %v6181 = vsel %vm6099, %v6058, %v6140
        %v6182 = vsel %vm6100, %v6059, %v6141
        %v6183 = vsel %vm6101, %v6060, %v6142
        %v6184 = vsel %vm6102, %v6061, %v6143
        %v6185 = vsel %vm6103, %v6062, %v6144
        %v6186 = vsel %vm6104, %v6063, %v6145
        %v6187 = vsel %vm6105, %v6064, %v6146
        %v6188 = vsel %vm6106, %v6065, %v6147
        %v6189 = vsel %vm6107, %v6066, %v6148
        %v6190 = vsel %vm6108, %v6067, %v6149
        %v6191 = vsel %vm6109, %v6068, %v6150
        %v6192 = vsel %vm6110, %v6069, %v6151
        %v6193 = vsel %vm6111, %v6070, %v6152
        %v6194 = vsel %vm6112, %v6071, %v6153
        %v6195 = vsel %vm6113, %v6072, %v6154
        %v6196 = vsel %vm6114, %v6073, %v6155
        %v6238 = vrot.slane %v6156, 2
        %v6239 = vrot.slane %v6156, 4
        %v6240 = vrot.slane %v6156, 6
        %v6241 = vrot.slane %v6157, 2
        %v6242 = vrot.slane %v6157, 4
        %v6243 = vrot.slane %v6157, 6
        %v6244 = vrot.slane %v6158, 2
        %v6245 = vrot.slane %v6158, 4
        %v6246 = vrot.slane %v6158, 6
        %v6247 = vrot.slane %v6159, 2
        %v6248 = vrot.slane %v6159, 4
        %v6249 = vrot.slane %v6159, 6
        %v6250 = vrot.slane %v6160, 2
        %v6251 = vrot.slane %v6160, 4
        %v6252 = vrot.slane %v6160, 6
        %v6253 = vrot.slane %v6161, 2
        %v6254 = vrot.slane %v6161, 4
        %v6255 = vrot.slane %v6161, 6
        %v6256 = vrot.slane %v6162, 2
        %v6257 = vrot.slane %v6162, 4
        %v6258 = vrot.slane %v6162, 6
        %v6259 = vrot.slane %v6163, 2
        %v6260 = vrot.slane %v6163, 4
        %v6261 = vrot.slane %v6163, 6
        %v6262 = vrot.slane %v6164, 2
        %v6263 = vrot.slane %v6164, 4
        %v6264 = vrot.slane %v6164, 6
        %v6265 = vrot.slane %v6165, 2
        %v6266 = vrot.slane %v6165, 4
        %v6267 = vrot.slane %v6165, 6
        %v6268 = vrot.slane %v6166, 2
        %v6269 = vrot.slane %v6166, 4
        %v6270 = vrot.slane %v6166, 6
        %v6271 = vrot.slane %v6167, 2
        %v6272 = vrot.slane %v6167, 4
        %v6273 = vrot.slane %v6167, 6
        %v6274 = vrot.slane %v6168, 2
        %v6275 = vrot.slane %v6168, 4
        %v6276 = vrot.slane %v6168, 6
        %v6277 = vrot.slane %v6169, 2
        %v6278 = vrot.slane %v6169, 4
        %v6279 = vrot.slane %v6169, 6
        %v6280 = vrot.slane %v6170, 2
        %v6281 = vrot.slane %v6170, 4
        %v6282 = vrot.slane %v6170, 6
        %v6283 = vrot.slane %v6171, 2
        %v6284 = vrot.slane %v6171, 4
        %v6285 = vrot.slane %v6171, 6
        %v6286 = vrot.slane %v6172, 2
        %v6287 = vrot.slane %v6172, 4
        %v6288 = vrot.slane %v6172, 6
        %v6289 = vrot.slane %v6173, 2
        %v6290 = vrot.slane %v6173, 4
        %v6291 = vrot.slane %v6173, 6
        %v6292 = vrot.slane %v6174, 2
        %v6293 = vrot.slane %v6174, 4
        %v6294 = vrot.slane %v6174, 6
        %v6295 = vrot.slane %v6175, 2
        %v6296 = vrot.slane %v6175, 4
        %v6297 = vrot.slane %v6175, 6
        %v6298 = vrot.slane %v6176, 2
        %v6299 = vrot.slane %v6176, 4
        %v6300 = vrot.slane %v6176, 6
        %v6301 = vrot.slane %v6177, 2
        %v6302 = vrot.slane %v6177, 4
        %v6303 = vrot.slane %v6177, 6
        %v6304 = vrot.slane %v6178, 2
        %v6305 = vrot.slane %v6178, 4
        %v6306 = vrot.slane %v6178, 6
        %v6307 = vrot.slane %v6179, 2
        %v6308 = vrot.slane %v6179, 4
        %v6309 = vrot.slane %v6179, 6
        %v6310 = vrot.slane %v6180, 2
        %v6311 = vrot.slane %v6180, 4
        %v6312 = vrot.slane %v6180, 6
        %v6313 = vrot.slane %v6181, 2
        %v6314 = vrot.slane %v6181, 4
        %v6315 = vrot.slane %v6181, 6
        %v6316 = vrot.slane %v6182, 2
        %v6317 = vrot.slane %v6182, 4
        %v6318 = vrot.slane %v6182, 6
        %v6319 = vrot.slane %v6183, 2
        %v6320 = vrot.slane %v6183, 4
        %v6321 = vrot.slane %v6183, 6
        %v6322 = vrot.slane %v6184, 2
        %v6323 = vrot.slane %v6184, 4
        %v6324 = vrot.slane %v6184, 6
        %v6325 = vrot.slane %v6185, 2
        %v6326 = vrot.slane %v6185, 4
        %v6327 = vrot.slane %v6185, 6
        %v6328 = vrot.slane %v6186, 2
        %v6329 = vrot.slane %v6186, 4
        %v6330 = vrot.slane %v6186, 6
        %v6331 = vrot.slane %v6187, 2
        %v6332 = vrot.slane %v6187, 4
        %v6333 = vrot.slane %v6187, 6
        %v6334 = vrot.slane %v6188, 2
        %v6335 = vrot.slane %v6188, 4
        %v6336 = vrot.slane %v6188, 6
        %v6337 = vrot.slane %v6189, 2
        %v6338 = vrot.slane %v6189, 4
        %v6339 = vrot.slane %v6189, 6
        %v6340 = vrot.slane %v6190, 2
        %v6341 = vrot.slane %v6190, 4
        %v6342 = vrot.slane %v6190, 6
        %v6343 = vrot.slane %v6191, 2
        %v6344 = vrot.slane %v6191, 4
        %v6345 = vrot.slane %v6191, 6
        %v6346 = vrot.slane %v6192, 2
        %v6347 = vrot.slane %v6192, 4
        %v6348 = vrot.slane %v6192, 6
        %v6349 = vrot.slane %v6193, 2
        %v6350 = vrot.slane %v6193, 4
        %v6351 = vrot.slane %v6193, 6
        %v6352 = vrot.slane %v6194, 2
        %v6353 = vrot.slane %v6194, 4
        %v6354 = vrot.slane %v6194, 6
        %v6355 = vrot.slane %v6195, 2
        %v6356 = vrot.slane %v6195, 4
        %v6357 = vrot.slane %v6195, 6
        %v6358 = vrot.slane %v6196, 2
        %v6359 = vstv %s309
        %v6360 = vadd.s32 %v6359, 1
        %v6361 = vadd.s32 %v6359, 2
        %v6362 = vadd.s32 %v6359, 3
        %v6363 = vadd.s32 %v6359, 4
        %v6364 = vadd.s32 %v6359, 5
        %v6365 = vadd.s32 %v6359, 6
        %v6366 = vadd.s32 %v6359, 7
        %v6367 = vadd.s32 %v6359, 8
        %v6368 = vadd.s32 %v6359, 9
        %v6369 = vadd.s32 %v6359, 10
        %v6370 = vadd.s32 %v6359, 11
        %v6371 = vadd.s32 %v6359, 12
        %v6372 = vadd.s32 %v6359, 13
        %v6373 = vadd.s32 %v6359, 14
        %v6374 = vadd.s32 %v6359, 15
        %v6375 = vadd.s32 %v6359, 16
        %v6376 = vadd.s32 %v6359, 17
        %v6377 = vlaneseq
        %v6378 = vshrl.u32 %v6377, 7
        %v6379 = vadd.s32 %v6378, 8
        %v6380 = vadd.s32 %v6378, 16
        %vm6381 = vcmp.ge.s32.totalorder %v6359, 2
        %vm6382 = vcmp.ge.s32.totalorder %v6360, 2
        %vm6383 = vcmp.ge.s32.totalorder %v6361, 2
        %vm6384 = vcmp.ge.s32.totalorder %v6362, 2
        %vm6385 = vcmp.ge.s32.totalorder %v6363, 2
        %vm6386 = vcmp.ge.s32.totalorder %v6364, 2
        %vm6387 = vcmp.ge.s32.totalorder %v6365, 2
        %vm6388 = vcmp.ge.s32.totalorder %v6366, 2
        %vm6389 = vcmp.ge.s32.totalorder %v6367, 2
        %vm6390 = vcmp.ge.s32.totalorder %v6368, 2
        %vm6391 = vcmp.ge.s32.totalorder %v6369, 2
        %vm6392 = vcmp.ge.s32.totalorder %v6370, 2
        %vm6393 = vcmp.ge.s32.totalorder %v6371, 2
        %vm6394 = vcmp.ge.s32.totalorder %v6372, 2
        %vm6395 = vcmp.ge.s32.totalorder %v6373, 2
        %vm6396 = vcmp.ge.s32.totalorder %v6374, 2
        %vm6397 = vcmp.ge.s32.totalorder %v6375, 2
        %vm6398 = vcmp.ge.s32.totalorder %v6376, 2
        %vm6399 = vcmp.le.s32.totalorder %v6359, 15
        %vm6400 = vcmp.le.s32.totalorder %v6360, 15
        %vm6401 = vcmp.le.s32.totalorder %v6361, 15
        %vm6402 = vcmp.le.s32.totalorder %v6362, 15
        %vm6403 = vcmp.le.s32.totalorder %v6363, 15
        %vm6404 = vcmp.le.s32.totalorder %v6364, 15
        %vm6405 = vcmp.le.s32.totalorder %v6365, 15
        %vm6406 = vcmp.le.s32.totalorder %v6366, 15
        %vm6407 = vcmp.le.s32.totalorder %v6367, 15
        %vm6408 = vcmp.le.s32.totalorder %v6368, 15
        %vm6409 = vcmp.le.s32.totalorder %v6369, 15
        %vm6410 = vcmp.le.s32.totalorder %v6370, 15
        %vm6411 = vcmp.le.s32.totalorder %v6371, 15
        %vm6412 = vcmp.le.s32.totalorder %v6372, 15
        %vm6413 = vcmp.le.s32.totalorder %v6373, 15
        %vm6414 = vcmp.le.s32.totalorder %v6374, 15
        %vm6415 = vcmp.le.s32.totalorder %v6375, 15
        %vm6416 = vcmp.le.s32.totalorder %v6376, 15
        %vm6417 = vmand %vm6381, %vm6399
        %vm6418 = vmand %vm6382, %vm6400
        %vm6419 = vmand %vm6383, %vm6401
        %vm6420 = vmand %vm6384, %vm6402
        %vm6421 = vmand %vm6385, %vm6403
        %vm6422 = vmand %vm6386, %vm6404
        %vm6423 = vmand %vm6387, %vm6405
        %vm6424 = vmand %vm6388, %vm6406
        %vm6425 = vmand %vm6389, %vm6407
        %vm6426 = vmand %vm6390, %vm6408
        %vm6427 = vmand %vm6391, %vm6409
        %vm6428 = vmand %vm6392, %vm6410
        %vm6429 = vmand %vm6393, %vm6411
        %vm6430 = vmand %vm6394, %vm6412
        %vm6431 = vmand %vm6395, %vm6413
        %vm6432 = vmand %vm6396, %vm6414
        %vm6433 = vmand %vm6397, %vm6415
        %vm6434 = vmand %vm6398, %vm6416
        %vm6435 = vcmp.ge.s32.totalorder %v6378, 2
        %vm6436 = vcmp.ge.s32.totalorder %v6379, 2
        %vm6437 = vcmp.ge.s32.totalorder %v6380, 2
        %vm6438 = vmand %vm6417, %vm6435
        %vm6439 = vmand %vm6417, %vm6436
        %vm6440 = vmand %vm6417, %vm6437
        %vm6441 = vmand %vm6418, %vm6435
        %vm6442 = vmand %vm6418, %vm6436
        %vm6443 = vmand %vm6418, %vm6437
        %vm6444 = vmand %vm6419, %vm6435
        %vm6445 = vmand %vm6419, %vm6436
        %vm6446 = vmand %vm6419, %vm6437
        %vm6447 = vmand %vm6420, %vm6435
        %vm6448 = vmand %vm6420, %vm6436
        %vm6449 = vmand %vm6420, %vm6437
        %vm6450 = vmand %vm6421, %vm6435
        %vm6451 = vmand %vm6421, %vm6436
        %vm6452 = vmand %vm6421, %vm6437
        %vm6453 = vmand %vm6422, %vm6435
        %vm6454 = vmand %vm6422, %vm6436
        %vm6455 = vmand %vm6422, %vm6437
        %vm6456 = vmand %vm6423, %vm6435
        %vm6457 = vmand %vm6423, %vm6436
        %vm6458 = vmand %vm6423, %vm6437
        %vm6459 = vmand %vm6424, %vm6435
        %vm6460 = vmand %vm6424, %vm6436
        %vm6461 = vmand %vm6424, %vm6437
        %vm6462 = vmand %vm6425, %vm6435
        %vm6463 = vmand %vm6425, %vm6436
        %vm6464 = vmand %vm6425, %vm6437
        %vm6465 = vmand %vm6426, %vm6435
        %vm6466 = vmand %vm6426, %vm6436
        %vm6467 = vmand %vm6426, %vm6437
        %vm6468 = vmand %vm6427, %vm6435
        %vm6469 = vmand %vm6427, %vm6436
        %vm6470 = vmand %vm6427, %vm6437
        %vm6471 = vmand %vm6428, %vm6435
        %vm6472 = vmand %vm6428, %vm6436
        %vm6473 = vmand %vm6428, %vm6437
        %vm6474 = vmand %vm6429, %vm6435
        %vm6475 = vmand %vm6429, %vm6436
        %vm6476 = vmand %vm6429, %vm6437
        %vm6477 = vmand %vm6430, %vm6435
        %vm6478 = vmand %vm6430, %vm6436
        %vm6479 = vmand %vm6430, %vm6437
        %vm6480 = vmand %vm6431, %vm6435
        %vm6481 = vmand %vm6431, %vm6436
        %vm6482 = vmand %vm6431, %vm6437
        %vm6483 = vmand %vm6432, %vm6435
        %vm6484 = vmand %vm6432, %vm6436
        %vm6485 = vmand %vm6432, %vm6437
        %vm6486 = vmand %vm6433, %vm6435
        %vm6487 = vmand %vm6433, %vm6436
        %vm6488 = vmand %vm6433, %vm6437
        %vm6489 = vmand %vm6434, %vm6435
        %vm6490 = vmand %vm6434, %vm6436
        %vm6491 = vmand %vm6434, %vm6437
        %vm6492 = vcmp.le.s32.totalorder %v6378, 15
        %vm6493 = vcmp.le.s32.totalorder %v6379, 15
        %vm6494 = vcmp.le.s32.totalorder %v6380, 15
        %vm6495 = vmand %vm6438, %vm6492
        %vm6496 = vmand %vm6439, %vm6493
        %vm6497 = vmand %vm6440, %vm6494
        %vm6498 = vmand %vm6441, %vm6492
        %vm6499 = vmand %vm6442, %vm6493
        %vm6500 = vmand %vm6443, %vm6494
        %vm6501 = vmand %vm6444, %vm6492
        %vm6502 = vmand %vm6445, %vm6493
        %vm6503 = vmand %vm6446, %vm6494
        %vm6504 = vmand %vm6447, %vm6492
        %vm6505 = vmand %vm6448, %vm6493
        %vm6506 = vmand %vm6449, %vm6494
        %vm6507 = vmand %vm6450, %vm6492
        %vm6508 = vmand %vm6451, %vm6493
        %vm6509 = vmand %vm6452, %vm6494
        %vm6510 = vmand %vm6453, %vm6492
        %vm6511 = vmand %vm6454, %vm6493
        %vm6512 = vmand %vm6455, %vm6494
        %vm6513 = vmand %vm6456, %vm6492
        %vm6514 = vmand %vm6457, %vm6493
        %vm6515 = vmand %vm6458, %vm6494
        %vm6516 = vmand %vm6459, %vm6492
        %vm6517 = vmand %vm6460, %vm6493
        %vm6518 = vmand %vm6461, %vm6494
        %vm6519 = vmand %vm6462, %vm6492
        %vm6520 = vmand %vm6463, %vm6493
        %vm6521 = vmand %vm6464, %vm6494
        %vm6522 = vmand %vm6465, %vm6492
        %vm6523 = vmand %vm6466, %vm6493
        %vm6524 = vmand %vm6467, %vm6494
        %vm6525 = vmand %vm6468, %vm6492
        %vm6526 = vmand %vm6469, %vm6493
        %vm6527 = vmand %vm6470, %vm6494
        %vm6528 = vmand %vm6471, %vm6492
        %vm6529 = vmand %vm6472, %vm6493
        %vm6530 = vmand %vm6473, %vm6494
        %vm6531 = vmand %vm6474, %vm6492
        %vm6532 = vmand %vm6475, %vm6493
        %vm6533 = vmand %vm6476, %vm6494
        %vm6534 = vmand %vm6477, %vm6492
        %vm6535 = vmand %vm6478, %vm6493
        %vm6536 = vmand %vm6479, %vm6494
        %vm6537 = vmand %vm6480, %vm6492
        %vm6538 = vmand %vm6481, %vm6493
        %vm6539 = vmand %vm6482, %vm6494
        %vm6540 = vmand %vm6483, %vm6492
        %vm6541 = vmand %vm6484, %vm6493
        %vm6542 = vmand %vm6485, %vm6494
        %vm6543 = vmand %vm6486, %vm6492
        %vm6544 = vmand %vm6487, %vm6493
        %vm6545 = vmand %vm6488, %vm6494
        %vm6546 = vmand %vm6489, %vm6492
        %vm6547 = vmand %vm6490, %vm6493
        %vm6548 = vmand %vm6491, %vm6494
        %v6549 = vsel %vm6495, 1, 0
        %v6550 = vsel %vm6496, 1, 0
        %v6551 = vsel %vm6497, 1, 0
        %v6552 = vsel %vm6498, 1, 0
        %v6553 = vsel %vm6499, 1, 0
        %v6554 = vsel %vm6500, 1, 0
        %v6555 = vsel %vm6501, 1, 0
        %v6556 = vsel %vm6502, 1, 0
        %v6557 = vsel %vm6503, 1, 0
        %v6558 = vsel %vm6504, 1, 0
        %v6559 = vsel %vm6505, 1, 0
        %v6560 = vsel %vm6506, 1, 0
        %v6561 = vsel %vm6507, 1, 0
        %v6562 = vsel %vm6508, 1, 0
        %v6563 = vsel %vm6509, 1, 0
        %v6564 = vsel %vm6510, 1, 0
        %v6565 = vsel %vm6511, 1, 0
        %v6566 = vsel %vm6512, 1, 0
        %v6567 = vsel %vm6513, 1, 0
        %v6568 = vsel %vm6514, 1, 0
        %v6569 = vsel %vm6515, 1, 0
        %v6570 = vsel %vm6516, 1, 0
        %v6571 = vsel %vm6517, 1, 0
        %v6572 = vsel %vm6518, 1, 0
        %v6573 = vsel %vm6519, 1, 0
        %v6574 = vsel %vm6520, 1, 0
        %v6575 = vsel %vm6521, 1, 0
        %v6576 = vsel %vm6522, 1, 0
        %v6577 = vsel %vm6523, 1, 0
        %v6578 = vsel %vm6524, 1, 0
        %v6579 = vsel %vm6525, 1, 0
        %v6580 = vsel %vm6526, 1, 0
        %v6581 = vsel %vm6527, 1, 0
        %v6582 = vsel %vm6528, 1, 0
        %v6583 = vsel %vm6529, 1, 0
        %v6584 = vsel %vm6530, 1, 0
        %v6585 = vsel %vm6531, 1, 0
        %v6586 = vsel %vm6532, 1, 0
        %v6587 = vsel %vm6533, 1, 0
        %v6588 = vsel %vm6534, 1, 0
        %v6589 = vsel %vm6535, 1, 0
        %v6590 = vsel %vm6536, 1, 0
        %v6591 = vsel %vm6537, 1, 0
        %v6592 = vsel %vm6538, 1, 0
        %v6593 = vsel %vm6539, 1, 0
        %v6594 = vsel %vm6540, 1, 0
        %v6595 = vsel %vm6541, 1, 0
        %v6596 = vsel %vm6542, 1, 0
        %v6597 = vsel %vm6543, 1, 0
        %v6598 = vsel %vm6544, 1, 0
        %v6599 = vsel %vm6545, 1, 0
        %v6600 = vsel %vm6546, 1, 0
        %v6601 = vsel %vm6547, 1, 0
        %v6602 = vsel %vm6548, 1, 0
        %vm6603 = vcmp.eq.s32.totalorder %v6549, 1
        %vm6604 = vcmp.eq.s32.totalorder %v6550, 1
        %vm6605 = vcmp.eq.s32.totalorder %v6551, 1
        %vm6606 = vcmp.eq.s32.totalorder %v6552, 1
        %vm6607 = vcmp.eq.s32.totalorder %v6553, 1
        %vm6608 = vcmp.eq.s32.totalorder %v6554, 1
        %vm6609 = vcmp.eq.s32.totalorder %v6555, 1
        %vm6610 = vcmp.eq.s32.totalorder %v6556, 1
        %vm6611 = vcmp.eq.s32.totalorder %v6557, 1
        %vm6612 = vcmp.eq.s32.totalorder %v6558, 1
        %vm6613 = vcmp.eq.s32.totalorder %v6559, 1
        %vm6614 = vcmp.eq.s32.totalorder %v6560, 1
        %vm6615 = vcmp.eq.s32.totalorder %v6561, 1
        %vm6616 = vcmp.eq.s32.totalorder %v6562, 1
        %vm6617 = vcmp.eq.s32.totalorder %v6563, 1
        %vm6618 = vcmp.eq.s32.totalorder %v6564, 1
        %vm6619 = vcmp.eq.s32.totalorder %v6565, 1
        %vm6620 = vcmp.eq.s32.totalorder %v6566, 1
        %vm6621 = vcmp.eq.s32.totalorder %v6567, 1
        %vm6622 = vcmp.eq.s32.totalorder %v6568, 1
        %vm6623 = vcmp.eq.s32.totalorder %v6569, 1
        %vm6624 = vcmp.eq.s32.totalorder %v6570, 1
        %vm6625 = vcmp.eq.s32.totalorder %v6571, 1
        %vm6626 = vcmp.eq.s32.totalorder %v6572, 1
        %vm6627 = vcmp.eq.s32.totalorder %v6573, 1
        %vm6628 = vcmp.eq.s32.totalorder %v6574, 1
        %vm6629 = vcmp.eq.s32.totalorder %v6575, 1
        %vm6630 = vcmp.eq.s32.totalorder %v6576, 1
        %vm6631 = vcmp.eq.s32.totalorder %v6577, 1
        %vm6632 = vcmp.eq.s32.totalorder %v6578, 1
        %vm6633 = vcmp.eq.s32.totalorder %v6579, 1
        %vm6634 = vcmp.eq.s32.totalorder %v6580, 1
        %vm6635 = vcmp.eq.s32.totalorder %v6581, 1
        %vm6636 = vcmp.eq.s32.totalorder %v6582, 1
        %vm6637 = vcmp.eq.s32.totalorder %v6583, 1
        %vm6638 = vcmp.eq.s32.totalorder %v6584, 1
        %vm6639 = vcmp.eq.s32.totalorder %v6585, 1
        %vm6640 = vcmp.eq.s32.totalorder %v6586, 1
        %vm6641 = vcmp.eq.s32.totalorder %v6587, 1
        %vm6642 = vcmp.eq.s32.totalorder %v6588, 1
        %vm6643 = vcmp.eq.s32.totalorder %v6589, 1
        %vm6644 = vcmp.eq.s32.totalorder %v6590, 1
        %vm6645 = vcmp.eq.s32.totalorder %v6591, 1
        %vm6646 = vcmp.eq.s32.totalorder %v6592, 1
        %vm6647 = vcmp.eq.s32.totalorder %v6593, 1
        %vm6648 = vcmp.eq.s32.totalorder %v6594, 1
        %vm6649 = vcmp.eq.s32.totalorder %v6595, 1
        %vm6650 = vcmp.eq.s32.totalorder %v6596, 1
        %vm6651 = vcmp.eq.s32.totalorder %v6597, 1
        %vm6652 = vcmp.eq.s32.totalorder %v6598, 1
        %vm6653 = vcmp.eq.s32.totalorder %v6599, 1
        %vm6654 = vcmp.eq.s32.totalorder %v6600, 1
        %vm6655 = vcmp.eq.s32.totalorder %v6601, 1
        %vm6656 = vcmp.eq.s32.totalorder %v6602, 1
        %6657 = vst [vmem:[#allocation1] ss:$4 sm:$0xff] %v6156
        %s6658 = scalar_lea.vmem [#allocation1], 1
        %6659 = vst [vmem:[%s6658] ss:$4 sm:$0xff] %v6238
        %s6660 = scalar_lea.vmem [#allocation1], 2
        %6661 = vst [vmem:[%s6660] ss:$4 sm:$0xff] %v6239
        %s6662 = scalar_lea.vmem [#allocation1], 3
        %6663 = vst [vmem:[%s6662] ss:$4 sm:$0xff] %v6240
        %s6664 = scalar_lea.vmem [#allocation1], 32
        %6665 = vst [vmem:[%s6664] ss:$4 sm:$0xff] %v6157
        %s6666 = scalar_lea.vmem [#allocation1], 33
        %6667 = vst [vmem:[%s6666] ss:$4 sm:$0xff] %v6241
        %s6668 = scalar_lea.vmem [#allocation1], 34
        %6669 = vst [vmem:[%s6668] ss:$4 sm:$0xff] %v6242
        %s6670 = scalar_lea.vmem [#allocation1], 35
        %6671 = vst [vmem:[%s6670] ss:$4 sm:$0xff] %v6243
        %v6672 = vld.sshfl [vmem:[#allocation1] sm:$0xff pattern:$0x73625140]
        %v6673 = vld.sshfl [vmem:[#allocation1 + $0x20] sm:$0xff pattern:$0x73625140]
        %6674 = vst [vmem:[#allocation1] ss:$4 sm:$0xff] %v6158
        %v6675 = vld.sshfl [vmem:[#allocation1] sm:$0xff pattern:$0x73625140]
        %6676 = vst [vmem:[%s6664] ss:$4 sm:$0xff] %v6244
        %6677 = vst [vmem:[%s6666] ss:$4 sm:$0xff] %v6245
        %6678 = vst [vmem:[%s6668] ss:$4 sm:$0xff] %v6246
        %6679 = vst [vmem:[%s6670] ss:$4 sm:$0xff] %v6159
        %v6680 = vld.sshfl [vmem:[#allocation1 + $0x20] sm:$0xff pattern:$0x73625140]
        %6681 = vst [vmem:[#allocation1] ss:$4 sm:$0xff] %v6247
        %6682 = vst [vmem:[%s6658] ss:$4 sm:$0xff] %v6248
        %6683 = vst [vmem:[%s6660] ss:$4 sm:$0xff] %v6249
        %6684 = vst [vmem:[%s6662] ss:$4 sm:$0xff] %v6160
        %6685 = vst [vmem:[%s6664] ss:$4 sm:$0xff] %v6250
        %v6686 = vld.sshfl [vmem:[#allocation1] sm:$0xff pattern:$0x73625140]
        %v6687 = vld.sshfl [vmem:[#allocation1 + $0x20] sm:$0xff pattern:$0x73625140]
        %6688 = vst [vmem:[#allocation1] ss:$4 sm:$0xff] %v6251
        %6689 = vst [vmem:[%s6658] ss:$4 sm:$0xff] %v6252
        %6690 = vst [vmem:[%s6660] ss:$4 sm:$0xff] %v6161
        %6691 = vst [vmem:[%s6662] ss:$4 sm:$0xff] %v6253
        %6692 = vst [vmem:[%s6664] ss:$4 sm:$0xff] %v6254
        %6693 = vst [vmem:[%s6666] ss:$4 sm:$0xff] %v6255
        %6694 = vst [vmem:[%s6668] ss:$4 sm:$0xff] %v6162
        %6695 = vst [vmem:[%s6670] ss:$4 sm:$0xff] %v6256
        %v6696 = vld.sshfl [vmem:[#allocation1] sm:$0xff pattern:$0x73625140]
        %v6697 = vld.sshfl [vmem:[#allocation1 + $0x20] sm:$0xff pattern:$0x73625140]
        %6698 = vst [vmem:[#allocation1] ss:$4 sm:$0xff] %v6257
        %v6699 = vld.sshfl [vmem:[#allocation1] sm:$0xff pattern:$0x73625140]
        %6700 = vst [vmem:[%s6664] ss:$4 sm:$0xff] %v6258
        %6701 = vst [vmem:[%s6666] ss:$4 sm:$0xff] %v6163
        %6702 = vst [vmem:[%s6668] ss:$4 sm:$0xff] %v6259
        %6703 = vst [vmem:[%s6670] ss:$4 sm:$0xff] %v6260
        %v6704 = vld.sshfl [vmem:[#allocation1 + $0x20] sm:$0xff pattern:$0x73625140]
        %6705 = vst [vmem:[#allocation1] ss:$4 sm:$0xff] %v6261
        %6706 = vst [vmem:[%s6658] ss:$4 sm:$0xff] %v6164
        %6707 = vst [vmem:[%s6660] ss:$4 sm:$0xff] %v6262
        %6708 = vst [vmem:[%s6662] ss:$4 sm:$0xff] %v6263
        %6709 = vst [vmem:[%s6664] ss:$4 sm:$0xff] %v6264
        %v6710 = vld.sshfl [vmem:[#allocation1] sm:$0xff pattern:$0x73625140]
        %v6711 = vld.sshfl [vmem:[#allocation1 + $0x20] sm:$0xff pattern:$0x73625140]
        %6712 = vst [vmem:[#allocation1] ss:$4 sm:$0xff] %v6165
        %6713 = vst [vmem:[%s6658] ss:$4 sm:$0xff] %v6265
        %6714 = vst [vmem:[%s6660] ss:$4 sm:$0xff] %v6266
        %6715 = vst [vmem:[%s6662] ss:$4 sm:$0xff] %v6267
        %6716 = vst [vmem:[%s6664] ss:$4 sm:$0xff] %v6166
        %6717 = vst [vmem:[%s6666] ss:$4 sm:$0xff] %v6268
        %6718 = vst [vmem:[%s6668] ss:$4 sm:$0xff] %v6269
        %6719 = vst [vmem:[%s6670] ss:$4 sm:$0xff] %v6270
        %v6720 = vld.sshfl [vmem:[#allocation1] sm:$0xff pattern:$0x73625140]
        %v6721 = vld.sshfl [vmem:[#allocation1 + $0x20] sm:$0xff pattern:$0x73625140]
        %6722 = vst [vmem:[#allocation1] ss:$4 sm:$0xff] %v6167
        %v6723 = vld.sshfl [vmem:[#allocation1] sm:$0xff pattern:$0x73625140]
        %6724 = vst [vmem:[%s6664] ss:$4 sm:$0xff] %v6271
        %6725 = vst [vmem:[%s6666] ss:$4 sm:$0xff] %v6272
        %6726 = vst [vmem:[%s6668] ss:$4 sm:$0xff] %v6273
        %6727 = vst [vmem:[%s6670] ss:$4 sm:$0xff] %v6168
        %v6728 = vld.sshfl [vmem:[#allocation1 + $0x20] sm:$0xff pattern:$0x73625140]
        %6729 = vst [vmem:[#allocation1] ss:$4 sm:$0xff] %v6274
        %6730 = vst [vmem:[%s6658] ss:$4 sm:$0xff] %v6275
        %6731 = vst [vmem:[%s6660] ss:$4 sm:$0xff] %v6276
        %6732 = vst [vmem:[%s6662] ss:$4 sm:$0xff] %v6169
        %6733 = vst [vmem:[%s6664] ss:$4 sm:$0xff] %v6277
        %v6734 = vld.sshfl [vmem:[#allocation1] sm:$0xff pattern:$0x73625140]
        %v6735 = vld.sshfl [vmem:[#allocation1 + $0x20] sm:$0xff pattern:$0x73625140]
        %6736 = vst [vmem:[#allocation1] ss:$4 sm:$0xff] %v6278
        %6737 = vst [vmem:[%s6658] ss:$4 sm:$0xff] %v6279
        %6738 = vst [vmem:[%s6660] ss:$4 sm:$0xff] %v6170
        %6739 = vst [vmem:[%s6662] ss:$4 sm:$0xff] %v6280
        %6740 = vst [vmem:[%s6664] ss:$4 sm:$0xff] %v6281
        %6741 = vst [vmem:[%s6666] ss:$4 sm:$0xff] %v6282
        %6742 = vst [vmem:[%s6668] ss:$4 sm:$0xff] %v6171
        %6743 = vst [vmem:[%s6670] ss:$4 sm:$0xff] %v6283
        %v6744 = vld.sshfl [vmem:[#allocation1] sm:$0xff pattern:$0x73625140]
        %v6745 = vld.sshfl [vmem:[#allocation1 + $0x20] sm:$0xff pattern:$0x73625140]
        %6746 = vst [vmem:[#allocation1] ss:$4 sm:$0xff] %v6284
        %v6747 = vld.sshfl [vmem:[#allocation1] sm:$0xff pattern:$0x73625140]
        %6748 = vst [vmem:[%s6664] ss:$4 sm:$0xff] %v6285
        %6749 = vst [vmem:[%s6666] ss:$4 sm:$0xff] %v6172
        %6750 = vst [vmem:[%s6668] ss:$4 sm:$0xff] %v6286
        %6751 = vst [vmem:[%s6670] ss:$4 sm:$0xff] %v6287
        %v6752 = vld.sshfl [vmem:[#allocation1 + $0x20] sm:$0xff pattern:$0x73625140]
        %6753 = vst [vmem:[#allocation1] ss:$4 sm:$0xff] %v6288
        %6754 = vst [vmem:[%s6658] ss:$4 sm:$0xff] %v6173
        %6755 = vst [vmem:[%s6660] ss:$4 sm:$0xff] %v6289
        %6756 = vst [vmem:[%s6662] ss:$4 sm:$0xff] %v6290
        %6757 = vst [vmem:[%s6664] ss:$4 sm:$0xff] %v6291
        %v6758 = vld.sshfl [vmem:[#allocation1] sm:$0xff pattern:$0x73625140]
        %v6759 = vld.sshfl [vmem:[#allocation1 + $0x20] sm:$0xff pattern:$0x73625140]
        %6760 = vst [vmem:[#allocation1] ss:$4 sm:$0xff] %v6174
        %6761 = vst [vmem:[%s6658] ss:$4 sm:$0xff] %v6292
        %6762 = vst [vmem:[%s6660] ss:$4 sm:$0xff] %v6293
        %6763 = vst [vmem:[%s6662] ss:$4 sm:$0xff] %v6294
        %6764 = vst [vmem:[%s6664] ss:$4 sm:$0xff] %v6175
        %6765 = vst [vmem:[%s6666] ss:$4 sm:$0xff] %v6295
        %6766 = vst [vmem:[%s6668] ss:$4 sm:$0xff] %v6296
        %6767 = vst [vmem:[%s6670] ss:$4 sm:$0xff] %v6297
        %v6768 = vld.sshfl [vmem:[#allocation1] sm:$0xff pattern:$0x73625140]
        %v6769 = vld.sshfl [vmem:[#allocation1 + $0x20] sm:$0xff pattern:$0x73625140]
        %6770 = vst [vmem:[#allocation1] ss:$4 sm:$0xff] %v6176
        %v6771 = vld.sshfl [vmem:[#allocation1] sm:$0xff pattern:$0x73625140]
        %6772 = vst [vmem:[%s6664] ss:$4 sm:$0xff] %v6298
        %6773 = vst [vmem:[%s6666] ss:$4 sm:$0xff] %v6299
        %6774 = vst [vmem:[%s6668] ss:$4 sm:$0xff] %v6300
        %6775 = vst [vmem:[%s6670] ss:$4 sm:$0xff] %v6177
        %v6776 = vld.sshfl [vmem:[#allocation1 + $0x20] sm:$0xff pattern:$0x73625140]
        %6777 = vst [vmem:[#allocation1] ss:$4 sm:$0xff] %v6301
        %6778 = vst [vmem:[%s6658] ss:$4 sm:$0xff] %v6302
        %6779 = vst [vmem:[%s6660] ss:$4 sm:$0xff] %v6303
        %6780 = vst [vmem:[%s6662] ss:$4 sm:$0xff] %v6178
        %6781 = vst [vmem:[%s6664] ss:$4 sm:$0xff] %v6304
        %v6782 = vld.sshfl [vmem:[#allocation1] sm:$0xff pattern:$0x73625140]
        %v6783 = vld.sshfl [vmem:[#allocation1 + $0x20] sm:$0xff pattern:$0x73625140]
        %6784 = vst [vmem:[#allocation1] ss:$4 sm:$0xff] %v6305
        %6785 = vst [vmem:[%s6658] ss:$4 sm:$0xff] %v6306
        %6786 = vst [vmem:[%s6660] ss:$4 sm:$0xff] %v6179
        %6787 = vst [vmem:[%s6662] ss:$4 sm:$0xff] %v6307
        %6788 = vst [vmem:[%s6664] ss:$4 sm:$0xff] %v6308
        %6789 = vst [vmem:[%s6666] ss:$4 sm:$0xff] %v6309
        %6790 = vst [vmem:[%s6668] ss:$4 sm:$0xff] %v6180
        %6791 = vst [vmem:[%s6670] ss:$4 sm:$0xff] %v6310
        %v6792 = vld.sshfl [vmem:[#allocation1] sm:$0xff pattern:$0x73625140]
        %v6793 = vld.sshfl [vmem:[#allocation1 + $0x20] sm:$0xff pattern:$0x73625140]
        %6794 = vst [vmem:[#allocation1] ss:$4 sm:$0xff] %v6311
        %v6795 = vld.sshfl [vmem:[#allocation1] sm:$0xff pattern:$0x73625140]
        %6796 = vst [vmem:[%s6664] ss:$4 sm:$0xff] %v6312
        %6797 = vst [vmem:[%s6666] ss:$4 sm:$0xff] %v6181
        %6798 = vst [vmem:[%s6668] ss:$4 sm:$0xff] %v6313
        %6799 = vst [vmem:[%s6670] ss:$4 sm:$0xff] %v6314
        %v6800 = vld.sshfl [vmem:[#allocation1 + $0x20] sm:$0xff pattern:$0x73625140]
        %6801 = vst [vmem:[#allocation1] ss:$4 sm:$0xff] %v6315
        %6802 = vst [vmem:[%s6658] ss:$4 sm:$0xff] %v6182
        %6803 = vst [vmem:[%s6660] ss:$4 sm:$0xff] %v6316
        %6804 = vst [vmem:[%s6662] ss:$4 sm:$0xff] %v6317
        %6805 = vst [vmem:[%s6664] ss:$4 sm:$0xff] %v6318
        %v6806 = vld.sshfl [vmem:[#allocation1] sm:$0xff pattern:$0x73625140]
        %v6807 = vld.sshfl [vmem:[#allocation1 + $0x20] sm:$0xff pattern:$0x73625140]
        %6808 = vst [vmem:[#allocation1] ss:$4 sm:$0xff] %v6183
        %6809 = vst [vmem:[%s6658] ss:$4 sm:$0xff] %v6319
        %6810 = vst [vmem:[%s6660] ss:$4 sm:$0xff] %v6320
        %6811 = vst [vmem:[%s6662] ss:$4 sm:$0xff] %v6321
        %6812 = vst [vmem:[%s6664] ss:$4 sm:$0xff] %v6184
        %6813 = vst [vmem:[%s6666] ss:$4 sm:$0xff] %v6322
        %6814 = vst [vmem:[%s6668] ss:$4 sm:$0xff] %v6323
        %6815 = vst [vmem:[%s6670] ss:$4 sm:$0xff] %v6324
        %v6816 = vld.sshfl [vmem:[#allocation1] sm:$0xff pattern:$0x73625140]
        %v6817 = vld.sshfl [vmem:[#allocation1 + $0x20] sm:$0xff pattern:$0x73625140]
        %6818 = vst [vmem:[#allocation1] ss:$4 sm:$0xff] %v6185
        %v6819 = vld.sshfl [vmem:[#allocation1] sm:$0xff pattern:$0x73625140]
        %6820 = vst [vmem:[%s6664] ss:$4 sm:$0xff] %v6325
        %6821 = vst [vmem:[%s6666] ss:$4 sm:$0xff] %v6326
        %6822 = vst [vmem:[%s6668] ss:$4 sm:$0xff] %v6327
        %6823 = vst [vmem:[%s6670] ss:$4 sm:$0xff] %v6186
        %v6824 = vld.sshfl [vmem:[#allocation1 + $0x20] sm:$0xff pattern:$0x73625140]
        %6825 = vst [vmem:[#allocation1] ss:$4 sm:$0xff] %v6328
        %6826 = vst [vmem:[%s6658] ss:$4 sm:$0xff] %v6329
        %6827 = vst [vmem:[%s6660] ss:$4 sm:$0xff] %v6330
        %6828 = vst [vmem:[%s6662] ss:$4 sm:$0xff] %v6187
        %6829 = vst [vmem:[%s6664] ss:$4 sm:$0xff] %v6331
        %v6830 = vld.sshfl [vmem:[#allocation1] sm:$0xff pattern:$0x73625140]
        %v6831 = vld.sshfl [vmem:[#allocation1 + $0x20] sm:$0xff pattern:$0x73625140]
        %6832 = vst [vmem:[#allocation1] ss:$4 sm:$0xff] %v6332
        %6833 = vst [vmem:[%s6658] ss:$4 sm:$0xff] %v6333
        %6834 = vst [vmem:[%s6660] ss:$4 sm:$0xff] %v6188
        %6835 = vst [vmem:[%s6662] ss:$4 sm:$0xff] %v6334
        %6836 = vst [vmem:[%s6664] ss:$4 sm:$0xff] %v6335
        %6837 = vst [vmem:[%s6666] ss:$4 sm:$0xff] %v6336
        %6838 = vst [vmem:[%s6668] ss:$4 sm:$0xff] %v6189
        %6839 = vst [vmem:[%s6670] ss:$4 sm:$0xff] %v6337
        %v6840 = vld.sshfl [vmem:[#allocation1] sm:$0xff pattern:$0x73625140]
        %v6841 = vld.sshfl [vmem:[#allocation1 + $0x20] sm:$0xff pattern:$0x73625140]
        %6842 = vst [vmem:[#allocation1] ss:$4 sm:$0xff] %v6338
        %v6843 = vld.sshfl [vmem:[#allocation1] sm:$0xff pattern:$0x73625140]
        %6844 = vst [vmem:[%s6664] ss:$4 sm:$0xff] %v6339
        %6845 = vst [vmem:[%s6666] ss:$4 sm:$0xff] %v6190
        %6846 = vst [vmem:[%s6668] ss:$4 sm:$0xff] %v6340
        %6847 = vst [vmem:[%s6670] ss:$4 sm:$0xff] %v6341
        %v6848 = vld.sshfl [vmem:[#allocation1 + $0x20] sm:$0xff pattern:$0x73625140]
        %6849 = vst [vmem:[#allocation1] ss:$4 sm:$0xff] %v6342
        %6850 = vst [vmem:[%s6658] ss:$4 sm:$0xff] %v6191
        %6851 = vst [vmem:[%s6660] ss:$4 sm:$0xff] %v6343
        %6852 = vst [vmem:[%s6662] ss:$4 sm:$0xff] %v6344
        %6853 = vst [vmem:[%s6664] ss:$4 sm:$0xff] %v6345
        %v6854 = vld.sshfl [vmem:[#allocation1] sm:$0xff pattern:$0x73625140]
        %v6855 = vld.sshfl [vmem:[#allocation1 + $0x20] sm:$0xff pattern:$0x73625140]
        %6856 = vst [vmem:[#allocation1] ss:$4 sm:$0xff] %v6192
        %6857 = vst [vmem:[%s6658] ss:$4 sm:$0xff] %v6346
        %6858 = vst [vmem:[%s6660] ss:$4 sm:$0xff] %v6347
        %6859 = vst [vmem:[%s6662] ss:$4 sm:$0xff] %v6348
        %6860 = vst [vmem:[%s6664] ss:$4 sm:$0xff] %v6193
        %6861 = vst [vmem:[%s6666] ss:$4 sm:$0xff] %v6349
        %6862 = vst [vmem:[%s6668] ss:$4 sm:$0xff] %v6350
        %6863 = vst [vmem:[%s6670] ss:$4 sm:$0xff] %v6351
        %v6864 = vld.sshfl [vmem:[#allocation1] sm:$0xff pattern:$0x73625140]
        %v6865 = vld.sshfl [vmem:[#allocation1 + $0x20] sm:$0xff pattern:$0x73625140]
        %6866 = vst [vmem:[#allocation1] ss:$4 sm:$0xff] %v6194
        %v6867 = vld.sshfl [vmem:[#allocation1] sm:$0xff pattern:$0x73625140]
        %6868 = vst [vmem:[%s6664] ss:$4 sm:$0xff] %v6352
        %6869 = vst [vmem:[%s6666] ss:$4 sm:$0xff] %v6353
        %6870 = vst [vmem:[%s6668] ss:$4 sm:$0xff] %v6354
        %6871 = vst [vmem:[%s6670] ss:$4 sm:$0xff] %v6195
        %v6872 = vld.sshfl [vmem:[#allocation1 + $0x20] sm:$0xff pattern:$0x73625140]
        %6873 = vst [vmem:[#allocation1] ss:$4 sm:$0xff] %v6355
        %6874 = vst [vmem:[%s6658] ss:$4 sm:$0xff] %v6356
        %6875 = vst [vmem:[%s6660] ss:$4 sm:$0xff] %v6357
        %6876 = vst [vmem:[%s6662] ss:$4 sm:$0xff] %v6196
        %6877 = vst [vmem:[%s6664] ss:$4 sm:$0xff] %v6358
        %v6878 = vld.sshfl [vmem:[#allocation1] sm:$0xff pattern:$0x73625140]
        %v6879 = vld.sshfl [vmem:[#allocation1 + $0x20] sm:$0xff pattern:$0x73625140]
        %v6934 = vsel %vm6603, %v6672, 0.0
        %v6935 = vsel %vm6604, %v6673, 0.0
        %v6936 = vsel %vm6605, %v6675, 0.0
        %v6937 = vsel %vm6606, %v6680, 0.0
        %v6938 = vsel %vm6607, %v6686, 0.0
        %v6939 = vsel %vm6608, %v6687, 0.0
        %v6940 = vsel %vm6609, %v6696, 0.0
        %v6941 = vsel %vm6610, %v6697, 0.0
        %v6942 = vsel %vm6611, %v6699, 0.0
        %v6943 = vsel %vm6612, %v6704, 0.0
        %v6944 = vsel %vm6613, %v6710, 0.0
        %v6945 = vsel %vm6614, %v6711, 0.0
        %v6946 = vsel %vm6615, %v6720, 0.0
        %v6947 = vsel %vm6616, %v6721, 0.0
        %v6948 = vsel %vm6617, %v6723, 0.0
        %v6949 = vsel %vm6618, %v6728, 0.0
        %v6950 = vsel %vm6619, %v6734, 0.0
        %v6951 = vsel %vm6620, %v6735, 0.0
        %v6952 = vsel %vm6621, %v6744, 0.0
        %v6953 = vsel %vm6622, %v6745, 0.0
        %v6954 = vsel %vm6623, %v6747, 0.0
        %v6955 = vsel %vm6624, %v6752, 0.0
        %v6956 = vsel %vm6625, %v6758, 0.0
        %v6957 = vsel %vm6626, %v6759, 0.0
        %v6958 = vsel %vm6627, %v6768, 0.0
        %v6959 = vsel %vm6628, %v6769, 0.0
        %v6960 = vsel %vm6629, %v6771, 0.0
        %v6961 = vsel %vm6630, %v6776, 0.0
        %v6962 = vsel %vm6631, %v6782, 0.0
        %v6963 = vsel %vm6632, %v6783, 0.0
        %v6964 = vsel %vm6633, %v6792, 0.0
        %v6965 = vsel %vm6634, %v6793, 0.0
        %v6966 = vsel %vm6635, %v6795, 0.0
        %v6967 = vsel %vm6636, %v6800, 0.0
        %v6968 = vsel %vm6637, %v6806, 0.0
        %v6969 = vsel %vm6638, %v6807, 0.0
        %v6970 = vsel %vm6639, %v6816, 0.0
        %v6971 = vsel %vm6640, %v6817, 0.0
        %v6972 = vsel %vm6641, %v6819, 0.0
        %v6973 = vsel %vm6642, %v6824, 0.0
        %v6974 = vsel %vm6643, %v6830, 0.0
        %v6975 = vsel %vm6644, %v6831, 0.0
        %v6976 = vsel %vm6645, %v6840, 0.0
        %v6977 = vsel %vm6646, %v6841, 0.0
        %v6978 = vsel %vm6647, %v6843, 0.0
        %v6979 = vsel %vm6648, %v6848, 0.0
        %v6980 = vsel %vm6649, %v6854, 0.0
        %v6981 = vsel %vm6650, %v6855, 0.0
        %v6982 = vsel %vm6651, %v6864, 0.0
        %v6983 = vsel %vm6652, %v6865, 0.0
        %v6984 = vsel %vm6653, %v6867, 0.0
        %v6985 = vsel %vm6654, %v6872, 0.0
        %v6986 = vsel %vm6655, %v6878, 0.0
        %v6987 = vsel %vm6656, %v6879, 0.0
        %6988 = vst [vmem:[#allocation2] sm:$0xff] %v6934
        %6989 = vst [vmem:[#allocation2 + $0x8] sm:$0xff] %v6935
        %6990 = vst [vmem:[#allocation2 + $0x10] sm:$0x3] %v6936
        %6991 = vst [vmem:[#allocation2 + $0x18] sm:$0xff] %v6937
        %6992 = vst [vmem:[#allocation2 + $0x20] sm:$0xff] %v6938
        %6993 = vst [vmem:[#allocation2 + $0x28] sm:$0x3] %v6939
        %6994 = vst [vmem:[#allocation2 + $0x30] sm:$0xff] %v6940
        %6995 = vst [vmem:[#allocation2 + $0x38] sm:$0xff] %v6941
        %6996 = vst [vmem:[#allocation2 + $0x40] sm:$0x3] %v6942
        %6997 = vst [vmem:[#allocation2 + $0x48] sm:$0xff] %v6943
        %6998 = vst [vmem:[#allocation2 + $0x50] sm:$0xff] %v6944
        %6999 = vst [vmem:[#allocation2 + $0x58] sm:$0x3] %v6945
        %7000 = vst [vmem:[#allocation2 + $0x60] sm:$0xff] %v6946
        %7001 = vst [vmem:[#allocation2 + $0x68] sm:$0xff] %v6947
        %7002 = vst [vmem:[#allocation2 + $0x70] sm:$0x3] %v6948
        %7003 = vst [vmem:[#allocation2 + $0x78] sm:$0xff] %v6949
        %7004 = vst [vmem:[#allocation2 + $0x80] sm:$0xff] %v6950
        %7005 = vst [vmem:[#allocation2 + $0x88] sm:$0x3] %v6951
        %7006 = vst [vmem:[#allocation2 + $0x90] sm:$0xff] %v6952
        %7007 = vst [vmem:[#allocation2 + $0x98] sm:$0xff] %v6953
        %7008 = vst [vmem:[#allocation2 + $0xa0] sm:$0x3] %v6954
        %7009 = vst [vmem:[#allocation2 + $0xa8] sm:$0xff] %v6955
        %7010 = vst [vmem:[#allocation2 + $0xb0] sm:$0xff] %v6956
        %7011 = vst [vmem:[#allocation2 + $0xb8] sm:$0x3] %v6957
        %7012 = vst [vmem:[#allocation2 + $0xc0] sm:$0xff] %v6958
        %7013 = vst [vmem:[#allocation2 + $0xc8] sm:$0xff] %v6959
        %7014 = vst [vmem:[#allocation2 + $0xd0] sm:$0x3] %v6960
        %7015 = vst [vmem:[#allocation2 + $0xd8] sm:$0xff] %v6961
        %7016 = vst [vmem:[#allocation2 + $0xe0] sm:$0xff] %v6962
        %7017 = vst [vmem:[#allocation2 + $0xe8] sm:$0x3] %v6963
        %7018 = vst [vmem:[#allocation2 + $0xf0] sm:$0xff] %v6964
        %7019 = vst [vmem:[#allocation2 + $0xf8] sm:$0xff] %v6965
        %7020 = vst [vmem:[#allocation2 + $0x100] sm:$0x3] %v6966
        %7021 = vst [vmem:[#allocation2 + $0x108] sm:$0xff] %v6967
        %7022 = vst [vmem:[#allocation2 + $0x110] sm:$0xff] %v6968
        %7023 = vst [vmem:[#allocation2 + $0x118] sm:$0x3] %v6969
        %7024 = vst [vmem:[#allocation2 + $0x120] sm:$0xff] %v6970
        %7025 = vst [vmem:[#allocation2 + $0x128] sm:$0xff] %v6971
        %7026 = vst [vmem:[#allocation2 + $0x130] sm:$0x3] %v6972
        %7027 = vst [vmem:[#allocation2 + $0x138] sm:$0xff] %v6973
        %7028 = vst [vmem:[#allocation2 + $0x140] sm:$0xff] %v6974
        %7029 = vst [vmem:[#allocation2 + $0x148] sm:$0x3] %v6975
        %7030 = vst [vmem:[#allocation2 + $0x150] sm:$0xff] %v6976
        %7031 = vst [vmem:[#allocation2 + $0x158] sm:$0xff] %v6977
        %7032 = vst [vmem:[#allocation2 + $0x160] sm:$0x3] %v6978
        %7033 = vst [vmem:[#allocation2 + $0x168] sm:$0xff] %v6979
        %7034 = vst [vmem:[#allocation2 + $0x170] sm:$0xff] %v6980
        %7035 = vst [vmem:[#allocation2 + $0x178] sm:$0x3] %v6981
        %7036 = vst [vmem:[#allocation2 + $0x180] sm:$0xff] %v6982
        %7037 = vst [vmem:[#allocation2 + $0x188] sm:$0xff] %v6983
        %7038 = vst [vmem:[#allocation2 + $0x190] sm:$0x3] %v6984
        %7039 = vst [vmem:[#allocation2 + $0x198] sm:$0xff] %v6985
        %7040 = vst [vmem:[#allocation2 + $0x1a0] sm:$0xff] %v6986
        %7041 = vst [vmem:[#allocation2 + $0x1a8] sm:$0x3] %v6987
        %v7042 = vld [vmem:[#allocation2] sm:$0xff]
        %v7043 = vld [vmem:[#allocation2 + $0x8] sm:$0xff]
        %v7044 = vld [vmem:[#allocation2 + $0x18] sm:$0xff]
        %v7045 = vld [vmem:[#allocation2 + $0x20] sm:$0xff]
        %v7046 = vld [vmem:[#allocation2 + $0x30] sm:$0xff]
        %v7047 = vld [vmem:[#allocation2 + $0x38] sm:$0xff]
        %v7048 = vld [vmem:[#allocation2 + $0x48] sm:$0xff]
        %v7049 = vld [vmem:[#allocation2 + $0x50] sm:$0xff]
        %v7050 = vld [vmem:[#allocation2 + $0x60] sm:$0xff]
        %v7051 = vld [vmem:[#allocation2 + $0x68] sm:$0xff]
        %v7052 = vld [vmem:[#allocation2 + $0x78] sm:$0xff]
        %v7053 = vld [vmem:[#allocation2 + $0x80] sm:$0xff]
        %v7054 = vld [vmem:[#allocation2 + $0x90] sm:$0xff]
        %v7055 = vld [vmem:[#allocation2 + $0x98] sm:$0xff]
        %v7056 = vld [vmem:[#allocation2 + $0xa8] sm:$0xff]
        %v7057 = vld [vmem:[#allocation2 + $0xb0] sm:$0xff]
        %v7058 = vld [vmem:[#allocation2 + $0xc0] sm:$0xff]
        %v7059 = vld [vmem:[#allocation2 + $0xc8] sm:$0xff]
        %v7060 = vld [vmem:[#allocation2 + $0xd8] sm:$0xff]
        %v7061 = vld [vmem:[#allocation2 + $0xe0] sm:$0xff]
        %v7062 = vld [vmem:[#allocation2 + $0xf0] sm:$0xff]
        %v7063 = vld [vmem:[#allocation2 + $0xf8] sm:$0xff]
        %v7064 = vld [vmem:[#allocation2 + $0x108] sm:$0xff]
        %v7065 = vld [vmem:[#allocation2 + $0x110] sm:$0xff]
        %v7066 = vld [vmem:[#allocation2 + $0x120] sm:$0xff]
        %v7067 = vld [vmem:[#allocation2 + $0x128] sm:$0xff]
        %v7068 = vld [vmem:[#allocation2 + $0x138] sm:$0xff]
        %v7069 = vld [vmem:[#allocation2 + $0x140] sm:$0xff]
        %v7070 = vld [vmem:[#allocation2 + $0x150] sm:$0xff]
        %v7071 = vld [vmem:[#allocation2 + $0x158] sm:$0xff]
        %v7072 = vld [vmem:[#allocation2 + $0x168] sm:$0xff]
        %v7073 = vld [vmem:[#allocation2 + $0x170] sm:$0xff]
        %v7074 = vld [vmem:[#allocation2 + $0x1] sm:$0xff]
        %v7075 = vld [vmem:[#allocation2 + $0x9] sm:$0xff]
        %v7076 = vld [vmem:[#allocation2 + $0x19] sm:$0xff]
        %v7077 = vld [vmem:[#allocation2 + $0x21] sm:$0xff]
        %v7078 = vld [vmem:[#allocation2 + $0x31] sm:$0xff]
        %v7079 = vld [vmem:[#allocation2 + $0x39] sm:$0xff]
        %v7080 = vld [vmem:[#allocation2 + $0x49] sm:$0xff]
        %v7081 = vld [vmem:[#allocation2 + $0x51] sm:$0xff]
        %v7082 = vld [vmem:[#allocation2 + $0x61] sm:$0xff]
        %v7083 = vld [vmem:[#allocation2 + $0x69] sm:$0xff]
        %v7084 = vld [vmem:[#allocation2 + $0x79] sm:$0xff]
        %v7085 = vld [vmem:[#allocation2 + $0x81] sm:$0xff]
        %v7086 = vld [vmem:[#allocation2 + $0x91] sm:$0xff]
        %v7087 = vld [vmem:[#allocation2 + $0x99] sm:$0xff]
        %v7088 = vld [vmem:[#allocation2 + $0xa9] sm:$0xff]
        %v7089 = vld [vmem:[#allocation2 + $0xb1] sm:$0xff]
        %v7090 = vld [vmem:[#allocation2 + $0xc1] sm:$0xff]
        %v7091 = vld [vmem:[#allocation2 + $0xc9] sm:$0xff]
        %v7092 = vld [vmem:[#allocation2 + $0xd9] sm:$0xff]
        %v7093 = vld [vmem:[#allocation2 + $0xe1] sm:$0xff]
        %v7094 = vld [vmem:[#allocation2 + $0xf1] sm:$0xff]
        %v7095 = vld [vmem:[#allocation2 + $0xf9] sm:$0xff]
        %v7096 = vld [vmem:[#allocation2 + $0x109] sm:$0xff]
        %v7097 = vld [vmem:[#allocation2 + $0x111] sm:$0xff]
        %v7098 = vld [vmem:[#allocation2 + $0x121] sm:$0xff]
        %v7099 = vld [vmem:[#allocation2 + $0x129] sm:$0xff]
        %v7100 = vld [vmem:[#allocation2 + $0x139] sm:$0xff]
        %v7101 = vld [vmem:[#allocation2 + $0x141] sm:$0xff]
        %v7102 = vld [vmem:[#allocation2 + $0x151] sm:$0xff]
        %v7103 = vld [vmem:[#allocation2 + $0x159] sm:$0xff]
        %v7104 = vld [vmem:[#allocation2 + $0x169] sm:$0xff]
        %v7105 = vld [vmem:[#allocation2 + $0x171] sm:$0xff]
        %v7106 = vld [vmem:[#allocation2 + $0x2] sm:$0xff]
        %v7107 = vld [vmem:[#allocation2 + $0xa] sm:$0xff]
        %v7108 = vld [vmem:[#allocation2 + $0x1a] sm:$0xff]
        %v7109 = vld [vmem:[#allocation2 + $0x22] sm:$0xff]
        %v7110 = vld [vmem:[#allocation2 + $0x32] sm:$0xff]
        %v7111 = vld [vmem:[#allocation2 + $0x3a] sm:$0xff]
        %v7112 = vld [vmem:[#allocation2 + $0x4a] sm:$0xff]
        %v7113 = vld [vmem:[#allocation2 + $0x52] sm:$0xff]
        %v7114 = vld [vmem:[#allocation2 + $0x62] sm:$0xff]
        %v7115 = vld [vmem:[#allocation2 + $0x6a] sm:$0xff]
        %v7116 = vld [vmem:[#allocation2 + $0x7a] sm:$0xff]
        %v7117 = vld [vmem:[#allocation2 + $0x82] sm:$0xff]
        %v7118 = vld [vmem:[#allocation2 + $0x92] sm:$0xff]
        %v7119 = vld [vmem:[#allocation2 + $0x9a] sm:$0xff]
        %v7120 = vld [vmem:[#allocation2 + $0xaa] sm:$0xff]
        %v7121 = vld [vmem:[#allocation2 + $0xb2] sm:$0xff]
        %v7122 = vld [vmem:[#allocation2 + $0xc2] sm:$0xff]
        %v7123 = vld [vmem:[#allocation2 + $0xca] sm:$0xff]
        %v7124 = vld [vmem:[#allocation2 + $0xda] sm:$0xff]
        %v7125 = vld [vmem:[#allocation2 + $0xe2] sm:$0xff]
        %v7126 = vld [vmem:[#allocation2 + $0xf2] sm:$0xff]
        %v7127 = vld [vmem:[#allocation2 + $0xfa] sm:$0xff]
        %v7128 = vld [vmem:[#allocation2 + $0x10a] sm:$0xff]
        %v7129 = vld [vmem:[#allocation2 + $0x112] sm:$0xff]
        %v7130 = vld [vmem:[#allocation2 + $0x122] sm:$0xff]
        %v7131 = vld [vmem:[#allocation2 + $0x12a] sm:$0xff]
        %v7132 = vld [vmem:[#allocation2 + $0x13a] sm:$0xff]
        %v7133 = vld [vmem:[#allocation2 + $0x142] sm:$0xff]
        %v7134 = vld [vmem:[#allocation2 + $0x152] sm:$0xff]
        %v7135 = vld [vmem:[#allocation2 + $0x15a] sm:$0xff]
        %v7136 = vld [vmem:[#allocation2 + $0x16a] sm:$0xff]
        %v7137 = vld [vmem:[#allocation2 + $0x172] sm:$0xff]
        %s7138 = scalar_lea.vmem [#allocation2], 24
        %v7139 = vld [vmem:[%s7138] sm:$0xff]
        %v7140 = vld [vmem:[%s7138 + $0x8] sm:$0xff]
        %v7141 = vld [vmem:[%s7138 + $0x18] sm:$0xff]
        %v7142 = vld [vmem:[%s7138 + $0x20] sm:$0xff]
        %v7143 = vld [vmem:[%s7138 + $0x30] sm:$0xff]
        %v7144 = vld [vmem:[%s7138 + $0x38] sm:$0xff]
        %v7145 = vld [vmem:[%s7138 + $0x48] sm:$0xff]
        %v7146 = vld [vmem:[%s7138 + $0x50] sm:$0xff]
        %v7147 = vld [vmem:[%s7138 + $0x60] sm:$0xff]
        %v7148 = vld [vmem:[%s7138 + $0x68] sm:$0xff]
        %v7149 = vld [vmem:[%s7138 + $0x78] sm:$0xff]
        %v7150 = vld [vmem:[%s7138 + $0x80] sm:$0xff]
        %v7151 = vld [vmem:[%s7138 + $0x90] sm:$0xff]
        %v7152 = vld [vmem:[%s7138 + $0x98] sm:$0xff]
        %v7153 = vld [vmem:[%s7138 + $0xa8] sm:$0xff]
        %v7154 = vld [vmem:[%s7138 + $0xb0] sm:$0xff]
        %v7155 = vld [vmem:[%s7138 + $0xc0] sm:$0xff]
        %v7156 = vld [vmem:[%s7138 + $0xc8] sm:$0xff]
        %v7157 = vld [vmem:[%s7138 + $0xd8] sm:$0xff]
        %v7158 = vld [vmem:[%s7138 + $0xe0] sm:$0xff]
        %v7159 = vld [vmem:[%s7138 + $0xf0] sm:$0xff]
        %v7160 = vld [vmem:[%s7138 + $0xf8] sm:$0xff]
        %v7161 = vld [vmem:[%s7138 + $0x108] sm:$0xff]
        %v7162 = vld [vmem:[%s7138 + $0x110] sm:$0xff]
        %v7163 = vld [vmem:[%s7138 + $0x120] sm:$0xff]
        %v7164 = vld [vmem:[%s7138 + $0x128] sm:$0xff]
        %v7165 = vld [vmem:[%s7138 + $0x138] sm:$0xff]
        %v7166 = vld [vmem:[%s7138 + $0x140] sm:$0xff]
        %v7167 = vld [vmem:[%s7138 + $0x150] sm:$0xff]
        %v7168 = vld [vmem:[%s7138 + $0x158] sm:$0xff]
        %v7169 = vld [vmem:[%s7138 + $0x168] sm:$0xff]
        %v7170 = vld [vmem:[%s7138 + $0x170] sm:$0xff]
        %v7171 = vld [vmem:[%s7138 + $0x1] sm:$0xff]
        %v7172 = vld [vmem:[%s7138 + $0x9] sm:$0xff]
        %v7173 = vld [vmem:[%s7138 + $0x19] sm:$0xff]
        %v7174 = vld [vmem:[%s7138 + $0x21] sm:$0xff]
        %v7175 = vld [vmem:[%s7138 + $0x31] sm:$0xff]
        %v7176 = vld [vmem:[%s7138 + $0x39] sm:$0xff]
        %v7177 = vld [vmem:[%s7138 + $0x49] sm:$0xff]
        %v7178 = vld [vmem:[%s7138 + $0x51] sm:$0xff]
        %v7179 = vld [vmem:[%s7138 + $0x61] sm:$0xff]
        %v7180 = vld [vmem:[%s7138 + $0x69] sm:$0xff]
        %v7181 = vld [vmem:[%s7138 + $0x79] sm:$0xff]
        %v7182 = vld [vmem:[%s7138 + $0x81] sm:$0xff]
        %v7183 = vld [vmem:[%s7138 + $0x91] sm:$0xff]
        %v7184 = vld [vmem:[%s7138 + $0x99] sm:$0xff]
        %v7185 = vld [vmem:[%s7138 + $0xa9] sm:$0xff]
        %v7186 = vld [vmem:[%s7138 + $0xb1] sm:$0xff]
        %v7187 = vld [vmem:[%s7138 + $0xc1] sm:$0xff]
        %v7188 = vld [vmem:[%s7138 + $0xc9] sm:$0xff]
        %v7189 = vld [vmem:[%s7138 + $0xd9] sm:$0xff]
        %v7190 = vld [vmem:[%s7138 + $0xe1] sm:$0xff]
        %v7191 = vld [vmem:[%s7138 + $0xf1] sm:$0xff]
        %v7192 = vld [vmem:[%s7138 + $0xf9] sm:$0xff]
        %v7193 = vld [vmem:[%s7138 + $0x109] sm:$0xff]
        %v7194 = vld [vmem:[%s7138 + $0x111] sm:$0xff]
        %v7195 = vld [vmem:[%s7138 + $0x121] sm:$0xff]
        %v7196 = vld [vmem:[%s7138 + $0x129] sm:$0xff]
        %v7197 = vld [vmem:[%s7138 + $0x139] sm:$0xff]
        %v7198 = vld [vmem:[%s7138 + $0x141] sm:$0xff]
        %v7199 = vld [vmem:[%s7138 + $0x151] sm:$0xff]
        %v7200 = vld [vmem:[%s7138 + $0x159] sm:$0xff]
        %v7201 = vld [vmem:[%s7138 + $0x169] sm:$0xff]
        %v7202 = vld [vmem:[%s7138 + $0x171] sm:$0xff]
        %v7203 = vld [vmem:[%s7138 + $0x2] sm:$0xff]
        %v7204 = vld [vmem:[%s7138 + $0xa] sm:$0xff]
        %v7205 = vld [vmem:[%s7138 + $0x1a] sm:$0xff]
        %v7206 = vld [vmem:[%s7138 + $0x22] sm:$0xff]
        %v7207 = vld [vmem:[%s7138 + $0x32] sm:$0xff]
        %v7208 = vld [vmem:[%s7138 + $0x3a] sm:$0xff]
        %v7209 = vld [vmem:[%s7138 + $0x4a] sm:$0xff]
        %v7210 = vld [vmem:[%s7138 + $0x52] sm:$0xff]
        %v7211 = vld [vmem:[%s7138 + $0x62] sm:$0xff]
        %v7212 = vld [vmem:[%s7138 + $0x6a] sm:$0xff]
        %v7213 = vld [vmem:[%s7138 + $0x7a] sm:$0xff]
        %v7214 = vld [vmem:[%s7138 + $0x82] sm:$0xff]
        %v7215 = vld [vmem:[%s7138 + $0x92] sm:$0xff]
        %v7216 = vld [vmem:[%s7138 + $0x9a] sm:$0xff]
        %v7217 = vld [vmem:[%s7138 + $0xaa] sm:$0xff]
        %v7218 = vld [vmem:[%s7138 + $0xb2] sm:$0xff]
        %v7219 = vld [vmem:[%s7138 + $0xc2] sm:$0xff]
        %v7220 = vld [vmem:[%s7138 + $0xca] sm:$0xff]
        %v7221 = vld [vmem:[%s7138 + $0xda] sm:$0xff]
        %v7222 = vld [vmem:[%s7138 + $0xe2] sm:$0xff]
        %v7223 = vld [vmem:[%s7138 + $0xf2] sm:$0xff]
        %v7224 = vld [vmem:[%s7138 + $0xfa] sm:$0xff]
        %v7225 = vld [vmem:[%s7138 + $0x10a] sm:$0xff]
        %v7226 = vld [vmem:[%s7138 + $0x112] sm:$0xff]
        %v7227 = vld [vmem:[%s7138 + $0x122] sm:$0xff]
        %v7228 = vld [vmem:[%s7138 + $0x12a] sm:$0xff]
        %v7229 = vld [vmem:[%s7138 + $0x13a] sm:$0xff]
        %v7230 = vld [vmem:[%s7138 + $0x142] sm:$0xff]
        %v7231 = vld [vmem:[%s7138 + $0x152] sm:$0xff]
        %v7232 = vld [vmem:[%s7138 + $0x15a] sm:$0xff]
        %v7233 = vld [vmem:[%s7138 + $0x16a] sm:$0xff]
        %v7234 = vld [vmem:[%s7138 + $0x172] sm:$0xff]
        %s7235 = scalar_lea.vmem [#allocation2], 48
        %v7236 = vld [vmem:[%s7235] sm:$0xff]
        %v7237 = vld [vmem:[%s7235 + $0x8] sm:$0xff]
        %v7238 = vld [vmem:[%s7235 + $0x18] sm:$0xff]
        %v7239 = vld [vmem:[%s7235 + $0x20] sm:$0xff]
        %v7240 = vld [vmem:[%s7235 + $0x30] sm:$0xff]
        %v7241 = vld [vmem:[%s7235 + $0x38] sm:$0xff]
        %v7242 = vld [vmem:[%s7235 + $0x48] sm:$0xff]
        %v7243 = vld [vmem:[%s7235 + $0x50] sm:$0xff]
        %v7244 = vld [vmem:[%s7235 + $0x60] sm:$0xff]
        %v7245 = vld [vmem:[%s7235 + $0x68] sm:$0xff]
        %v7246 = vld [vmem:[%s7235 + $0x78] sm:$0xff]
        %v7247 = vld [vmem:[%s7235 + $0x80] sm:$0xff]
        %v7248 = vld [vmem:[%s7235 + $0x90] sm:$0xff]
        %v7249 = vld [vmem:[%s7235 + $0x98] sm:$0xff]
        %v7250 = vld [vmem:[%s7235 + $0xa8] sm:$0xff]
        %v7251 = vld [vmem:[%s7235 + $0xb0] sm:$0xff]
        %v7252 = vld [vmem:[%s7235 + $0xc0] sm:$0xff]
        %v7253 = vld [vmem:[%s7235 + $0xc8] sm:$0xff]
        %v7254 = vld [vmem:[%s7235 + $0xd8] sm:$0xff]
        %v7255 = vld [vmem:[%s7235 + $0xe0] sm:$0xff]
        %v7256 = vld [vmem:[%s7235 + $0xf0] sm:$0xff]
        %v7257 = vld [vmem:[%s7235 + $0xf8] sm:$0xff]
        %v7258 = vld [vmem:[%s7235 + $0x108] sm:$0xff]
        %v7259 = vld [vmem:[%s7235 + $0x110] sm:$0xff]
        %v7260 = vld [vmem:[%s7235 + $0x120] sm:$0xff]
        %v7261 = vld [vmem:[%s7235 + $0x128] sm:$0xff]
        %v7262 = vld [vmem:[%s7235 + $0x138] sm:$0xff]
        %v7263 = vld [vmem:[%s7235 + $0x140] sm:$0xff]
        %v7264 = vld [vmem:[%s7235 + $0x150] sm:$0xff]
        %v7265 = vld [vmem:[%s7235 + $0x158] sm:$0xff]
        %v7266 = vld [vmem:[%s7235 + $0x168] sm:$0xff]
        %v7267 = vld [vmem:[%s7235 + $0x170] sm:$0xff]
        %v7268 = vld [vmem:[%s7235 + $0x1] sm:$0xff]
        %v7269 = vld [vmem:[%s7235 + $0x9] sm:$0xff]
        %v7270 = vld [vmem:[%s7235 + $0x19] sm:$0xff]
        %v7271 = vld [vmem:[%s7235 + $0x21] sm:$0xff]
        %v7272 = vld [vmem:[%s7235 + $0x31] sm:$0xff]
        %v7273 = vld [vmem:[%s7235 + $0x39] sm:$0xff]
        %v7274 = vld [vmem:[%s7235 + $0x49] sm:$0xff]
        %v7275 = vld [vmem:[%s7235 + $0x51] sm:$0xff]
        %v7276 = vld [vmem:[%s7235 + $0x61] sm:$0xff]
        %v7277 = vld [vmem:[%s7235 + $0x69] sm:$0xff]
        %v7278 = vld [vmem:[%s7235 + $0x79] sm:$0xff]
        %v7279 = vld [vmem:[%s7235 + $0x81] sm:$0xff]
        %v7280 = vld [vmem:[%s7235 + $0x91] sm:$0xff]
        %v7281 = vld [vmem:[%s7235 + $0x99] sm:$0xff]
        %v7282 = vld [vmem:[%s7235 + $0xa9] sm:$0xff]
        %v7283 = vld [vmem:[%s7235 + $0xb1] sm:$0xff]
        %v7284 = vld [vmem:[%s7235 + $0xc1] sm:$0xff]
        %v7285 = vld [vmem:[%s7235 + $0xc9] sm:$0xff]
        %v7286 = vld [vmem:[%s7235 + $0xd9] sm:$0xff]
        %v7287 = vld [vmem:[%s7235 + $0xe1] sm:$0xff]
        %v7288 = vld [vmem:[%s7235 + $0xf1] sm:$0xff]
        %v7289 = vld [vmem:[%s7235 + $0xf9] sm:$0xff]
        %v7290 = vld [vmem:[%s7235 + $0x109] sm:$0xff]
        %v7291 = vld [vmem:[%s7235 + $0x111] sm:$0xff]
        %v7292 = vld [vmem:[%s7235 + $0x121] sm:$0xff]
        %v7293 = vld [vmem:[%s7235 + $0x129] sm:$0xff]
        %v7294 = vld [vmem:[%s7235 + $0x139] sm:$0xff]
        %v7295 = vld [vmem:[%s7235 + $0x141] sm:$0xff]
        %v7296 = vld [vmem:[%s7235 + $0x151] sm:$0xff]
        %v7297 = vld [vmem:[%s7235 + $0x159] sm:$0xff]
        %v7298 = vld [vmem:[%s7235 + $0x169] sm:$0xff]
        %v7299 = vld [vmem:[%s7235 + $0x171] sm:$0xff]
        %v7300 = vld [vmem:[%s7235 + $0x2] sm:$0xff]
        %v7301 = vld [vmem:[%s7235 + $0xa] sm:$0xff]
        %v7302 = vld [vmem:[%s7235 + $0x1a] sm:$0xff]
        %v7303 = vld [vmem:[%s7235 + $0x22] sm:$0xff]
        %v7304 = vld [vmem:[%s7235 + $0x32] sm:$0xff]
        %v7305 = vld [vmem:[%s7235 + $0x3a] sm:$0xff]
        %v7306 = vld [vmem:[%s7235 + $0x4a] sm:$0xff]
        %v7307 = vld [vmem:[%s7235 + $0x52] sm:$0xff]
        %v7308 = vld [vmem:[%s7235 + $0x62] sm:$0xff]
        %v7309 = vld [vmem:[%s7235 + $0x6a] sm:$0xff]
        %v7310 = vld [vmem:[%s7235 + $0x7a] sm:$0xff]
        %v7311 = vld [vmem:[%s7235 + $0x82] sm:$0xff]
        %v7312 = vld [vmem:[%s7235 + $0x92] sm:$0xff]
        %v7313 = vld [vmem:[%s7235 + $0x9a] sm:$0xff]
        %v7314 = vld [vmem:[%s7235 + $0xaa] sm:$0xff]
        %v7315 = vld [vmem:[%s7235 + $0xb2] sm:$0xff]
        %v7316 = vld [vmem:[%s7235 + $0xc2] sm:$0xff]
        %v7317 = vld [vmem:[%s7235 + $0xca] sm:$0xff]
        %v7318 = vld [vmem:[%s7235 + $0xda] sm:$0xff]
        %v7319 = vld [vmem:[%s7235 + $0xe2] sm:$0xff]
        %v7320 = vld [vmem:[%s7235 + $0xf2] sm:$0xff]
        %v7321 = vld [vmem:[%s7235 + $0xfa] sm:$0xff]
        %v7322 = vld [vmem:[%s7235 + $0x10a] sm:$0xff]
        %v7323 = vld [vmem:[%s7235 + $0x112] sm:$0xff]
        %v7324 = vld [vmem:[%s7235 + $0x122] sm:$0xff]
        %v7325 = vld [vmem:[%s7235 + $0x12a] sm:$0xff]
        %v7326 = vld [vmem:[%s7235 + $0x13a] sm:$0xff]
        %v7327 = vld [vmem:[%s7235 + $0x142] sm:$0xff]
        %v7328 = vld [vmem:[%s7235 + $0x152] sm:$0xff]
        %v7329 = vld [vmem:[%s7235 + $0x15a] sm:$0xff]
        %v7330 = vld [vmem:[%s7235 + $0x16a] sm:$0xff]
        %v7331 = vld [vmem:[%s7235 + $0x172] sm:$0xff]
        %v7332 = vld [vmem:[#allocation3] sm:$0xff]
        %v7333 = vld [vmem:[#allocation3 + $0x8] sm:$0xff]
        %v7334 = vld [vmem:[#allocation3 + $0x10] sm:$0xff]
        %v7335 = vld [vmem:[#allocation3 + $0x18] sm:$0xff]
        %v7336 = vld [vmem:[#allocation3 + $0x20] sm:$0xff]
        %v7337 = vld [vmem:[#allocation3 + $0x28] sm:$0xff]
        %v7338 = vld [vmem:[#allocation3 + $0x30] sm:$0xff]
        %v7339 = vld [vmem:[#allocation3 + $0x38] sm:$0xff]
        %v7340 = vld [vmem:[#allocation3 + $0x40] sm:$0xff]
        %v7341 = vld [vmem:[#allocation3 + $0x48] sm:$0xff]
        %v7342 = vld [vmem:[#allocation3 + $0x50] sm:$0xff]
        %v7343 = vld [vmem:[#allocation3 + $0x58] sm:$0xff]
        %v7344 = vld [vmem:[#allocation3 + $0x60] sm:$0xff]
        %v7345 = vld [vmem:[#allocation3 + $0x68] sm:$0xff]
        %v7346 = vld [vmem:[#allocation3 + $0x70] sm:$0xff]
        %v7347 = vld [vmem:[#allocation3 + $0x78] sm:$0xff]
        %v7348 = vld [vmem:[#allocation3 + $0x80] sm:$0xff]
        %v7349 = vld [vmem:[#allocation3 + $0x88] sm:$0xff]
        %v7350 = vld [vmem:[#allocation3 + $0x90] sm:$0xff]
        %v7351 = vld [vmem:[#allocation3 + $0x98] sm:$0xff]
        %v7352 = vld [vmem:[#allocation3 + $0xa0] sm:$0xff]
        %v7353 = vld [vmem:[#allocation3 + $0xa8] sm:$0xff]
        %v7354 = vld [vmem:[#allocation3 + $0xb0] sm:$0xff]
        %v7355 = vld [vmem:[#allocation3 + $0xb8] sm:$0xff]
        %v7356 = vld [vmem:[#allocation3 + $0xc0] sm:$0xff]
        %v7357 = vld [vmem:[#allocation3 + $0xc8] sm:$0xff]
        %v7358 = vld [vmem:[#allocation3 + $0xd0] sm:$0xff]
        %v7359 = vld [vmem:[#allocation3 + $0xd8] sm:$0xff]
        %v7360 = vld [vmem:[#allocation3 + $0xe0] sm:$0xff]
        %v7361 = vld [vmem:[#allocation3 + $0xe8] sm:$0xff]
        %v7362 = vld [vmem:[#allocation3 + $0xf0] sm:$0xff]
        %v7363 = vld [vmem:[#allocation3 + $0xf8] sm:$0xff]
        %v7364 = vld [vmem:[#allocation3 + $0x100] sm:$0xff]
        %v7365 = vld [vmem:[#allocation3 + $0x108] sm:$0xff]
        %v7366 = vld [vmem:[#allocation3 + $0x110] sm:$0xff]
        %v7367 = vld [vmem:[#allocation3 + $0x118] sm:$0xff]
        %v7368 = vld [vmem:[#allocation3 + $0x120] sm:$0xff]
        %v7369 = vld [vmem:[#allocation3 + $0x128] sm:$0xff]
        %v7370 = vld [vmem:[#allocation3 + $0x130] sm:$0xff]
        %v7371 = vld [vmem:[#allocation3 + $0x138] sm:$0xff]
        %v7372 = vld [vmem:[#allocation3 + $0x140] sm:$0xff]
        %v7373 = vld [vmem:[#allocation3 + $0x148] sm:$0xff]
        %v7374 = vld [vmem:[#allocation3 + $0x150] sm:$0xff]
        %v7375 = vld [vmem:[#allocation3 + $0x158] sm:$0xff]
        %v7376 = vld [vmem:[#allocation3 + $0x160] sm:$0xff]
        %v7377 = vld [vmem:[#allocation3 + $0x168] sm:$0xff]
        %v7378 = vld [vmem:[#allocation3 + $0x170] sm:$0xff]
        %v7379 = vld [vmem:[#allocation3 + $0x178] sm:$0xff]
        %v7380 = vld [vmem:[#allocation3 + $0x180] sm:$0xff]
        %v7381 = vld [vmem:[#allocation3 + $0x188] sm:$0xff]
        %v7382 = vld [vmem:[#allocation3 + $0x190] sm:$0xff]
        %v7383 = vld [vmem:[#allocation3 + $0x198] sm:$0xff]
        %v7384 = vld [vmem:[#allocation3 + $0x1a0] sm:$0xff]
        %v7385 = vld [vmem:[#allocation3 + $0x1a8] sm:$0xff]
        %v7386 = vld [vmem:[#allocation3 + $0x1b0] sm:$0xff]
        %v7387 = vld [vmem:[#allocation3 + $0x1b8] sm:$0xff]
        %v7388 = vld [vmem:[#allocation3 + $0x1c0] sm:$0xff]
        %v7389 = vld [vmem:[#allocation3 + $0x1c8] sm:$0xff]
        %v7390 = vld [vmem:[#allocation3 + $0x1d0] sm:$0xff]
        %v7391 = vld [vmem:[#allocation3 + $0x1d8] sm:$0xff]
        %v7392 = vld [vmem:[#allocation3 + $0x1e0] sm:$0xff]
        %v7393 = vld [vmem:[#allocation3 + $0x1e8] sm:$0xff]
        %v7394 = vld [vmem:[#allocation3 + $0x1f0] sm:$0xff]
        %v7395 = vld [vmem:[#allocation3 + $0x1f8] sm:$0xff]
        %v7396 = vld [vmem:[#allocation3 + $0x200] sm:$0xff]
        %v7397 = vld [vmem:[#allocation3 + $0x208] sm:$0xff]
        %v7398 = vld [vmem:[#allocation3 + $0x210] sm:$0xff]
        %v7399 = vld [vmem:[#allocation3 + $0x218] sm:$0xff]
        %v7400 = vld [vmem:[#allocation3 + $0x220] sm:$0xff]
        %v7401 = vld [vmem:[#allocation3 + $0x228] sm:$0xff]
        %v7402 = vld [vmem:[#allocation3 + $0x230] sm:$0xff]
        %v7403 = vld [vmem:[#allocation3 + $0x238] sm:$0xff]
        %v7404 = vld [vmem:[#allocation3 + $0x240] sm:$0xff]
        %v7405 = vld [vmem:[#allocation3 + $0x248] sm:$0xff]
        %v7406 = vld [vmem:[#allocation3 + $0x250] sm:$0xff]
        %v7407 = vld [vmem:[#allocation3 + $0x258] sm:$0xff]
        %v7408 = vld [vmem:[#allocation3 + $0x260] sm:$0xff]
        %v7409 = vld [vmem:[#allocation3 + $0x268] sm:$0xff]
        %v7410 = vld [vmem:[#allocation3 + $0x270] sm:$0xff]
        %v7411 = vld [vmem:[#allocation3 + $0x278] sm:$0xff]
        %v7412 = vld [vmem:[#allocation3 + $0x280] sm:$0xff]
        %v7413 = vld [vmem:[#allocation3 + $0x288] sm:$0xff]
        %v7414 = vld [vmem:[#allocation3 + $0x290] sm:$0xff]
        %v7415 = vld [vmem:[#allocation3 + $0x298] sm:$0xff]
        %v7416 = vld [vmem:[#allocation3 + $0x2a0] sm:$0xff]
        %v7417 = vld [vmem:[#allocation3 + $0x2a8] sm:$0xff]
        %v7418 = vld [vmem:[#allocation3 + $0x2b0] sm:$0xff]
        %v7419 = vld [vmem:[#allocation3 + $0x2b8] sm:$0xff]
        %v7420 = vld [vmem:[#allocation3 + $0x2c0] sm:$0xff]
        %v7421 = vld [vmem:[#allocation3 + $0x2c8] sm:$0xff]
        %v7422 = vld [vmem:[#allocation3 + $0x2d0] sm:$0xff]
        %v7423 = vld [vmem:[#allocation3 + $0x2d8] sm:$0xff]
        %v7424 = vld [vmem:[#allocation3 + $0x2e0] sm:$0xff]
        %v7425 = vld [vmem:[#allocation3 + $0x2e8] sm:$0xff]
        %v7426 = vld [vmem:[#allocation3 + $0x2f0] sm:$0xff]
        %v7427 = vld [vmem:[#allocation3 + $0x2f8] sm:$0xff]
        %v7428 = vld [vmem:[#allocation3 + $0x300] sm:$0xff]
        %v7429 = vld [vmem:[#allocation3 + $0x308] sm:$0xff]
        %v7430 = vld [vmem:[#allocation3 + $0x310] sm:$0xff]
        %v7431 = vld [vmem:[#allocation3 + $0x318] sm:$0xff]
        %v7432 = vld [vmem:[#allocation3 + $0x320] sm:$0xff]
        %v7433 = vld [vmem:[#allocation3 + $0x328] sm:$0xff]
        %v7434 = vld [vmem:[#allocation3 + $0x330] sm:$0xff]
        %v7435 = vld [vmem:[#allocation3 + $0x338] sm:$0xff]
        %v7436 = vld [vmem:[#allocation3 + $0x340] sm:$0xff]
        %v7437 = vld [vmem:[#allocation3 + $0x348] sm:$0xff]
        %v7438 = vld [vmem:[#allocation3 + $0x350] sm:$0xff]
        %v7439 = vld [vmem:[#allocation3 + $0x358] sm:$0xff]
        %v7440 = vld [vmem:[#allocation3 + $0x360] sm:$0xff]
        %v7441 = vld [vmem:[#allocation3 + $0x368] sm:$0xff]
        %v7442 = vld [vmem:[#allocation3 + $0x370] sm:$0xff]
        %v7443 = vld [vmem:[#allocation3 + $0x378] sm:$0xff]
        %v7444 = vld [vmem:[#allocation3 + $0x380] sm:$0xff]
        %v7445 = vld [vmem:[#allocation3 + $0x388] sm:$0xff]
        %v7446 = vld [vmem:[#allocation3 + $0x390] sm:$0xff]
        %v7447 = vld [vmem:[#allocation3 + $0x398] sm:$0xff]
        %v7448 = vld [vmem:[#allocation3 + $0x3a0] sm:$0xff]
        %v7449 = vld [vmem:[#allocation3 + $0x3a8] sm:$0xff]
        %v7450 = vld [vmem:[#allocation3 + $0x3b0] sm:$0xff]
        %v7451 = vld [vmem:[#allocation3 + $0x3b8] sm:$0xff]
        %v7452 = vld [vmem:[#allocation3 + $0x3c0] sm:$0xff]
        %v7453 = vld [vmem:[#allocation3 + $0x3c8] sm:$0xff]
        %v7454 = vld [vmem:[#allocation3 + $0x3d0] sm:$0xff]
        %v7455 = vld [vmem:[#allocation3 + $0x3d8] sm:$0xff]
        %v7456 = vld [vmem:[#allocation3 + $0x3e0] sm:$0xff]
        %v7457 = vld [vmem:[#allocation3 + $0x3e8] sm:$0xff]
        %v7458 = vld [vmem:[#allocation3 + $0x3f0] sm:$0xff]
        %v7459 = vld [vmem:[#allocation3 + $0x3f8] sm:$0xff]
        %v7460 = vld [vmem:[#allocation3 + $0x400] sm:$0xff]
        %v7461 = vld [vmem:[#allocation3 + $0x408] sm:$0xff]
        %v7462 = vld [vmem:[#allocation3 + $0x410] sm:$0xff]
        %v7463 = vld [vmem:[#allocation3 + $0x418] sm:$0xff]
        %v7464 = vld [vmem:[#allocation3 + $0x420] sm:$0xff]
        %v7465 = vld [vmem:[#allocation3 + $0x428] sm:$0xff]
        %v7466 = vld [vmem:[#allocation3 + $0x430] sm:$0xff]
        %v7467 = vld [vmem:[#allocation3 + $0x438] sm:$0xff]
        %v7468 = vld [vmem:[#allocation3 + $0x440] sm:$0xff]
        %v7469 = vld [vmem:[#allocation3 + $0x448] sm:$0xff]
        %v7470 = vld [vmem:[#allocation3 + $0x450] sm:$0xff]
        %v7471 = vld [vmem:[#allocation3 + $0x458] sm:$0xff]
        %v7472 = vld [vmem:[#allocation3 + $0x460] sm:$0xff]
        %v7473 = vld [vmem:[#allocation3 + $0x468] sm:$0xff]
        %v7474 = vld [vmem:[#allocation3 + $0x470] sm:$0xff]
        %v7475 = vld [vmem:[#allocation3 + $0x478] sm:$0xff]
        %v7476 = vld [vmem:[%s4] sm:$0x1]
        %v7478 = vperm.slane %v7476, 0
        %7480 = vmatpush.msra.mxu0 %v7347
        %7481 = vmatpush.msra.mxu0 %v7346
        %7482 = vmatpush.msra.mxu0 %v7345
        %7483 = vmatpush.msra.mxu0 %v7344
        %7484 = vmatpush.msra.mxu0 %v7343
        %7485 = vmatpush.msra.mxu0 %v7342
        %7486 = vmatpush.msra.mxu0 %v7341
        %7487 = vmatpush.msra.mxu0 %v7340
        %7488 = vmatpush.msra.mxu0 %v7339
        %7489 = vmatpush.msra.mxu0 %v7338
        %7490 = vmatpush.msra.mxu0 %v7337
        %7491 = vmatpush.msra.mxu0 %v7336
        %7492 = vmatpush.msra.mxu0 %v7335
        %7493 = vmatpush.msra.mxu0 %v7334
        %7494 = vmatpush.msra.mxu0 %v7333
        %7495 = vmatpush.msra.mxu0 %v7332
        %7496 = vmatmul.f32.gmra.mxu0 %v7042
        %v7497 = vpop.f32.mrf.mxu0
        %v7498 = vadd.f32 %v7478, %v7497
        %7499 = vmatmul.f32.gmra.mxu0 %v7043
        %v7500 = vpop.f32.mrf.mxu0
        %v7501 = vadd.f32 %v7478, %v7500
        %7502 = vmatmul.f32.gmra.mxu0 %v7044
        %v7503 = vpop.f32.mrf.mxu0
        %v7504 = vadd.f32 %v7478, %v7503
        %7505 = vmatmul.f32.gmra.mxu0 %v7045
        %v7506 = vpop.f32.mrf.mxu0
        %v7507 = vadd.f32 %v7478, %v7506
        %7508 = vmatmul.f32.gmra.mxu0 %v7046
        %v7509 = vpop.f32.mrf.mxu0
        %v7510 = vadd.f32 %v7478, %v7509
        %7511 = vmatmul.f32.gmra.mxu0 %v7047
        %v7512 = vpop.f32.mrf.mxu0
        %v7513 = vadd.f32 %v7478, %v7512
        %7514 = vmatmul.f32.gmra.mxu0 %v7048
        %v7515 = vpop.f32.mrf.mxu0
        %v7516 = vadd.f32 %v7478, %v7515
        %7517 = vmatmul.f32.gmra.mxu0 %v7049
        %v7518 = vpop.f32.mrf.mxu0
        %v7519 = vadd.f32 %v7478, %v7518
        %7520 = vmatmul.f32.gmra.mxu0 %v7050
        %v7521 = vpop.f32.mrf.mxu0
        %v7522 = vadd.f32 %v7478, %v7521
        %7523 = vmatmul.f32.gmra.mxu0 %v7051
        %v7524 = vpop.f32.mrf.mxu0
        %v7525 = vadd.f32 %v7478, %v7524
        %7526 = vmatmul.f32.gmra.mxu0 %v7052
        %v7527 = vpop.f32.mrf.mxu0
        %v7528 = vadd.f32 %v7478, %v7527
        %7529 = vmatmul.f32.gmra.mxu0 %v7053
        %v7530 = vpop.f32.mrf.mxu0
        %v7531 = vadd.f32 %v7478, %v7530
        %7532 = vmatmul.f32.gmra.mxu0 %v7054
        %v7533 = vpop.f32.mrf.mxu0
        %v7534 = vadd.f32 %v7478, %v7533
        %7535 = vmatmul.f32.gmra.mxu0 %v7055
        %v7536 = vpop.f32.mrf.mxu0
        %v7537 = vadd.f32 %v7478, %v7536
        %7538 = vmatmul.f32.gmra.mxu0 %v7056
        %v7539 = vpop.f32.mrf.mxu0
        %v7540 = vadd.f32 %v7478, %v7539
        %7541 = vmatmul.f32.gmra.mxu0 %v7057
        %v7542 = vpop.f32.mrf.mxu0
        %v7543 = vadd.f32 %v7478, %v7542
        %7544 = vmatmul.f32.gmra.mxu0 %v7058
        %v7545 = vpop.f32.mrf.mxu0
        %v7546 = vadd.f32 %v7478, %v7545
        %7547 = vmatmul.f32.gmra.mxu0 %v7059
        %v7548 = vpop.f32.mrf.mxu0
        %v7549 = vadd.f32 %v7478, %v7548
        %7550 = vmatmul.f32.gmra.mxu0 %v7060
        %v7551 = vpop.f32.mrf.mxu0
        %v7552 = vadd.f32 %v7478, %v7551
        %7553 = vmatmul.f32.gmra.mxu0 %v7061
        %v7554 = vpop.f32.mrf.mxu0
        %v7555 = vadd.f32 %v7478, %v7554
        %7556 = vmatmul.f32.gmra.mxu0 %v7062
        %v7557 = vpop.f32.mrf.mxu0
        %v7558 = vadd.f32 %v7478, %v7557
        %7559 = vmatmul.f32.gmra.mxu0 %v7063
        %v7560 = vpop.f32.mrf.mxu0
        %v7561 = vadd.f32 %v7478, %v7560
        %7562 = vmatmul.f32.gmra.mxu0 %v7064
        %v7563 = vpop.f32.mrf.mxu0
        %v7564 = vadd.f32 %v7478, %v7563
        %7565 = vmatmul.f32.gmra.mxu0 %v7065
        %v7566 = vpop.f32.mrf.mxu0
        %v7567 = vadd.f32 %v7478, %v7566
        %7568 = vmatmul.f32.gmra.mxu0 %v7066
        %v7569 = vpop.f32.mrf.mxu0
        %v7570 = vadd.f32 %v7478, %v7569
        %7571 = vmatmul.f32.gmra.mxu0 %v7067
        %v7572 = vpop.f32.mrf.mxu0
        %v7573 = vadd.f32 %v7478, %v7572
        %7574 = vmatmul.f32.gmra.mxu0 %v7068
        %v7575 = vpop.f32.mrf.mxu0
        %v7576 = vadd.f32 %v7478, %v7575
        %7577 = vmatmul.f32.gmra.mxu0 %v7069
        %v7578 = vpop.f32.mrf.mxu0
        %v7579 = vadd.f32 %v7478, %v7578
        %7580 = vmatmul.f32.gmra.mxu0 %v7070
        %v7581 = vpop.f32.mrf.mxu0
        %v7582 = vadd.f32 %v7478, %v7581
        %7583 = vmatmul.f32.gmra.mxu0 %v7071
        %v7584 = vpop.f32.mrf.mxu0
        %v7585 = vadd.f32 %v7478, %v7584
        %7586 = vmatmul.f32.gmra.mxu0 %v7072
        %v7587 = vpop.f32.mrf.mxu0
        %v7588 = vadd.f32 %v7478, %v7587
        %7589 = vmatmul.f32.gmra.mxu0 %v7073
        %v7590 = vpop.f32.mrf.mxu0
        %v7591 = vadd.f32 %v7478, %v7590
        %7592 = vdwg.mxu0
        %7593 = vmatpush.msra.mxu0 %v7363
        %7594 = vmatpush.msra.mxu0 %v7362
        %7595 = vmatpush.msra.mxu0 %v7361
        %7596 = vmatpush.msra.mxu0 %v7360
        %7597 = vmatpush.msra.mxu0 %v7359
        %7598 = vmatpush.msra.mxu0 %v7358
        %7599 = vmatpush.msra.mxu0 %v7357
        %7600 = vmatpush.msra.mxu0 %v7356
        %7601 = vmatpush.msra.mxu0 %v7355
        %7602 = vmatpush.msra.mxu0 %v7354
        %7603 = vmatpush.msra.mxu0 %v7353
        %7604 = vmatpush.msra.mxu0 %v7352
        %7605 = vmatpush.msra.mxu0 %v7351
        %7606 = vmatpush.msra.mxu0 %v7350
        %7607 = vmatpush.msra.mxu0 %v7349
        %7608 = vmatpush.msra.mxu0 %v7348
        %7609 = vmatmul.f32.gmra.mxu0 %v7074
        %v7610 = vpop.f32.mrf.mxu0
        %v7611 = vadd.f32 %v7498, %v7610
        %7612 = vmatmul.f32.gmra.mxu0 %v7075
        %v7613 = vpop.f32.mrf.mxu0
        %v7614 = vadd.f32 %v7501, %v7613
        %7615 = vmatmul.f32.gmra.mxu0 %v7076
        %v7616 = vpop.f32.mrf.mxu0
        %v7617 = vadd.f32 %v7504, %v7616
        %7618 = vmatmul.f32.gmra.mxu0 %v7077
        %v7619 = vpop.f32.mrf.mxu0
        %v7620 = vadd.f32 %v7507, %v7619
        %7621 = vmatmul.f32.gmra.mxu0 %v7078
        %v7622 = vpop.f32.mrf.mxu0
        %v7623 = vadd.f32 %v7510, %v7622
        %7624 = vmatmul.f32.gmra.mxu0 %v7079
        %v7625 = vpop.f32.mrf.mxu0
        %v7626 = vadd.f32 %v7513, %v7625
        %7627 = vmatmul.f32.gmra.mxu0 %v7080
        %v7628 = vpop.f32.mrf.mxu0
        %v7629 = vadd.f32 %v7516, %v7628
        %7630 = vmatmul.f32.gmra.mxu0 %v7081
        %v7631 = vpop.f32.mrf.mxu0
        %v7632 = vadd.f32 %v7519, %v7631
        %7633 = vmatmul.f32.gmra.mxu0 %v7082
        %v7634 = vpop.f32.mrf.mxu0
        %v7635 = vadd.f32 %v7522, %v7634
        %7636 = vmatmul.f32.gmra.mxu0 %v7083
        %v7637 = vpop.f32.mrf.mxu0
        %v7638 = vadd.f32 %v7525, %v7637
        %7639 = vmatmul.f32.gmra.mxu0 %v7084
        %v7640 = vpop.f32.mrf.mxu0
        %v7641 = vadd.f32 %v7528, %v7640
        %7642 = vmatmul.f32.gmra.mxu0 %v7085
        %v7643 = vpop.f32.mrf.mxu0
        %v7644 = vadd.f32 %v7531, %v7643
        %7645 = vmatmul.f32.gmra.mxu0 %v7086
        %v7646 = vpop.f32.mrf.mxu0
        %v7647 = vadd.f32 %v7534, %v7646
        %7648 = vmatmul.f32.gmra.mxu0 %v7087
        %v7649 = vpop.f32.mrf.mxu0
        %v7650 = vadd.f32 %v7537, %v7649
        %7651 = vmatmul.f32.gmra.mxu0 %v7088
        %v7652 = vpop.f32.mrf.mxu0
        %v7653 = vadd.f32 %v7540, %v7652
        %7654 = vmatmul.f32.gmra.mxu0 %v7089
        %v7655 = vpop.f32.mrf.mxu0
        %v7656 = vadd.f32 %v7543, %v7655
        %7657 = vmatmul.f32.gmra.mxu0 %v7090
        %v7658 = vpop.f32.mrf.mxu0
        %v7659 = vadd.f32 %v7546, %v7658
        %7660 = vmatmul.f32.gmra.mxu0 %v7091
        %v7661 = vpop.f32.mrf.mxu0
        %v7662 = vadd.f32 %v7549, %v7661
        %7663 = vmatmul.f32.gmra.mxu0 %v7092
        %v7664 = vpop.f32.mrf.mxu0
        %v7665 = vadd.f32 %v7552, %v7664
        %7666 = vmatmul.f32.gmra.mxu0 %v7093
        %v7667 = vpop.f32.mrf.mxu0
        %v7668 = vadd.f32 %v7555, %v7667
        %7669 = vmatmul.f32.gmra.mxu0 %v7094
        %v7670 = vpop.f32.mrf.mxu0
        %v7671 = vadd.f32 %v7558, %v7670
        %7672 = vmatmul.f32.gmra.mxu0 %v7095
        %v7673 = vpop.f32.mrf.mxu0
        %v7674 = vadd.f32 %v7561, %v7673
        %7675 = vmatmul.f32.gmra.mxu0 %v7096
        %v7676 = vpop.f32.mrf.mxu0
        %v7677 = vadd.f32 %v7564, %v7676
        %7678 = vmatmul.f32.gmra.mxu0 %v7097
        %v7679 = vpop.f32.mrf.mxu0
        %v7680 = vadd.f32 %v7567, %v7679
        %7681 = vmatmul.f32.gmra.mxu0 %v7098
        %v7682 = vpop.f32.mrf.mxu0
        %v7683 = vadd.f32 %v7570, %v7682
        %7684 = vmatmul.f32.gmra.mxu0 %v7099
        %v7685 = vpop.f32.mrf.mxu0
        %v7686 = vadd.f32 %v7573, %v7685
        %7687 = vmatmul.f32.gmra.mxu0 %v7100
        %v7688 = vpop.f32.mrf.mxu0
        %v7689 = vadd.f32 %v7576, %v7688
        %7690 = vmatmul.f32.gmra.mxu0 %v7101
        %v7691 = vpop.f32.mrf.mxu0
        %v7692 = vadd.f32 %v7579, %v7691
        %7693 = vmatmul.f32.gmra.mxu0 %v7102
        %v7694 = vpop.f32.mrf.mxu0
        %v7695 = vadd.f32 %v7582, %v7694
        %7696 = vmatmul.f32.gmra.mxu0 %v7103
        %v7697 = vpop.f32.mrf.mxu0
        %v7698 = vadd.f32 %v7585, %v7697
        %7699 = vmatmul.f32.gmra.mxu0 %v7104
        %v7700 = vpop.f32.mrf.mxu0
        %v7701 = vadd.f32 %v7588, %v7700
        %7702 = vmatmul.f32.gmra.mxu0 %v7105
        %v7703 = vpop.f32.mrf.mxu0
        %v7704 = vadd.f32 %v7591, %v7703
        %7705 = vdwg.mxu0
        %7706 = vmatpush.msra.mxu0 %v7379
        %7707 = vmatpush.msra.mxu0 %v7378
        %7708 = vmatpush.msra.mxu0 %v7377
        %7709 = vmatpush.msra.mxu0 %v7376
        %7710 = vmatpush.msra.mxu0 %v7375
        %7711 = vmatpush.msra.mxu0 %v7374
        %7712 = vmatpush.msra.mxu0 %v7373
        %7713 = vmatpush.msra.mxu0 %v7372
        %7714 = vmatpush.msra.mxu0 %v7371
        %7715 = vmatpush.msra.mxu0 %v7370
        %7716 = vmatpush.msra.mxu0 %v7369
        %7717 = vmatpush.msra.mxu0 %v7368
        %7718 = vmatpush.msra.mxu0 %v7367
        %7719 = vmatpush.msra.mxu0 %v7366
        %7720 = vmatpush.msra.mxu0 %v7365
        %7721 = vmatpush.msra.mxu0 %v7364
        %7722 = vmatmul.f32.gmra.mxu0 %v7106
        %v7723 = vpop.f32.mrf.mxu0
        %v7724 = vadd.f32 %v7611, %v7723
        %7725 = vmatmul.f32.gmra.mxu0 %v7107
        %v7726 = vpop.f32.mrf.mxu0
        %v7727 = vadd.f32 %v7614, %v7726
        %7728 = vmatmul.f32.gmra.mxu0 %v7108
        %v7729 = vpop.f32.mrf.mxu0
        %v7730 = vadd.f32 %v7617, %v7729
        %7731 = vmatmul.f32.gmra.mxu0 %v7109
        %v7732 = vpop.f32.mrf.mxu0
        %v7733 = vadd.f32 %v7620, %v7732
        %7734 = vmatmul.f32.gmra.mxu0 %v7110
        %v7735 = vpop.f32.mrf.mxu0
        %v7736 = vadd.f32 %v7623, %v7735
        %7737 = vmatmul.f32.gmra.mxu0 %v7111
        %v7738 = vpop.f32.mrf.mxu0
        %v7739 = vadd.f32 %v7626, %v7738
        %7740 = vmatmul.f32.gmra.mxu0 %v7112
        %v7741 = vpop.f32.mrf.mxu0
        %v7742 = vadd.f32 %v7629, %v7741
        %7743 = vmatmul.f32.gmra.mxu0 %v7113
        %v7744 = vpop.f32.mrf.mxu0
        %v7745 = vadd.f32 %v7632, %v7744
        %7746 = vmatmul.f32.gmra.mxu0 %v7114
        %v7747 = vpop.f32.mrf.mxu0
        %v7748 = vadd.f32 %v7635, %v7747
        %7749 = vmatmul.f32.gmra.mxu0 %v7115
        %v7750 = vpop.f32.mrf.mxu0
        %v7751 = vadd.f32 %v7638, %v7750
        %7752 = vmatmul.f32.gmra.mxu0 %v7116
        %v7753 = vpop.f32.mrf.mxu0
        %v7754 = vadd.f32 %v7641, %v7753
        %7755 = vmatmul.f32.gmra.mxu0 %v7117
        %v7756 = vpop.f32.mrf.mxu0
        %v7757 = vadd.f32 %v7644, %v7756
        %7758 = vmatmul.f32.gmra.mxu0 %v7118
        %v7759 = vpop.f32.mrf.mxu0
        %v7760 = vadd.f32 %v7647, %v7759
        %7761 = vmatmul.f32.gmra.mxu0 %v7119
        %v7762 = vpop.f32.mrf.mxu0
        %v7763 = vadd.f32 %v7650, %v7762
        %7764 = vmatmul.f32.gmra.mxu0 %v7120
        %v7765 = vpop.f32.mrf.mxu0
        %v7766 = vadd.f32 %v7653, %v7765
        %7767 = vmatmul.f32.gmra.mxu0 %v7121
        %v7768 = vpop.f32.mrf.mxu0
        %v7769 = vadd.f32 %v7656, %v7768
        %7770 = vmatmul.f32.gmra.mxu0 %v7122
        %v7771 = vpop.f32.mrf.mxu0
        %v7772 = vadd.f32 %v7659, %v7771
        %7773 = vmatmul.f32.gmra.mxu0 %v7123
        %v7774 = vpop.f32.mrf.mxu0
        %v7775 = vadd.f32 %v7662, %v7774
        %7776 = vmatmul.f32.gmra.mxu0 %v7124
        %v7777 = vpop.f32.mrf.mxu0
        %v7778 = vadd.f32 %v7665, %v7777
        %7779 = vmatmul.f32.gmra.mxu0 %v7125
        %v7780 = vpop.f32.mrf.mxu0
        %v7781 = vadd.f32 %v7668, %v7780
        %7782 = vmatmul.f32.gmra.mxu0 %v7126
        %v7783 = vpop.f32.mrf.mxu0
        %v7784 = vadd.f32 %v7671, %v7783
        %7785 = vmatmul.f32.gmra.mxu0 %v7127
        %v7786 = vpop.f32.mrf.mxu0
        %v7787 = vadd.f32 %v7674, %v7786
        %7788 = vmatmul.f32.gmra.mxu0 %v7128
        %v7789 = vpop.f32.mrf.mxu0
        %v7790 = vadd.f32 %v7677, %v7789
        %7791 = vmatmul.f32.gmra.mxu0 %v7129
        %v7792 = vpop.f32.mrf.mxu0
        %v7793 = vadd.f32 %v7680, %v7792
        %7794 = vmatmul.f32.gmra.mxu0 %v7130
        %v7795 = vpop.f32.mrf.mxu0
        %v7796 = vadd.f32 %v7683, %v7795
        %7797 = vmatmul.f32.gmra.mxu0 %v7131
        %v7798 = vpop.f32.mrf.mxu0
        %v7799 = vadd.f32 %v7686, %v7798
        %7800 = vmatmul.f32.gmra.mxu0 %v7132
        %v7801 = vpop.f32.mrf.mxu0
        %v7802 = vadd.f32 %v7689, %v7801
        %7803 = vmatmul.f32.gmra.mxu0 %v7133
        %v7804 = vpop.f32.mrf.mxu0
        %v7805 = vadd.f32 %v7692, %v7804
        %7806 = vmatmul.f32.gmra.mxu0 %v7134
        %v7807 = vpop.f32.mrf.mxu0
        %v7808 = vadd.f32 %v7695, %v7807
        %7809 = vmatmul.f32.gmra.mxu0 %v7135
        %v7810 = vpop.f32.mrf.mxu0
        %v7811 = vadd.f32 %v7698, %v7810
        %7812 = vmatmul.f32.gmra.mxu0 %v7136
        %v7813 = vpop.f32.mrf.mxu0
        %v7814 = vadd.f32 %v7701, %v7813
        %7815 = vmatmul.f32.gmra.mxu0 %v7137
        %v7816 = vpop.f32.mrf.mxu0
        %v7817 = vadd.f32 %v7704, %v7816
        %7818 = vdwg.mxu0
        %7819 = vmatpush.msra.mxu0 %v7395
        %7820 = vmatpush.msra.mxu0 %v7394
        %7821 = vmatpush.msra.mxu0 %v7393
        %7822 = vmatpush.msra.mxu0 %v7392
        %7823 = vmatpush.msra.mxu0 %v7391
        %7824 = vmatpush.msra.mxu0 %v7390
        %7825 = vmatpush.msra.mxu0 %v7389
        %7826 = vmatpush.msra.mxu0 %v7388
        %7827 = vmatpush.msra.mxu0 %v7387
        %7828 = vmatpush.msra.mxu0 %v7386
        %7829 = vmatpush.msra.mxu0 %v7385
        %7830 = vmatpush.msra.mxu0 %v7384
        %7831 = vmatpush.msra.mxu0 %v7383
        %7832 = vmatpush.msra.mxu0 %v7382
        %7833 = vmatpush.msra.mxu0 %v7381
        %7834 = vmatpush.msra.mxu0 %v7380
        %7835 = vmatmul.f32.gmra.mxu0 %v7139
        %v7836 = vpop.f32.mrf.mxu0
        %v7837 = vadd.f32 %v7724, %v7836
        %7838 = vmatmul.f32.gmra.mxu0 %v7140
        %v7839 = vpop.f32.mrf.mxu0
        %v7840 = vadd.f32 %v7727, %v7839
        %7841 = vmatmul.f32.gmra.mxu0 %v7141
        %v7842 = vpop.f32.mrf.mxu0
        %v7843 = vadd.f32 %v7730, %v7842
        %7844 = vmatmul.f32.gmra.mxu0 %v7142
        %v7845 = vpop.f32.mrf.mxu0
        %v7846 = vadd.f32 %v7733, %v7845
        %7847 = vmatmul.f32.gmra.mxu0 %v7143
        %v7848 = vpop.f32.mrf.mxu0
        %v7849 = vadd.f32 %v7736, %v7848
        %7850 = vmatmul.f32.gmra.mxu0 %v7144
        %v7851 = vpop.f32.mrf.mxu0
        %v7852 = vadd.f32 %v7739, %v7851
        %7853 = vmatmul.f32.gmra.mxu0 %v7145
        %v7854 = vpop.f32.mrf.mxu0
        %v7855 = vadd.f32 %v7742, %v7854
        %7856 = vmatmul.f32.gmra.mxu0 %v7146
        %v7857 = vpop.f32.mrf.mxu0
        %v7858 = vadd.f32 %v7745, %v7857
        %7859 = vmatmul.f32.gmra.mxu0 %v7147
        %v7860 = vpop.f32.mrf.mxu0
        %v7861 = vadd.f32 %v7748, %v7860
        %7862 = vmatmul.f32.gmra.mxu0 %v7148
        %v7863 = vpop.f32.mrf.mxu0
        %v7864 = vadd.f32 %v7751, %v7863
        %7865 = vmatmul.f32.gmra.mxu0 %v7149
        %v7866 = vpop.f32.mrf.mxu0
        %v7867 = vadd.f32 %v7754, %v7866
        %7868 = vmatmul.f32.gmra.mxu0 %v7150
        %v7869 = vpop.f32.mrf.mxu0
        %v7870 = vadd.f32 %v7757, %v7869
        %7871 = vmatmul.f32.gmra.mxu0 %v7151
        %v7872 = vpop.f32.mrf.mxu0
        %v7873 = vadd.f32 %v7760, %v7872
        %7874 = vmatmul.f32.gmra.mxu0 %v7152
        %v7875 = vpop.f32.mrf.mxu0
        %v7876 = vadd.f32 %v7763, %v7875
        %7877 = vmatmul.f32.gmra.mxu0 %v7153
        %v7878 = vpop.f32.mrf.mxu0
        %v7879 = vadd.f32 %v7766, %v7878
        %7880 = vmatmul.f32.gmra.mxu0 %v7154
        %v7881 = vpop.f32.mrf.mxu0
        %v7882 = vadd.f32 %v7769, %v7881
        %7883 = vmatmul.f32.gmra.mxu0 %v7155
        %v7884 = vpop.f32.mrf.mxu0
        %v7885 = vadd.f32 %v7772, %v7884
        %7886 = vmatmul.f32.gmra.mxu0 %v7156
        %v7887 = vpop.f32.mrf.mxu0
        %v7888 = vadd.f32 %v7775, %v7887
        %7889 = vmatmul.f32.gmra.mxu0 %v7157
        %v7890 = vpop.f32.mrf.mxu0
        %v7891 = vadd.f32 %v7778, %v7890
        %7892 = vmatmul.f32.gmra.mxu0 %v7158
        %v7893 = vpop.f32.mrf.mxu0
        %v7894 = vadd.f32 %v7781, %v7893
        %7895 = vmatmul.f32.gmra.mxu0 %v7159
        %v7896 = vpop.f32.mrf.mxu0
        %v7897 = vadd.f32 %v7784, %v7896
        %7898 = vmatmul.f32.gmra.mxu0 %v7160
        %v7899 = vpop.f32.mrf.mxu0
        %v7900 = vadd.f32 %v7787, %v7899
        %7901 = vmatmul.f32.gmra.mxu0 %v7161
        %v7902 = vpop.f32.mrf.mxu0
        %v7903 = vadd.f32 %v7790, %v7902
        %7904 = vmatmul.f32.gmra.mxu0 %v7162
        %v7905 = vpop.f32.mrf.mxu0
        %v7906 = vadd.f32 %v7793, %v7905
        %7907 = vmatmul.f32.gmra.mxu0 %v7163
        %v7908 = vpop.f32.mrf.mxu0
        %v7909 = vadd.f32 %v7796, %v7908
        %7910 = vmatmul.f32.gmra.mxu0 %v7164
        %v7911 = vpop.f32.mrf.mxu0
        %v7912 = vadd.f32 %v7799, %v7911
        %7913 = vmatmul.f32.gmra.mxu0 %v7165
        %v7914 = vpop.f32.mrf.mxu0
        %v7915 = vadd.f32 %v7802, %v7914
        %7916 = vmatmul.f32.gmra.mxu0 %v7166
        %v7917 = vpop.f32.mrf.mxu0
        %v7918 = vadd.f32 %v7805, %v7917
        %7919 = vmatmul.f32.gmra.mxu0 %v7167
        %v7920 = vpop.f32.mrf.mxu0
        %v7921 = vadd.f32 %v7808, %v7920
        %7922 = vmatmul.f32.gmra.mxu0 %v7168
        %v7923 = vpop.f32.mrf.mxu0
        %v7924 = vadd.f32 %v7811, %v7923
        %7925 = vmatmul.f32.gmra.mxu0 %v7169
        %v7926 = vpop.f32.mrf.mxu0
        %v7927 = vadd.f32 %v7814, %v7926
        %7928 = vmatmul.f32.gmra.mxu0 %v7170
        %v7929 = vpop.f32.mrf.mxu0
        %v7930 = vadd.f32 %v7817, %v7929
        %7931 = vdwg.mxu0
        %7932 = vmatpush.msra.mxu0 %v7411
        %7933 = vmatpush.msra.mxu0 %v7410
        %7934 = vmatpush.msra.mxu0 %v7409
        %7935 = vmatpush.msra.mxu0 %v7408
        %7936 = vmatpush.msra.mxu0 %v7407
        %7937 = vmatpush.msra.mxu0 %v7406
        %7938 = vmatpush.msra.mxu0 %v7405
        %7939 = vmatpush.msra.mxu0 %v7404
        %7940 = vmatpush.msra.mxu0 %v7403
        %7941 = vmatpush.msra.mxu0 %v7402
        %7942 = vmatpush.msra.mxu0 %v7401
        %7943 = vmatpush.msra.mxu0 %v7400
        %7944 = vmatpush.msra.mxu0 %v7399
        %7945 = vmatpush.msra.mxu0 %v7398
        %7946 = vmatpush.msra.mxu0 %v7397
        %7947 = vmatpush.msra.mxu0 %v7396
        %7948 = vmatmul.f32.gmra.mxu0 %v7171
        %v7949 = vpop.f32.mrf.mxu0
        %v7950 = vadd.f32 %v7837, %v7949
        %7951 = vmatmul.f32.gmra.mxu0 %v7172
        %v7952 = vpop.f32.mrf.mxu0
        %v7953 = vadd.f32 %v7840, %v7952
        %7954 = vmatmul.f32.gmra.mxu0 %v7173
        %v7955 = vpop.f32.mrf.mxu0
        %v7956 = vadd.f32 %v7843, %v7955
        %7957 = vmatmul.f32.gmra.mxu0 %v7174
        %v7958 = vpop.f32.mrf.mxu0
        %v7959 = vadd.f32 %v7846, %v7958
        %7960 = vmatmul.f32.gmra.mxu0 %v7175
        %v7961 = vpop.f32.mrf.mxu0
        %v7962 = vadd.f32 %v7849, %v7961
        %7963 = vmatmul.f32.gmra.mxu0 %v7176
        %v7964 = vpop.f32.mrf.mxu0
        %v7965 = vadd.f32 %v7852, %v7964
        %7966 = vmatmul.f32.gmra.mxu0 %v7177
        %v7967 = vpop.f32.mrf.mxu0
        %v7968 = vadd.f32 %v7855, %v7967
        %7969 = vmatmul.f32.gmra.mxu0 %v7178
        %v7970 = vpop.f32.mrf.mxu0
        %v7971 = vadd.f32 %v7858, %v7970
        %7972 = vmatmul.f32.gmra.mxu0 %v7179
        %v7973 = vpop.f32.mrf.mxu0
        %v7974 = vadd.f32 %v7861, %v7973
        %7975 = vmatmul.f32.gmra.mxu0 %v7180
        %v7976 = vpop.f32.mrf.mxu0
        %v7977 = vadd.f32 %v7864, %v7976
        %7978 = vmatmul.f32.gmra.mxu0 %v7181
        %v7979 = vpop.f32.mrf.mxu0
        %v7980 = vadd.f32 %v7867, %v7979
        %7981 = vmatmul.f32.gmra.mxu0 %v7182
        %v7982 = vpop.f32.mrf.mxu0
        %v7983 = vadd.f32 %v7870, %v7982
        %7984 = vmatmul.f32.gmra.mxu0 %v7183
        %v7985 = vpop.f32.mrf.mxu0
        %v7986 = vadd.f32 %v7873, %v7985
        %7987 = vmatmul.f32.gmra.mxu0 %v7184
        %v7988 = vpop.f32.mrf.mxu0
        %v7989 = vadd.f32 %v7876, %v7988
        %7990 = vmatmul.f32.gmra.mxu0 %v7185
        %v7991 = vpop.f32.mrf.mxu0
        %v7992 = vadd.f32 %v7879, %v7991
        %7993 = vmatmul.f32.gmra.mxu0 %v7186
        %v7994 = vpop.f32.mrf.mxu0
        %v7995 = vadd.f32 %v7882, %v7994
        %7996 = vmatmul.f32.gmra.mxu0 %v7187
        %v7997 = vpop.f32.mrf.mxu0
        %v7998 = vadd.f32 %v7885, %v7997
        %7999 = vmatmul.f32.gmra.mxu0 %v7188
        %v8000 = vpop.f32.mrf.mxu0
        %v8001 = vadd.f32 %v7888, %v8000
        %8002 = vmatmul.f32.gmra.mxu0 %v7189
        %v8003 = vpop.f32.mrf.mxu0
        %v8004 = vadd.f32 %v7891, %v8003
        %8005 = vmatmul.f32.gmra.mxu0 %v7190
        %v8006 = vpop.f32.mrf.mxu0
        %v8007 = vadd.f32 %v7894, %v8006
        %8008 = vmatmul.f32.gmra.mxu0 %v7191
        %v8009 = vpop.f32.mrf.mxu0
        %v8010 = vadd.f32 %v7897, %v8009
        %8011 = vmatmul.f32.gmra.mxu0 %v7192
        %v8012 = vpop.f32.mrf.mxu0
        %v8013 = vadd.f32 %v7900, %v8012
        %8014 = vmatmul.f32.gmra.mxu0 %v7193
        %v8015 = vpop.f32.mrf.mxu0
        %v8016 = vadd.f32 %v7903, %v8015
        %8017 = vmatmul.f32.gmra.mxu0 %v7194
        %v8018 = vpop.f32.mrf.mxu0
        %v8019 = vadd.f32 %v7906, %v8018
        %8020 = vmatmul.f32.gmra.mxu0 %v7195
        %v8021 = vpop.f32.mrf.mxu0
        %v8022 = vadd.f32 %v7909, %v8021
        %8023 = vmatmul.f32.gmra.mxu0 %v7196
        %v8024 = vpop.f32.mrf.mxu0
        %v8025 = vadd.f32 %v7912, %v8024
        %8026 = vmatmul.f32.gmra.mxu0 %v7197
        %v8027 = vpop.f32.mrf.mxu0
        %v8028 = vadd.f32 %v7915, %v8027
        %8029 = vmatmul.f32.gmra.mxu0 %v7198
        %v8030 = vpop.f32.mrf.mxu0
        %v8031 = vadd.f32 %v7918, %v8030
        %8032 = vmatmul.f32.gmra.mxu0 %v7199
        %v8033 = vpop.f32.mrf.mxu0
        %v8034 = vadd.f32 %v7921, %v8033
        %8035 = vmatmul.f32.gmra.mxu0 %v7200
        %v8036 = vpop.f32.mrf.mxu0
        %v8037 = vadd.f32 %v7924, %v8036
        %8038 = vmatmul.f32.gmra.mxu0 %v7201
        %v8039 = vpop.f32.mrf.mxu0
        %v8040 = vadd.f32 %v7927, %v8039
        %8041 = vmatmul.f32.gmra.mxu0 %v7202
        %v8042 = vpop.f32.mrf.mxu0
        %v8043 = vadd.f32 %v7930, %v8042
        %8044 = vdwg.mxu0
        %8045 = vmatpush.msra.mxu0 %v7427
        %8046 = vmatpush.msra.mxu0 %v7426
        %8047 = vmatpush.msra.mxu0 %v7425
        %8048 = vmatpush.msra.mxu0 %v7424
        %8049 = vmatpush.msra.mxu0 %v7423
        %8050 = vmatpush.msra.mxu0 %v7422
        %8051 = vmatpush.msra.mxu0 %v7421
        %8052 = vmatpush.msra.mxu0 %v7420
        %8053 = vmatpush.msra.mxu0 %v7419
        %8054 = vmatpush.msra.mxu0 %v7418
        %8055 = vmatpush.msra.mxu0 %v7417
        %8056 = vmatpush.msra.mxu0 %v7416
        %8057 = vmatpush.msra.mxu0 %v7415
        %8058 = vmatpush.msra.mxu0 %v7414
        %8059 = vmatpush.msra.mxu0 %v7413
        %8060 = vmatpush.msra.mxu0 %v7412
        %8061 = vmatmul.f32.gmra.mxu0 %v7203
        %v8062 = vpop.f32.mrf.mxu0
        %v8063 = vadd.f32 %v7950, %v8062
        %8064 = vmatmul.f32.gmra.mxu0 %v7204
        %v8065 = vpop.f32.mrf.mxu0
        %v8066 = vadd.f32 %v7953, %v8065
        %8067 = vmatmul.f32.gmra.mxu0 %v7205
        %v8068 = vpop.f32.mrf.mxu0
        %v8069 = vadd.f32 %v7956, %v8068
        %8070 = vmatmul.f32.gmra.mxu0 %v7206
        %v8071 = vpop.f32.mrf.mxu0
        %v8072 = vadd.f32 %v7959, %v8071
        %8073 = vmatmul.f32.gmra.mxu0 %v7207
        %v8074 = vpop.f32.mrf.mxu0
        %v8075 = vadd.f32 %v7962, %v8074
        %8076 = vmatmul.f32.gmra.mxu0 %v7208
        %v8077 = vpop.f32.mrf.mxu0
        %v8078 = vadd.f32 %v7965, %v8077
        %8079 = vmatmul.f32.gmra.mxu0 %v7209
        %v8080 = vpop.f32.mrf.mxu0
        %v8081 = vadd.f32 %v7968, %v8080
        %8082 = vmatmul.f32.gmra.mxu0 %v7210
        %v8083 = vpop.f32.mrf.mxu0
        %v8084 = vadd.f32 %v7971, %v8083
        %8085 = vmatmul.f32.gmra.mxu0 %v7211
        %v8086 = vpop.f32.mrf.mxu0
        %v8087 = vadd.f32 %v7974, %v8086
        %8088 = vmatmul.f32.gmra.mxu0 %v7212
        %v8089 = vpop.f32.mrf.mxu0
        %v8090 = vadd.f32 %v7977, %v8089
        %8091 = vmatmul.f32.gmra.mxu0 %v7213
        %v8092 = vpop.f32.mrf.mxu0
        %v8093 = vadd.f32 %v7980, %v8092
        %8094 = vmatmul.f32.gmra.mxu0 %v7214
        %v8095 = vpop.f32.mrf.mxu0
        %v8096 = vadd.f32 %v7983, %v8095
        %8097 = vmatmul.f32.gmra.mxu0 %v7215
        %v8098 = vpop.f32.mrf.mxu0
        %v8099 = vadd.f32 %v7986, %v8098
        %8100 = vmatmul.f32.gmra.mxu0 %v7216
        %v8101 = vpop.f32.mrf.mxu0
        %v8102 = vadd.f32 %v7989, %v8101
        %8103 = vmatmul.f32.gmra.mxu0 %v7217
        %v8104 = vpop.f32.mrf.mxu0
        %v8105 = vadd.f32 %v7992, %v8104
        %8106 = vmatmul.f32.gmra.mxu0 %v7218
        %v8107 = vpop.f32.mrf.mxu0
        %v8108 = vadd.f32 %v7995, %v8107
        %8109 = vmatmul.f32.gmra.mxu0 %v7219
        %v8110 = vpop.f32.mrf.mxu0
        %v8111 = vadd.f32 %v7998, %v8110
        %8112 = vmatmul.f32.gmra.mxu0 %v7220
        %v8113 = vpop.f32.mrf.mxu0
        %v8114 = vadd.f32 %v8001, %v8113
        %8115 = vmatmul.f32.gmra.mxu0 %v7221
        %v8116 = vpop.f32.mrf.mxu0
        %v8117 = vadd.f32 %v8004, %v8116
        %8118 = vmatmul.f32.gmra.mxu0 %v7222
        %v8119 = vpop.f32.mrf.mxu0
        %v8120 = vadd.f32 %v8007, %v8119
        %8121 = vmatmul.f32.gmra.mxu0 %v7223
        %v8122 = vpop.f32.mrf.mxu0
        %v8123 = vadd.f32 %v8010, %v8122
        %8124 = vmatmul.f32.gmra.mxu0 %v7224
        %v8125 = vpop.f32.mrf.mxu0
        %v8126 = vadd.f32 %v8013, %v8125
        %8127 = vmatmul.f32.gmra.mxu0 %v7225
        %v8128 = vpop.f32.mrf.mxu0
        %v8129 = vadd.f32 %v8016, %v8128
        %8130 = vmatmul.f32.gmra.mxu0 %v7226
        %v8131 = vpop.f32.mrf.mxu0
        %v8132 = vadd.f32 %v8019, %v8131
        %8133 = vmatmul.f32.gmra.mxu0 %v7227
        %v8134 = vpop.f32.mrf.mxu0
        %v8135 = vadd.f32 %v8022, %v8134
        %8136 = vmatmul.f32.gmra.mxu0 %v7228
        %v8137 = vpop.f32.mrf.mxu0
        %v8138 = vadd.f32 %v8025, %v8137
        %8139 = vmatmul.f32.gmra.mxu0 %v7229
        %v8140 = vpop.f32.mrf.mxu0
        %v8141 = vadd.f32 %v8028, %v8140
        %8142 = vmatmul.f32.gmra.mxu0 %v7230
        %v8143 = vpop.f32.mrf.mxu0
        %v8144 = vadd.f32 %v8031, %v8143
        %8145 = vmatmul.f32.gmra.mxu0 %v7231
        %v8146 = vpop.f32.mrf.mxu0
        %v8147 = vadd.f32 %v8034, %v8146
        %8148 = vmatmul.f32.gmra.mxu0 %v7232
        %v8149 = vpop.f32.mrf.mxu0
        %v8150 = vadd.f32 %v8037, %v8149
        %8151 = vmatmul.f32.gmra.mxu0 %v7233
        %v8152 = vpop.f32.mrf.mxu0
        %v8153 = vadd.f32 %v8040, %v8152
        %8154 = vmatmul.f32.gmra.mxu0 %v7234
        %v8155 = vpop.f32.mrf.mxu0
        %v8156 = vadd.f32 %v8043, %v8155
        %8157 = vdwg.mxu0
        %8158 = vmatpush.msra.mxu0 %v7443
        %8159 = vmatpush.msra.mxu0 %v7442
        %8160 = vmatpush.msra.mxu0 %v7441
        %8161 = vmatpush.msra.mxu0 %v7440
        %8162 = vmatpush.msra.mxu0 %v7439
        %8163 = vmatpush.msra.mxu0 %v7438
        %8164 = vmatpush.msra.mxu0 %v7437
        %8165 = vmatpush.msra.mxu0 %v7436
        %8166 = vmatpush.msra.mxu0 %v7435
        %8167 = vmatpush.msra.mxu0 %v7434
        %8168 = vmatpush.msra.mxu0 %v7433
        %8169 = vmatpush.msra.mxu0 %v7432
        %8170 = vmatpush.msra.mxu0 %v7431
        %8171 = vmatpush.msra.mxu0 %v7430
        %8172 = vmatpush.msra.mxu0 %v7429
        %8173 = vmatpush.msra.mxu0 %v7428
        %8174 = vmatmul.f32.gmra.mxu0 %v7236
        %v8175 = vpop.f32.mrf.mxu0
        %v8176 = vadd.f32 %v8063, %v8175
        %8177 = vmatmul.f32.gmra.mxu0 %v7237
        %v8178 = vpop.f32.mrf.mxu0
        %v8179 = vadd.f32 %v8066, %v8178
        %8180 = vmatmul.f32.gmra.mxu0 %v7238
        %v8181 = vpop.f32.mrf.mxu0
        %v8182 = vadd.f32 %v8069, %v8181
        %8183 = vmatmul.f32.gmra.mxu0 %v7239
        %v8184 = vpop.f32.mrf.mxu0
        %v8185 = vadd.f32 %v8072, %v8184
        %8186 = vmatmul.f32.gmra.mxu0 %v7240
        %v8187 = vpop.f32.mrf.mxu0
        %v8188 = vadd.f32 %v8075, %v8187
        %8189 = vmatmul.f32.gmra.mxu0 %v7241
        %v8190 = vpop.f32.mrf.mxu0
        %v8191 = vadd.f32 %v8078, %v8190
        %8192 = vmatmul.f32.gmra.mxu0 %v7242
        %v8193 = vpop.f32.mrf.mxu0
        %v8194 = vadd.f32 %v8081, %v8193
        %8195 = vmatmul.f32.gmra.mxu0 %v7243
        %v8196 = vpop.f32.mrf.mxu0
        %v8197 = vadd.f32 %v8084, %v8196
        %8198 = vmatmul.f32.gmra.mxu0 %v7244
        %v8199 = vpop.f32.mrf.mxu0
        %v8200 = vadd.f32 %v8087, %v8199
        %8201 = vmatmul.f32.gmra.mxu0 %v7245
        %v8202 = vpop.f32.mrf.mxu0
        %v8203 = vadd.f32 %v8090, %v8202
        %8204 = vmatmul.f32.gmra.mxu0 %v7246
        %v8205 = vpop.f32.mrf.mxu0
        %v8206 = vadd.f32 %v8093, %v8205
        %8207 = vmatmul.f32.gmra.mxu0 %v7247
        %v8208 = vpop.f32.mrf.mxu0
        %v8209 = vadd.f32 %v8096, %v8208
        %8210 = vmatmul.f32.gmra.mxu0 %v7248
        %v8211 = vpop.f32.mrf.mxu0
        %v8212 = vadd.f32 %v8099, %v8211
        %8213 = vmatmul.f32.gmra.mxu0 %v7249
        %v8214 = vpop.f32.mrf.mxu0
        %v8215 = vadd.f32 %v8102, %v8214
        %8216 = vmatmul.f32.gmra.mxu0 %v7250
        %v8217 = vpop.f32.mrf.mxu0
        %v8218 = vadd.f32 %v8105, %v8217
        %8219 = vmatmul.f32.gmra.mxu0 %v7251
        %v8220 = vpop.f32.mrf.mxu0
        %v8221 = vadd.f32 %v8108, %v8220
        %8222 = vmatmul.f32.gmra.mxu0 %v7252
        %v8223 = vpop.f32.mrf.mxu0
        %v8224 = vadd.f32 %v8111, %v8223
        %8225 = vmatmul.f32.gmra.mxu0 %v7253
        %v8226 = vpop.f32.mrf.mxu0
        %v8227 = vadd.f32 %v8114, %v8226
        %8228 = vmatmul.f32.gmra.mxu0 %v7254
        %v8229 = vpop.f32.mrf.mxu0
        %v8230 = vadd.f32 %v8117, %v8229
        %8231 = vmatmul.f32.gmra.mxu0 %v7255
        %v8232 = vpop.f32.mrf.mxu0
        %v8233 = vadd.f32 %v8120, %v8232
        %8234 = vmatmul.f32.gmra.mxu0 %v7256
        %v8235 = vpop.f32.mrf.mxu0
        %v8236 = vadd.f32 %v8123, %v8235
        %8237 = vmatmul.f32.gmra.mxu0 %v7257
        %v8238 = vpop.f32.mrf.mxu0
        %v8239 = vadd.f32 %v8126, %v8238
        %8240 = vmatmul.f32.gmra.mxu0 %v7258
        %v8241 = vpop.f32.mrf.mxu0
        %v8242 = vadd.f32 %v8129, %v8241
        %8243 = vmatmul.f32.gmra.mxu0 %v7259
        %v8244 = vpop.f32.mrf.mxu0
        %v8245 = vadd.f32 %v8132, %v8244
        %8246 = vmatmul.f32.gmra.mxu0 %v7260
        %v8247 = vpop.f32.mrf.mxu0
        %v8248 = vadd.f32 %v8135, %v8247
        %8249 = vmatmul.f32.gmra.mxu0 %v7261
        %v8250 = vpop.f32.mrf.mxu0
        %v8251 = vadd.f32 %v8138, %v8250
        %8252 = vmatmul.f32.gmra.mxu0 %v7262
        %v8253 = vpop.f32.mrf.mxu0
        %v8254 = vadd.f32 %v8141, %v8253
        %8255 = vmatmul.f32.gmra.mxu0 %v7263
        %v8256 = vpop.f32.mrf.mxu0
        %v8257 = vadd.f32 %v8144, %v8256
        %8258 = vmatmul.f32.gmra.mxu0 %v7264
        %v8259 = vpop.f32.mrf.mxu0
        %v8260 = vadd.f32 %v8147, %v8259
        %8261 = vmatmul.f32.gmra.mxu0 %v7265
        %v8262 = vpop.f32.mrf.mxu0
        %v8263 = vadd.f32 %v8150, %v8262
        %8264 = vmatmul.f32.gmra.mxu0 %v7266
        %v8265 = vpop.f32.mrf.mxu0
        %v8266 = vadd.f32 %v8153, %v8265
        %8267 = vmatmul.f32.gmra.mxu0 %v7267
        %v8268 = vpop.f32.mrf.mxu0
        %v8269 = vadd.f32 %v8156, %v8268
        %8270 = vdwg.mxu0
        %8271 = vmatpush.msra.mxu0 %v7459
        %8272 = vmatpush.msra.mxu0 %v7458
        %8273 = vmatpush.msra.mxu0 %v7457
        %8274 = vmatpush.msra.mxu0 %v7456
        %8275 = vmatpush.msra.mxu0 %v7455
        %8276 = vmatpush.msra.mxu0 %v7454
        %8277 = vmatpush.msra.mxu0 %v7453
        %8278 = vmatpush.msra.mxu0 %v7452
        %8279 = vmatpush.msra.mxu0 %v7451
        %8280 = vmatpush.msra.mxu0 %v7450
        %8281 = vmatpush.msra.mxu0 %v7449
        %8282 = vmatpush.msra.mxu0 %v7448
        %8283 = vmatpush.msra.mxu0 %v7447
        %8284 = vmatpush.msra.mxu0 %v7446
        %8285 = vmatpush.msra.mxu0 %v7445
        %8286 = vmatpush.msra.mxu0 %v7444
        %8287 = vmatmul.f32.gmra.mxu0 %v7268
        %v8288 = vpop.f32.mrf.mxu0
        %v8289 = vadd.f32 %v8176, %v8288
        %8290 = vmatmul.f32.gmra.mxu0 %v7269
        %v8291 = vpop.f32.mrf.mxu0
        %v8292 = vadd.f32 %v8179, %v8291
        %8293 = vmatmul.f32.gmra.mxu0 %v7270
        %v8294 = vpop.f32.mrf.mxu0
        %v8295 = vadd.f32 %v8182, %v8294
        %8296 = vmatmul.f32.gmra.mxu0 %v7271
        %v8297 = vpop.f32.mrf.mxu0
        %v8298 = vadd.f32 %v8185, %v8297
        %8299 = vmatmul.f32.gmra.mxu0 %v7272
        %v8300 = vpop.f32.mrf.mxu0
        %v8301 = vadd.f32 %v8188, %v8300
        %8302 = vmatmul.f32.gmra.mxu0 %v7273
        %v8303 = vpop.f32.mrf.mxu0
        %v8304 = vadd.f32 %v8191, %v8303
        %8305 = vmatmul.f32.gmra.mxu0 %v7274
        %v8306 = vpop.f32.mrf.mxu0
        %v8307 = vadd.f32 %v8194, %v8306
        %8308 = vmatmul.f32.gmra.mxu0 %v7275
        %v8309 = vpop.f32.mrf.mxu0
        %v8310 = vadd.f32 %v8197, %v8309
        %8311 = vmatmul.f32.gmra.mxu0 %v7276
        %v8312 = vpop.f32.mrf.mxu0
        %v8313 = vadd.f32 %v8200, %v8312
        %8314 = vmatmul.f32.gmra.mxu0 %v7277
        %v8315 = vpop.f32.mrf.mxu0
        %v8316 = vadd.f32 %v8203, %v8315
        %8317 = vmatmul.f32.gmra.mxu0 %v7278
        %v8318 = vpop.f32.mrf.mxu0
        %v8319 = vadd.f32 %v8206, %v8318
        %8320 = vmatmul.f32.gmra.mxu0 %v7279
        %v8321 = vpop.f32.mrf.mxu0
        %v8322 = vadd.f32 %v8209, %v8321
        %8323 = vmatmul.f32.gmra.mxu0 %v7280
        %v8324 = vpop.f32.mrf.mxu0
        %v8325 = vadd.f32 %v8212, %v8324
        %8326 = vmatmul.f32.gmra.mxu0 %v7281
        %v8327 = vpop.f32.mrf.mxu0
        %v8328 = vadd.f32 %v8215, %v8327
        %8329 = vmatmul.f32.gmra.mxu0 %v7282
        %v8330 = vpop.f32.mrf.mxu0
        %v8331 = vadd.f32 %v8218, %v8330
        %8332 = vmatmul.f32.gmra.mxu0 %v7283
        %v8333 = vpop.f32.mrf.mxu0
        %v8334 = vadd.f32 %v8221, %v8333
        %8335 = vmatmul.f32.gmra.mxu0 %v7284
        %v8336 = vpop.f32.mrf.mxu0
        %v8337 = vadd.f32 %v8224, %v8336
        %8338 = vmatmul.f32.gmra.mxu0 %v7285
        %v8339 = vpop.f32.mrf.mxu0
        %v8340 = vadd.f32 %v8227, %v8339
        %8341 = vmatmul.f32.gmra.mxu0 %v7286
        %v8342 = vpop.f32.mrf.mxu0
        %v8343 = vadd.f32 %v8230, %v8342
        %8344 = vmatmul.f32.gmra.mxu0 %v7287
        %v8345 = vpop.f32.mrf.mxu0
        %v8346 = vadd.f32 %v8233, %v8345
        %8347 = vmatmul.f32.gmra.mxu0 %v7288
        %v8348 = vpop.f32.mrf.mxu0
        %v8349 = vadd.f32 %v8236, %v8348
        %8350 = vmatmul.f32.gmra.mxu0 %v7289
        %v8351 = vpop.f32.mrf.mxu0
        %v8352 = vadd.f32 %v8239, %v8351
        %8353 = vmatmul.f32.gmra.mxu0 %v7290
        %v8354 = vpop.f32.mrf.mxu0
        %v8355 = vadd.f32 %v8242, %v8354
        %8356 = vmatmul.f32.gmra.mxu0 %v7291
        %v8357 = vpop.f32.mrf.mxu0
        %v8358 = vadd.f32 %v8245, %v8357
        %8359 = vmatmul.f32.gmra.mxu0 %v7292
        %v8360 = vpop.f32.mrf.mxu0
        %v8361 = vadd.f32 %v8248, %v8360
        %8362 = vmatmul.f32.gmra.mxu0 %v7293
        %v8363 = vpop.f32.mrf.mxu0
        %v8364 = vadd.f32 %v8251, %v8363
        %8365 = vmatmul.f32.gmra.mxu0 %v7294
        %v8366 = vpop.f32.mrf.mxu0
        %v8367 = vadd.f32 %v8254, %v8366
        %8368 = vmatmul.f32.gmra.mxu0 %v7295
        %v8369 = vpop.f32.mrf.mxu0
        %v8370 = vadd.f32 %v8257, %v8369
        %8371 = vmatmul.f32.gmra.mxu0 %v7296
        %v8372 = vpop.f32.mrf.mxu0
        %v8373 = vadd.f32 %v8260, %v8372
        %8374 = vmatmul.f32.gmra.mxu0 %v7297
        %v8375 = vpop.f32.mrf.mxu0
        %v8376 = vadd.f32 %v8263, %v8375
        %8377 = vmatmul.f32.gmra.mxu0 %v7298
        %v8378 = vpop.f32.mrf.mxu0
        %v8379 = vadd.f32 %v8266, %v8378
        %8380 = vmatmul.f32.gmra.mxu0 %v7299
        %v8381 = vpop.f32.mrf.mxu0
        %v8382 = vadd.f32 %v8269, %v8381
        %8383 = vdwg.mxu0
        %8384 = vmatpush.msra.mxu0 %v7475
        %8385 = vmatpush.msra.mxu0 %v7474
        %8386 = vmatpush.msra.mxu0 %v7473
        %8387 = vmatpush.msra.mxu0 %v7472
        %8388 = vmatpush.msra.mxu0 %v7471
        %8389 = vmatpush.msra.mxu0 %v7470
        %8390 = vmatpush.msra.mxu0 %v7469
        %8391 = vmatpush.msra.mxu0 %v7468
        %8392 = vmatpush.msra.mxu0 %v7467
        %8393 = vmatpush.msra.mxu0 %v7466
        %8394 = vmatpush.msra.mxu0 %v7465
        %8395 = vmatpush.msra.mxu0 %v7464
        %8396 = vmatpush.msra.mxu0 %v7463
        %8397 = vmatpush.msra.mxu0 %v7462
        %8398 = vmatpush.msra.mxu0 %v7461
        %8399 = vmatpush.msra.mxu0 %v7460
        %8400 = vmatmul.f32.gmra.mxu0 %v7300
        %v8401 = vpop.f32.mrf.mxu0
        %v8402 = vadd.f32 %v8289, %v8401
        %8403 = vmatmul.f32.gmra.mxu0 %v7301
        %v8404 = vpop.f32.mrf.mxu0
        %v8405 = vadd.f32 %v8292, %v8404
        %8406 = vmatmul.f32.gmra.mxu0 %v7302
        %v8407 = vpop.f32.mrf.mxu0
        %v8408 = vadd.f32 %v8295, %v8407
        %8409 = vmatmul.f32.gmra.mxu0 %v7303
        %v8410 = vpop.f32.mrf.mxu0
        %v8411 = vadd.f32 %v8298, %v8410
        %8412 = vmatmul.f32.gmra.mxu0 %v7304
        %v8413 = vpop.f32.mrf.mxu0
        %v8414 = vadd.f32 %v8301, %v8413
        %8415 = vmatmul.f32.gmra.mxu0 %v7305
        %v8416 = vpop.f32.mrf.mxu0
        %v8417 = vadd.f32 %v8304, %v8416
        %8418 = vmatmul.f32.gmra.mxu0 %v7306
        %v8419 = vpop.f32.mrf.mxu0
        %v8420 = vadd.f32 %v8307, %v8419
        %8421 = vmatmul.f32.gmra.mxu0 %v7307
        %v8422 = vpop.f32.mrf.mxu0
        %v8423 = vadd.f32 %v8310, %v8422
        %8424 = vmatmul.f32.gmra.mxu0 %v7308
        %v8425 = vpop.f32.mrf.mxu0
        %v8426 = vadd.f32 %v8313, %v8425
        %8427 = vmatmul.f32.gmra.mxu0 %v7309
        %v8428 = vpop.f32.mrf.mxu0
        %v8429 = vadd.f32 %v8316, %v8428
        %8430 = vmatmul.f32.gmra.mxu0 %v7310
        %v8431 = vpop.f32.mrf.mxu0
        %v8432 = vadd.f32 %v8319, %v8431
        %8433 = vmatmul.f32.gmra.mxu0 %v7311
        %v8434 = vpop.f32.mrf.mxu0
        %v8435 = vadd.f32 %v8322, %v8434
        %8436 = vmatmul.f32.gmra.mxu0 %v7312
        %v8437 = vpop.f32.mrf.mxu0
        %v8438 = vadd.f32 %v8325, %v8437
        %8439 = vmatmul.f32.gmra.mxu0 %v7313
        %v8440 = vpop.f32.mrf.mxu0
        %v8441 = vadd.f32 %v8328, %v8440
        %8442 = vmatmul.f32.gmra.mxu0 %v7314
        %v8443 = vpop.f32.mrf.mxu0
        %v8444 = vadd.f32 %v8331, %v8443
        %8445 = vmatmul.f32.gmra.mxu0 %v7315
        %v8446 = vpop.f32.mrf.mxu0
        %v8447 = vadd.f32 %v8334, %v8446
        %8448 = vmatmul.f32.gmra.mxu0 %v7316
        %v8449 = vpop.f32.mrf.mxu0
        %v8450 = vadd.f32 %v8337, %v8449
        %8451 = vmatmul.f32.gmra.mxu0 %v7317
        %v8452 = vpop.f32.mrf.mxu0
        %v8453 = vadd.f32 %v8340, %v8452
        %8454 = vmatmul.f32.gmra.mxu0 %v7318
        %v8455 = vpop.f32.mrf.mxu0
        %v8456 = vadd.f32 %v8343, %v8455
        %8457 = vmatmul.f32.gmra.mxu0 %v7319
        %v8458 = vpop.f32.mrf.mxu0
        %v8459 = vadd.f32 %v8346, %v8458
        %8460 = vmatmul.f32.gmra.mxu0 %v7320
        %v8461 = vpop.f32.mrf.mxu0
        %v8462 = vadd.f32 %v8349, %v8461
        %8463 = vmatmul.f32.gmra.mxu0 %v7321
        %v8464 = vpop.f32.mrf.mxu0
        %v8465 = vadd.f32 %v8352, %v8464
        %8466 = vmatmul.f32.gmra.mxu0 %v7322
        %v8467 = vpop.f32.mrf.mxu0
        %v8468 = vadd.f32 %v8355, %v8467
        %8469 = vmatmul.f32.gmra.mxu0 %v7323
        %v8470 = vpop.f32.mrf.mxu0
        %v8471 = vadd.f32 %v8358, %v8470
        %8472 = vmatmul.f32.gmra.mxu0 %v7324
        %v8473 = vpop.f32.mrf.mxu0
        %v8474 = vadd.f32 %v8361, %v8473
        %8475 = vmatmul.f32.gmra.mxu0 %v7325
        %v8476 = vpop.f32.mrf.mxu0
        %v8477 = vadd.f32 %v8364, %v8476
        %8478 = vmatmul.f32.gmra.mxu0 %v7326
        %v8479 = vpop.f32.mrf.mxu0
        %v8480 = vadd.f32 %v8367, %v8479
        %8481 = vmatmul.f32.gmra.mxu0 %v7327
        %v8482 = vpop.f32.mrf.mxu0
        %v8483 = vadd.f32 %v8370, %v8482
        %8484 = vmatmul.f32.gmra.mxu0 %v7328
        %v8485 = vpop.f32.mrf.mxu0
        %v8486 = vadd.f32 %v8373, %v8485
        %8487 = vmatmul.f32.gmra.mxu0 %v7329
        %v8488 = vpop.f32.mrf.mxu0
        %v8489 = vadd.f32 %v8376, %v8488
        %8490 = vmatmul.f32.gmra.mxu0 %v7330
        %v8491 = vpop.f32.mrf.mxu0
        %v8492 = vadd.f32 %v8379, %v8491
        %8493 = vmatmul.f32.gmra.mxu0 %v7331
        %v8494 = vpop.f32.mrf.mxu0
        %v8495 = vadd.f32 %v8382, %v8494
        %8496 = vdwg.mxu0
        %vm8497 = vcmp.gt.f32.partialorder %v8402, 0.0
        %vm8498 = vcmp.gt.f32.partialorder %v8405, 0.0
        %vm8499 = vcmp.gt.f32.partialorder %v8408, 0.0
        %vm8500 = vcmp.gt.f32.partialorder %v8411, 0.0
        %vm8501 = vcmp.gt.f32.partialorder %v8414, 0.0
        %vm8502 = vcmp.gt.f32.partialorder %v8417, 0.0
        %vm8503 = vcmp.gt.f32.partialorder %v8420, 0.0
        %vm8504 = vcmp.gt.f32.partialorder %v8423, 0.0
        %vm8505 = vcmp.gt.f32.partialorder %v8426, 0.0
        %vm8506 = vcmp.gt.f32.partialorder %v8429, 0.0
        %vm8507 = vcmp.gt.f32.partialorder %v8432, 0.0
        %vm8508 = vcmp.gt.f32.partialorder %v8435, 0.0
        %vm8509 = vcmp.gt.f32.partialorder %v8438, 0.0
        %vm8510 = vcmp.gt.f32.partialorder %v8441, 0.0
        %vm8511 = vcmp.gt.f32.partialorder %v8444, 0.0
        %vm8512 = vcmp.gt.f32.partialorder %v8447, 0.0
        %vm8513 = vcmp.gt.f32.partialorder %v8450, 0.0
        %vm8514 = vcmp.gt.f32.partialorder %v8453, 0.0
        %vm8515 = vcmp.gt.f32.partialorder %v8456, 0.0
        %vm8516 = vcmp.gt.f32.partialorder %v8459, 0.0
        %vm8517 = vcmp.gt.f32.partialorder %v8462, 0.0
        %vm8518 = vcmp.gt.f32.partialorder %v8465, 0.0
        %vm8519 = vcmp.gt.f32.partialorder %v8468, 0.0
        %vm8520 = vcmp.gt.f32.partialorder %v8471, 0.0
        %vm8521 = vcmp.gt.f32.partialorder %v8474, 0.0
        %vm8522 = vcmp.gt.f32.partialorder %v8477, 0.0
        %vm8523 = vcmp.gt.f32.partialorder %v8480, 0.0
        %vm8524 = vcmp.gt.f32.partialorder %v8483, 0.0
        %vm8525 = vcmp.gt.f32.partialorder %v8486, 0.0
        %vm8526 = vcmp.gt.f32.partialorder %v8489, 0.0
        %vm8527 = vcmp.gt.f32.partialorder %v8492, 0.0
        %vm8528 = vcmp.gt.f32.partialorder %v8495, 0.0
        %v8529 = vmul.f32 %v8402, 0.01
        %v8530 = vmul.f32 %v8405, 0.01
        %v8531 = vmul.f32 %v8408, 0.01
        %v8532 = vmul.f32 %v8411, 0.01
        %v8533 = vmul.f32 %v8414, 0.01
        %v8534 = vmul.f32 %v8417, 0.01
        %v8535 = vmul.f32 %v8420, 0.01
        %v8536 = vmul.f32 %v8423, 0.01
        %v8537 = vmul.f32 %v8426, 0.01
        %v8538 = vmul.f32 %v8429, 0.01
        %v8539 = vmul.f32 %v8432, 0.01
        %v8540 = vmul.f32 %v8435, 0.01
        %v8541 = vmul.f32 %v8438, 0.01
        %v8542 = vmul.f32 %v8441, 0.01
        %v8543 = vmul.f32 %v8444, 0.01
        %v8544 = vmul.f32 %v8447, 0.01
        %v8545 = vmul.f32 %v8450, 0.01
        %v8546 = vmul.f32 %v8453, 0.01
        %v8547 = vmul.f32 %v8456, 0.01
        %v8548 = vmul.f32 %v8459, 0.01
        %v8549 = vmul.f32 %v8462, 0.01
        %v8550 = vmul.f32 %v8465, 0.01
        %v8551 = vmul.f32 %v8468, 0.01
        %v8552 = vmul.f32 %v8471, 0.01
        %v8553 = vmul.f32 %v8474, 0.01
        %v8554 = vmul.f32 %v8477, 0.01
        %v8555 = vmul.f32 %v8480, 0.01
        %v8556 = vmul.f32 %v8483, 0.01
        %v8557 = vmul.f32 %v8486, 0.01
        %v8558 = vmul.f32 %v8489, 0.01
        %v8559 = vmul.f32 %v8492, 0.01
        %v8560 = vmul.f32 %v8495, 0.01
        %v8561 = vsel %vm8497, %v8402, %v8529
        %v8562 = vsel %vm8498, %v8405, %v8530
        %v8563 = vsel %vm8499, %v8408, %v8531
        %v8564 = vsel %vm8500, %v8411, %v8532
        %v8565 = vsel %vm8501, %v8414, %v8533
        %v8566 = vsel %vm8502, %v8417, %v8534
        %v8567 = vsel %vm8503, %v8420, %v8535
        %v8568 = vsel %vm8504, %v8423, %v8536
        %v8569 = vsel %vm8505, %v8426, %v8537
        %v8570 = vsel %vm8506, %v8429, %v8538
        %v8571 = vsel %vm8507, %v8432, %v8539
        %v8572 = vsel %vm8508, %v8435, %v8540
        %v8573 = vsel %vm8509, %v8438, %v8541
        %v8574 = vsel %vm8510, %v8441, %v8542
        %v8575 = vsel %vm8511, %v8444, %v8543
        %v8576 = vsel %vm8512, %v8447, %v8544
        %v8577 = vsel %vm8513, %v8450, %v8545
        %v8578 = vsel %vm8514, %v8453, %v8546
        %v8579 = vsel %vm8515, %v8456, %v8547
        %v8580 = vsel %vm8516, %v8459, %v8548
        %v8581 = vsel %vm8517, %v8462, %v8549
        %v8582 = vsel %vm8518, %v8465, %v8550
        %v8583 = vsel %vm8519, %v8468, %v8551
        %v8584 = vsel %vm8520, %v8471, %v8552
        %v8585 = vsel %vm8521, %v8474, %v8553
        %v8586 = vsel %vm8522, %v8477, %v8554
        %v8587 = vsel %vm8523, %v8480, %v8555
        %v8588 = vsel %vm8524, %v8483, %v8556
        %v8589 = vsel %vm8525, %v8486, %v8557
        %v8590 = vsel %vm8526, %v8489, %v8558
        %v8591 = vsel %vm8527, %v8492, %v8559
        %v8592 = vsel %vm8528, %v8495, %v8560
        %vm8593 = vcmask 1045504
        %v8594 = vsel %vm8593, %v438, %v441
        %v8595 = vsel %vm8593, %v441, %v537
        %v8596 = vsel %vm8593, %v444, %v447
        %v8597 = vsel %vm8593, %v447, %v538
        %v8598 = vsel %vm8593, %v450, %v453
        %v8599 = vsel %vm8593, %v453, %v539
        %v8600 = vsel %vm8593, %v456, %v459
        %v8601 = vsel %vm8593, %v459, %v540
        %v8602 = vsel %vm8593, %v462, %v465
        %v8603 = vsel %vm8593, %v465, %v541
        %v8604 = vsel %vm8593, %v468, %v471
        %v8605 = vsel %vm8593, %v471, %v542
        %v8606 = vsel %vm8593, %v474, %v477
        %v8607 = vsel %vm8593, %v477, %v543
        %v8608 = vsel %vm8593, %v480, %v483
        %v8609 = vsel %vm8593, %v483, %v544
        %v8610 = vsel %vm8593, %v486, %v489
        %v8611 = vsel %vm8593, %v489, %v545
        %v8612 = vsel %vm8593, %v492, %v495
        %v8613 = vsel %vm8593, %v495, %v546
        %v8614 = vsel %vm8593, %v498, %v501
        %v8615 = vsel %vm8593, %v501, %v547
        %v8616 = vsel %vm8593, %v504, %v507
        %v8617 = vsel %vm8593, %v507, %v548
        %v8618 = vsel %vm8593, %v510, %v513
        %v8619 = vsel %vm8593, %v513, %v549
        %v8620 = vsel %vm8593, %v516, %v519
        %v8621 = vsel %vm8593, %v519, %v550
        %v8622 = vsel %vm8593, %v522, %v525
        %v8623 = vsel %vm8593, %v525, %v551
        %v8624 = vsel %vm8593, %v528, %v531
        %v8625 = vsel %vm8593, %v531, %v552
        %v8626 = vld [vmem:[%s5] sm:$0xf]
        %v8627 = vld [vmem:[%s6] sm:$0x1]
        %v8629 = vperm.slane %v8627, 0
        %v8631 = vsel %vm1276, %v8594, 0
        %v8633 = vsel %vm1276, %v8595, 0
        %v8635 = vsel %vm1276, %v8596, 0
        %v8637 = vsel %vm1276, %v8597, 0
        %v8639 = vsel %vm1276, %v8598, 0
        %v8641 = vsel %vm1276, %v8599, 0
        %v8643 = vsel %vm1276, %v8600, 0
        %v8645 = vsel %vm1276, %v8601, 0
        %v8647 = vsel %vm1276, %v8602, 0
        %v8649 = vsel %vm1276, %v8603, 0
        %v8651 = vsel %vm1276, %v8604, 0
        %v8653 = vsel %vm1276, %v8605, 0
        %v8655 = vsel %vm1276, %v8606, 0
        %v8657 = vsel %vm1276, %v8607, 0
        %v8659 = vsel %vm1276, %v8608, 0
        %v8661 = vsel %vm1276, %v8609, 0
        %v8663 = vsel %vm1276, %v8610, 0
        %v8665 = vsel %vm1276, %v8611, 0
        %v8667 = vsel %vm1276, %v8612, 0
        %v8669 = vsel %vm1276, %v8613, 0
        %v8671 = vsel %vm1276, %v8614, 0
        %v8673 = vsel %vm1276, %v8615, 0
        %v8675 = vsel %vm1276, %v8616, 0
        %v8677 = vsel %vm1276, %v8617, 0
        %v8679 = vsel %vm1276, %v8618, 0
        %v8681 = vsel %vm1276, %v8619, 0
        %v8683 = vsel %vm1276, %v8620, 0
        %v8685 = vsel %vm1276, %v8621, 0
        %v8687 = vsel %vm1276, %v8622, 0
        %v8689 = vsel %vm1276, %v8623, 0
        %v8691 = vsel %vm1276, %v8624, 0
        %v8693 = vsel %vm1276, %v8625, 0
        %v8696 = vsel %vm1359, %v8626, 0
        %8698 = vmatpush.msra.mxu0 0.0
        %8699 = vmatpush.msra.mxu0 0.0
        %8700 = vmatpush.msra.mxu0 0.0
        %8701 = vmatpush.msra.mxu0 0.0
        %8702 = vmatpush.msra.mxu0 0.0
        %8703 = vmatpush.msra.mxu0 0.0
        %8704 = vmatpush.msra.mxu0 0.0
        %8705 = vmatpush.msra.mxu0 0.0
        %8706 = vmatpush.msra.mxu0 0.0
        %8707 = vmatpush.msra.mxu0 0.0
        %8708 = vmatpush.msra.mxu0 0.0
        %8709 = vmatpush.msra.mxu0 0.0
        %8710 = vmatpush.msra.mxu0 0.0
        %8711 = vmatpush.msra.mxu0 0.0
        %8712 = vmatpush.msra.mxu0 0.0
        %8713 = vmatpush.msra.mxu0 %v8696
        %8714 = vmatmul.f32.gmra.mxu0 %v8631
        %v8715 = vpop.f32.mrf.mxu0
        %v8716 = vadd.f32 %v8629, %v8715
        %8717 = vmatmul.f32.gmra.mxu0 %v8633
        %v8718 = vpop.f32.mrf.mxu0
        %v8719 = vadd.f32 %v8629, %v8718
        %8720 = vmatmul.f32.gmra.mxu0 %v8635
        %v8721 = vpop.f32.mrf.mxu0
        %v8722 = vadd.f32 %v8629, %v8721
        %8723 = vmatmul.f32.gmra.mxu0 %v8637
        %v8724 = vpop.f32.mrf.mxu0
        %v8725 = vadd.f32 %v8629, %v8724
        %8726 = vmatmul.f32.gmra.mxu0 %v8639
        %v8727 = vpop.f32.mrf.mxu0
        %v8728 = vadd.f32 %v8629, %v8727
        %8729 = vmatmul.f32.gmra.mxu0 %v8641
        %v8730 = vpop.f32.mrf.mxu0
        %v8731 = vadd.f32 %v8629, %v8730
        %8732 = vmatmul.f32.gmra.mxu0 %v8643
        %v8733 = vpop.f32.mrf.mxu0
        %v8734 = vadd.f32 %v8629, %v8733
        %8735 = vmatmul.f32.gmra.mxu0 %v8645
        %v8736 = vpop.f32.mrf.mxu0
        %v8737 = vadd.f32 %v8629, %v8736
        %8738 = vmatmul.f32.gmra.mxu0 %v8647
        %v8739 = vpop.f32.mrf.mxu0
        %v8740 = vadd.f32 %v8629, %v8739
        %8741 = vmatmul.f32.gmra.mxu0 %v8649
        %v8742 = vpop.f32.mrf.mxu0
        %v8743 = vadd.f32 %v8629, %v8742
        %8744 = vmatmul.f32.gmra.mxu0 %v8651
        %v8745 = vpop.f32.mrf.mxu0
        %v8746 = vadd.f32 %v8629, %v8745
        %8747 = vmatmul.f32.gmra.mxu0 %v8653
        %v8748 = vpop.f32.mrf.mxu0
        %v8749 = vadd.f32 %v8629, %v8748
        %8750 = vmatmul.f32.gmra.mxu0 %v8655
        %v8751 = vpop.f32.mrf.mxu0
        %v8752 = vadd.f32 %v8629, %v8751
        %8753 = vmatmul.f32.gmra.mxu0 %v8657
        %v8754 = vpop.f32.mrf.mxu0
        %v8755 = vadd.f32 %v8629, %v8754
        %8756 = vmatmul.f32.gmra.mxu0 %v8659
        %v8757 = vpop.f32.mrf.mxu0
        %v8758 = vadd.f32 %v8629, %v8757
        %8759 = vmatmul.f32.gmra.mxu0 %v8661
        %v8760 = vpop.f32.mrf.mxu0
        %v8761 = vadd.f32 %v8629, %v8760
        %8762 = vmatmul.f32.gmra.mxu0 %v8663
        %v8763 = vpop.f32.mrf.mxu0
        %v8764 = vadd.f32 %v8629, %v8763
        %8765 = vmatmul.f32.gmra.mxu0 %v8665
        %v8766 = vpop.f32.mrf.mxu0
        %v8767 = vadd.f32 %v8629, %v8766
        %8768 = vmatmul.f32.gmra.mxu0 %v8667
        %v8769 = vpop.f32.mrf.mxu0
        %v8770 = vadd.f32 %v8629, %v8769
        %8771 = vmatmul.f32.gmra.mxu0 %v8669
        %v8772 = vpop.f32.mrf.mxu0
        %v8773 = vadd.f32 %v8629, %v8772
        %8774 = vmatmul.f32.gmra.mxu0 %v8671
        %v8775 = vpop.f32.mrf.mxu0
        %v8776 = vadd.f32 %v8629, %v8775
        %8777 = vmatmul.f32.gmra.mxu0 %v8673
        %v8778 = vpop.f32.mrf.mxu0
        %v8779 = vadd.f32 %v8629, %v8778
        %8780 = vmatmul.f32.gmra.mxu0 %v8675
        %v8781 = vpop.f32.mrf.mxu0
        %v8782 = vadd.f32 %v8629, %v8781
        %8783 = vmatmul.f32.gmra.mxu0 %v8677
        %v8784 = vpop.f32.mrf.mxu0
        %v8785 = vadd.f32 %v8629, %v8784
        %8786 = vmatmul.f32.gmra.mxu0 %v8679
        %v8787 = vpop.f32.mrf.mxu0
        %v8788 = vadd.f32 %v8629, %v8787
        %8789 = vmatmul.f32.gmra.mxu0 %v8681
        %v8790 = vpop.f32.mrf.mxu0
        %v8791 = vadd.f32 %v8629, %v8790
        %8792 = vmatmul.f32.gmra.mxu0 %v8683
        %v8793 = vpop.f32.mrf.mxu0
        %v8794 = vadd.f32 %v8629, %v8793
        %8795 = vmatmul.f32.gmra.mxu0 %v8685
        %v8796 = vpop.f32.mrf.mxu0
        %v8797 = vadd.f32 %v8629, %v8796
        %8798 = vmatmul.f32.gmra.mxu0 %v8687
        %v8799 = vpop.f32.mrf.mxu0
        %v8800 = vadd.f32 %v8629, %v8799
        %8801 = vmatmul.f32.gmra.mxu0 %v8689
        %v8802 = vpop.f32.mrf.mxu0
        %v8803 = vadd.f32 %v8629, %v8802
        %8804 = vmatmul.f32.gmra.mxu0 %v8691
        %v8805 = vpop.f32.mrf.mxu0
        %v8806 = vadd.f32 %v8629, %v8805
        %8807 = vmatmul.f32.gmra.mxu0 %v8693
        %v8808 = vpop.f32.mrf.mxu0
        %v8809 = vadd.f32 %v8629, %v8808
        %8810 = vdwg.mxu0
        %v8811 = vadd.f32 %v8561, %v8716
        %v8812 = vadd.f32 %v8562, %v8719
        %v8813 = vadd.f32 %v8563, %v8722
        %v8814 = vadd.f32 %v8564, %v8725
        %v8815 = vadd.f32 %v8565, %v8728
        %v8816 = vadd.f32 %v8566, %v8731
        %v8817 = vadd.f32 %v8567, %v8734
        %v8818 = vadd.f32 %v8568, %v8737
        %v8819 = vadd.f32 %v8569, %v8740
        %v8820 = vadd.f32 %v8570, %v8743
        %v8821 = vadd.f32 %v8571, %v8746
        %v8822 = vadd.f32 %v8572, %v8749
        %v8823 = vadd.f32 %v8573, %v8752
        %v8824 = vadd.f32 %v8574, %v8755
        %v8825 = vadd.f32 %v8575, %v8758
        %v8826 = vadd.f32 %v8576, %v8761
        %v8827 = vadd.f32 %v8577, %v8764
        %v8828 = vadd.f32 %v8578, %v8767
        %v8829 = vadd.f32 %v8579, %v8770
        %v8830 = vadd.f32 %v8580, %v8773
        %v8831 = vadd.f32 %v8581, %v8776
        %v8832 = vadd.f32 %v8582, %v8779
        %v8833 = vadd.f32 %v8583, %v8782
        %v8834 = vadd.f32 %v8584, %v8785
        %v8835 = vadd.f32 %v8585, %v8788
        %v8836 = vadd.f32 %v8586, %v8791
        %v8837 = vadd.f32 %v8587, %v8794
        %v8838 = vadd.f32 %v8588, %v8797
        %v8839 = vadd.f32 %v8589, %v8800
        %v8840 = vadd.f32 %v8590, %v8803
        %v8841 = vadd.f32 %v8591, %v8806
        %v8842 = vadd.f32 %v8592, %v8809
        %8843 = vst [vmem:[%s302] sm:$0xff] %v8811
        %8844 = vst [vmem:[%s302 + $0x8] sm:$0xff] %v8812
        %8845 = vst [vmem:[%s302 + $0x10] sm:$0xff] %v8813
        %8846 = vst [vmem:[%s302 + $0x18] sm:$0xff] %v8814
        %8847 = vst [vmem:[%s302 + $0x20] sm:$0xff] %v8815
        %8848 = vst [vmem:[%s302 + $0x28] sm:$0xff] %v8816
        %8849 = vst [vmem:[%s302 + $0x30] sm:$0xff] %v8817
        %8850 = vst [vmem:[%s302 + $0x38] sm:$0xff] %v8818
        %8851 = vst [vmem:[%s302 + $0x40] sm:$0xff] %v8819
        %8852 = vst [vmem:[%s302 + $0x48] sm:$0xff] %v8820
        %8853 = vst [vmem:[%s302 + $0x50] sm:$0xff] %v8821
        %8854 = vst [vmem:[%s302 + $0x58] sm:$0xff] %v8822
        %8855 = vst [vmem:[%s302 + $0x60] sm:$0xff] %v8823
        %8856 = vst [vmem:[%s302 + $0x68] sm:$0xff] %v8824
        %8857 = vst [vmem:[%s302 + $0x70] sm:$0xff] %v8825
        %8858 = vst [vmem:[%s302 + $0x78] sm:$0xff] %v8826
        %8859 = vst [vmem:[%s302 + $0x80] sm:$0xff] %v8827
        %8860 = vst [vmem:[%s302 + $0x88] sm:$0xff] %v8828
        %8861 = vst [vmem:[%s302 + $0x90] sm:$0xff] %v8829
        %8862 = vst [vmem:[%s302 + $0x98] sm:$0xff] %v8830
        %8863 = vst [vmem:[%s302 + $0xa0] sm:$0xff] %v8831
        %8864 = vst [vmem:[%s302 + $0xa8] sm:$0xff] %v8832
        %8865 = vst [vmem:[%s302 + $0xb0] sm:$0xff] %v8833
        %8866 = vst [vmem:[%s302 + $0xb8] sm:$0xff] %v8834
        %8867 = vst [vmem:[%s302 + $0xc0] sm:$0xff] %v8835
        %8868 = vst [vmem:[%s302 + $0xc8] sm:$0xff] %v8836
        %8869 = vst [vmem:[%s302 + $0xd0] sm:$0xff] %v8837
        %8870 = vst [vmem:[%s302 + $0xd8] sm:$0xff] %v8838
        %8871 = vst [vmem:[%s302 + $0xe0] sm:$0xff] %v8839
        %8872 = vst [vmem:[%s302 + $0xe8] sm:$0xff] %v8840
        %8873 = vst [vmem:[%s302 + $0xf0] sm:$0xff] %v8841
        %8874 = vst [vmem:[%s302 + $0xf8] sm:$0xff] %v8842
        %s8875 = sand.u32 %s196, 1
        %s8876 = scalar_lea.sflag [#allocation5], %s8875
        %s8877 = sand.u32 %s196, 1
        %s8878 = smul.addr %s8877, 256
        %s8879 = scalar_lea.vmem [#allocation6], %s8878
        // Predicated region
        $region53: #{tpu_custom_call.1} parent=47 // pred_check
          %p8880 = pneg %p206
        $region54: #{tpu_custom_call.1} parent=47 // pred_check_branch
          %8882 = sbr.rel (%p8880) target = $region56
        $region55: #{tpu_custom_call.1} parent=47 // pred_region
          %s8883 = smul.u32 16, %s27
          %8885 = vsyncadd %s8876, 0
          %s8886 = smul.addr %s8883, 2
          %s8887 = smul.addr %s26, 32
          %s8888 = sadd.s32 %s8886, %s8887
          %s8889 = smul.addr %s8888, 8
          %s8890 = scalar_lea.hbm %s7, %s8889
          %s8891 = sshll.u32 %s8879, 4
          %s8892 = int_to_ptr.vmem [resolvable:$true] %s8891
          %s8893 = sshll.u32 %s8890, 4
          %s8894 = int_to_ptr.hbm [resolvable:$true] %s8893
          %8899 = dma.vmem_to_hbm [thread:$0]  %s8892, 4096, %s8894, %s8876, 128, 128, 8
        $region56: #{tpu_custom_call.1} parent=47 // pred_fallthru
          _
      $region48: #{tpu_custom_call.1} parent=5 // pred_fallthru
        _
      %p8900 = scmp.le.s32.totalorder 2, %s17
      // Predicated region
      $region57: #{tpu_custom_call.1} parent=5 // pred_check
        %p8901 = pneg %p8900
      $region58: #{tpu_custom_call.1} parent=5 // pred_check_branch
        %8903 = sbr.rel (%p8901) target = $region60
      $region59: #{tpu_custom_call.1} parent=5 // pred_region
        %s8904 = ssub.s32 %s17, 2
        // Predicated region
        $region61: #{tpu_custom_call.1} parent=59 // pred_check
          %p8905 = pneg %p212
        $region62: #{tpu_custom_call.1} parent=59 // pred_check_branch
          %8907 = sbr.rel (%p8905) target = $region64
        $region63: #{tpu_custom_call.1} parent=59 // pred_region
          %s8908 = sand.u32 %s197, 1
          %s8909 = scalar_lea.sflag [#allocation5], %s8908
          %s8910 = sand.u32 %s197, 1
          %s8911 = smul.addr %s8910, 256
          %s8912 = scalar_lea.vmem [#allocation6], %s8911
          %8914 = dma.done %s8909, 4096
        $region64: #{tpu_custom_call.1} parent=59 // pred_fallthru
          _
      $region60: #{tpu_custom_call.1} parent=5 // pred_fallthru
        _
    $region6: #{tpu_custom_call.1} parent=1 // loop_footer
      %s21 = sadd.s32 1, %s17
    $region7: #{tpu_custom_call.1} parent=1 // loop_footer_branch
      %16 = sbr.rel target = $region3
    $region8: #{tpu_custom_call.1} parent=1 // loop_exit
      _
    %8915 = vsyncpa [#allocation4], 1
    %s8916 = scalar_lea.sflag [#allocation4], 1
    %8917 = vsyncpa %s8916, 1
    %8918 = vsyncpa [#allocation5], 1
    %s8919 = scalar_lea.sflag [#allocation5], 1
    %8920 = vsyncpa %s8919, 1

</llo_original>
